<compile_context>
chip_gen: v6e
topology: v6e:2x2x1
jax: 0.10.0
libtpu: 0.0.40
codegen_flags: <defaults>
</compile_context>

<pallas_src>
import functools
import math

import jax
import jax.numpy as jnp
from jax.experimental import pallas as pl
from jax.experimental.pallas import tpu as pltpu


# ----------------------------- helpers -------------------------------------

def _round_up(x, m):
    return ((x + m - 1) // m) * m


def _pick_tile(dim, target, aligns=(256, 128)):
    """Largest tile <= target that divides `dim`, preferring the alignments
    in `aligns` (falls back to the full dim when no aligned divisor exists)."""
    if dim <= target:
        return dim
    for align in aligns:
        d = (target // align) * align
        while d >= align:
            if dim % d == 0:
                return d
            d -= align
    return dim


_NEG_BIG = -1e30
_VMEM_LIMIT = 48 * 1024 * 1024   # safe on v5e/v6e (128 MiB) and v7x (64 MiB)


# ----------------------------- layernorm -----------------------------------

def _layernorm_kernel(x_ref, g_ref, b_ref, o_ref):
    x = x_ref[...].astype(jnp.float32)
    mean = jnp.mean(x, axis=-1, keepdims=True)
    var = jnp.mean(jnp.square(x - mean), axis=-1, keepdims=True)
    y = (x - mean) * jax.lax.rsqrt(var + 1e-5)
    o_ref[...] = (y * g_ref[...] + b_ref[...]).astype(o_ref.dtype)


def pallas_layernorm(x, g, b, *, block_rows=256):
    T, D = x.shape
    tr = _pick_tile(T, block_rows, aligns=(16, 8))
    return pl.pallas_call(
        _layernorm_kernel,
        out_shape=jax.ShapeDtypeStruct((T, D), x.dtype),
        grid=(T // tr,),
        in_specs=[pl.BlockSpec((tr, D), lambda i: (i, 0)),
                  pl.BlockSpec((1, D), lambda i: (0, 0)),
                  pl.BlockSpec((1, D), lambda i: (0, 0))],
        out_specs=pl.BlockSpec((tr, D), lambda i: (i, 0)),
        compiler_params=pltpu.CompilerParams(
            dimension_semantics=("parallel",)),
    )(x, g.reshape(1, D), b.reshape(1, D))


# ------------------- resident-activation matmul (+ fused epilogue) ----------

def _matmul_kernel(*refs, activation, has_bias, has_residual, contract_last):
    x_ref, w_ref = refs[0], refs[1]
    pos = 2
    b_ref = r_ref = None
    if has_bias:
        b_ref = refs[pos]
        pos += 1
    if has_residual:
        r_ref = refs[pos]
        pos += 1
    o_ref = refs[pos]

    if contract_last:
        # x[T,K] @ w[tn,K]^T expressed via contracting dims -> no transpose.
        out = jax.lax.dot_general(
            x_ref[...], w_ref[...], (((1,), (1,)), ((), ())),
            preferred_element_type=jnp.float32)
    else:
        out = jnp.dot(x_ref[...], w_ref[...],
                      preferred_element_type=jnp.float32)

    if has_bias:
        out = out + b_ref[...].astype(jnp.float32)
    if activation == "gelu":
        # GPT-2 "gelu_new" (tanh approximation), kept in f32 (v5e-safe).
        out = 0.5 * out * (1.0 + jnp.tanh(
            0.7978845608028654 * (out + 0.044715 * out * out * out)))
    if has_residual:
        out = out + r_ref[...].astype(jnp.float32)
    o_ref[...] = out.astype(o_ref.dtype)


def pallas_matmul(x, w, bias=None, residual=None, *, activation="none",
                  transpose_w=False, out_dtype=None, out_dims=None, bn=512):
    """out = act(x @ w (+ bias)) (+ residual).

    The whole x [T, K] stays resident in VMEM (single block, full-K
    contraction); the weight streams from HBM exactly once, tiled over its
    output dimension (grid = (N//tn,), "parallel" for megacore).

    out_dims=(rows, cols) may be smaller than (T, N); the edge output blocks
    are then partially out of bounds and masked on store (used by the LM
    head to emit exactly [T, vocab] without a post-kernel slice copy).
    """
    T, K = x.shape
    if transpose_w:
        N, Kw = w.shape          # w is [N, K] (e.g. the embedding table)
    else:
        Kw, N = w.shape          # w is [K, N]
    assert Kw == K
    tn = _pick_tile(N, bn)
    assert N % tn == 0
    out_rows, out_cols = (T, N) if out_dims is None else out_dims

    in_specs = [pl.BlockSpec((T, K), lambda j: (0, 0))]   # resident activation
    args = [x]
    if transpose_w:
        in_specs.append(pl.BlockSpec((tn, K), lambda j: (j, 0)))
    else:
        in_specs.append(pl.BlockSpec((K, tn), lambda j: (0, j)))
    args.append(w)
    if bias is not None:
        in_specs.append(pl.BlockSpec((1, tn), lambda j: (0, j)))
        args.append(bias.reshape(1, N).astype(jnp.float32))
    if residual is not None:
        in_specs.append(pl.BlockSpec((T, tn), lambda j: (0, j)))
        args.append(residual)

    kern = functools.partial(
        _matmul_kernel, activation=activation,
        has_bias=bias is not None, has_residual=residual is not None,
        contract_last=transpose_w)

    out_dtype = x.dtype if out_dtype is None else out_dtype
    return pl.pallas_call(
        kern,
        out_shape=jax.ShapeDtypeStruct((out_rows, out_cols), out_dtype),
        grid=(N // tn,),
        in_specs=in_specs,
        out_specs=pl.BlockSpec((T, tn), lambda j: (0, j)),
        compiler_params=pltpu.CompilerParams(
            dimension_semantics=("parallel",),
            vmem_limit_bytes=_VMEM_LIMIT),
    )(*args)


# ------------------- flash causal attention (triangular grid) ---------------

def _flash_attn_kernel(qi_ref, ki_ref, q_ref, k_ref, v_ref, o_ref,
                       m_sc, l_sc, acc_sc, *, scale, blk):
    t = pl.program_id(1)
    qi = qi_ref[t]
    ki = ki_ref[t]

    @pl.when(ki == 0)
    def _():
        m_sc[...] = jnp.full_like(m_sc, _NEG_BIG)
        l_sc[...] = jnp.zeros_like(l_sc)
        acc_sc[...] = jnp.zeros_like(acc_sc)

    # Scale q once (tq*Dh muls) instead of scaling the [tq,tk] score matrix.
    q = (q_ref[0, 0].astype(jnp.float32) * scale).astype(q_ref.dtype)
    k = k_ref[0, 0]
    s = jax.lax.dot_general(
        q, k, (((1,), (1,)), ((), ())), preferred_element_type=jnp.float32)
    row = qi * blk + jax.lax.broadcasted_iota(jnp.int32, (blk, blk), 0)
    col = ki * blk + jax.lax.broadcasted_iota(jnp.int32, (blk, blk), 1)
    s = jnp.where(col <= row, s, _NEG_BIG)

    # Online softmax update.  KV block ki=0 is always visited first and has an
    # unmasked column for every query row, so m becomes finite immediately.
    m_prev = m_sc[...]
    m_new = jnp.maximum(m_prev, jnp.max(s, axis=-1, keepdims=True))
    alpha = jnp.exp(m_prev - m_new)
    p = jnp.exp(s - m_new)
    l_sc[...] = alpha * l_sc[...] + jnp.sum(p, axis=-1, keepdims=True)
    acc_sc[...] = alpha * acc_sc[...] + jnp.dot(
        p.astype(v_ref.dtype), v_ref[0, 0], preferred_element_type=jnp.float32)
    m_sc[...] = m_new

    # With tq == tk the last causally-relevant KV block for qi is ki == qi.
    @pl.when(ki == qi)
    def _():
        o_ref[0] = (acc_sc[...] *
                    pl.reciprocal(l_sc[...], approx=False)).astype(o_ref.dtype)


def pallas_causal_attention(qkv, *, block=256):
    """qkv: [3, H, Tp, Dh] (q/k/v stacked).  Returns [H, Tp, Dh].

    Only the lower-triangular (q_block, kv_block) pairs are enumerated via
    scalar-prefetched block-index maps, so no grid step is spent on fully
    masked blocks."""
    _, H, Tp, Dh = qkv.shape
    blk = _pick_tile(Tp, block, aligns=(16, 8))
    n = Tp // blk
    pairs = [(qi, ki) for qi in range(n) for ki in range(qi + 1)]
    qi_map = jnp.asarray([p[0] for p in pairs], jnp.int32)
    ki_map = jnp.asarray([p[1] for p in pairs], jnp.int32)
    scale = 1.0 / math.sqrt(Dh)
    kern = functools.partial(_flash_attn_kernel, scale=scale, blk=blk)

    grid_spec = pltpu.PrefetchScalarGridSpec(
        num_scalar_prefetch=2,
        grid=(H, len(pairs)),
        in_specs=[
            pl.BlockSpec((1, 1, blk, Dh),
                         lambda h, t, qi_m, ki_m: (0, h, qi_m[t], 0)),
            pl.BlockSpec((1, 1, blk, Dh),
                         lambda h, t, qi_m, ki_m: (1, h, ki_m[t], 0)),
            pl.BlockSpec((1, 1, blk, Dh),
                         lambda h, t, qi_m, ki_m: (2, h, ki_m[t], 0)),
        ],
        out_specs=pl.BlockSpec((1, blk, Dh),
                               lambda h, t, qi_m, ki_m: (h, qi_m[t], 0)),
        scratch_shapes=[pltpu.VMEM((blk, 1), jnp.float32),
                        pltpu.VMEM((blk, 1), jnp.float32),
                        pltpu.VMEM((blk, Dh), jnp.float32)])

    return pl.pallas_call(
        kern,
        out_shape=jax.ShapeDtypeStruct((H, Tp, Dh), qkv.dtype),
        grid_spec=grid_spec,
        compiler_params=pltpu.CompilerParams(
            dimension_semantics=("parallel", "arbitrary")),
    )(qi_map, ki_map, qkv, qkv, qkv)


# ----------------------------- GPT-2 model ----------------------------------

_LM_HEAD_TN = 512   # vocab tile of the LM head (vocab padded to a multiple)


def init_gpt2_params(key, *, vocab, n_pos, n_embd, n_layer):
    keys = jax.random.split(key, 2 + 4 * n_layer)
    std = 0.02
    v_pad = _round_up(vocab, _LM_HEAD_TN)
    wte = jax.random.normal(keys[0], (v_pad, n_embd), jnp.float32) * std
    if v_pad > vocab:
        wte = wte.at[vocab:].set(0.0)     # padded vocab rows -> zero logits
    params = {
        "wte": wte.astype(jnp.bfloat16),  # [V_pad, D]; also the tied LM head
        "wpe": (jax.random.normal(keys[1], (n_pos, n_embd), jnp.float32)
                * std).astype(jnp.bfloat16),
        "lnf_g": jnp.ones((n_embd,), jnp.float32),
        "lnf_b": jnp.zeros((n_embd,), jnp.float32),
        "layers": [],
    }
    for l in range(n_layer):
        k = keys[2 + 4 * l: 2 + 4 * (l + 1)]
        params["layers"].append({
            "ln1_g": jnp.ones((n_embd,), jnp.float32),
            "ln1_b": jnp.zeros((n_embd,), jnp.float32),
            "attn_w": (jax.random.normal(k[0], (n_embd, 3 * n_embd)) * std
                       ).astype(jnp.bfloat16),
            "attn_b": jnp.zeros((3 * n_embd,), jnp.float32),
            "proj_w": (jax.random.normal(k[1], (n_embd, n_embd)) * std
                       ).astype(jnp.bfloat16),
            "proj_b": jnp.zeros((n_embd,), jnp.float32),
            "ln2_g": jnp.ones((n_embd,), jnp.float32),
            "ln2_b": jnp.zeros((n_embd,), jnp.float32),
            "fc_w": (jax.random.normal(k[2], (n_embd, 4 * n_embd)) * std
                     ).astype(jnp.bfloat16),
            "fc_b": jnp.zeros((4 * n_embd,), jnp.float32),
            "mlp_proj_w": (jax.random.normal(k[3], (4 * n_embd, n_embd)) * std
                           ).astype(jnp.bfloat16),
            "mlp_proj_b": jnp.zeros((n_embd,), jnp.float32),
        })
    return params


def gpt2_logits(tokens, params, *, n_head, vocab):
    # tokens: [1, T] int32
    T = tokens.shape[-1]
    D = params["wte"].shape[-1]
    Dh = D // n_head

    # Pad the sequence so all tiles are (8,128)-aligned; pads sit at the end,
    # are causally invisible to real positions, and are masked off by the LM
    # head's bounded output store.
    Tp = _round_up(T, 128)
    assert params["wpe"].shape[0] >= Tp
    tokens_p = jnp.pad(tokens, ((0, 0), (0, Tp - T))) if Tp > T else tokens

    # Embedding lookup (plain-JAX glue), activations in bf16.
    h = (jnp.take(params["wte"], tokens_p[0], axis=0)
         + params["wpe"][:Tp]).astype(jnp.bfloat16)

    for lp in params["layers"]:
        # ---- attention block ----
        x = pallas_layernorm(h, lp["ln1_g"], lp["ln1_b"])
        qkv = pallas_matmul(x, lp["attn_w"], lp["attn_b"])          # [Tp, 3D]
        # TODO(synk): the head split/merge still goes through one XLA
        # transpose each way; it could be folded into the attention
        # BlockSpecs (2 heads per 128-lane block) for a lane-dense layout.
        qkv4 = qkv.reshape(Tp, 3, n_head, Dh).transpose(1, 2, 0, 3)  # [3,H,Tp,Dh]
        a = pallas_causal_attention(qkv4)                            # [H,Tp,Dh]
        a = a.transpose(1, 0, 2).reshape(Tp, D)
        h = pallas_matmul(a, lp["proj_w"], lp["proj_b"], residual=h)

        # ---- MLP block ----
        x = pallas_layernorm(h, lp["ln2_g"], lp["ln2_b"])
        m = pallas_matmul(x, lp["fc_w"], lp["fc_b"], activation="gelu")
        h = pallas_matmul(m, lp["mlp_proj_w"], lp["mlp_proj_b"], residual=h)

    hf = pallas_layernorm(h, params["lnf_g"], params["lnf_b"])
    # LM head: tied to the (padded) wte, contracted over the last dims so the
    # transposed table is never materialized; the activation stays resident
    # in VMEM, the weight streams once, and the kernel writes exactly
    # [T, vocab] (edge blocks masked) -> no post-kernel slice copy.
    logits = pallas_matmul(hf, params["wte"], transpose_w=True,
                           out_dtype=jnp.float32, out_dims=(T, vocab),
                           bn=_LM_HEAD_TN)                           # [T, V]
    return logits[None]                                              # [1, T, V]


# ----------------------------- main ------------------------------------------

if __name__ == "__main__":
    # Small GPT-2-shaped config (real module: gpt2, bs=1, seq=1023; scaled
    # down).  Non-multiple SEQ / VOCAB exercise the padding / edge-masking
    # paths the real shapes (1023, 50257) need.
    VOCAB, N_POS, N_EMBD, N_HEAD, N_LAYER, SEQ = 500, 256, 128, 4, 2, 200

    key = jax.random.PRNGKey(0)
    pkey, tkey = jax.random.split(key)
    params = init_gpt2_params(pkey, vocab=VOCAB, n_pos=N_POS,
                              n_embd=N_EMBD, n_layer=N_LAYER)
    tokens = jax.random.randint(tkey, (1, SEQ), 0, VOCAB, dtype=jnp.int32)

    fwd = jax.jit(functools.partial(gpt2_logits, n_head=N_HEAD, vocab=VOCAB))
    logits = jax.block_until_ready(fwd(tokens, params))

    assert logits.shape == (1, SEQ, VOCAB)
    assert bool(jnp.all(jnp.isfinite(logits)))
    print("KERNEL_OK")
</pallas_src>

<mosaic_0001>
module attributes {stable_mosaic.version = 11 : i64} {
  func.func @_layernorm_kernel(%arg0: i32, %arg1: memref<256x128xbf16, #tpu.memory_space<vmem>>, %arg2: memref<1x128xf32, #tpu.memory_space<vmem>>, %arg3: memref<1x128xf32, #tpu.memory_space<vmem>>, %arg4: memref<256x128xbf16, #tpu.memory_space<vmem>>) attributes {dimension_semantics = [#tpu.dimension_semantics<parallel>], iteration_bounds = array<i64: 1>, scalar_prefetch = 0 : i64, scratch_operands = 0 : i64, tpu.core_type = #tpu.core_type<tc>, window_params = [{transform_indices = @transform_0, window_bounds = array<i64: 256, 128>}, {pipeline_mode = #tpu.pipeline_mode<synchronous>, transform_indices = @transform_1, window_bounds = array<i64: 1, 128>}, {pipeline_mode = #tpu.pipeline_mode<synchronous>, transform_indices = @transform_2, window_bounds = array<i64: 1, 128>}, {transform_indices = @transform_3, window_bounds = array<i64: 256, 128>}]} {
    %c0 = arith.constant 0 : index
    %c0_0 = arith.constant 0 : index
    %0 = vector.load %arg1[%c0, %c0_0] : memref<256x128xbf16, #tpu.memory_space<vmem>>, vector<256x128xbf16>
    %1 = arith.extf %0 : vector<256x128xbf16> to vector<256x128xf32>
    %cst = arith.constant dense<0.000000e+00> : vector<256xf32>
    %2 = vector.multi_reduction <add>, %1, %cst [1] : vector<256x128xf32> to vector<256xf32>
    %3 = vector.shape_cast %2 : vector<256xf32> to vector<256x1xf32>
    %cst_1 = arith.constant 1.280000e+02 : f32
    %4 = vector.broadcast %cst_1 : f32 to vector<256x1xf32>
    %5 = arith.divf %3, %4 : vector<256x1xf32>
    %6 = vector.broadcast %5 : vector<256x1xf32> to vector<256x128xf32>
    %7 = arith.subf %1, %6 : vector<256x128xf32>
    %8 = arith.mulf %7, %7 : vector<256x128xf32>
    %cst_2 = arith.constant dense<0.000000e+00> : vector<256xf32>
    %9 = vector.multi_reduction <add>, %8, %cst_2 [1] : vector<256x128xf32> to vector<256xf32>
    %10 = vector.shape_cast %9 : vector<256xf32> to vector<256x1xf32>
    %cst_3 = arith.constant 1.280000e+02 : f32
    %11 = vector.broadcast %cst_3 : f32 to vector<256x1xf32>
    %12 = arith.divf %10, %11 : vector<256x1xf32>
    %13 = vector.broadcast %5 : vector<256x1xf32> to vector<256x128xf32>
    %14 = arith.subf %1, %13 : vector<256x128xf32>
    %cst_4 = arith.constant 9.99999974E-6 : f32
    %15 = vector.broadcast %cst_4 : f32 to vector<256x1xf32>
    %16 = arith.addf %12, %15 : vector<256x1xf32>
    %17 = math.rsqrt %16 : vector<256x1xf32>
    %18 = vector.broadcast %17 : vector<256x1xf32> to vector<256x128xf32>
    %19 = arith.mulf %14, %18 : vector<256x128xf32>
    %c0_5 = arith.constant 0 : index
    %c0_6 = arith.constant 0 : index
    %20 = vector.load %arg2[%c0_5, %c0_6] : memref<1x128xf32, #tpu.memory_space<vmem>>, vector<1x128xf32>
    %21 = vector.broadcast %20 : vector<1x128xf32> to vector<256x128xf32>
    %22 = arith.mulf %19, %21 : vector<256x128xf32>
    %c0_7 = arith.constant 0 : index
    %c0_8 = arith.constant 0 : index
    %23 = vector.load %arg3[%c0_7, %c0_8] : memref<1x128xf32, #tpu.memory_space<vmem>>, vector<1x128xf32>
    %24 = vector.broadcast %23 : vector<1x128xf32> to vector<256x128xf32>
    %25 = arith.addf %22, %24 : vector<256x128xf32>
    %26 = arith.truncf %25 : vector<256x128xf32> to vector<256x128xbf16>
    %c0_9 = arith.constant 0 : index
    %c0_10 = arith.constant 0 : index
    %27 = vector.load %arg4[%c0_9, %c0_10] : memref<256x128xbf16, #tpu.memory_space<vmem>>, vector<256x128xbf16>
    tpu.vector_store %arg4[%c0_9, %c0_10], %26 {strides = array<i32>} : memref<256x128xbf16, #tpu.memory_space<vmem>>, vector<256x128xbf16>,
    return
  }
  func.func @transform_0(%arg0: i32) -> (i32, i32) {
    %c0_i32 = arith.constant 0 : i32
    %c0_i32_0 = arith.constant 0 : i32
    return %arg0, %c0_i32 : i32, i32
  }
  func.func @transform_1(%arg0: i32) -> (i32, i32) {
    %c0_i32 = arith.constant 0 : i32
    %c0_i32_0 = arith.constant 0 : i32
    %c0_i32_1 = arith.constant 0 : i32
    return %c0_i32, %c0_i32_0 : i32, i32
  }
  func.func @transform_2(%arg0: i32) -> (i32, i32) {
    %c0_i32 = arith.constant 0 : i32
    %c0_i32_0 = arith.constant 0 : i32
    %c0_i32_1 = arith.constant 0 : i32
    return %c0_i32, %c0_i32_0 : i32, i32
  }
  func.func @transform_3(%arg0: i32) -> (i32, i32) {
    %c0_i32 = arith.constant 0 : i32
    %c0_i32_0 = arith.constant 0 : i32
    return %arg0, %c0_i32 : i32, i32
  }
}

module attributes {stable_mosaic.version = 11 : i64} {
  func.func @_matmul_kernel(%arg0: i32, %arg1: memref<256x128xbf16, #tpu.memory_space<vmem>>, %arg2: memref<128x384xbf16, #tpu.memory_space<vmem>>, %arg3: memref<1x384xf32, #tpu.memory_space<vmem>>, %arg4: memref<256x384xbf16, #tpu.memory_space<vmem>>) attributes {dimension_semantics = [#tpu.dimension_semantics<parallel>], iteration_bounds = array<i64: 1>, scalar_prefetch = 0 : i64, scratch_operands = 0 : i64, tpu.core_type = #tpu.core_type<tc>, window_params = [{pipeline_mode = #tpu.pipeline_mode<synchronous>, transform_indices = @transform_0, window_bounds = array<i64: 256, 128>}, {transform_indices = @transform_1, window_bounds = array<i64: 128, 384>}, {transform_indices = @transform_2, window_bounds = array<i64: 1, 384>}, {transform_indices = @transform_3, window_bounds = array<i64: 256, 384>}]} {
    %c0 = arith.constant 0 : index
    %c0_0 = arith.constant 0 : index
    %0 = vector.load %arg1[%c0, %c0_0] : memref<256x128xbf16, #tpu.memory_space<vmem>>, vector<256x128xbf16>
    %c0_1 = arith.constant 0 : index
    %c0_2 = arith.constant 0 : index
    %1 = vector.load %arg2[%c0_1, %c0_2] : memref<128x384xbf16, #tpu.memory_space<vmem>>, vector<128x384xbf16>
    %cst = arith.constant dense<0.000000e+00> : vector<256x384xf32>
    %2 = tpu.matmul %0, %1, %cst {dimension_numbers = #tpu.dot_dimension_numbers<[1], [0], [0], [1], [0, 0, 1, 1], [], []>} : vector<256x128xbf16>, vector<128x384xbf16>, vector<256x384xf32> -> vector<256x384xf32>
    %c0_3 = arith.constant 0 : index
    %c0_4 = arith.constant 0 : index
    %3 = vector.load %arg3[%c0_3, %c0_4] : memref<1x384xf32, #tpu.memory_space<vmem>>, vector<1x384xf32>
    %4 = vector.broadcast %3 : vector<1x384xf32> to vector<256x384xf32>
    %5 = arith.addf %2, %4 : vector<256x384xf32>
    %6 = arith.truncf %5 : vector<256x384xf32> to vector<256x384xbf16>
    %c0_5 = arith.constant 0 : index
    %c0_6 = arith.constant 0 : index
    %7 = vector.load %arg4[%c0_5, %c0_6] : memref<256x384xbf16, #tpu.memory_space<vmem>>, vector<256x384xbf16>
    tpu.vector_store %arg4[%c0_5, %c0_6], %6 {strides = array<i32>} : memref<256x384xbf16, #tpu.memory_space<vmem>>, vector<256x384xbf16>,
    return
  }
  func.func @transform_0(%arg0: i32) -> (i32, i32) {
    %c0_i32 = arith.constant 0 : i32
    %c0_i32_0 = arith.constant 0 : i32
    %c0_i32_1 = arith.constant 0 : i32
    return %c0_i32, %c0_i32_0 : i32, i32
  }
  func.func @transform_1(%arg0: i32) -> (i32, i32) {
    %c0_i32 = arith.constant 0 : i32
    %c0_i32_0 = arith.constant 0 : i32
    return %c0_i32, %arg0 : i32, i32
  }
  func.func @transform_2(%arg0: i32) -> (i32, i32) {
    %c0_i32 = arith.constant 0 : i32
    %c0_i32_0 = arith.constant 0 : i32
    return %c0_i32, %arg0 : i32, i32
  }
  func.func @transform_3(%arg0: i32) -> (i32, i32) {
    %c0_i32 = arith.constant 0 : i32
    %c0_i32_0 = arith.constant 0 : i32
    return %c0_i32, %arg0 : i32, i32
  }
}

module attributes {stable_mosaic.version = 11 : i64} {
  func.func @_flash_attn_kernel(%arg0: i32, %arg1: i32, %arg2: memref<1xi32, #tpu.memory_space<smem>>, %arg3: memref<1xi32, #tpu.memory_space<smem>>, %arg4: memref<1x1x256x32xbf16, #tpu.memory_space<vmem>>, %arg5: memref<1x1x256x32xbf16, #tpu.memory_space<vmem>>, %arg6: memref<1x1x256x32xbf16, #tpu.memory_space<vmem>>, %arg7: memref<1x256x32xbf16, #tpu.memory_space<vmem>>, %arg8: memref<256x1xf32, #tpu.memory_space<vmem>>, %arg9: memref<256x1xf32, #tpu.memory_space<vmem>>, %arg10: memref<256x32xf32, #tpu.memory_space<vmem>>) attributes {dimension_semantics = [#tpu.dimension_semantics<parallel>, #tpu.dimension_semantics<arbitrary>], iteration_bounds = array<i64: 4, 1>, scalar_prefetch = 2 : i64, scratch_operands = 3 : i64, tpu.core_type = #tpu.core_type<tc>, window_params = [{transform_indices = @transform_0, window_bounds = array<i64: 1, 1, 256, 32>}, {transform_indices = @transform_1, window_bounds = array<i64: 1, 1, 256, 32>}, {transform_indices = @transform_2, window_bounds = array<i64: 1, 1, 256, 32>}, {transform_indices = @transform_3, window_bounds = array<i64: 1, 256, 32>}]} {
    %0 = arith.index_cast %arg1 : i32 to index
    %1 = memref.load %arg2[%0] : memref<1xi32, #tpu.memory_space<smem>>
    %2 = arith.index_cast %arg1 : i32 to index
    %3 = memref.load %arg3[%2] : memref<1xi32, #tpu.memory_space<smem>>
    %c0_i32 = arith.constant 0 : i32
    %4 = arith.cmpi eq, %3, %c0_i32 : i32
    %5 = arith.extui %4 : i1 to i32
    %c0_i32_0 = arith.constant 0 : i32
    %6 = arith.cmpi ne, %5, %c0_i32_0 : i32
    scf.if %6 {
      %cst_31 = arith.constant -1.000000e+30 : f32
      %55 = vector.broadcast %cst_31 : f32 to vector<256x1xf32>
      %c0_32 = arith.constant 0 : index
      %c0_33 = arith.constant 0 : index
      %56 = vector.load %arg8[%c0_32, %c0_33] : memref<256x1xf32, #tpu.memory_space<vmem>>, vector<256x1xf32>
      tpu.vector_store %arg8[%c0_32, %c0_33], %55 {strides = array<i32>} : memref<256x1xf32, #tpu.memory_space<vmem>>, vector<256x1xf32>,
      %cst_34 = arith.constant 0.000000e+00 : f32
      %57 = vector.broadcast %cst_34 : f32 to vector<256x1xf32>
      %c0_35 = arith.constant 0 : index
      %c0_36 = arith.constant 0 : index
      %58 = vector.load %arg9[%c0_35, %c0_36] : memref<256x1xf32, #tpu.memory_space<vmem>>, vector<256x1xf32>
      tpu.vector_store %arg9[%c0_35, %c0_36], %57 {strides = array<i32>} : memref<256x1xf32, #tpu.memory_space<vmem>>, vector<256x1xf32>,
      %cst_37 = arith.constant 0.000000e+00 : f32
      %59 = vector.broadcast %cst_37 : f32 to vector<256x32xf32>
      %c0_38 = arith.constant 0 : index
      %c0_39 = arith.constant 0 : index
      %60 = vector.load %arg10[%c0_38, %c0_39] : memref<256x32xf32, #tpu.memory_space<vmem>>, vector<256x32xf32>
      tpu.vector_store %arg10[%c0_38, %c0_39], %59 {strides = array<i32>} : memref<256x32xf32, #tpu.memory_space<vmem>>, vector<256x32xf32>,
    } else {
    }
    %c0 = arith.constant 0 : index
    %c0_1 = arith.constant 0 : index
    %c0_2 = arith.constant 0 : index
    %c0_3 = arith.constant 0 : index
    %7 = vector.load %arg4[%c0, %c0_1, %c0_2, %c0_3] : memref<1x1x256x32xbf16, #tpu.memory_space<vmem>>, vector<1x1x256x32xbf16>
    %8 = vector.shape_cast %7 : vector<1x1x256x32xbf16> to vector<256x32xbf16>
    %9 = arith.extf %8 : vector<256x32xbf16> to vector<256x32xf32>
    %cst = arith.constant 0.176776692 : f32
    %10 = vector.broadcast %cst : f32 to vector<256x32xf32>
    %11 = arith.mulf %9, %10 : vector<256x32xf32>
    %12 = arith.truncf %11 : vector<256x32xf32> to vector<256x32xbf16>
    %c0_4 = arith.constant 0 : index
    %c0_5 = arith.constant 0 : index
    %c0_6 = arith.constant 0 : index
    %c0_7 = arith.constant 0 : index
    %13 = vector.load %arg5[%c0_4, %c0_5, %c0_6, %c0_7] : memref<1x1x256x32xbf16, #tpu.memory_space<vmem>>, vector<1x1x256x32xbf16>
    %14 = vector.shape_cast %13 : vector<1x1x256x32xbf16> to vector<256x32xbf16>
    %cst_8 = arith.constant dense<0.000000e+00> : vector<256x256xf32>
    %15 = tpu.matmul %12, %14, %cst_8 {dimension_numbers = #tpu.dot_dimension_numbers<[1], [1], [0], [0], [0, 0, 1, 0], [], []>} : vector<256x32xbf16>, vector<256x32xbf16>, vector<256x256xf32> -> vector<256x256xf32>
    %c256_i32 = arith.constant 256 : i32
    %16 = arith.muli %1, %c256_i32 : i32
    %17 = tpu.iota {dimensions = array<i32: 0>} : vector<256x256xi32>
    %18 = vector.broadcast %16 : i32 to vector<256x256xi32>
    %19 = arith.addi %18, %17 : vector<256x256xi32>
    %c256_i32_9 = arith.constant 256 : i32
    %20 = arith.muli %3, %c256_i32_9 : i32
    %21 = tpu.iota {dimensions = array<i32: 1>} : vector<256x256xi32>
    %22 = vector.broadcast %20 : i32 to vector<256x256xi32>
    %23 = arith.addi %22, %21 : vector<256x256xi32>
    %24 = arith.cmpi sle, %23, %19 : vector<256x256xi32>
    %cst_10 = arith.constant -1.000000e+30 : f32
    %25 = vector.broadcast %cst_10 : f32 to vector<256x256xf32>
    %26 = arith.select %24, %15, %25 : vector<256x256xi1>, vector<256x256xf32>
    %c0_11 = arith.constant 0 : index
    %c0_12 = arith.constant 0 : index
    %27 = vector.load %arg8[%c0_11, %c0_12] : memref<256x1xf32, #tpu.memory_space<vmem>>, vector<256x1xf32>
    %cst_13 = arith.constant dense<0xFF800000> : vector<256xf32>
    %28 = vector.multi_reduction <maximumf>, %26, %cst_13 [1] : vector<256x256xf32> to vector<256xf32>
    %29 = vector.shape_cast %28 : vector<256xf32> to vector<256x1xf32>
    %30 = arith.maximumf %27, %29 : vector<256x1xf32>
    %31 = arith.subf %27, %30 : vector<256x1xf32>
    %32 = math.exp %31 : vector<256x1xf32>
    %33 = vector.broadcast %30 : vector<256x1xf32> to vector<256x256xf32>
    %34 = arith.subf %26, %33 : vector<256x256xf32>
    %35 = math.exp %34 : vector<256x256xf32>
    %c0_14 = arith.constant 0 : index
    %c0_15 = arith.constant 0 : index
    %36 = vector.load %arg9[%c0_14, %c0_15] : memref<256x1xf32, #tpu.memory_space<vmem>>, vector<256x1xf32>
    %37 = arith.mulf %32, %36 : vector<256x1xf32>
    %cst_16 = arith.constant dense<0.000000e+00> : vector<256xf32>
    %38 = vector.multi_reduction <add>, %35, %cst_16 [1] : vector<256x256xf32> to vector<256xf32>
    %39 = vector.shape_cast %38 : vector<256xf32> to vector<256x1xf32>
    %40 = arith.addf %37, %39 : vector<256x1xf32>
    %c0_17 = arith.constant 0 : index
    %c0_18 = arith.constant 0 : index
    %41 = vector.load %arg9[%c0_17, %c0_18] : memref<256x1xf32, #tpu.memory_space<vmem>>, vector<256x1xf32>
    tpu.vector_store %arg9[%c0_17, %c0_18], %40 {strides = array<i32>} : memref<256x1xf32, #tpu.memory_space<vmem>>, vector<256x1xf32>,
    %c0_19 = arith.constant 0 : index
    %c0_20 = arith.constant 0 : index
    %42 = vector.load %arg10[%c0_19, %c0_20] : memref<256x32xf32, #tpu.memory_space<vmem>>, vector<256x32xf32>
    %43 = vector.broadcast %32 : vector<256x1xf32> to vector<256x32xf32>
    %44 = arith.mulf %43, %42 : vector<256x32xf32>
    %45 = arith.truncf %35 : vector<256x256xf32> to vector<256x256xbf16>
    %c0_21 = arith.constant 0 : index
    %c0_22 = arith.constant 0 : index
    %c0_23 = arith.constant 0 : index
    %c0_24 = arith.constant 0 : index
    %46 = vector.load %arg6[%c0_21, %c0_22, %c0_23, %c0_24] : memref<1x1x256x32xbf16, #tpu.memory_space<vmem>>, vector<1x1x256x32xbf16>
    %47 = vector.shape_cast %46 : vector<1x1x256x32xbf16> to vector<256x32xbf16>
    %cst_25 = arith.constant dense<0.000000e+00> : vector<256x32xf32>
    %48 = tpu.matmul %45, %47, %cst_25 {dimension_numbers = #tpu.dot_dimension_numbers<[1], [0], [0], [1], [0, 0, 1, 1], [], []>} : vector<256x256xbf16>, vector<256x32xbf16>, vector<256x32xf32> -> vector<256x32xf32>
    %49 = arith.addf %44, %48 : vector<256x32xf32>
    %c0_26 = arith.constant 0 : index
    %c0_27 = arith.constant 0 : index
    %50 = vector.load %arg10[%c0_26, %c0_27] : memref<256x32xf32, #tpu.memory_space<vmem>>, vector<256x32xf32>
    tpu.vector_store %arg10[%c0_26, %c0_27], %49 {strides = array<i32>} : memref<256x32xf32, #tpu.memory_space<vmem>>, vector<256x32xf32>,
    %c0_28 = arith.constant 0 : index
    %c0_29 = arith.constant 0 : index
    %51 = vector.load %arg8[%c0_28, %c0_29] : memref<256x1xf32, #tpu.memory_space<vmem>>, vector<256x1xf32>
    tpu.vector_store %arg8[%c0_28, %c0_29], %30 {strides = array<i32>} : memref<256x1xf32, #tpu.memory_space<vmem>>, vector<256x1xf32>,
    %52 = arith.cmpi eq, %3, %1 : i32
    %53 = arith.extui %52 : i1 to i32
    %c0_i32_30 = arith.constant 0 : i32
    %54 = arith.cmpi ne, %53, %c0_i32_30 : i32
    scf.if %54 {
      %c0_31 = arith.constant 0 : index
      %c0_32 = arith.constant 0 : index
      %55 = vector.load %arg10[%c0_31, %c0_32] : memref<256x32xf32, #tpu.memory_space<vmem>>, vector<256x32xf32>
      %c0_33 = arith.constant 0 : index
      %c0_34 = arith.constant 0 : index
      %56 = vector.load %arg9[%c0_33, %c0_34] : memref<256x1xf32, #tpu.memory_space<vmem>>, vector<256x1xf32>
      %57 = tpu.reciprocal %56 : vector<256x1xf32> -> vector<256x1xf32>
      %58 = vector.broadcast %57 : vector<256x1xf32> to vector<256x32xf32>
      %59 = arith.mulf %55, %58 : vector<256x32xf32>
      %60 = arith.truncf %59 : vector<256x32xf32> to vector<256x32xbf16>
      %c0_35 = arith.constant 0 : index
      %c0_36 = arith.constant 0 : index
      %c0_37 = arith.constant 0 : index
      %61 = vector.load %arg7[%c0_35, %c0_36, %c0_37] : memref<1x256x32xbf16, #tpu.memory_space<vmem>>, vector<1x256x32xbf16>
      %62 = vector.shape_cast %61 : vector<1x256x32xbf16> to vector<256x32xbf16>
      %63 = vector.shape_cast %60 : vector<256x32xbf16> to vector<1x256x32xbf16>
      tpu.vector_store %arg7[%c0_35, %c0_36, %c0_37], %63 {strides = array<i32>} : memref<1x256x32xbf16, #tpu.memory_space<vmem>>, vector<1x256x32xbf16>,
    } else {
    }
    return
  }
  func.func @transform_0(%arg0: i32, %arg1: i32, %arg2: memref<1xi32, #tpu.memory_space<smem>>, %arg3: memref<1xi32, #tpu.memory_space<smem>>) -> (i32, i32, i32, i32) {
    %0 = arith.index_cast %arg1 : i32 to index
    %1 = memref.load %arg2[%0] : memref<1xi32, #tpu.memory_space<smem>>
    %c0_i32 = arith.constant 0 : i32
    %c0_i32_0 = arith.constant 0 : i32
    %c0_i32_1 = arith.constant 0 : i32
    return %c0_i32, %arg0, %1, %c0_i32_0 : i32, i32, i32, i32
  }
  func.func @transform_1(%arg0: i32, %arg1: i32, %arg2: memref<1xi32, #tpu.memory_space<smem>>, %arg3: memref<1xi32, #tpu.memory_space<smem>>) -> (i32, i32, i32, i32) {
    %0 = arith.index_cast %arg1 : i32 to index
    %1 = memref.load %arg3[%0] : memref<1xi32, #tpu.memory_space<smem>>
    %c1_i32 = arith.constant 1 : i32
    %c0_i32 = arith.constant 0 : i32
    %c0_i32_0 = arith.constant 0 : i32
    return %c1_i32, %arg0, %1, %c0_i32 : i32, i32, i32, i32
  }
  func.func @transform_2(%arg0: i32, %arg1: i32, %arg2: memref<1xi32, #tpu.memory_space<smem>>, %arg3: memref<1xi32, #tpu.memory_space<smem>>) -> (i32, i32, i32, i32) {
    %0 = arith.index_cast %arg1 : i32 to index
    %1 = memref.load %arg3[%0] : memref<1xi32, #tpu.memory_space<smem>>
    %c2_i32 = arith.constant 2 : i32
    %c0_i32 = arith.constant 0 : i32
    %c0_i32_0 = arith.constant 0 : i32
    return %c2_i32, %arg0, %1, %c0_i32 : i32, i32, i32, i32
  }
  func.func @transform_3(%arg0: i32, %arg1: i32, %arg2: memref<1xi32, #tpu.memory_space<smem>>, %arg3: memref<1xi32, #tpu.memory_space<smem>>) -> (i32, i32, i32) {
    %0 = arith.index_cast %arg1 : i32 to index
    %1 = memref.load %arg2[%0] : memref<1xi32, #tpu.memory_space<smem>>
    %c0_i32 = arith.constant 0 : i32
    %c0_i32_0 = arith.constant 0 : i32
    return %arg0, %1, %c0_i32 : i32, i32, i32
  }
}

module attributes {stable_mosaic.version = 11 : i64} {
  func.func @_matmul_kernel(%arg0: i32, %arg1: memref<256x128xbf16, #tpu.memory_space<vmem>>, %arg2: memref<128x128xbf16, #tpu.memory_space<vmem>>, %arg3: memref<1x128xf32, #tpu.memory_space<vmem>>, %arg4: memref<256x128xbf16, #tpu.memory_space<vmem>>, %arg5: memref<256x128xbf16, #tpu.memory_space<vmem>>) attributes {dimension_semantics = [#tpu.dimension_semantics<parallel>], iteration_bounds = array<i64: 1>, scalar_prefetch = 0 : i64, scratch_operands = 0 : i64, tpu.core_type = #tpu.core_type<tc>, window_params = [{pipeline_mode = #tpu.pipeline_mode<synchronous>, transform_indices = @transform_0, window_bounds = array<i64: 256, 128>}, {transform_indices = @transform_1, window_bounds = array<i64: 128, 128>}, {transform_indices = @transform_2, window_bounds = array<i64: 1, 128>}, {transform_indices = @transform_3, window_bounds = array<i64: 256, 128>}, {transform_indices = @transform_4, window_bounds = array<i64: 256, 128>}]} {
    %c0 = arith.constant 0 : index
    %c0_0 = arith.constant 0 : index
    %0 = vector.load %arg1[%c0, %c0_0] : memref<256x128xbf16, #tpu.memory_space<vmem>>, vector<256x128xbf16>
    %c0_1 = arith.constant 0 : index
    %c0_2 = arith.constant 0 : index
    %1 = vector.load %arg2[%c0_1, %c0_2] : memref<128x128xbf16, #tpu.memory_space<vmem>>, vector<128x128xbf16>
    %cst = arith.constant dense<0.000000e+00> : vector<256x128xf32>
    %2 = tpu.matmul %0, %1, %cst {dimension_numbers = #tpu.dot_dimension_numbers<[1], [0], [0], [1], [0, 0, 1, 1], [], []>} : vector<256x128xbf16>, vector<128x128xbf16>, vector<256x128xf32> -> vector<256x128xf32>
    %c0_3 = arith.constant 0 : index
    %c0_4 = arith.constant 0 : index
    %3 = vector.load %arg3[%c0_3, %c0_4] : memref<1x128xf32, #tpu.memory_space<vmem>>, vector<1x128xf32>
    %4 = vector.broadcast %3 : vector<1x128xf32> to vector<256x128xf32>
    %5 = arith.addf %2, %4 : vector<256x128xf32>
    %c0_5 = arith.constant 0 : index
    %c0_6 = arith.constant 0 : index
    %6 = vector.load %arg4[%c0_5, %c0_6] : memref<256x128xbf16, #tpu.memory_space<vmem>>, vector<256x128xbf16>
    %7 = arith.extf %6 : vector<256x128xbf16> to vector<256x128xf32>
    %8 = arith.addf %5, %7 : vector<256x128xf32>
    %9 = arith.truncf %8 : vector<256x128xf32> to vector<256x128xbf16>
    %c0_7 = arith.constant 0 : index
    %c0_8 = arith.constant 0 : index
    %10 = vector.load %arg5[%c0_7, %c0_8] : memref<256x128xbf16, #tpu.memory_space<vmem>>, vector<256x128xbf16>
    tpu.vector_store %arg5[%c0_7, %c0_8], %9 {strides = array<i32>} : memref<256x128xbf16, #tpu.memory_space<vmem>>, vector<256x128xbf16>,
    return
  }
  func.func @transform_0(%arg0: i32) -> (i32, i32) {
    %c0_i32 = arith.constant 0 : i32
    %c0_i32_0 = arith.constant 0 : i32
    %c0_i32_1 = arith.constant 0 : i32
    return %c0_i32, %c0_i32_0 : i32, i32
  }
  func.func @transform_1(%arg0: i32) -> (i32, i32) {
    %c0_i32 = arith.constant 0 : i32
    %c0_i32_0 = arith.constant 0 : i32
    return %c0_i32, %arg0 : i32, i32
  }
  func.func @transform_2(%arg0: i32) -> (i32, i32) {
    %c0_i32 = arith.constant 0 : i32
    %c0_i32_0 = arith.constant 0 : i32
    return %c0_i32, %arg0 : i32, i32
  }
  func.func @transform_3(%arg0: i32) -> (i32, i32) {
    %c0_i32 = arith.constant 0 : i32
    %c0_i32_0 = arith.constant 0 : i32
    return %c0_i32, %arg0 : i32, i32
  }
  func.func @transform_4(%arg0: i32) -> (i32, i32) {
    %c0_i32 = arith.constant 0 : i32
    %c0_i32_0 = arith.constant 0 : i32
    return %c0_i32, %arg0 : i32, i32
  }
}

module attributes {stable_mosaic.version = 11 : i64} {
  func.func @_matmul_kernel(%arg0: i32, %arg1: memref<256x512xbf16, #tpu.memory_space<vmem>>, %arg2: memref<512x128xbf16, #tpu.memory_space<vmem>>, %arg3: memref<1x128xf32, #tpu.memory_space<vmem>>, %arg4: memref<256x128xbf16, #tpu.memory_space<vmem>>, %arg5: memref<256x128xbf16, #tpu.memory_space<vmem>>) attributes {dimension_semantics = [#tpu.dimension_semantics<parallel>], iteration_bounds = array<i64: 1>, scalar_prefetch = 0 : i64, scratch_operands = 0 : i64, tpu.core_type = #tpu.core_type<tc>, window_params = [{pipeline_mode = #tpu.pipeline_mode<synchronous>, transform_indices = @transform_0, window_bounds = array<i64: 256, 512>}, {transform_indices = @transform_1, window_bounds = array<i64: 512, 128>}, {transform_indices = @transform_2, window_bounds = array<i64: 1, 128>}, {transform_indices = @transform_3, window_bounds = array<i64: 256, 128>}, {transform_indices = @transform_4, window_bounds = array<i64: 256, 128>}]} {
    %c0 = arith.constant 0 : index
    %c0_0 = arith.constant 0 : index
    %0 = vector.load %arg1[%c0, %c0_0] : memref<256x512xbf16, #tpu.memory_space<vmem>>, vector<256x512xbf16>
    %c0_1 = arith.constant 0 : index
    %c0_2 = arith.constant 0 : index
    %1 = vector.load %arg2[%c0_1, %c0_2] : memref<512x128xbf16, #tpu.memory_space<vmem>>, vector<512x128xbf16>
    %cst = arith.constant dense<0.000000e+00> : vector<256x128xf32>
    %2 = tpu.matmul %0, %1, %cst {dimension_numbers = #tpu.dot_dimension_numbers<[1], [0], [0], [1], [0, 0, 1, 1], [], []>} : vector<256x512xbf16>, vector<512x128xbf16>, vector<256x128xf32> -> vector<256x128xf32>
    %c0_3 = arith.constant 0 : index
    %c0_4 = arith.constant 0 : index
    %3 = vector.load %arg3[%c0_3, %c0_4] : memref<1x128xf32, #tpu.memory_space<vmem>>, vector<1x128xf32>
    %4 = vector.broadcast %3 : vector<1x128xf32> to vector<256x128xf32>
    %5 = arith.addf %2, %4 : vector<256x128xf32>
    %c0_5 = arith.constant 0 : index
    %c0_6 = arith.constant 0 : index
    %6 = vector.load %arg4[%c0_5, %c0_6] : memref<256x128xbf16, #tpu.memory_space<vmem>>, vector<256x128xbf16>
    %7 = arith.extf %6 : vector<256x128xbf16> to vector<256x128xf32>
    %8 = arith.addf %5, %7 : vector<256x128xf32>
    %9 = arith.truncf %8 : vector<256x128xf32> to vector<256x128xbf16>
    %c0_7 = arith.constant 0 : index
    %c0_8 = arith.constant 0 : index
    %10 = vector.load %arg5[%c0_7, %c0_8] : memref<256x128xbf16, #tpu.memory_space<vmem>>, vector<256x128xbf16>
    tpu.vector_store %arg5[%c0_7, %c0_8], %9 {strides = array<i32>} : memref<256x128xbf16, #tpu.memory_space<vmem>>, vector<256x128xbf16>,
    return
  }
  func.func @transform_0(%arg0: i32) -> (i32, i32) {
    %c0_i32 = arith.constant 0 : i32
    %c0_i32_0 = arith.constant 0 : i32
    %c0_i32_1 = arith.constant 0 : i32
    return %c0_i32, %c0_i32_0 : i32, i32
  }
  func.func @transform_1(%arg0: i32) -> (i32, i32) {
    %c0_i32 = arith.constant 0 : i32
    %c0_i32_0 = arith.constant 0 : i32
    return %c0_i32, %arg0 : i32, i32
  }
  func.func @transform_2(%arg0: i32) -> (i32, i32) {
    %c0_i32 = arith.constant 0 : i32
    %c0_i32_0 = arith.constant 0 : i32
    return %c0_i32, %arg0 : i32, i32
  }
  func.func @transform_3(%arg0: i32) -> (i32, i32) {
    %c0_i32 = arith.constant 0 : i32
    %c0_i32_0 = arith.constant 0 : i32
    return %c0_i32, %arg0 : i32, i32
  }
  func.func @transform_4(%arg0: i32) -> (i32, i32) {
    %c0_i32 = arith.constant 0 : i32
    %c0_i32_0 = arith.constant 0 : i32
    return %c0_i32, %arg0 : i32, i32
  }
}

module attributes {stable_mosaic.version = 11 : i64} {
  func.func @_matmul_kernel(%arg0: i32, %arg1: memref<256x128xbf16, #tpu.memory_space<vmem>>, %arg2: memref<128x512xbf16, #tpu.memory_space<vmem>>, %arg3: memref<1x512xf32, #tpu.memory_space<vmem>>, %arg4: memref<256x512xbf16, #tpu.memory_space<vmem>>) attributes {dimension_semantics = [#tpu.dimension_semantics<parallel>], iteration_bounds = array<i64: 1>, scalar_prefetch = 0 : i64, scratch_operands = 0 : i64, tpu.core_type = #tpu.core_type<tc>, window_params = [{pipeline_mode = #tpu.pipeline_mode<synchronous>, transform_indices = @transform_0, window_bounds = array<i64: 256, 128>}, {transform_indices = @transform_1, window_bounds = array<i64: 128, 512>}, {transform_indices = @transform_2, window_bounds = array<i64: 1, 512>}, {transform_indices = @transform_3, window_bounds = array<i64: 256, 512>}]} {
    %c0 = arith.constant 0 : index
    %c0_0 = arith.constant 0 : index
    %0 = vector.load %arg1[%c0, %c0_0] : memref<256x128xbf16, #tpu.memory_space<vmem>>, vector<256x128xbf16>
    %c0_1 = arith.constant 0 : index
    %c0_2 = arith.constant 0 : index
    %1 = vector.load %arg2[%c0_1, %c0_2] : memref<128x512xbf16, #tpu.memory_space<vmem>>, vector<128x512xbf16>
    %cst = arith.constant dense<0.000000e+00> : vector<256x512xf32>
    %2 = tpu.matmul %0, %1, %cst {dimension_numbers = #tpu.dot_dimension_numbers<[1], [0], [0], [1], [0, 0, 1, 1], [], []>} : vector<256x128xbf16>, vector<128x512xbf16>, vector<256x512xf32> -> vector<256x512xf32>
    %c0_3 = arith.constant 0 : index
    %c0_4 = arith.constant 0 : index
    %3 = vector.load %arg3[%c0_3, %c0_4] : memref<1x512xf32, #tpu.memory_space<vmem>>, vector<1x512xf32>
    %4 = vector.broadcast %3 : vector<1x512xf32> to vector<256x512xf32>
    %5 = arith.addf %2, %4 : vector<256x512xf32>
    %cst_5 = arith.constant 5.000000e-01 : f32
    %6 = vector.broadcast %cst_5 : f32 to vector<256x512xf32>
    %7 = arith.mulf %6, %5 : vector<256x512xf32>
    %cst_6 = arith.constant 4.471500e-02 : f32
    %8 = vector.broadcast %cst_6 : f32 to vector<256x512xf32>
    %9 = arith.mulf %8, %5 : vector<256x512xf32>
    %10 = arith.mulf %9, %5 : vector<256x512xf32>
    %11 = arith.mulf %10, %5 : vector<256x512xf32>
    %12 = arith.addf %5, %11 : vector<256x512xf32>
    %cst_7 = arith.constant 0.797884583 : f32
    %13 = vector.broadcast %cst_7 : f32 to vector<256x512xf32>
    %14 = arith.mulf %13, %12 : vector<256x512xf32>
    %15 = math.tanh %14 : vector<256x512xf32>
    %cst_8 = arith.constant 1.000000e+00 : f32
    %16 = vector.broadcast %cst_8 : f32 to vector<256x512xf32>
    %17 = arith.addf %16, %15 : vector<256x512xf32>
    %18 = arith.mulf %7, %17 : vector<256x512xf32>
    %19 = arith.truncf %18 : vector<256x512xf32> to vector<256x512xbf16>
    %c0_9 = arith.constant 0 : index
    %c0_10 = arith.constant 0 : index
    %20 = vector.load %arg4[%c0_9, %c0_10] : memref<256x512xbf16, #tpu.memory_space<vmem>>, vector<256x512xbf16>
    tpu.vector_store %arg4[%c0_9, %c0_10], %19 {strides = array<i32>} : memref<256x512xbf16, #tpu.memory_space<vmem>>, vector<256x512xbf16>,
    return
  }
  func.func @transform_0(%arg0: i32) -> (i32, i32) {
    %c0_i32 = arith.constant 0 : i32
    %c0_i32_0 = arith.constant 0 : i32
    %c0_i32_1 = arith.constant 0 : i32
    return %c0_i32, %c0_i32_0 : i32, i32
  }
  func.func @transform_1(%arg0: i32) -> (i32, i32) {
    %c0_i32 = arith.constant 0 : i32
    %c0_i32_0 = arith.constant 0 : i32
    return %c0_i32, %arg0 : i32, i32
  }
  func.func @transform_2(%arg0: i32) -> (i32, i32) {
    %c0_i32 = arith.constant 0 : i32
    %c0_i32_0 = arith.constant 0 : i32
    return %c0_i32, %arg0 : i32, i32
  }
  func.func @transform_3(%arg0: i32) -> (i32, i32) {
    %c0_i32 = arith.constant 0 : i32
    %c0_i32_0 = arith.constant 0 : i32
    return %c0_i32, %arg0 : i32, i32
  }
}

module attributes {stable_mosaic.version = 11 : i64} {
  func.func @_matmul_kernel(%arg0: i32, %arg1: memref<256x128xbf16, #tpu.memory_space<vmem>>, %arg2: memref<512x128xbf16, #tpu.memory_space<vmem>>, %arg3: memref<256x512xf32, #tpu.memory_space<vmem>>) attributes {dimension_semantics = [#tpu.dimension_semantics<parallel>], iteration_bounds = array<i64: 1>, scalar_prefetch = 0 : i64, scratch_operands = 0 : i64, tpu.core_type = #tpu.core_type<tc>, window_params = [{pipeline_mode = #tpu.pipeline_mode<synchronous>, transform_indices = @transform_0, window_bounds = array<i64: 256, 128>}, {transform_indices = @transform_1, window_bounds = array<i64: 512, 128>}, {transform_indices = @transform_2, window_bounds = array<i64: 256, 512>}]} {
    %c0 = arith.constant 0 : index
    %c0_0 = arith.constant 0 : index
    %0 = vector.load %arg1[%c0, %c0_0] : memref<256x128xbf16, #tpu.memory_space<vmem>>, vector<256x128xbf16>
    %c0_1 = arith.constant 0 : index
    %c0_2 = arith.constant 0 : index
    %1 = vector.load %arg2[%c0_1, %c0_2] : memref<512x128xbf16, #tpu.memory_space<vmem>>, vector<512x128xbf16>
    %cst = arith.constant dense<0.000000e+00> : vector<256x512xf32>
    %2 = tpu.matmul %0, %1, %cst {dimension_numbers = #tpu.dot_dimension_numbers<[1], [1], [0], [0], [0, 0, 1, 0], [], []>} : vector<256x128xbf16>, vector<512x128xbf16>, vector<256x512xf32> -> vector<256x512xf32>
    %c0_3 = arith.constant 0 : index
    %c0_4 = arith.constant 0 : index
    %3 = vector.load %arg3[%c0_3, %c0_4] : memref<256x512xf32, #tpu.memory_space<vmem>>, vector<256x512xf32>
    tpu.vector_store %arg3[%c0_3, %c0_4], %2 {strides = array<i32>} : memref<256x512xf32, #tpu.memory_space<vmem>>, vector<256x512xf32>,
    return
  }
  func.func @transform_0(%arg0: i32) -> (i32, i32) {
    %c0_i32 = arith.constant 0 : i32
    %c0_i32_0 = arith.constant 0 : i32
    %c0_i32_1 = arith.constant 0 : i32
    return %c0_i32, %c0_i32_0 : i32, i32
  }
  func.func @transform_1(%arg0: i32) -> (i32, i32) {
    %c0_i32 = arith.constant 0 : i32
    %c0_i32_0 = arith.constant 0 : i32
    return %arg0, %c0_i32 : i32, i32
  }
  func.func @transform_2(%arg0: i32) -> (i32, i32) {
    %c0_i32 = arith.constant 0 : i32
    %c0_i32_0 = arith.constant 0 : i32
    return %c0_i32, %arg0 : i32, i32
  }
}

</mosaic_0001>

<llo_original>
// kernel: gpt2_logits.16
$region0: #{gpt2_logits.16}
  #allocation0 [shape = 'u32[]', space=smem, size = 0x4, offset = 0x4, fixed_abs, tag = 'smem constant byte address 0x4 - core index']
  #allocation1 [shape = 'u32[144,128]{1,0:T(1,128)}', space=vmem, size = 0x12000, scoped, tag = 'internal scratch']
  %s0 = inlined_call_operand.vmem [shape: bf16[256,128], index: 0, kind: input, shape index: {}]
  %s1 = inlined_call_operand.vmem [shape: f32[1,128], index: 1, kind: input, shape index: {}]
  %s2 = inlined_call_operand.vmem [shape: f32[1,128], index: 2, kind: input, shape index: {}]
  %s3 = inlined_call_operand.vmem [shape: bf16[256,128], index: 3, kind: output, shape index: {}]
  %s4 = sld [smem:[#allocation0]]
  $region22: #{gpt2_logits.16} parent=0
    _
  %s6 = ssub.s32 1, %s4
  %s7 = scalar_select 0, %s6, %s4
  // Predicated region
  $region2: #{gpt2_logits.16} parent=0 // pred_check
    _
  $region3: #{gpt2_logits.16} parent=0 // pred_check_branch
    %9 = sbr.rel (0) target = $region5
  $region4: #{gpt2_logits.16} parent=0 // pred_region
    _
  $region5: #{gpt2_logits.16} parent=0 // pred_fallthru
    _
  // Predicated region
  $region6: #{gpt2_logits.16} parent=0 // pred_check
    _
  $region7: #{gpt2_logits.16} parent=0 // pred_check_branch
    %11 = sbr.rel (0) target = $region9
  $region8: #{gpt2_logits.16} parent=0 // pred_region
    _
  $region9: #{gpt2_logits.16} parent=0 // pred_fallthru
    _
  // Predicated region
  $region10: #{gpt2_logits.16} parent=0 // pred_check
    _
  $region11: #{gpt2_logits.16} parent=0 // pred_check_branch
    %13 = sbr.rel (0) target = $region13
  $region12: #{gpt2_logits.16} parent=0 // pred_region
    _
  $region13: #{gpt2_logits.16} parent=0 // pred_fallthru
    _
  %v14 = vld [vmem:[%s0] sm:$0xf]
  %v15 = vld [vmem:[%s0 + $0x4] sm:$0xf]
  %v16 = vld [vmem:[%s0 + $0x8] sm:$0xf]
  %v17 = vld [vmem:[%s0 + $0xc] sm:$0xf]
  %v18 = vld [vmem:[%s0 + $0x10] sm:$0xf]
  %v19 = vld [vmem:[%s0 + $0x14] sm:$0xf]
  %v20 = vld [vmem:[%s0 + $0x18] sm:$0xf]
  %v21 = vld [vmem:[%s0 + $0x1c] sm:$0xf]
  %v22 = vld [vmem:[%s0 + $0x20] sm:$0xf]
  %v23 = vld [vmem:[%s0 + $0x24] sm:$0xf]
  %v24 = vld [vmem:[%s0 + $0x28] sm:$0xf]
  %v25 = vld [vmem:[%s0 + $0x2c] sm:$0xf]
  %v26 = vld [vmem:[%s0 + $0x30] sm:$0xf]
  %v27 = vld [vmem:[%s0 + $0x34] sm:$0xf]
  %v28 = vld [vmem:[%s0 + $0x38] sm:$0xf]
  %v29 = vld [vmem:[%s0 + $0x3c] sm:$0xf]
  %v30 = vld [vmem:[%s0 + $0x40] sm:$0xf]
  %v31 = vld [vmem:[%s0 + $0x44] sm:$0xf]
  %v32 = vld [vmem:[%s0 + $0x48] sm:$0xf]
  %v33 = vld [vmem:[%s0 + $0x4c] sm:$0xf]
  %v34 = vld [vmem:[%s0 + $0x50] sm:$0xf]
  %v35 = vld [vmem:[%s0 + $0x54] sm:$0xf]
  %v36 = vld [vmem:[%s0 + $0x58] sm:$0xf]
  %v37 = vld [vmem:[%s0 + $0x5c] sm:$0xf]
  %v38 = vld [vmem:[%s0 + $0x60] sm:$0xf]
  %v39 = vld [vmem:[%s0 + $0x64] sm:$0xf]
  %v40 = vld [vmem:[%s0 + $0x68] sm:$0xf]
  %v41 = vld [vmem:[%s0 + $0x6c] sm:$0xf]
  %v42 = vld [vmem:[%s0 + $0x70] sm:$0xf]
  %v43 = vld [vmem:[%s0 + $0x74] sm:$0xf]
  %v44 = vld [vmem:[%s0 + $0x78] sm:$0xf]
  %v45 = vld [vmem:[%s0 + $0x7c] sm:$0xf]
  %v46 = vunpack.c.l.bf16 %v14
  %v47 = vunpack.c.l.bf16 %v15
  %v48 = vunpack.c.l.bf16 %v16
  %v49 = vunpack.c.l.bf16 %v17
  %v50 = vunpack.c.l.bf16 %v18
  %v51 = vunpack.c.l.bf16 %v19
  %v52 = vunpack.c.l.bf16 %v20
  %v53 = vunpack.c.l.bf16 %v21
  %v54 = vunpack.c.l.bf16 %v22
  %v55 = vunpack.c.l.bf16 %v23
  %v56 = vunpack.c.l.bf16 %v24
  %v57 = vunpack.c.l.bf16 %v25
  %v58 = vunpack.c.l.bf16 %v26
  %v59 = vunpack.c.l.bf16 %v27
  %v60 = vunpack.c.l.bf16 %v28
  %v61 = vunpack.c.l.bf16 %v29
  %v62 = vunpack.c.l.bf16 %v30
  %v63 = vunpack.c.l.bf16 %v31
  %v64 = vunpack.c.l.bf16 %v32
  %v65 = vunpack.c.l.bf16 %v33
  %v66 = vunpack.c.l.bf16 %v34
  %v67 = vunpack.c.l.bf16 %v35
  %v68 = vunpack.c.l.bf16 %v36
  %v69 = vunpack.c.l.bf16 %v37
  %v70 = vunpack.c.l.bf16 %v38
  %v71 = vunpack.c.l.bf16 %v39
  %v72 = vunpack.c.l.bf16 %v40
  %v73 = vunpack.c.l.bf16 %v41
  %v74 = vunpack.c.l.bf16 %v42
  %v75 = vunpack.c.l.bf16 %v43
  %v76 = vunpack.c.l.bf16 %v44
  %v77 = vunpack.c.l.bf16 %v45
  %78 = vadd.xlane.f32.xlu0 %v46
  %v79 = vpop.xlane.xlu0 %78
  %80 = vadd.xlane.f32.xlu0 %v47
  %v81 = vpop.xlane.xlu0 %80
  %82 = vadd.xlane.f32.xlu0 %v48
  %v83 = vpop.xlane.xlu0 %82
  %84 = vadd.xlane.f32.xlu0 %v49
  %v85 = vpop.xlane.xlu0 %84
  %86 = vadd.xlane.f32.xlu0 %v50
  %v87 = vpop.xlane.xlu0 %86
  %88 = vadd.xlane.f32.xlu0 %v51
  %v89 = vpop.xlane.xlu0 %88
  %90 = vadd.xlane.f32.xlu0 %v52
  %v91 = vpop.xlane.xlu0 %90
  %92 = vadd.xlane.f32.xlu0 %v53
  %v93 = vpop.xlane.xlu0 %92
  %94 = vadd.xlane.f32.xlu0 %v54
  %v95 = vpop.xlane.xlu0 %94
  %96 = vadd.xlane.f32.xlu0 %v55
  %v97 = vpop.xlane.xlu0 %96
  %98 = vadd.xlane.f32.xlu0 %v56
  %v99 = vpop.xlane.xlu0 %98
  %100 = vadd.xlane.f32.xlu0 %v57
  %v101 = vpop.xlane.xlu0 %100
  %102 = vadd.xlane.f32.xlu0 %v58
  %v103 = vpop.xlane.xlu0 %102
  %104 = vadd.xlane.f32.xlu0 %v59
  %v105 = vpop.xlane.xlu0 %104
  %106 = vadd.xlane.f32.xlu0 %v60
  %v107 = vpop.xlane.xlu0 %106
  %108 = vadd.xlane.f32.xlu0 %v61
  %v109 = vpop.xlane.xlu0 %108
  %110 = vadd.xlane.f32.xlu0 %v62
  %v111 = vpop.xlane.xlu0 %110
  %112 = vadd.xlane.f32.xlu0 %v63
  %v113 = vpop.xlane.xlu0 %112
  %114 = vadd.xlane.f32.xlu0 %v64
  %v115 = vpop.xlane.xlu0 %114
  %116 = vadd.xlane.f32.xlu0 %v65
  %v117 = vpop.xlane.xlu0 %116
  %118 = vadd.xlane.f32.xlu0 %v66
  %v119 = vpop.xlane.xlu0 %118
  %120 = vadd.xlane.f32.xlu0 %v67
  %v121 = vpop.xlane.xlu0 %120
  %122 = vadd.xlane.f32.xlu0 %v68
  %v123 = vpop.xlane.xlu0 %122
  %124 = vadd.xlane.f32.xlu0 %v69
  %v125 = vpop.xlane.xlu0 %124
  %126 = vadd.xlane.f32.xlu0 %v70
  %v127 = vpop.xlane.xlu0 %126
  %128 = vadd.xlane.f32.xlu0 %v71
  %v129 = vpop.xlane.xlu0 %128
  %130 = vadd.xlane.f32.xlu0 %v72
  %v131 = vpop.xlane.xlu0 %130
  %132 = vadd.xlane.f32.xlu0 %v73
  %v133 = vpop.xlane.xlu0 %132
  %134 = vadd.xlane.f32.xlu0 %v74
  %v135 = vpop.xlane.xlu0 %134
  %136 = vadd.xlane.f32.xlu0 %v75
  %v137 = vpop.xlane.xlu0 %136
  %138 = vadd.xlane.f32.xlu0 %v76
  %v139 = vpop.xlane.xlu0 %138
  %140 = vadd.xlane.f32.xlu0 %v77
  %v141 = vpop.xlane.xlu0 %140
  %v142 = vrcp.pop 128.0
  %v143 = vmul.f32 %v79, %v142
  %v144 = vmul.f32 %v81, %v142
  %v145 = vmul.f32 %v83, %v142
  %v146 = vmul.f32 %v85, %v142
  %v147 = vmul.f32 %v87, %v142
  %v148 = vmul.f32 %v89, %v142
  %v149 = vmul.f32 %v91, %v142
  %v150 = vmul.f32 %v93, %v142
  %v151 = vmul.f32 %v95, %v142
  %v152 = vmul.f32 %v97, %v142
  %v153 = vmul.f32 %v99, %v142
  %v154 = vmul.f32 %v101, %v142
  %v155 = vmul.f32 %v103, %v142
  %v156 = vmul.f32 %v105, %v142
  %v157 = vmul.f32 %v107, %v142
  %v158 = vmul.f32 %v109, %v142
  %v159 = vmul.f32 %v111, %v142
  %v160 = vmul.f32 %v113, %v142
  %v161 = vmul.f32 %v115, %v142
  %v162 = vmul.f32 %v117, %v142
  %v163 = vmul.f32 %v119, %v142
  %v164 = vmul.f32 %v121, %v142
  %v165 = vmul.f32 %v123, %v142
  %v166 = vmul.f32 %v125, %v142
  %v167 = vmul.f32 %v127, %v142
  %v168 = vmul.f32 %v129, %v142
  %v169 = vmul.f32 %v131, %v142
  %v170 = vmul.f32 %v133, %v142
  %v171 = vmul.f32 %v135, %v142
  %v172 = vmul.f32 %v137, %v142
  %v173 = vmul.f32 %v139, %v142
  %v174 = vmul.f32 %v141, %v142
  %v175 = vsub.f32 %v46, %v143
  %v176 = vsub.f32 %v47, %v144
  %v177 = vsub.f32 %v48, %v145
  %v178 = vsub.f32 %v49, %v146
  %v179 = vsub.f32 %v50, %v147
  %v180 = vsub.f32 %v51, %v148
  %v181 = vsub.f32 %v52, %v149
  %v182 = vsub.f32 %v53, %v150
  %v183 = vsub.f32 %v54, %v151
  %v184 = vsub.f32 %v55, %v152
  %v185 = vsub.f32 %v56, %v153
  %v186 = vsub.f32 %v57, %v154
  %v187 = vsub.f32 %v58, %v155
  %v188 = vsub.f32 %v59, %v156
  %v189 = vsub.f32 %v60, %v157
  %v190 = vsub.f32 %v61, %v158
  %v191 = vsub.f32 %v62, %v159
  %v192 = vsub.f32 %v63, %v160
  %v193 = vsub.f32 %v64, %v161
  %v194 = vsub.f32 %v65, %v162
  %v195 = vsub.f32 %v66, %v163
  %v196 = vsub.f32 %v67, %v164
  %v197 = vsub.f32 %v68, %v165
  %v198 = vsub.f32 %v69, %v166
  %v199 = vsub.f32 %v70, %v167
  %v200 = vsub.f32 %v71, %v168
  %v201 = vsub.f32 %v72, %v169
  %v202 = vsub.f32 %v73, %v170
  %v203 = vsub.f32 %v74, %v171
  %v204 = vsub.f32 %v75, %v172
  %v205 = vsub.f32 %v76, %v173
  %v206 = vsub.f32 %v77, %v174
  %v207 = vmul.f32 %v175, %v175
  %v208 = vmul.f32 %v176, %v176
  %v209 = vmul.f32 %v177, %v177
  %v210 = vmul.f32 %v178, %v178
  %v211 = vmul.f32 %v179, %v179
  %v212 = vmul.f32 %v180, %v180
  %v213 = vmul.f32 %v181, %v181
  %v214 = vmul.f32 %v182, %v182
  %v215 = vmul.f32 %v183, %v183
  %v216 = vmul.f32 %v184, %v184
  %v217 = vmul.f32 %v185, %v185
  %v218 = vmul.f32 %v186, %v186
  %v219 = vmul.f32 %v187, %v187
  %v220 = vmul.f32 %v188, %v188
  %v221 = vmul.f32 %v189, %v189
  %v222 = vmul.f32 %v190, %v190
  %v223 = vmul.f32 %v191, %v191
  %v224 = vmul.f32 %v192, %v192
  %v225 = vmul.f32 %v193, %v193
  %v226 = vmul.f32 %v194, %v194
  %v227 = vmul.f32 %v195, %v195
  %v228 = vmul.f32 %v196, %v196
  %v229 = vmul.f32 %v197, %v197
  %v230 = vmul.f32 %v198, %v198
  %v231 = vmul.f32 %v199, %v199
  %v232 = vmul.f32 %v200, %v200
  %v233 = vmul.f32 %v201, %v201
  %v234 = vmul.f32 %v202, %v202
  %v235 = vmul.f32 %v203, %v203
  %v236 = vmul.f32 %v204, %v204
  %v237 = vmul.f32 %v205, %v205
  %v238 = vmul.f32 %v206, %v206
  %239 = vadd.xlane.f32.xlu0 %v207
  %v240 = vpop.xlane.xlu0 %239
  %241 = vadd.xlane.f32.xlu0 %v208
  %v242 = vpop.xlane.xlu0 %241
  %243 = vadd.xlane.f32.xlu0 %v209
  %v244 = vpop.xlane.xlu0 %243
  %245 = vadd.xlane.f32.xlu0 %v210
  %v246 = vpop.xlane.xlu0 %245
  %247 = vadd.xlane.f32.xlu0 %v211
  %v248 = vpop.xlane.xlu0 %247
  %249 = vadd.xlane.f32.xlu0 %v212
  %v250 = vpop.xlane.xlu0 %249
  %251 = vadd.xlane.f32.xlu0 %v213
  %v252 = vpop.xlane.xlu0 %251
  %253 = vadd.xlane.f32.xlu0 %v214
  %v254 = vpop.xlane.xlu0 %253
  %255 = vadd.xlane.f32.xlu0 %v215
  %v256 = vpop.xlane.xlu0 %255
  %257 = vadd.xlane.f32.xlu0 %v216
  %v258 = vpop.xlane.xlu0 %257
  %259 = vadd.xlane.f32.xlu0 %v217
  %v260 = vpop.xlane.xlu0 %259
  %261 = vadd.xlane.f32.xlu0 %v218
  %v262 = vpop.xlane.xlu0 %261
  %263 = vadd.xlane.f32.xlu0 %v219
  %v264 = vpop.xlane.xlu0 %263
  %265 = vadd.xlane.f32.xlu0 %v220
  %v266 = vpop.xlane.xlu0 %265
  %267 = vadd.xlane.f32.xlu0 %v221
  %v268 = vpop.xlane.xlu0 %267
  %269 = vadd.xlane.f32.xlu0 %v222
  %v270 = vpop.xlane.xlu0 %269
  %271 = vadd.xlane.f32.xlu0 %v223
  %v272 = vpop.xlane.xlu0 %271
  %273 = vadd.xlane.f32.xlu0 %v224
  %v274 = vpop.xlane.xlu0 %273
  %275 = vadd.xlane.f32.xlu0 %v225
  %v276 = vpop.xlane.xlu0 %275
  %277 = vadd.xlane.f32.xlu0 %v226
  %v278 = vpop.xlane.xlu0 %277
  %279 = vadd.xlane.f32.xlu0 %v227
  %v280 = vpop.xlane.xlu0 %279
  %281 = vadd.xlane.f32.xlu0 %v228
  %v282 = vpop.xlane.xlu0 %281
  %283 = vadd.xlane.f32.xlu0 %v229
  %v284 = vpop.xlane.xlu0 %283
  %285 = vadd.xlane.f32.xlu0 %v230
  %v286 = vpop.xlane.xlu0 %285
  %287 = vadd.xlane.f32.xlu0 %v231
  %v288 = vpop.xlane.xlu0 %287
  %289 = vadd.xlane.f32.xlu0 %v232
  %v290 = vpop.xlane.xlu0 %289
  %291 = vadd.xlane.f32.xlu0 %v233
  %v292 = vpop.xlane.xlu0 %291
  %293 = vadd.xlane.f32.xlu0 %v234
  %v294 = vpop.xlane.xlu0 %293
  %295 = vadd.xlane.f32.xlu0 %v235
  %v296 = vpop.xlane.xlu0 %295
  %297 = vadd.xlane.f32.xlu0 %v236
  %v298 = vpop.xlane.xlu0 %297
  %299 = vadd.xlane.f32.xlu0 %v237
  %v300 = vpop.xlane.xlu0 %299
  %301 = vadd.xlane.f32.xlu0 %v238
  %v302 = vpop.xlane.xlu0 %301
  %v303 = vmul.f32 %v240, %v142
  %v304 = vmul.f32 %v242, %v142
  %v305 = vmul.f32 %v244, %v142
  %v306 = vmul.f32 %v246, %v142
  %v307 = vmul.f32 %v248, %v142
  %v308 = vmul.f32 %v250, %v142
  %v309 = vmul.f32 %v252, %v142
  %v310 = vmul.f32 %v254, %v142
  %v311 = vmul.f32 %v256, %v142
  %v312 = vmul.f32 %v258, %v142
  %v313 = vmul.f32 %v260, %v142
  %v314 = vmul.f32 %v262, %v142
  %v315 = vmul.f32 %v264, %v142
  %v316 = vmul.f32 %v266, %v142
  %v317 = vmul.f32 %v268, %v142
  %v318 = vmul.f32 %v270, %v142
  %v319 = vmul.f32 %v272, %v142
  %v320 = vmul.f32 %v274, %v142
  %v321 = vmul.f32 %v276, %v142
  %v322 = vmul.f32 %v278, %v142
  %v323 = vmul.f32 %v280, %v142
  %v324 = vmul.f32 %v282, %v142
  %v325 = vmul.f32 %v284, %v142
  %v326 = vmul.f32 %v286, %v142
  %v327 = vmul.f32 %v288, %v142
  %v328 = vmul.f32 %v290, %v142
  %v329 = vmul.f32 %v292, %v142
  %v330 = vmul.f32 %v294, %v142
  %v331 = vmul.f32 %v296, %v142
  %v332 = vmul.f32 %v298, %v142
  %v333 = vmul.f32 %v300, %v142
  %v334 = vmul.f32 %v302, %v142
  %v335 = vadd.f32 %v303, 1e-05
  %v336 = vadd.f32 %v304, 1e-05
  %v337 = vadd.f32 %v305, 1e-05
  %v338 = vadd.f32 %v306, 1e-05
  %v339 = vadd.f32 %v307, 1e-05
  %v340 = vadd.f32 %v308, 1e-05
  %v341 = vadd.f32 %v309, 1e-05
  %v342 = vadd.f32 %v310, 1e-05
  %v343 = vadd.f32 %v311, 1e-05
  %v344 = vadd.f32 %v312, 1e-05
  %v345 = vadd.f32 %v313, 1e-05
  %v346 = vadd.f32 %v314, 1e-05
  %v347 = vadd.f32 %v315, 1e-05
  %v348 = vadd.f32 %v316, 1e-05
  %v349 = vadd.f32 %v317, 1e-05
  %v350 = vadd.f32 %v318, 1e-05
  %v351 = vadd.f32 %v319, 1e-05
  %v352 = vadd.f32 %v320, 1e-05
  %v353 = vadd.f32 %v321, 1e-05
  %v354 = vadd.f32 %v322, 1e-05
  %v355 = vadd.f32 %v323, 1e-05
  %v356 = vadd.f32 %v324, 1e-05
  %v357 = vadd.f32 %v325, 1e-05
  %v358 = vadd.f32 %v326, 1e-05
  %v359 = vadd.f32 %v327, 1e-05
  %v360 = vadd.f32 %v328, 1e-05
  %v361 = vadd.f32 %v329, 1e-05
  %v362 = vadd.f32 %v330, 1e-05
  %v363 = vadd.f32 %v331, 1e-05
  %v364 = vadd.f32 %v332, 1e-05
  %v365 = vadd.f32 %v333, 1e-05
  %v366 = vadd.f32 %v334, 1e-05
  %v367 = vrsqrt.pop %v335
  %v368 = vrsqrt.pop %v336
  %v369 = vrsqrt.pop %v337
  %v370 = vrsqrt.pop %v338
  %v371 = vrsqrt.pop %v339
  %v372 = vrsqrt.pop %v340
  %v373 = vrsqrt.pop %v341
  %v374 = vrsqrt.pop %v342
  %v375 = vrsqrt.pop %v343
  %v376 = vrsqrt.pop %v344
  %v377 = vrsqrt.pop %v345
  %v378 = vrsqrt.pop %v346
  %v379 = vrsqrt.pop %v347
  %v380 = vrsqrt.pop %v348
  %v381 = vrsqrt.pop %v349
  %v382 = vrsqrt.pop %v350
  %v383 = vrsqrt.pop %v351
  %v384 = vrsqrt.pop %v352
  %v385 = vrsqrt.pop %v353
  %v386 = vrsqrt.pop %v354
  %v387 = vrsqrt.pop %v355
  %v388 = vrsqrt.pop %v356
  %v389 = vrsqrt.pop %v357
  %v390 = vrsqrt.pop %v358
  %v391 = vrsqrt.pop %v359
  %v392 = vrsqrt.pop %v360
  %v393 = vrsqrt.pop %v361
  %v394 = vrsqrt.pop %v362
  %v395 = vrsqrt.pop %v363
  %v396 = vrsqrt.pop %v364
  %v397 = vrsqrt.pop %v365
  %v398 = vrsqrt.pop %v366
  %v399 = vmul.f32 %v175, %v367
  %v400 = vmul.f32 %v176, %v368
  %v401 = vmul.f32 %v177, %v369
  %v402 = vmul.f32 %v178, %v370
  %v403 = vmul.f32 %v179, %v371
  %v404 = vmul.f32 %v180, %v372
  %v405 = vmul.f32 %v181, %v373
  %v406 = vmul.f32 %v182, %v374
  %v407 = vmul.f32 %v183, %v375
  %v408 = vmul.f32 %v184, %v376
  %v409 = vmul.f32 %v185, %v377
  %v410 = vmul.f32 %v186, %v378
  %v411 = vmul.f32 %v187, %v379
  %v412 = vmul.f32 %v188, %v380
  %v413 = vmul.f32 %v189, %v381
  %v414 = vmul.f32 %v190, %v382
  %v415 = vmul.f32 %v191, %v383
  %v416 = vmul.f32 %v192, %v384
  %v417 = vmul.f32 %v193, %v385
  %v418 = vmul.f32 %v194, %v386
  %v419 = vmul.f32 %v195, %v387
  %v420 = vmul.f32 %v196, %v388
  %v421 = vmul.f32 %v197, %v389
  %v422 = vmul.f32 %v198, %v390
  %v423 = vmul.f32 %v199, %v391
  %v424 = vmul.f32 %v200, %v392
  %v425 = vmul.f32 %v201, %v393
  %v426 = vmul.f32 %v202, %v394
  %v427 = vmul.f32 %v203, %v395
  %v428 = vmul.f32 %v204, %v396
  %v429 = vmul.f32 %v205, %v397
  %v430 = vmul.f32 %v206, %v398
  %v431 = vld [vmem:[%s1] sm:$0x1]
  %v433 = vlaneseq
  %v434 = vshrl.u32 %v433, 7
  %v435 = vsub.s32 0, %v434
  %v436 = vrot.slane %v431, %v435
  %v438 = vmul.f32 %v399, %v436
  %v439 = vmul.f32 %v400, %v436
  %v440 = vmul.f32 %v401, %v436
  %v441 = vmul.f32 %v402, %v436
  %v442 = vmul.f32 %v403, %v436
  %v443 = vmul.f32 %v404, %v436
  %v444 = vmul.f32 %v405, %v436
  %v445 = vmul.f32 %v406, %v436
  %v446 = vmul.f32 %v407, %v436
  %v447 = vmul.f32 %v408, %v436
  %v448 = vmul.f32 %v409, %v436
  %v449 = vmul.f32 %v410, %v436
  %v450 = vmul.f32 %v411, %v436
  %v451 = vmul.f32 %v412, %v436
  %v452 = vmul.f32 %v413, %v436
  %v453 = vmul.f32 %v414, %v436
  %v454 = vmul.f32 %v415, %v436
  %v455 = vmul.f32 %v416, %v436
  %v456 = vmul.f32 %v417, %v436
  %v457 = vmul.f32 %v418, %v436
  %v458 = vmul.f32 %v419, %v436
  %v459 = vmul.f32 %v420, %v436
  %v460 = vmul.f32 %v421, %v436
  %v461 = vmul.f32 %v422, %v436
  %v462 = vmul.f32 %v423, %v436
  %v463 = vmul.f32 %v424, %v436
  %v464 = vmul.f32 %v425, %v436
  %v465 = vmul.f32 %v426, %v436
  %v466 = vmul.f32 %v427, %v436
  %v467 = vmul.f32 %v428, %v436
  %v468 = vmul.f32 %v429, %v436
  %v469 = vmul.f32 %v430, %v436
  %v470 = vld [vmem:[%s2] sm:$0x1]
  %v472 = vlaneseq
  %v473 = vshrl.u32 %v472, 7
  %v474 = vsub.s32 0, %v473
  %v475 = vrot.slane %v470, %v474
  %v477 = vadd.f32 %v438, %v475
  %v478 = vadd.f32 %v439, %v475
  %v479 = vadd.f32 %v440, %v475
  %v480 = vadd.f32 %v441, %v475
  %v481 = vadd.f32 %v442, %v475
  %v482 = vadd.f32 %v443, %v475
  %v483 = vadd.f32 %v444, %v475
  %v484 = vadd.f32 %v445, %v475
  %v485 = vadd.f32 %v446, %v475
  %v486 = vadd.f32 %v447, %v475
  %v487 = vadd.f32 %v448, %v475
  %v488 = vadd.f32 %v449, %v475
  %v489 = vadd.f32 %v450, %v475
  %v490 = vadd.f32 %v451, %v475
  %v491 = vadd.f32 %v452, %v475
  %v492 = vadd.f32 %v453, %v475
  %v493 = vadd.f32 %v454, %v475
  %v494 = vadd.f32 %v455, %v475
  %v495 = vadd.f32 %v456, %v475
  %v496 = vadd.f32 %v457, %v475
  %v497 = vadd.f32 %v458, %v475
  %v498 = vadd.f32 %v459, %v475
  %v499 = vadd.f32 %v460, %v475
  %v500 = vadd.f32 %v461, %v475
  %v501 = vadd.f32 %v462, %v475
  %v502 = vadd.f32 %v463, %v475
  %v503 = vadd.f32 %v464, %v475
  %v504 = vadd.f32 %v465, %v475
  %v505 = vadd.f32 %v466, %v475
  %v506 = vadd.f32 %v467, %v475
  %v507 = vadd.f32 %v468, %v475
  %v508 = vadd.f32 %v469, %v475
  %v509 = vpack.c.bf16 %v478, %v477
  %v510 = vpack.c.bf16 %v480, %v479
  %v511 = vpack.c.bf16 %v482, %v481
  %v512 = vpack.c.bf16 %v484, %v483
  %v513 = vpack.c.bf16 %v486, %v485
  %v514 = vpack.c.bf16 %v488, %v487
  %v515 = vpack.c.bf16 %v490, %v489
  %v516 = vpack.c.bf16 %v492, %v491
  %v517 = vpack.c.bf16 %v494, %v493
  %v518 = vpack.c.bf16 %v496, %v495
  %v519 = vpack.c.bf16 %v498, %v497
  %v520 = vpack.c.bf16 %v500, %v499
  %v521 = vpack.c.bf16 %v502, %v501
  %v522 = vpack.c.bf16 %v504, %v503
  %v523 = vpack.c.bf16 %v506, %v505
  %v524 = vpack.c.bf16 %v508, %v507
  %v541 = vunpack.c.l.b16 %v509
  %v542 = vunpack.c.h.b16 %v509
  %v543 = vunpack.c.l.b16 %v510
  %v544 = vunpack.c.h.b16 %v510
  %v545 = vunpack.c.l.b16 %v511
  %v546 = vunpack.c.h.b16 %v511
  %v547 = vunpack.c.l.b16 %v512
  %v548 = vunpack.c.h.b16 %v512
  %v549 = vunpack.c.l.b16 %v513
  %v550 = vunpack.c.h.b16 %v513
  %v551 = vunpack.c.l.b16 %v514
  %v552 = vunpack.c.h.b16 %v514
  %v553 = vunpack.c.l.b16 %v515
  %v554 = vunpack.c.h.b16 %v515
  %v555 = vunpack.c.l.b16 %v516
  %v556 = vunpack.c.h.b16 %v516
  %v557 = vunpack.c.l.b16 %v517
  %v558 = vunpack.c.h.b16 %v517
  %v559 = vunpack.c.l.b16 %v518
  %v560 = vunpack.c.h.b16 %v518
  %v561 = vunpack.c.l.b16 %v519
  %v562 = vunpack.c.h.b16 %v519
  %v563 = vunpack.c.l.b16 %v520
  %v564 = vunpack.c.h.b16 %v520
  %v565 = vunpack.c.l.b16 %v521
  %v566 = vunpack.c.h.b16 %v521
  %v567 = vunpack.c.l.b16 %v522
  %v568 = vunpack.c.h.b16 %v522
  %v569 = vunpack.c.l.b16 %v523
  %v570 = vunpack.c.h.b16 %v523
  %v571 = vunpack.c.l.b16 %v524
  %v572 = vunpack.c.h.b16 %v524
  %v573 = vpack.c.b16 %v541, %v541
  %v574 = vpack.c.b16 %v542, %v542
  %v575 = vpack.c.b16 %v543, %v543
  %v576 = vpack.c.b16 %v544, %v544
  %v577 = vpack.c.b16 %v545, %v545
  %v578 = vpack.c.b16 %v546, %v546
  %v579 = vpack.c.b16 %v547, %v547
  %v580 = vpack.c.b16 %v548, %v548
  %v581 = vpack.c.b16 %v549, %v549
  %v582 = vpack.c.b16 %v550, %v550
  %v583 = vpack.c.b16 %v551, %v551
  %v584 = vpack.c.b16 %v552, %v552
  %v585 = vpack.c.b16 %v553, %v553
  %v586 = vpack.c.b16 %v554, %v554
  %v587 = vpack.c.b16 %v555, %v555
  %v588 = vpack.c.b16 %v556, %v556
  %v589 = vpack.c.b16 %v557, %v557
  %v590 = vpack.c.b16 %v558, %v558
  %v591 = vpack.c.b16 %v559, %v559
  %v592 = vpack.c.b16 %v560, %v560
  %v593 = vpack.c.b16 %v561, %v561
  %v594 = vpack.c.b16 %v562, %v562
  %v595 = vpack.c.b16 %v563, %v563
  %v596 = vpack.c.b16 %v564, %v564
  %v597 = vpack.c.b16 %v565, %v565
  %v598 = vpack.c.b16 %v566, %v566
  %v599 = vpack.c.b16 %v567, %v567
  %v600 = vpack.c.b16 %v568, %v568
  %v601 = vpack.c.b16 %v569, %v569
  %v602 = vpack.c.b16 %v570, %v570
  %v603 = vpack.c.b16 %v571, %v571
  %v604 = vpack.c.b16 %v572, %v572
  %637 = vst [vmem:[%s3] sm:$0xf] %v573
  %638 = vst [vmem:[%s3 + $0x4] sm:$0xf] %v574
  %639 = vst [vmem:[%s3 + $0x8] sm:$0xf] %v575
  %640 = vst [vmem:[%s3 + $0xc] sm:$0xf] %v576
  %641 = vst [vmem:[%s3 + $0x10] sm:$0xf] %v577
  %642 = vst [vmem:[%s3 + $0x14] sm:$0xf] %v578
  %643 = vst [vmem:[%s3 + $0x18] sm:$0xf] %v579
  %644 = vst [vmem:[%s3 + $0x1c] sm:$0xf] %v580
  %645 = vst [vmem:[%s3 + $0x20] sm:$0xf] %v581
  %646 = vst [vmem:[%s3 + $0x24] sm:$0xf] %v582
  %647 = vst [vmem:[%s3 + $0x28] sm:$0xf] %v583
  %648 = vst [vmem:[%s3 + $0x2c] sm:$0xf] %v584
  %649 = vst [vmem:[%s3 + $0x30] sm:$0xf] %v585
  %650 = vst [vmem:[%s3 + $0x34] sm:$0xf] %v586
  %651 = vst [vmem:[%s3 + $0x38] sm:$0xf] %v587
  %652 = vst [vmem:[%s3 + $0x3c] sm:$0xf] %v588
  %653 = vst [vmem:[%s3 + $0x40] sm:$0xf] %v589
  %654 = vst [vmem:[%s3 + $0x44] sm:$0xf] %v590
  %655 = vst [vmem:[%s3 + $0x48] sm:$0xf] %v591
  %656 = vst [vmem:[%s3 + $0x4c] sm:$0xf] %v592
  %657 = vst [vmem:[%s3 + $0x50] sm:$0xf] %v593
  %658 = vst [vmem:[%s3 + $0x54] sm:$0xf] %v594
  %659 = vst [vmem:[%s3 + $0x58] sm:$0xf] %v595
  %660 = vst [vmem:[%s3 + $0x5c] sm:$0xf] %v596
  %661 = vst [vmem:[%s3 + $0x60] sm:$0xf] %v597
  %662 = vst [vmem:[%s3 + $0x64] sm:$0xf] %v598
  %663 = vst [vmem:[%s3 + $0x68] sm:$0xf] %v599
  %664 = vst [vmem:[%s3 + $0x6c] sm:$0xf] %v600
  %665 = vst [vmem:[%s3 + $0x70] sm:$0xf] %v601
  %666 = vst [vmem:[%s3 + $0x74] sm:$0xf] %v602
  %667 = vst [vmem:[%s3 + $0x78] sm:$0xf] %v603
  %668 = vst [vmem:[%s3 + $0x7c] sm:$0xf] %v604
  // Predicated region
  $region14: #{gpt2_logits.16} parent=0 // pred_check
    _
  $region15: #{gpt2_logits.16} parent=0 // pred_check_branch
    %670 = sbr.rel (0) target = $region17
  $region16: #{gpt2_logits.16} parent=0 // pred_region
    _
  $region17: #{gpt2_logits.16} parent=0 // pred_fallthru
    _
  // Predicated region
  $region18: #{gpt2_logits.16} parent=0 // pred_check
    _
  $region19: #{gpt2_logits.16} parent=0 // pred_check_branch
    %672 = sbr.rel (0) target = $region21
  $region20: #{gpt2_logits.16} parent=0 // pred_region
    _
  $region21: #{gpt2_logits.16} parent=0 // pred_fallthru
    _

// kernel: gpt2_logits.17
$region0: #{gpt2_logits.17}
  #allocation0 [shape = 'u32[]', space=smem, size = 0x4, offset = 0x4, fixed_abs, tag = 'smem constant byte address 0x4 - core index']
  #allocation1 [shape = 'u32[144,128]{1,0:T(1,128)}', space=vmem, size = 0x12000, scoped, tag = 'internal scratch']
  %s0 = inlined_call_operand.vmem [shape: bf16[256,128], index: 0, kind: input, shape index: {}]
  %s1 = inlined_call_operand.vmem [shape: bf16[128,384], index: 1, kind: input, shape index: {}]
  %s2 = inlined_call_operand.vmem [shape: f32[1,384], index: 2, kind: input, shape index: {}]
  %s3 = inlined_call_operand.vmem [shape: bf16[256,384], index: 3, kind: output, shape index: {}]
  %s4 = sld [smem:[#allocation0]]
  $region22: #{gpt2_logits.17} parent=0
    _
  %s6 = ssub.s32 1, %s4
  %s7 = scalar_select 0, %s6, %s4
  // Predicated region
  $region2: #{gpt2_logits.17} parent=0 // pred_check
    _
  $region3: #{gpt2_logits.17} parent=0 // pred_check_branch
    %9 = sbr.rel (0) target = $region5
  $region4: #{gpt2_logits.17} parent=0 // pred_region
    _
  $region5: #{gpt2_logits.17} parent=0 // pred_fallthru
    _
  // Predicated region
  $region6: #{gpt2_logits.17} parent=0 // pred_check
    _
  $region7: #{gpt2_logits.17} parent=0 // pred_check_branch
    %11 = sbr.rel (0) target = $region9
  $region8: #{gpt2_logits.17} parent=0 // pred_region
    _
  $region9: #{gpt2_logits.17} parent=0 // pred_fallthru
    _
  // Predicated region
  $region10: #{gpt2_logits.17} parent=0 // pred_check
    _
  $region11: #{gpt2_logits.17} parent=0 // pred_check_branch
    %13 = sbr.rel (0) target = $region13
  $region12: #{gpt2_logits.17} parent=0 // pred_region
    _
  $region13: #{gpt2_logits.17} parent=0 // pred_fallthru
    _
  %v15 = vld [vmem:[%s0] sm:$0xf]
  %v16 = vld [vmem:[%s0 + $0x4] sm:$0xf]
  %v17 = vld [vmem:[%s0 + $0x8] sm:$0xf]
  %v18 = vld [vmem:[%s0 + $0xc] sm:$0xf]
  %v19 = vld [vmem:[%s0 + $0x10] sm:$0xf]
  %v20 = vld [vmem:[%s0 + $0x14] sm:$0xf]
  %v21 = vld [vmem:[%s0 + $0x18] sm:$0xf]
  %v22 = vld [vmem:[%s0 + $0x1c] sm:$0xf]
  %v23 = vld [vmem:[%s0 + $0x20] sm:$0xf]
  %v24 = vld [vmem:[%s0 + $0x24] sm:$0xf]
  %v25 = vld [vmem:[%s0 + $0x28] sm:$0xf]
  %v26 = vld [vmem:[%s0 + $0x2c] sm:$0xf]
  %v27 = vld [vmem:[%s0 + $0x30] sm:$0xf]
  %v28 = vld [vmem:[%s0 + $0x34] sm:$0xf]
  %v29 = vld [vmem:[%s0 + $0x38] sm:$0xf]
  %v30 = vld [vmem:[%s0 + $0x3c] sm:$0xf]
  %v31 = vld [vmem:[%s0 + $0x40] sm:$0xf]
  %v32 = vld [vmem:[%s0 + $0x44] sm:$0xf]
  %v33 = vld [vmem:[%s0 + $0x48] sm:$0xf]
  %v34 = vld [vmem:[%s0 + $0x4c] sm:$0xf]
  %v35 = vld [vmem:[%s0 + $0x50] sm:$0xf]
  %v36 = vld [vmem:[%s0 + $0x54] sm:$0xf]
  %v37 = vld [vmem:[%s0 + $0x58] sm:$0xf]
  %v38 = vld [vmem:[%s0 + $0x5c] sm:$0xf]
  %v39 = vld [vmem:[%s0 + $0x60] sm:$0xf]
  %v40 = vld [vmem:[%s0 + $0x64] sm:$0xf]
  %v41 = vld [vmem:[%s0 + $0x68] sm:$0xf]
  %v42 = vld [vmem:[%s0 + $0x6c] sm:$0xf]
  %v43 = vld [vmem:[%s0 + $0x70] sm:$0xf]
  %v44 = vld [vmem:[%s0 + $0x74] sm:$0xf]
  %v45 = vld [vmem:[%s0 + $0x78] sm:$0xf]
  %v46 = vld [vmem:[%s0 + $0x7c] sm:$0xf]
  %v47 = vld [vmem:[%s1] sm:$0xff]
  %v48 = vld [vmem:[%s1 + $0x8] sm:$0xf]
  %v49 = vld [vmem:[%s1 + $0xc] sm:$0xff]
  %v50 = vld [vmem:[%s1 + $0x14] sm:$0xf]
  %v51 = vld [vmem:[%s1 + $0x18] sm:$0xff]
  %v52 = vld [vmem:[%s1 + $0x20] sm:$0xf]
  %v53 = vld [vmem:[%s1 + $0x24] sm:$0xff]
  %v54 = vld [vmem:[%s1 + $0x2c] sm:$0xf]
  %v55 = vld [vmem:[%s1 + $0x30] sm:$0xff]
  %v56 = vld [vmem:[%s1 + $0x38] sm:$0xf]
  %v57 = vld [vmem:[%s1 + $0x3c] sm:$0xff]
  %v58 = vld [vmem:[%s1 + $0x44] sm:$0xf]
  %v59 = vld [vmem:[%s1 + $0x48] sm:$0xff]
  %v60 = vld [vmem:[%s1 + $0x50] sm:$0xf]
  %v61 = vld [vmem:[%s1 + $0x54] sm:$0xff]
  %v62 = vld [vmem:[%s1 + $0x5c] sm:$0xf]
  %v63 = vld [vmem:[%s1 + $0x60] sm:$0xff]
  %v64 = vld [vmem:[%s1 + $0x68] sm:$0xf]
  %v65 = vld [vmem:[%s1 + $0x6c] sm:$0xff]
  %v66 = vld [vmem:[%s1 + $0x74] sm:$0xf]
  %v67 = vld [vmem:[%s1 + $0x78] sm:$0xff]
  %v68 = vld [vmem:[%s1 + $0x80] sm:$0xf]
  %v69 = vld [vmem:[%s1 + $0x84] sm:$0xff]
  %v70 = vld [vmem:[%s1 + $0x8c] sm:$0xf]
  %v71 = vld [vmem:[%s1 + $0x90] sm:$0xff]
  %v72 = vld [vmem:[%s1 + $0x98] sm:$0xf]
  %v73 = vld [vmem:[%s1 + $0x9c] sm:$0xff]
  %v74 = vld [vmem:[%s1 + $0xa4] sm:$0xf]
  %v75 = vld [vmem:[%s1 + $0xa8] sm:$0xff]
  %v76 = vld [vmem:[%s1 + $0xb0] sm:$0xf]
  %v77 = vld [vmem:[%s1 + $0xb4] sm:$0xff]
  %v78 = vld [vmem:[%s1 + $0xbc] sm:$0xf]
  %v79 = vld [vmem:[%s2] sm:$0x7]
  %v81 = vlaneseq
  %v82 = vshrl.u32 %v81, 7
  %v83 = vsub.s32 0, %v82
  %v84 = vrot.slane %v79, %v83
  %v85 = vlaneseq
  %v86 = vshrl.u32 %v85, 7
  %v87 = vsub.s32 1, %v86
  %v88 = vrot.slane %v79, %v87
  %v89 = vlaneseq
  %v90 = vshrl.u32 %v89, 7
  %v91 = vsub.s32 2, %v90
  %v92 = vrot.slane %v79, %v91
  %v128 = vunpack.c.l.b16 %v15
  %v129 = vunpack.c.l.b16 %v16
  %v130 = vunpack.c.l.b16 %v17
  %v131 = vunpack.c.l.b16 %v18
  %v132 = vunpack.c.l.b16 %v19
  %v133 = vunpack.c.l.b16 %v20
  %v134 = vunpack.c.l.b16 %v21
  %v135 = vunpack.c.l.b16 %v22
  %v136 = vunpack.c.l.b16 %v23
  %v137 = vunpack.c.l.b16 %v24
  %v138 = vunpack.c.l.b16 %v25
  %v139 = vunpack.c.l.b16 %v26
  %v140 = vunpack.c.l.b16 %v27
  %v141 = vunpack.c.l.b16 %v28
  %v142 = vunpack.c.l.b16 %v29
  %v143 = vunpack.c.l.b16 %v30
  %v144 = vunpack.c.l.b16 %v31
  %v145 = vunpack.c.l.b16 %v32
  %v146 = vunpack.c.l.b16 %v33
  %v147 = vunpack.c.l.b16 %v34
  %v148 = vunpack.c.l.b16 %v35
  %v149 = vunpack.c.l.b16 %v36
  %v150 = vunpack.c.l.b16 %v37
  %v151 = vunpack.c.l.b16 %v38
  %v152 = vunpack.c.l.b16 %v39
  %v153 = vunpack.c.l.b16 %v40
  %v154 = vunpack.c.l.b16 %v41
  %v155 = vunpack.c.l.b16 %v42
  %v156 = vunpack.c.l.b16 %v43
  %v157 = vunpack.c.l.b16 %v44
  %v158 = vunpack.c.l.b16 %v45
  %v159 = vunpack.c.l.b16 %v46
  %v160 = vpack.c.b16 %v129, %v128
  %v161 = vpack.c.b16 %v131, %v130
  %v162 = vpack.c.b16 %v133, %v132
  %v163 = vpack.c.b16 %v135, %v134
  %v164 = vpack.c.b16 %v137, %v136
  %v165 = vpack.c.b16 %v139, %v138
  %v166 = vpack.c.b16 %v141, %v140
  %v167 = vpack.c.b16 %v143, %v142
  %v168 = vpack.c.b16 %v145, %v144
  %v169 = vpack.c.b16 %v147, %v146
  %v170 = vpack.c.b16 %v149, %v148
  %v171 = vpack.c.b16 %v151, %v150
  %v172 = vpack.c.b16 %v153, %v152
  %v173 = vpack.c.b16 %v155, %v154
  %v174 = vpack.c.b16 %v157, %v156
  %v175 = vpack.c.b16 %v159, %v158
  %v224 = vunpack.c.l.b16 %v47
  %v225 = vunpack.c.h.b16 %v47
  %v226 = vunpack.c.l.b16 %v48
  %v227 = vunpack.c.l.b16 %v49
  %v228 = vunpack.c.h.b16 %v49
  %v229 = vunpack.c.l.b16 %v50
  %v230 = vunpack.c.l.b16 %v51
  %v231 = vunpack.c.h.b16 %v51
  %v232 = vunpack.c.l.b16 %v52
  %v233 = vunpack.c.l.b16 %v53
  %v234 = vunpack.c.h.b16 %v53
  %v235 = vunpack.c.l.b16 %v54
  %v236 = vunpack.c.l.b16 %v55
  %v237 = vunpack.c.h.b16 %v55
  %v238 = vunpack.c.l.b16 %v56
  %v239 = vunpack.c.l.b16 %v57
  %v240 = vunpack.c.h.b16 %v57
  %v241 = vunpack.c.l.b16 %v58
  %v242 = vunpack.c.l.b16 %v59
  %v243 = vunpack.c.h.b16 %v59
  %v244 = vunpack.c.l.b16 %v60
  %v245 = vunpack.c.l.b16 %v61
  %v246 = vunpack.c.h.b16 %v61
  %v247 = vunpack.c.l.b16 %v62
  %v248 = vunpack.c.l.b16 %v63
  %v249 = vunpack.c.h.b16 %v63
  %v250 = vunpack.c.l.b16 %v64
  %v251 = vunpack.c.l.b16 %v65
  %v252 = vunpack.c.h.b16 %v65
  %v253 = vunpack.c.l.b16 %v66
  %v254 = vunpack.c.l.b16 %v67
  %v255 = vunpack.c.h.b16 %v67
  %v256 = vunpack.c.l.b16 %v68
  %v257 = vunpack.c.l.b16 %v69
  %v258 = vunpack.c.h.b16 %v69
  %v259 = vunpack.c.l.b16 %v70
  %v260 = vunpack.c.l.b16 %v71
  %v261 = vunpack.c.h.b16 %v71
  %v262 = vunpack.c.l.b16 %v72
  %v263 = vunpack.c.l.b16 %v73
  %v264 = vunpack.c.h.b16 %v73
  %v265 = vunpack.c.l.b16 %v74
  %v266 = vunpack.c.l.b16 %v75
  %v267 = vunpack.c.h.b16 %v75
  %v268 = vunpack.c.l.b16 %v76
  %v269 = vunpack.c.l.b16 %v77
  %v270 = vunpack.c.h.b16 %v77
  %v271 = vunpack.c.l.b16 %v78
  %v272 = vpack.c.b16 %v227, %v224
  %v273 = vpack.c.b16 %v228, %v225
  %v274 = vpack.c.b16 %v229, %v226
  %v275 = vpack.c.b16 %v233, %v230
  %v276 = vpack.c.b16 %v234, %v231
  %v277 = vpack.c.b16 %v235, %v232
  %v278 = vpack.c.b16 %v239, %v236
  %v279 = vpack.c.b16 %v240, %v237
  %v280 = vpack.c.b16 %v241, %v238
  %v281 = vpack.c.b16 %v245, %v242
  %v282 = vpack.c.b16 %v246, %v243
  %v283 = vpack.c.b16 %v247, %v244
  %v284 = vpack.c.b16 %v251, %v248
  %v285 = vpack.c.b16 %v252, %v249
  %v286 = vpack.c.b16 %v253, %v250
  %v287 = vpack.c.b16 %v257, %v254
  %v288 = vpack.c.b16 %v258, %v255
  %v289 = vpack.c.b16 %v259, %v256
  %v290 = vpack.c.b16 %v263, %v260
  %v291 = vpack.c.b16 %v264, %v261
  %v292 = vpack.c.b16 %v265, %v262
  %v293 = vpack.c.b16 %v269, %v266
  %v294 = vpack.c.b16 %v270, %v267
  %v295 = vpack.c.b16 %v271, %v268
  %320 = vmatprep.subr.bf16.mxu0 %v294
  %321 = vmatpush1.bf16.msra.mxu0 %v293
  %322 = vmatprep.subr.bf16.mxu0 %v291
  %323 = vmatpush1.bf16.msra.mxu0 %v290
  %324 = vmatprep.subr.bf16.mxu0 %v288
  %325 = vmatpush1.bf16.msra.mxu0 %v287
  %326 = vmatprep.subr.bf16.mxu0 %v285
  %327 = vmatpush1.bf16.msra.mxu0 %v284
  %328 = vmatprep.subr.bf16.mxu0 %v282
  %329 = vmatpush1.bf16.msra.mxu0 %v281
  %330 = vmatprep.subr.bf16.mxu0 %v279
  %331 = vmatpush1.bf16.msra.mxu0 %v278
  %332 = vmatprep.subr.bf16.mxu0 %v276
  %333 = vmatpush1.bf16.msra.mxu0 %v275
  %334 = vmatprep.subr.bf16.mxu0 %v273
  %335 = vmatpush1.bf16.msra.mxu0 %v272
  %336 = vmatprep.subr.bf16.mxu0 0
  %337 = vmatpush2.bf16.msra.mxu0 0
  %338 = vmatprep.subr.bf16.mxu0 0
  %339 = vmatpush2.bf16.msra.mxu0 0
  %340 = vmatprep.subr.bf16.mxu0 0
  %341 = vmatpush2.bf16.msra.mxu0 0
  %342 = vmatprep.subr.bf16.mxu0 0
  %343 = vmatpush2.bf16.msra.mxu0 0
  %344 = vmatprep.subr.bf16.mxu0 0
  %345 = vmatpush2.bf16.msra.mxu0 0
  %346 = vmatprep.subr.bf16.mxu0 0
  %347 = vmatpush2.bf16.msra.mxu0 0
  %348 = vmatprep.subr.bf16.mxu0 0
  %349 = vmatpush2.bf16.msra.mxu0 0
  %350 = vmatprep.subr.bf16.mxu0 0
  %351 = vmatpush2.bf16.msra.mxu0 0
  %352 = vmatprep.mubr.bf16.mxu0 0
  %353 = vmatmul.mubr.bf16.gmra.mxu0 %v160
  %v354 = vpop.f32.mrf.mxu0
  %v355 = vadd.f32 %v84, %v354
  %v356 = vpop.f32.mrf.mxu0
  %v357 = vadd.f32 %v88, %v356
  %v358 = vpop.f32.mrf.mxu0
  %v359 = vadd.f32 %v84, %v358
  %v360 = vpop.f32.mrf.mxu0
  %v361 = vadd.f32 %v88, %v360
  %362 = vmatprep.mubr.bf16.mxu0 0
  %363 = vmatmul.mubr.bf16.gmra.mxu0 %v161
  %v364 = vpop.f32.mrf.mxu0
  %v365 = vadd.f32 %v84, %v364
  %v366 = vpop.f32.mrf.mxu0
  %v367 = vadd.f32 %v88, %v366
  %v368 = vpop.f32.mrf.mxu0
  %v369 = vadd.f32 %v84, %v368
  %v370 = vpop.f32.mrf.mxu0
  %v371 = vadd.f32 %v88, %v370
  %372 = vmatprep.mubr.bf16.mxu0 0
  %373 = vmatmul.mubr.bf16.gmra.mxu0 %v162
  %v374 = vpop.f32.mrf.mxu0
  %v375 = vadd.f32 %v84, %v374
  %v376 = vpop.f32.mrf.mxu0
  %v377 = vadd.f32 %v88, %v376
  %v378 = vpop.f32.mrf.mxu0
  %v379 = vadd.f32 %v84, %v378
  %v380 = vpop.f32.mrf.mxu0
  %v381 = vadd.f32 %v88, %v380
  %382 = vmatprep.mubr.bf16.mxu0 0
  %383 = vmatmul.mubr.bf16.gmra.mxu0 %v163
  %v384 = vpop.f32.mrf.mxu0
  %v385 = vadd.f32 %v84, %v384
  %v386 = vpop.f32.mrf.mxu0
  %v387 = vadd.f32 %v88, %v386
  %v388 = vpop.f32.mrf.mxu0
  %v389 = vadd.f32 %v84, %v388
  %v390 = vpop.f32.mrf.mxu0
  %v391 = vadd.f32 %v88, %v390
  %392 = vmatprep.mubr.bf16.mxu0 0
  %393 = vmatmul.mubr.bf16.gmra.mxu0 %v164
  %v394 = vpop.f32.mrf.mxu0
  %v395 = vadd.f32 %v84, %v394
  %v396 = vpop.f32.mrf.mxu0
  %v397 = vadd.f32 %v88, %v396
  %v398 = vpop.f32.mrf.mxu0
  %v399 = vadd.f32 %v84, %v398
  %v400 = vpop.f32.mrf.mxu0
  %v401 = vadd.f32 %v88, %v400
  %402 = vmatprep.mubr.bf16.mxu0 0
  %403 = vmatmul.mubr.bf16.gmra.mxu0 %v165
  %v404 = vpop.f32.mrf.mxu0
  %v405 = vadd.f32 %v84, %v404
  %v406 = vpop.f32.mrf.mxu0
  %v407 = vadd.f32 %v88, %v406
  %v408 = vpop.f32.mrf.mxu0
  %v409 = vadd.f32 %v84, %v408
  %v410 = vpop.f32.mrf.mxu0
  %v411 = vadd.f32 %v88, %v410
  %412 = vmatprep.mubr.bf16.mxu0 0
  %413 = vmatmul.mubr.bf16.gmra.mxu0 %v166
  %v414 = vpop.f32.mrf.mxu0
  %v415 = vadd.f32 %v84, %v414
  %v416 = vpop.f32.mrf.mxu0
  %v417 = vadd.f32 %v88, %v416
  %v418 = vpop.f32.mrf.mxu0
  %v419 = vadd.f32 %v84, %v418
  %v420 = vpop.f32.mrf.mxu0
  %v421 = vadd.f32 %v88, %v420
  %422 = vmatprep.mubr.bf16.mxu0 0
  %423 = vmatmul.mubr.bf16.gmra.mxu0 %v167
  %v424 = vpop.f32.mrf.mxu0
  %v425 = vadd.f32 %v84, %v424
  %v426 = vpop.f32.mrf.mxu0
  %v427 = vadd.f32 %v88, %v426
  %v428 = vpop.f32.mrf.mxu0
  %v429 = vadd.f32 %v84, %v428
  %v430 = vpop.f32.mrf.mxu0
  %v431 = vadd.f32 %v88, %v430
  %432 = vmatprep.mubr.bf16.mxu0 0
  %433 = vmatmul.mubr.bf16.gmra.mxu0 %v168
  %v434 = vpop.f32.mrf.mxu0
  %v435 = vadd.f32 %v84, %v434
  %v436 = vpop.f32.mrf.mxu0
  %v437 = vadd.f32 %v88, %v436
  %v438 = vpop.f32.mrf.mxu0
  %v439 = vadd.f32 %v84, %v438
  %v440 = vpop.f32.mrf.mxu0
  %v441 = vadd.f32 %v88, %v440
  %442 = vmatprep.mubr.bf16.mxu0 0
  %443 = vmatmul.mubr.bf16.gmra.mxu0 %v169
  %v444 = vpop.f32.mrf.mxu0
  %v445 = vadd.f32 %v84, %v444
  %v446 = vpop.f32.mrf.mxu0
  %v447 = vadd.f32 %v88, %v446
  %v448 = vpop.f32.mrf.mxu0
  %v449 = vadd.f32 %v84, %v448
  %v450 = vpop.f32.mrf.mxu0
  %v451 = vadd.f32 %v88, %v450
  %452 = vmatprep.mubr.bf16.mxu0 0
  %453 = vmatmul.mubr.bf16.gmra.mxu0 %v170
  %v454 = vpop.f32.mrf.mxu0
  %v455 = vadd.f32 %v84, %v454
  %v456 = vpop.f32.mrf.mxu0
  %v457 = vadd.f32 %v88, %v456
  %v458 = vpop.f32.mrf.mxu0
  %v459 = vadd.f32 %v84, %v458
  %v460 = vpop.f32.mrf.mxu0
  %v461 = vadd.f32 %v88, %v460
  %462 = vmatprep.mubr.bf16.mxu0 0
  %463 = vmatmul.mubr.bf16.gmra.mxu0 %v171
  %v464 = vpop.f32.mrf.mxu0
  %v465 = vadd.f32 %v84, %v464
  %v466 = vpop.f32.mrf.mxu0
  %v467 = vadd.f32 %v88, %v466
  %v468 = vpop.f32.mrf.mxu0
  %v469 = vadd.f32 %v84, %v468
  %v470 = vpop.f32.mrf.mxu0
  %v471 = vadd.f32 %v88, %v470
  %472 = vmatprep.mubr.bf16.mxu0 0
  %473 = vmatmul.mubr.bf16.gmra.mxu0 %v172
  %v474 = vpop.f32.mrf.mxu0
  %v475 = vadd.f32 %v84, %v474
  %v476 = vpop.f32.mrf.mxu0
  %v477 = vadd.f32 %v88, %v476
  %v478 = vpop.f32.mrf.mxu0
  %v479 = vadd.f32 %v84, %v478
  %v480 = vpop.f32.mrf.mxu0
  %v481 = vadd.f32 %v88, %v480
  %482 = vmatprep.mubr.bf16.mxu0 0
  %483 = vmatmul.mubr.bf16.gmra.mxu0 %v173
  %v484 = vpop.f32.mrf.mxu0
  %v485 = vadd.f32 %v84, %v484
  %v486 = vpop.f32.mrf.mxu0
  %v487 = vadd.f32 %v88, %v486
  %v488 = vpop.f32.mrf.mxu0
  %v489 = vadd.f32 %v84, %v488
  %v490 = vpop.f32.mrf.mxu0
  %v491 = vadd.f32 %v88, %v490
  %492 = vmatprep.mubr.bf16.mxu0 0
  %493 = vmatmul.mubr.bf16.gmra.mxu0 %v174
  %v494 = vpop.f32.mrf.mxu0
  %v495 = vadd.f32 %v84, %v494
  %v496 = vpop.f32.mrf.mxu0
  %v497 = vadd.f32 %v88, %v496
  %v498 = vpop.f32.mrf.mxu0
  %v499 = vadd.f32 %v84, %v498
  %v500 = vpop.f32.mrf.mxu0
  %v501 = vadd.f32 %v88, %v500
  %502 = vmatprep.mubr.bf16.mxu0 0
  %503 = vmatmul.mubr.bf16.gmra.mxu0 %v175
  %v504 = vpop.f32.mrf.mxu0
  %v505 = vadd.f32 %v84, %v504
  %v506 = vpop.f32.mrf.mxu0
  %v507 = vadd.f32 %v88, %v506
  %v508 = vpop.f32.mrf.mxu0
  %v509 = vadd.f32 %v84, %v508
  %v510 = vpop.f32.mrf.mxu0
  %v511 = vadd.f32 %v88, %v510
  %512 = vdwg.mxu0
  %513 = vmatprep.subr.bf16.mxu0 0
  %514 = vmatpush1.bf16.msra.mxu0 %v295
  %515 = vmatprep.subr.bf16.mxu0 0
  %516 = vmatpush1.bf16.msra.mxu0 %v292
  %517 = vmatprep.subr.bf16.mxu0 0
  %518 = vmatpush1.bf16.msra.mxu0 %v289
  %519 = vmatprep.subr.bf16.mxu0 0
  %520 = vmatpush1.bf16.msra.mxu0 %v286
  %521 = vmatprep.subr.bf16.mxu0 0
  %522 = vmatpush1.bf16.msra.mxu0 %v283
  %523 = vmatprep.subr.bf16.mxu0 0
  %524 = vmatpush1.bf16.msra.mxu0 %v280
  %525 = vmatprep.subr.bf16.mxu0 0
  %526 = vmatpush1.bf16.msra.mxu0 %v277
  %527 = vmatprep.subr.bf16.mxu0 0
  %528 = vmatpush1.bf16.msra.mxu0 %v274
  %529 = vmatprep.subr.bf16.mxu0 0
  %530 = vmatpush2.bf16.msra.mxu0 0
  %531 = vmatprep.subr.bf16.mxu0 0
  %532 = vmatpush2.bf16.msra.mxu0 0
  %533 = vmatprep.subr.bf16.mxu0 0
  %534 = vmatpush2.bf16.msra.mxu0 0
  %535 = vmatprep.subr.bf16.mxu0 0
  %536 = vmatpush2.bf16.msra.mxu0 0
  %537 = vmatprep.subr.bf16.mxu0 0
  %538 = vmatpush2.bf16.msra.mxu0 0
  %539 = vmatprep.subr.bf16.mxu0 0
  %540 = vmatpush2.bf16.msra.mxu0 0
  %541 = vmatprep.subr.bf16.mxu0 0
  %542 = vmatpush2.bf16.msra.mxu0 0
  %543 = vmatprep.subr.bf16.mxu0 0
  %544 = vmatpush2.bf16.msra.mxu0 0
  %545 = vmatprep.mubr.bf16.mxu0 0
  %546 = vmatmul.mubr.bf16.gmra.mxu0 %v160
  %v547 = vpop.f32.mrf.mxu0
  %v548 = vadd.f32 %v92, %v547
  %v549 = vpop.f32.mrf.mxu0
  %v550 = vpop.f32.mrf.mxu0
  %v551 = vadd.f32 %v92, %v550
  %v552 = vpop.f32.mrf.mxu0
  %553 = vmatprep.mubr.bf16.mxu0 0
  %554 = vmatmul.mubr.bf16.gmra.mxu0 %v161
  %v555 = vpop.f32.mrf.mxu0
  %v556 = vadd.f32 %v92, %v555
  %v557 = vpop.f32.mrf.mxu0
  %v558 = vpop.f32.mrf.mxu0
  %v559 = vadd.f32 %v92, %v558
  %v560 = vpop.f32.mrf.mxu0
  %561 = vmatprep.mubr.bf16.mxu0 0
  %562 = vmatmul.mubr.bf16.gmra.mxu0 %v162
  %v563 = vpop.f32.mrf.mxu0
  %v564 = vadd.f32 %v92, %v563
  %v565 = vpop.f32.mrf.mxu0
  %v566 = vpop.f32.mrf.mxu0
  %v567 = vadd.f32 %v92, %v566
  %v568 = vpop.f32.mrf.mxu0
  %569 = vmatprep.mubr.bf16.mxu0 0
  %570 = vmatmul.mubr.bf16.gmra.mxu0 %v163
  %v571 = vpop.f32.mrf.mxu0
  %v572 = vadd.f32 %v92, %v571
  %v573 = vpop.f32.mrf.mxu0
  %v574 = vpop.f32.mrf.mxu0
  %v575 = vadd.f32 %v92, %v574
  %v576 = vpop.f32.mrf.mxu0
  %577 = vmatprep.mubr.bf16.mxu0 0
  %578 = vmatmul.mubr.bf16.gmra.mxu0 %v164
  %v579 = vpop.f32.mrf.mxu0
  %v580 = vadd.f32 %v92, %v579
  %v581 = vpop.f32.mrf.mxu0
  %v582 = vpop.f32.mrf.mxu0
  %v583 = vadd.f32 %v92, %v582
  %v584 = vpop.f32.mrf.mxu0
  %585 = vmatprep.mubr.bf16.mxu0 0
  %586 = vmatmul.mubr.bf16.gmra.mxu0 %v165
  %v587 = vpop.f32.mrf.mxu0
  %v588 = vadd.f32 %v92, %v587
  %v589 = vpop.f32.mrf.mxu0
  %v590 = vpop.f32.mrf.mxu0
  %v591 = vadd.f32 %v92, %v590
  %v592 = vpop.f32.mrf.mxu0
  %593 = vmatprep.mubr.bf16.mxu0 0
  %594 = vmatmul.mubr.bf16.gmra.mxu0 %v166
  %v595 = vpop.f32.mrf.mxu0
  %v596 = vadd.f32 %v92, %v595
  %v597 = vpop.f32.mrf.mxu0
  %v598 = vpop.f32.mrf.mxu0
  %v599 = vadd.f32 %v92, %v598
  %v600 = vpop.f32.mrf.mxu0
  %601 = vmatprep.mubr.bf16.mxu0 0
  %602 = vmatmul.mubr.bf16.gmra.mxu0 %v167
  %v603 = vpop.f32.mrf.mxu0
  %v604 = vadd.f32 %v92, %v603
  %v605 = vpop.f32.mrf.mxu0
  %v606 = vpop.f32.mrf.mxu0
  %v607 = vadd.f32 %v92, %v606
  %v608 = vpop.f32.mrf.mxu0
  %609 = vmatprep.mubr.bf16.mxu0 0
  %610 = vmatmul.mubr.bf16.gmra.mxu0 %v168
  %v611 = vpop.f32.mrf.mxu0
  %v612 = vadd.f32 %v92, %v611
  %v613 = vpop.f32.mrf.mxu0
  %v614 = vpop.f32.mrf.mxu0
  %v615 = vadd.f32 %v92, %v614
  %v616 = vpop.f32.mrf.mxu0
  %617 = vmatprep.mubr.bf16.mxu0 0
  %618 = vmatmul.mubr.bf16.gmra.mxu0 %v169
  %v619 = vpop.f32.mrf.mxu0
  %v620 = vadd.f32 %v92, %v619
  %v621 = vpop.f32.mrf.mxu0
  %v622 = vpop.f32.mrf.mxu0
  %v623 = vadd.f32 %v92, %v622
  %v624 = vpop.f32.mrf.mxu0
  %625 = vmatprep.mubr.bf16.mxu0 0
  %626 = vmatmul.mubr.bf16.gmra.mxu0 %v170
  %v627 = vpop.f32.mrf.mxu0
  %v628 = vadd.f32 %v92, %v627
  %v629 = vpop.f32.mrf.mxu0
  %v630 = vpop.f32.mrf.mxu0
  %v631 = vadd.f32 %v92, %v630
  %v632 = vpop.f32.mrf.mxu0
  %633 = vmatprep.mubr.bf16.mxu0 0
  %634 = vmatmul.mubr.bf16.gmra.mxu0 %v171
  %v635 = vpop.f32.mrf.mxu0
  %v636 = vadd.f32 %v92, %v635
  %v637 = vpop.f32.mrf.mxu0
  %v638 = vpop.f32.mrf.mxu0
  %v639 = vadd.f32 %v92, %v638
  %v640 = vpop.f32.mrf.mxu0
  %641 = vmatprep.mubr.bf16.mxu0 0
  %642 = vmatmul.mubr.bf16.gmra.mxu0 %v172
  %v643 = vpop.f32.mrf.mxu0
  %v644 = vadd.f32 %v92, %v643
  %v645 = vpop.f32.mrf.mxu0
  %v646 = vpop.f32.mrf.mxu0
  %v647 = vadd.f32 %v92, %v646
  %v648 = vpop.f32.mrf.mxu0
  %649 = vmatprep.mubr.bf16.mxu0 0
  %650 = vmatmul.mubr.bf16.gmra.mxu0 %v173
  %v651 = vpop.f32.mrf.mxu0
  %v652 = vadd.f32 %v92, %v651
  %v653 = vpop.f32.mrf.mxu0
  %v654 = vpop.f32.mrf.mxu0
  %v655 = vadd.f32 %v92, %v654
  %v656 = vpop.f32.mrf.mxu0
  %657 = vmatprep.mubr.bf16.mxu0 0
  %658 = vmatmul.mubr.bf16.gmra.mxu0 %v174
  %v659 = vpop.f32.mrf.mxu0
  %v660 = vadd.f32 %v92, %v659
  %v661 = vpop.f32.mrf.mxu0
  %v662 = vpop.f32.mrf.mxu0
  %v663 = vadd.f32 %v92, %v662
  %v664 = vpop.f32.mrf.mxu0
  %665 = vmatprep.mubr.bf16.mxu0 0
  %666 = vmatmul.mubr.bf16.gmra.mxu0 %v175
  %v667 = vpop.f32.mrf.mxu0
  %v668 = vadd.f32 %v92, %v667
  %v669 = vpop.f32.mrf.mxu0
  %v670 = vpop.f32.mrf.mxu0
  %v671 = vadd.f32 %v92, %v670
  %v672 = vpop.f32.mrf.mxu0
  %673 = vdwg.mxu0
  %v674 = vpack.c.bf16 %v359, %v355
  %v675 = vpack.c.bf16 %v361, %v357
  %v676 = vpack.c.bf16 %v551, %v548
  %v677 = vpack.c.bf16 %v369, %v365
  %v678 = vpack.c.bf16 %v371, %v367
  %v679 = vpack.c.bf16 %v559, %v556
  %v680 = vpack.c.bf16 %v379, %v375
  %v681 = vpack.c.bf16 %v381, %v377
  %v682 = vpack.c.bf16 %v567, %v564
  %v683 = vpack.c.bf16 %v389, %v385
  %v684 = vpack.c.bf16 %v391, %v387
  %v685 = vpack.c.bf16 %v575, %v572
  %v686 = vpack.c.bf16 %v399, %v395
  %v687 = vpack.c.bf16 %v401, %v397
  %v688 = vpack.c.bf16 %v583, %v580
  %v689 = vpack.c.bf16 %v409, %v405
  %v690 = vpack.c.bf16 %v411, %v407
  %v691 = vpack.c.bf16 %v591, %v588
  %v692 = vpack.c.bf16 %v419, %v415
  %v693 = vpack.c.bf16 %v421, %v417
  %v694 = vpack.c.bf16 %v599, %v596
  %v695 = vpack.c.bf16 %v429, %v425
  %v696 = vpack.c.bf16 %v431, %v427
  %v697 = vpack.c.bf16 %v607, %v604
  %v698 = vpack.c.bf16 %v439, %v435
  %v699 = vpack.c.bf16 %v441, %v437
  %v700 = vpack.c.bf16 %v615, %v612
  %v701 = vpack.c.bf16 %v449, %v445
  %v702 = vpack.c.bf16 %v451, %v447
  %v703 = vpack.c.bf16 %v623, %v620
  %v704 = vpack.c.bf16 %v459, %v455
  %v705 = vpack.c.bf16 %v461, %v457
  %v706 = vpack.c.bf16 %v631, %v628
  %v707 = vpack.c.bf16 %v469, %v465
  %v708 = vpack.c.bf16 %v471, %v467
  %v709 = vpack.c.bf16 %v639, %v636
  %v710 = vpack.c.bf16 %v479, %v475
  %v711 = vpack.c.bf16 %v481, %v477
  %v712 = vpack.c.bf16 %v647, %v644
  %v713 = vpack.c.bf16 %v489, %v485
  %v714 = vpack.c.bf16 %v491, %v487
  %v715 = vpack.c.bf16 %v655, %v652
  %v716 = vpack.c.bf16 %v499, %v495
  %v717 = vpack.c.bf16 %v501, %v497
  %v718 = vpack.c.bf16 %v663, %v660
  %v719 = vpack.c.bf16 %v509, %v505
  %v720 = vpack.c.bf16 %v511, %v507
  %v721 = vpack.c.bf16 %v671, %v668
  %v770 = vunpack.c.l.b16 %v674
  %v771 = vunpack.c.l.b16 %v675
  %v772 = vunpack.c.l.b16 %v676
  %v773 = vunpack.c.h.b16 %v674
  %v774 = vunpack.c.h.b16 %v675
  %v775 = vunpack.c.h.b16 %v676
  %v776 = vunpack.c.l.b16 %v677
  %v777 = vunpack.c.l.b16 %v678
  %v778 = vunpack.c.l.b16 %v679
  %v779 = vunpack.c.h.b16 %v677
  %v780 = vunpack.c.h.b16 %v678
  %v781 = vunpack.c.h.b16 %v679
  %v782 = vunpack.c.l.b16 %v680
  %v783 = vunpack.c.l.b16 %v681
  %v784 = vunpack.c.l.b16 %v682
  %v785 = vunpack.c.h.b16 %v680
  %v786 = vunpack.c.h.b16 %v681
  %v787 = vunpack.c.h.b16 %v682
  %v788 = vunpack.c.l.b16 %v683
  %v789 = vunpack.c.l.b16 %v684
  %v790 = vunpack.c.l.b16 %v685
  %v791 = vunpack.c.h.b16 %v683
  %v792 = vunpack.c.h.b16 %v684
  %v793 = vunpack.c.h.b16 %v685
  %v794 = vunpack.c.l.b16 %v686
  %v795 = vunpack.c.l.b16 %v687
  %v796 = vunpack.c.l.b16 %v688
  %v797 = vunpack.c.h.b16 %v686
  %v798 = vunpack.c.h.b16 %v687
  %v799 = vunpack.c.h.b16 %v688
  %v800 = vunpack.c.l.b16 %v689
  %v801 = vunpack.c.l.b16 %v690
  %v802 = vunpack.c.l.b16 %v691
  %v803 = vunpack.c.h.b16 %v689
  %v804 = vunpack.c.h.b16 %v690
  %v805 = vunpack.c.h.b16 %v691
  %v806 = vunpack.c.l.b16 %v692
  %v807 = vunpack.c.l.b16 %v693
  %v808 = vunpack.c.l.b16 %v694
  %v809 = vunpack.c.h.b16 %v692
  %v810 = vunpack.c.h.b16 %v693
  %v811 = vunpack.c.h.b16 %v694
  %v812 = vunpack.c.l.b16 %v695
  %v813 = vunpack.c.l.b16 %v696
  %v814 = vunpack.c.l.b16 %v697
  %v815 = vunpack.c.h.b16 %v695
  %v816 = vunpack.c.h.b16 %v696
  %v817 = vunpack.c.h.b16 %v697
  %v818 = vunpack.c.l.b16 %v698
  %v819 = vunpack.c.l.b16 %v699
  %v820 = vunpack.c.l.b16 %v700
  %v821 = vunpack.c.h.b16 %v698
  %v822 = vunpack.c.h.b16 %v699
  %v823 = vunpack.c.h.b16 %v700
  %v824 = vunpack.c.l.b16 %v701
  %v825 = vunpack.c.l.b16 %v702
  %v826 = vunpack.c.l.b16 %v703
  %v827 = vunpack.c.h.b16 %v701
  %v828 = vunpack.c.h.b16 %v702
  %v829 = vunpack.c.h.b16 %v703
  %v830 = vunpack.c.l.b16 %v704
  %v831 = vunpack.c.l.b16 %v705
  %v832 = vunpack.c.l.b16 %v706
  %v833 = vunpack.c.h.b16 %v704
  %v834 = vunpack.c.h.b16 %v705
  %v835 = vunpack.c.h.b16 %v706
  %v836 = vunpack.c.l.b16 %v707
  %v837 = vunpack.c.l.b16 %v708
  %v838 = vunpack.c.l.b16 %v709
  %v839 = vunpack.c.h.b16 %v707
  %v840 = vunpack.c.h.b16 %v708
  %v841 = vunpack.c.h.b16 %v709
  %v842 = vunpack.c.l.b16 %v710
  %v843 = vunpack.c.l.b16 %v711
  %v844 = vunpack.c.l.b16 %v712
  %v845 = vunpack.c.h.b16 %v710
  %v846 = vunpack.c.h.b16 %v711
  %v847 = vunpack.c.h.b16 %v712
  %v848 = vunpack.c.l.b16 %v713
  %v849 = vunpack.c.l.b16 %v714
  %v850 = vunpack.c.l.b16 %v715
  %v851 = vunpack.c.h.b16 %v713
  %v852 = vunpack.c.h.b16 %v714
  %v853 = vunpack.c.h.b16 %v715
  %v854 = vunpack.c.l.b16 %v716
  %v855 = vunpack.c.l.b16 %v717
  %v856 = vunpack.c.l.b16 %v718
  %v857 = vunpack.c.h.b16 %v716
  %v858 = vunpack.c.h.b16 %v717
  %v859 = vunpack.c.h.b16 %v718
  %v860 = vunpack.c.l.b16 %v719
  %v861 = vunpack.c.l.b16 %v720
  %v862 = vunpack.c.l.b16 %v721
  %v863 = vunpack.c.h.b16 %v719
  %v864 = vunpack.c.h.b16 %v720
  %v865 = vunpack.c.h.b16 %v721
  %v866 = vpack.c.b16 %v771, %v770
  %v867 = vpack.c.b16 %v772, %v772
  %v868 = vpack.c.b16 %v774, %v773
  %v869 = vpack.c.b16 %v775, %v775
  %v870 = vpack.c.b16 %v777, %v776
  %v871 = vpack.c.b16 %v778, %v778
  %v872 = vpack.c.b16 %v780, %v779
  %v873 = vpack.c.b16 %v781, %v781
  %v874 = vpack.c.b16 %v783, %v782
  %v875 = vpack.c.b16 %v784, %v784
  %v876 = vpack.c.b16 %v786, %v785
  %v877 = vpack.c.b16 %v787, %v787
  %v878 = vpack.c.b16 %v789, %v788
  %v879 = vpack.c.b16 %v790, %v790
  %v880 = vpack.c.b16 %v792, %v791
  %v881 = vpack.c.b16 %v793, %v793
  %v882 = vpack.c.b16 %v795, %v794
  %v883 = vpack.c.b16 %v796, %v796
  %v884 = vpack.c.b16 %v798, %v797
  %v885 = vpack.c.b16 %v799, %v799
  %v886 = vpack.c.b16 %v801, %v800
  %v887 = vpack.c.b16 %v802, %v802
  %v888 = vpack.c.b16 %v804, %v803
  %v889 = vpack.c.b16 %v805, %v805
  %v890 = vpack.c.b16 %v807, %v806
  %v891 = vpack.c.b16 %v808, %v808
  %v892 = vpack.c.b16 %v810, %v809
  %v893 = vpack.c.b16 %v811, %v811
  %v894 = vpack.c.b16 %v813, %v812
  %v895 = vpack.c.b16 %v814, %v814
  %v896 = vpack.c.b16 %v816, %v815
  %v897 = vpack.c.b16 %v817, %v817
  %v898 = vpack.c.b16 %v819, %v818
  %v899 = vpack.c.b16 %v820, %v820
  %v900 = vpack.c.b16 %v822, %v821
  %v901 = vpack.c.b16 %v823, %v823
  %v902 = vpack.c.b16 %v825, %v824
  %v903 = vpack.c.b16 %v826, %v826
  %v904 = vpack.c.b16 %v828, %v827
  %v905 = vpack.c.b16 %v829, %v829
  %v906 = vpack.c.b16 %v831, %v830
  %v907 = vpack.c.b16 %v832, %v832
  %v908 = vpack.c.b16 %v834, %v833
  %v909 = vpack.c.b16 %v835, %v835
  %v910 = vpack.c.b16 %v837, %v836
  %v911 = vpack.c.b16 %v838, %v838
  %v912 = vpack.c.b16 %v840, %v839
  %v913 = vpack.c.b16 %v841, %v841
  %v914 = vpack.c.b16 %v843, %v842
  %v915 = vpack.c.b16 %v844, %v844
  %v916 = vpack.c.b16 %v846, %v845
  %v917 = vpack.c.b16 %v847, %v847
  %v918 = vpack.c.b16 %v849, %v848
  %v919 = vpack.c.b16 %v850, %v850
  %v920 = vpack.c.b16 %v852, %v851
  %v921 = vpack.c.b16 %v853, %v853
  %v922 = vpack.c.b16 %v855, %v854
  %v923 = vpack.c.b16 %v856, %v856
  %v924 = vpack.c.b16 %v858, %v857
  %v925 = vpack.c.b16 %v859, %v859
  %v926 = vpack.c.b16 %v861, %v860
  %v927 = vpack.c.b16 %v862, %v862
  %v928 = vpack.c.b16 %v864, %v863
  %v929 = vpack.c.b16 %v865, %v865
  %994 = vst [vmem:[%s3] sm:$0xff] %v866
  %995 = vst [vmem:[%s3 + $0x8] sm:$0xf] %v867
  %996 = vst [vmem:[%s3 + $0xc] sm:$0xff] %v868
  %997 = vst [vmem:[%s3 + $0x14] sm:$0xf] %v869
  %998 = vst [vmem:[%s3 + $0x18] sm:$0xff] %v870
  %999 = vst [vmem:[%s3 + $0x20] sm:$0xf] %v871
  %1000 = vst [vmem:[%s3 + $0x24] sm:$0xff] %v872
  %1001 = vst [vmem:[%s3 + $0x2c] sm:$0xf] %v873
  %1002 = vst [vmem:[%s3 + $0x30] sm:$0xff] %v874
  %1003 = vst [vmem:[%s3 + $0x38] sm:$0xf] %v875
  %1004 = vst [vmem:[%s3 + $0x3c] sm:$0xff] %v876
  %1005 = vst [vmem:[%s3 + $0x44] sm:$0xf] %v877
  %1006 = vst [vmem:[%s3 + $0x48] sm:$0xff] %v878
  %1007 = vst [vmem:[%s3 + $0x50] sm:$0xf] %v879
  %1008 = vst [vmem:[%s3 + $0x54] sm:$0xff] %v880
  %1009 = vst [vmem:[%s3 + $0x5c] sm:$0xf] %v881
  %1010 = vst [vmem:[%s3 + $0x60] sm:$0xff] %v882
  %1011 = vst [vmem:[%s3 + $0x68] sm:$0xf] %v883
  %1012 = vst [vmem:[%s3 + $0x6c] sm:$0xff] %v884
  %1013 = vst [vmem:[%s3 + $0x74] sm:$0xf] %v885
  %1014 = vst [vmem:[%s3 + $0x78] sm:$0xff] %v886
  %1015 = vst [vmem:[%s3 + $0x80] sm:$0xf] %v887
  %1016 = vst [vmem:[%s3 + $0x84] sm:$0xff] %v888
  %1017 = vst [vmem:[%s3 + $0x8c] sm:$0xf] %v889
  %1018 = vst [vmem:[%s3 + $0x90] sm:$0xff] %v890
  %1019 = vst [vmem:[%s3 + $0x98] sm:$0xf] %v891
  %1020 = vst [vmem:[%s3 + $0x9c] sm:$0xff] %v892
  %1021 = vst [vmem:[%s3 + $0xa4] sm:$0xf] %v893
  %1022 = vst [vmem:[%s3 + $0xa8] sm:$0xff] %v894
  %1023 = vst [vmem:[%s3 + $0xb0] sm:$0xf] %v895
  %1024 = vst [vmem:[%s3 + $0xb4] sm:$0xff] %v896
  %1025 = vst [vmem:[%s3 + $0xbc] sm:$0xf] %v897
  %1026 = vst [vmem:[%s3 + $0xc0] sm:$0xff] %v898
  %1027 = vst [vmem:[%s3 + $0xc8] sm:$0xf] %v899
  %1028 = vst [vmem:[%s3 + $0xcc] sm:$0xff] %v900
  %1029 = vst [vmem:[%s3 + $0xd4] sm:$0xf] %v901
  %1030 = vst [vmem:[%s3 + $0xd8] sm:$0xff] %v902
  %1031 = vst [vmem:[%s3 + $0xe0] sm:$0xf] %v903
  %1032 = vst [vmem:[%s3 + $0xe4] sm:$0xff] %v904
  %1033 = vst [vmem:[%s3 + $0xec] sm:$0xf] %v905
  %1034 = vst [vmem:[%s3 + $0xf0] sm:$0xff] %v906
  %1035 = vst [vmem:[%s3 + $0xf8] sm:$0xf] %v907
  %1036 = vst [vmem:[%s3 + $0xfc] sm:$0xff] %v908
  %1037 = vst [vmem:[%s3 + $0x104] sm:$0xf] %v909
  %1038 = vst [vmem:[%s3 + $0x108] sm:$0xff] %v910
  %1039 = vst [vmem:[%s3 + $0x110] sm:$0xf] %v911
  %1040 = vst [vmem:[%s3 + $0x114] sm:$0xff] %v912
  %1041 = vst [vmem:[%s3 + $0x11c] sm:$0xf] %v913
  %1042 = vst [vmem:[%s3 + $0x120] sm:$0xff] %v914
  %1043 = vst [vmem:[%s3 + $0x128] sm:$0xf] %v915
  %1044 = vst [vmem:[%s3 + $0x12c] sm:$0xff] %v916
  %1045 = vst [vmem:[%s3 + $0x134] sm:$0xf] %v917
  %1046 = vst [vmem:[%s3 + $0x138] sm:$0xff] %v918
  %1047 = vst [vmem:[%s3 + $0x140] sm:$0xf] %v919
  %1048 = vst [vmem:[%s3 + $0x144] sm:$0xff] %v920
  %1049 = vst [vmem:[%s3 + $0x14c] sm:$0xf] %v921
  %1050 = vst [vmem:[%s3 + $0x150] sm:$0xff] %v922
  %1051 = vst [vmem:[%s3 + $0x158] sm:$0xf] %v923
  %1052 = vst [vmem:[%s3 + $0x15c] sm:$0xff] %v924
  %1053 = vst [vmem:[%s3 + $0x164] sm:$0xf] %v925
  %1054 = vst [vmem:[%s3 + $0x168] sm:$0xff] %v926
  %1055 = vst [vmem:[%s3 + $0x170] sm:$0xf] %v927
  %1056 = vst [vmem:[%s3 + $0x174] sm:$0xff] %v928
  %1057 = vst [vmem:[%s3 + $0x17c] sm:$0xf] %v929
  // Predicated region
  $region14: #{gpt2_logits.17} parent=0 // pred_check
    _
  $region15: #{gpt2_logits.17} parent=0 // pred_check_branch
    %1059 = sbr.rel (0) target = $region17
  $region16: #{gpt2_logits.17} parent=0 // pred_region
    _
  $region17: #{gpt2_logits.17} parent=0 // pred_fallthru
    _
  // Predicated region
  $region18: #{gpt2_logits.17} parent=0 // pred_check
    _
  $region19: #{gpt2_logits.17} parent=0 // pred_check_branch
    %1061 = sbr.rel (0) target = $region21
  $region20: #{gpt2_logits.17} parent=0 // pred_region
    _
  $region21: #{gpt2_logits.17} parent=0 // pred_fallthru
    _

// kernel: gpt2_logits.19
$region0: #{gpt2_logits.19}
  #allocation0 [shape = 'u32[]', space=smem, size = 0x4, offset = 0x4, fixed_abs, tag = 'smem constant byte address 0x4 - core index']
  #allocation1 [shape = 'u32[144,128]{1,0:T(1,128)}', space=vmem, size = 0x12000, scoped, tag = 'internal scratch']
  %s0 = inlined_call_operand.vmem [shape: bf16[256,128], index: 0, kind: input, shape index: {}]
  %s1 = inlined_call_operand.vmem [shape: bf16[128,128], index: 1, kind: input, shape index: {}]
  %s2 = inlined_call_operand.vmem [shape: f32[1,128], index: 2, kind: input, shape index: {}]
  %s3 = inlined_call_operand.vmem [shape: bf16[256,128], index: 3, kind: input, shape index: {}]
  %s4 = inlined_call_operand.vmem [shape: bf16[256,128], index: 4, kind: output, shape index: {}]
  %s5 = sld [smem:[#allocation0]]
  $region26: #{gpt2_logits.19} parent=0
    _
  %s7 = ssub.s32 1, %s5
  %s8 = scalar_select 0, %s7, %s5
  // Predicated region
  $region2: #{gpt2_logits.19} parent=0 // pred_check
    _
  $region3: #{gpt2_logits.19} parent=0 // pred_check_branch
    %10 = sbr.rel (0) target = $region5
  $region4: #{gpt2_logits.19} parent=0 // pred_region
    _
  $region5: #{gpt2_logits.19} parent=0 // pred_fallthru
    _
  // Predicated region
  $region6: #{gpt2_logits.19} parent=0 // pred_check
    _
  $region7: #{gpt2_logits.19} parent=0 // pred_check_branch
    %12 = sbr.rel (0) target = $region9
  $region8: #{gpt2_logits.19} parent=0 // pred_region
    _
  $region9: #{gpt2_logits.19} parent=0 // pred_fallthru
    _
  // Predicated region
  $region10: #{gpt2_logits.19} parent=0 // pred_check
    _
  $region11: #{gpt2_logits.19} parent=0 // pred_check_branch
    %14 = sbr.rel (0) target = $region13
  $region12: #{gpt2_logits.19} parent=0 // pred_region
    _
  $region13: #{gpt2_logits.19} parent=0 // pred_fallthru
    _
  // Predicated region
  $region14: #{gpt2_logits.19} parent=0 // pred_check
    _
  $region15: #{gpt2_logits.19} parent=0 // pred_check_branch
    %16 = sbr.rel (0) target = $region17
  $region16: #{gpt2_logits.19} parent=0 // pred_region
    _
  $region17: #{gpt2_logits.19} parent=0 // pred_fallthru
    _
  %v18 = vld [vmem:[%s0] sm:$0xf]
  %v19 = vld [vmem:[%s0 + $0x4] sm:$0xf]
  %v20 = vld [vmem:[%s0 + $0x8] sm:$0xf]
  %v21 = vld [vmem:[%s0 + $0xc] sm:$0xf]
  %v22 = vld [vmem:[%s0 + $0x10] sm:$0xf]
  %v23 = vld [vmem:[%s0 + $0x14] sm:$0xf]
  %v24 = vld [vmem:[%s0 + $0x18] sm:$0xf]
  %v25 = vld [vmem:[%s0 + $0x1c] sm:$0xf]
  %v26 = vld [vmem:[%s0 + $0x20] sm:$0xf]
  %v27 = vld [vmem:[%s0 + $0x24] sm:$0xf]
  %v28 = vld [vmem:[%s0 + $0x28] sm:$0xf]
  %v29 = vld [vmem:[%s0 + $0x2c] sm:$0xf]
  %v30 = vld [vmem:[%s0 + $0x30] sm:$0xf]
  %v31 = vld [vmem:[%s0 + $0x34] sm:$0xf]
  %v32 = vld [vmem:[%s0 + $0x38] sm:$0xf]
  %v33 = vld [vmem:[%s0 + $0x3c] sm:$0xf]
  %v34 = vld [vmem:[%s0 + $0x40] sm:$0xf]
  %v35 = vld [vmem:[%s0 + $0x44] sm:$0xf]
  %v36 = vld [vmem:[%s0 + $0x48] sm:$0xf]
  %v37 = vld [vmem:[%s0 + $0x4c] sm:$0xf]
  %v38 = vld [vmem:[%s0 + $0x50] sm:$0xf]
  %v39 = vld [vmem:[%s0 + $0x54] sm:$0xf]
  %v40 = vld [vmem:[%s0 + $0x58] sm:$0xf]
  %v41 = vld [vmem:[%s0 + $0x5c] sm:$0xf]
  %v42 = vld [vmem:[%s0 + $0x60] sm:$0xf]
  %v43 = vld [vmem:[%s0 + $0x64] sm:$0xf]
  %v44 = vld [vmem:[%s0 + $0x68] sm:$0xf]
  %v45 = vld [vmem:[%s0 + $0x6c] sm:$0xf]
  %v46 = vld [vmem:[%s0 + $0x70] sm:$0xf]
  %v47 = vld [vmem:[%s0 + $0x74] sm:$0xf]
  %v48 = vld [vmem:[%s0 + $0x78] sm:$0xf]
  %v49 = vld [vmem:[%s0 + $0x7c] sm:$0xf]
  %v50 = vld [vmem:[%s1] sm:$0xf]
  %v51 = vld [vmem:[%s1 + $0x4] sm:$0xf]
  %v52 = vld [vmem:[%s1 + $0x8] sm:$0xf]
  %v53 = vld [vmem:[%s1 + $0xc] sm:$0xf]
  %v54 = vld [vmem:[%s1 + $0x10] sm:$0xf]
  %v55 = vld [vmem:[%s1 + $0x14] sm:$0xf]
  %v56 = vld [vmem:[%s1 + $0x18] sm:$0xf]
  %v57 = vld [vmem:[%s1 + $0x1c] sm:$0xf]
  %v58 = vld [vmem:[%s1 + $0x20] sm:$0xf]
  %v59 = vld [vmem:[%s1 + $0x24] sm:$0xf]
  %v60 = vld [vmem:[%s1 + $0x28] sm:$0xf]
  %v61 = vld [vmem:[%s1 + $0x2c] sm:$0xf]
  %v62 = vld [vmem:[%s1 + $0x30] sm:$0xf]
  %v63 = vld [vmem:[%s1 + $0x34] sm:$0xf]
  %v64 = vld [vmem:[%s1 + $0x38] sm:$0xf]
  %v65 = vld [vmem:[%s1 + $0x3c] sm:$0xf]
  %v66 = vld [vmem:[%s2] sm:$0x1]
  %v68 = vlaneseq
  %v69 = vshrl.u32 %v68, 7
  %v70 = vsub.s32 0, %v69
  %v71 = vrot.slane %v66, %v70
  %v105 = vunpack.c.l.b16 %v18
  %v106 = vunpack.c.l.b16 %v19
  %v107 = vunpack.c.l.b16 %v20
  %v108 = vunpack.c.l.b16 %v21
  %v109 = vunpack.c.l.b16 %v22
  %v110 = vunpack.c.l.b16 %v23
  %v111 = vunpack.c.l.b16 %v24
  %v112 = vunpack.c.l.b16 %v25
  %v113 = vunpack.c.l.b16 %v26
  %v114 = vunpack.c.l.b16 %v27
  %v115 = vunpack.c.l.b16 %v28
  %v116 = vunpack.c.l.b16 %v29
  %v117 = vunpack.c.l.b16 %v30
  %v118 = vunpack.c.l.b16 %v31
  %v119 = vunpack.c.l.b16 %v32
  %v120 = vunpack.c.l.b16 %v33
  %v121 = vunpack.c.l.b16 %v34
  %v122 = vunpack.c.l.b16 %v35
  %v123 = vunpack.c.l.b16 %v36
  %v124 = vunpack.c.l.b16 %v37
  %v125 = vunpack.c.l.b16 %v38
  %v126 = vunpack.c.l.b16 %v39
  %v127 = vunpack.c.l.b16 %v40
  %v128 = vunpack.c.l.b16 %v41
  %v129 = vunpack.c.l.b16 %v42
  %v130 = vunpack.c.l.b16 %v43
  %v131 = vunpack.c.l.b16 %v44
  %v132 = vunpack.c.l.b16 %v45
  %v133 = vunpack.c.l.b16 %v46
  %v134 = vunpack.c.l.b16 %v47
  %v135 = vunpack.c.l.b16 %v48
  %v136 = vunpack.c.l.b16 %v49
  %v137 = vpack.c.b16 %v106, %v105
  %v138 = vpack.c.b16 %v108, %v107
  %v139 = vpack.c.b16 %v110, %v109
  %v140 = vpack.c.b16 %v112, %v111
  %v141 = vpack.c.b16 %v114, %v113
  %v142 = vpack.c.b16 %v116, %v115
  %v143 = vpack.c.b16 %v118, %v117
  %v144 = vpack.c.b16 %v120, %v119
  %v145 = vpack.c.b16 %v122, %v121
  %v146 = vpack.c.b16 %v124, %v123
  %v147 = vpack.c.b16 %v126, %v125
  %v148 = vpack.c.b16 %v128, %v127
  %v149 = vpack.c.b16 %v130, %v129
  %v150 = vpack.c.b16 %v132, %v131
  %v151 = vpack.c.b16 %v134, %v133
  %v152 = vpack.c.b16 %v136, %v135
  %v185 = vunpack.c.l.b16 %v50
  %v186 = vunpack.c.l.b16 %v51
  %v187 = vunpack.c.l.b16 %v52
  %v188 = vunpack.c.l.b16 %v53
  %v189 = vunpack.c.l.b16 %v54
  %v190 = vunpack.c.l.b16 %v55
  %v191 = vunpack.c.l.b16 %v56
  %v192 = vunpack.c.l.b16 %v57
  %v193 = vunpack.c.l.b16 %v58
  %v194 = vunpack.c.l.b16 %v59
  %v195 = vunpack.c.l.b16 %v60
  %v196 = vunpack.c.l.b16 %v61
  %v197 = vunpack.c.l.b16 %v62
  %v198 = vunpack.c.l.b16 %v63
  %v199 = vunpack.c.l.b16 %v64
  %v200 = vunpack.c.l.b16 %v65
  %v201 = vpack.c.b16 %v186, %v185
  %v202 = vpack.c.b16 %v188, %v187
  %v203 = vpack.c.b16 %v190, %v189
  %v204 = vpack.c.b16 %v192, %v191
  %v205 = vpack.c.b16 %v194, %v193
  %v206 = vpack.c.b16 %v196, %v195
  %v207 = vpack.c.b16 %v198, %v197
  %v208 = vpack.c.b16 %v200, %v199
  %217 = vmatprep.subr.bf16.mxu0 0
  %218 = vmatpush1.bf16.msra.mxu0 %v208
  %219 = vmatprep.subr.bf16.mxu0 0
  %220 = vmatpush1.bf16.msra.mxu0 %v207
  %221 = vmatprep.subr.bf16.mxu0 0
  %222 = vmatpush1.bf16.msra.mxu0 %v206
  %223 = vmatprep.subr.bf16.mxu0 0
  %224 = vmatpush1.bf16.msra.mxu0 %v205
  %225 = vmatprep.subr.bf16.mxu0 0
  %226 = vmatpush1.bf16.msra.mxu0 %v204
  %227 = vmatprep.subr.bf16.mxu0 0
  %228 = vmatpush1.bf16.msra.mxu0 %v203
  %229 = vmatprep.subr.bf16.mxu0 0
  %230 = vmatpush1.bf16.msra.mxu0 %v202
  %231 = vmatprep.subr.bf16.mxu0 0
  %232 = vmatpush1.bf16.msra.mxu0 %v201
  %233 = vmatprep.subr.bf16.mxu0 0
  %234 = vmatpush2.bf16.msra.mxu0 0
  %235 = vmatprep.subr.bf16.mxu0 0
  %236 = vmatpush2.bf16.msra.mxu0 0
  %237 = vmatprep.subr.bf16.mxu0 0
  %238 = vmatpush2.bf16.msra.mxu0 0
  %239 = vmatprep.subr.bf16.mxu0 0
  %240 = vmatpush2.bf16.msra.mxu0 0
  %241 = vmatprep.subr.bf16.mxu0 0
  %242 = vmatpush2.bf16.msra.mxu0 0
  %243 = vmatprep.subr.bf16.mxu0 0
  %244 = vmatpush2.bf16.msra.mxu0 0
  %245 = vmatprep.subr.bf16.mxu0 0
  %246 = vmatpush2.bf16.msra.mxu0 0
  %247 = vmatprep.subr.bf16.mxu0 0
  %248 = vmatpush2.bf16.msra.mxu0 0
  %249 = vmatprep.mubr.bf16.mxu0 0
  %250 = vmatmul.mubr.bf16.gmra.mxu0 %v137
  %v251 = vpop.f32.mrf.mxu0
  %v252 = vadd.f32 %v71, %v251
  %v253 = vpop.f32.mrf.mxu0
  %v254 = vpop.f32.mrf.mxu0
  %v255 = vadd.f32 %v71, %v254
  %v256 = vpop.f32.mrf.mxu0
  %257 = vmatprep.mubr.bf16.mxu0 0
  %258 = vmatmul.mubr.bf16.gmra.mxu0 %v138
  %v259 = vpop.f32.mrf.mxu0
  %v260 = vadd.f32 %v71, %v259
  %v261 = vpop.f32.mrf.mxu0
  %v262 = vpop.f32.mrf.mxu0
  %v263 = vadd.f32 %v71, %v262
  %v264 = vpop.f32.mrf.mxu0
  %265 = vmatprep.mubr.bf16.mxu0 0
  %266 = vmatmul.mubr.bf16.gmra.mxu0 %v139
  %v267 = vpop.f32.mrf.mxu0
  %v268 = vadd.f32 %v71, %v267
  %v269 = vpop.f32.mrf.mxu0
  %v270 = vpop.f32.mrf.mxu0
  %v271 = vadd.f32 %v71, %v270
  %v272 = vpop.f32.mrf.mxu0
  %273 = vmatprep.mubr.bf16.mxu0 0
  %274 = vmatmul.mubr.bf16.gmra.mxu0 %v140
  %v275 = vpop.f32.mrf.mxu0
  %v276 = vadd.f32 %v71, %v275
  %v277 = vpop.f32.mrf.mxu0
  %v278 = vpop.f32.mrf.mxu0
  %v279 = vadd.f32 %v71, %v278
  %v280 = vpop.f32.mrf.mxu0
  %281 = vmatprep.mubr.bf16.mxu0 0
  %282 = vmatmul.mubr.bf16.gmra.mxu0 %v141
  %v283 = vpop.f32.mrf.mxu0
  %v284 = vadd.f32 %v71, %v283
  %v285 = vpop.f32.mrf.mxu0
  %v286 = vpop.f32.mrf.mxu0
  %v287 = vadd.f32 %v71, %v286
  %v288 = vpop.f32.mrf.mxu0
  %289 = vmatprep.mubr.bf16.mxu0 0
  %290 = vmatmul.mubr.bf16.gmra.mxu0 %v142
  %v291 = vpop.f32.mrf.mxu0
  %v292 = vadd.f32 %v71, %v291
  %v293 = vpop.f32.mrf.mxu0
  %v294 = vpop.f32.mrf.mxu0
  %v295 = vadd.f32 %v71, %v294
  %v296 = vpop.f32.mrf.mxu0
  %297 = vmatprep.mubr.bf16.mxu0 0
  %298 = vmatmul.mubr.bf16.gmra.mxu0 %v143
  %v299 = vpop.f32.mrf.mxu0
  %v300 = vadd.f32 %v71, %v299
  %v301 = vpop.f32.mrf.mxu0
  %v302 = vpop.f32.mrf.mxu0
  %v303 = vadd.f32 %v71, %v302
  %v304 = vpop.f32.mrf.mxu0
  %305 = vmatprep.mubr.bf16.mxu0 0
  %306 = vmatmul.mubr.bf16.gmra.mxu0 %v144
  %v307 = vpop.f32.mrf.mxu0
  %v308 = vadd.f32 %v71, %v307
  %v309 = vpop.f32.mrf.mxu0
  %v310 = vpop.f32.mrf.mxu0
  %v311 = vadd.f32 %v71, %v310
  %v312 = vpop.f32.mrf.mxu0
  %313 = vmatprep.mubr.bf16.mxu0 0
  %314 = vmatmul.mubr.bf16.gmra.mxu0 %v145
  %v315 = vpop.f32.mrf.mxu0
  %v316 = vadd.f32 %v71, %v315
  %v317 = vpop.f32.mrf.mxu0
  %v318 = vpop.f32.mrf.mxu0
  %v319 = vadd.f32 %v71, %v318
  %v320 = vpop.f32.mrf.mxu0
  %321 = vmatprep.mubr.bf16.mxu0 0
  %322 = vmatmul.mubr.bf16.gmra.mxu0 %v146
  %v323 = vpop.f32.mrf.mxu0
  %v324 = vadd.f32 %v71, %v323
  %v325 = vpop.f32.mrf.mxu0
  %v326 = vpop.f32.mrf.mxu0
  %v327 = vadd.f32 %v71, %v326
  %v328 = vpop.f32.mrf.mxu0
  %329 = vmatprep.mubr.bf16.mxu0 0
  %330 = vmatmul.mubr.bf16.gmra.mxu0 %v147
  %v331 = vpop.f32.mrf.mxu0
  %v332 = vadd.f32 %v71, %v331
  %v333 = vpop.f32.mrf.mxu0
  %v334 = vpop.f32.mrf.mxu0
  %v335 = vadd.f32 %v71, %v334
  %v336 = vpop.f32.mrf.mxu0
  %337 = vmatprep.mubr.bf16.mxu0 0
  %338 = vmatmul.mubr.bf16.gmra.mxu0 %v148
  %v339 = vpop.f32.mrf.mxu0
  %v340 = vadd.f32 %v71, %v339
  %v341 = vpop.f32.mrf.mxu0
  %v342 = vpop.f32.mrf.mxu0
  %v343 = vadd.f32 %v71, %v342
  %v344 = vpop.f32.mrf.mxu0
  %345 = vmatprep.mubr.bf16.mxu0 0
  %346 = vmatmul.mubr.bf16.gmra.mxu0 %v149
  %v347 = vpop.f32.mrf.mxu0
  %v348 = vadd.f32 %v71, %v347
  %v349 = vpop.f32.mrf.mxu0
  %v350 = vpop.f32.mrf.mxu0
  %v351 = vadd.f32 %v71, %v350
  %v352 = vpop.f32.mrf.mxu0
  %353 = vmatprep.mubr.bf16.mxu0 0
  %354 = vmatmul.mubr.bf16.gmra.mxu0 %v150
  %v355 = vpop.f32.mrf.mxu0
  %v356 = vadd.f32 %v71, %v355
  %v357 = vpop.f32.mrf.mxu0
  %v358 = vpop.f32.mrf.mxu0
  %v359 = vadd.f32 %v71, %v358
  %v360 = vpop.f32.mrf.mxu0
  %361 = vmatprep.mubr.bf16.mxu0 0
  %362 = vmatmul.mubr.bf16.gmra.mxu0 %v151
  %v363 = vpop.f32.mrf.mxu0
  %v364 = vadd.f32 %v71, %v363
  %v365 = vpop.f32.mrf.mxu0
  %v366 = vpop.f32.mrf.mxu0
  %v367 = vadd.f32 %v71, %v366
  %v368 = vpop.f32.mrf.mxu0
  %369 = vmatprep.mubr.bf16.mxu0 0
  %370 = vmatmul.mubr.bf16.gmra.mxu0 %v152
  %v371 = vpop.f32.mrf.mxu0
  %v372 = vadd.f32 %v71, %v371
  %v373 = vpop.f32.mrf.mxu0
  %v374 = vpop.f32.mrf.mxu0
  %v375 = vadd.f32 %v71, %v374
  %v376 = vpop.f32.mrf.mxu0
  %377 = vdwg.mxu0
  %v378 = vld [vmem:[%s3] sm:$0xf]
  %v379 = vld [vmem:[%s3 + $0x4] sm:$0xf]
  %v380 = vld [vmem:[%s3 + $0x8] sm:$0xf]
  %v381 = vld [vmem:[%s3 + $0xc] sm:$0xf]
  %v382 = vld [vmem:[%s3 + $0x10] sm:$0xf]
  %v383 = vld [vmem:[%s3 + $0x14] sm:$0xf]
  %v384 = vld [vmem:[%s3 + $0x18] sm:$0xf]
  %v385 = vld [vmem:[%s3 + $0x1c] sm:$0xf]
  %v386 = vld [vmem:[%s3 + $0x20] sm:$0xf]
  %v387 = vld [vmem:[%s3 + $0x24] sm:$0xf]
  %v388 = vld [vmem:[%s3 + $0x28] sm:$0xf]
  %v389 = vld [vmem:[%s3 + $0x2c] sm:$0xf]
  %v390 = vld [vmem:[%s3 + $0x30] sm:$0xf]
  %v391 = vld [vmem:[%s3 + $0x34] sm:$0xf]
  %v392 = vld [vmem:[%s3 + $0x38] sm:$0xf]
  %v393 = vld [vmem:[%s3 + $0x3c] sm:$0xf]
  %v394 = vld [vmem:[%s3 + $0x40] sm:$0xf]
  %v395 = vld [vmem:[%s3 + $0x44] sm:$0xf]
  %v396 = vld [vmem:[%s3 + $0x48] sm:$0xf]
  %v397 = vld [vmem:[%s3 + $0x4c] sm:$0xf]
  %v398 = vld [vmem:[%s3 + $0x50] sm:$0xf]
  %v399 = vld [vmem:[%s3 + $0x54] sm:$0xf]
  %v400 = vld [vmem:[%s3 + $0x58] sm:$0xf]
  %v401 = vld [vmem:[%s3 + $0x5c] sm:$0xf]
  %v402 = vld [vmem:[%s3 + $0x60] sm:$0xf]
  %v403 = vld [vmem:[%s3 + $0x64] sm:$0xf]
  %v404 = vld [vmem:[%s3 + $0x68] sm:$0xf]
  %v405 = vld [vmem:[%s3 + $0x6c] sm:$0xf]
  %v406 = vld [vmem:[%s3 + $0x70] sm:$0xf]
  %v407 = vld [vmem:[%s3 + $0x74] sm:$0xf]
  %v408 = vld [vmem:[%s3 + $0x78] sm:$0xf]
  %v409 = vld [vmem:[%s3 + $0x7c] sm:$0xf]
  %v410 = vunpack.c.l.bf16 %v378
  %v411 = vunpack.c.l.bf16 %v379
  %v412 = vunpack.c.l.bf16 %v380
  %v413 = vunpack.c.l.bf16 %v381
  %v414 = vunpack.c.l.bf16 %v382
  %v415 = vunpack.c.l.bf16 %v383
  %v416 = vunpack.c.l.bf16 %v384
  %v417 = vunpack.c.l.bf16 %v385
  %v418 = vunpack.c.l.bf16 %v386
  %v419 = vunpack.c.l.bf16 %v387
  %v420 = vunpack.c.l.bf16 %v388
  %v421 = vunpack.c.l.bf16 %v389
  %v422 = vunpack.c.l.bf16 %v390
  %v423 = vunpack.c.l.bf16 %v391
  %v424 = vunpack.c.l.bf16 %v392
  %v425 = vunpack.c.l.bf16 %v393
  %v426 = vunpack.c.l.bf16 %v394
  %v427 = vunpack.c.l.bf16 %v395
  %v428 = vunpack.c.l.bf16 %v396
  %v429 = vunpack.c.l.bf16 %v397
  %v430 = vunpack.c.l.bf16 %v398
  %v431 = vunpack.c.l.bf16 %v399
  %v432 = vunpack.c.l.bf16 %v400
  %v433 = vunpack.c.l.bf16 %v401
  %v434 = vunpack.c.l.bf16 %v402
  %v435 = vunpack.c.l.bf16 %v403
  %v436 = vunpack.c.l.bf16 %v404
  %v437 = vunpack.c.l.bf16 %v405
  %v438 = vunpack.c.l.bf16 %v406
  %v439 = vunpack.c.l.bf16 %v407
  %v440 = vunpack.c.l.bf16 %v408
  %v441 = vunpack.c.l.bf16 %v409
  %v442 = vadd.f32 %v252, %v410
  %v443 = vadd.f32 %v255, %v411
  %v444 = vadd.f32 %v260, %v412
  %v445 = vadd.f32 %v263, %v413
  %v446 = vadd.f32 %v268, %v414
  %v447 = vadd.f32 %v271, %v415
  %v448 = vadd.f32 %v276, %v416
  %v449 = vadd.f32 %v279, %v417
  %v450 = vadd.f32 %v284, %v418
  %v451 = vadd.f32 %v287, %v419
  %v452 = vadd.f32 %v292, %v420
  %v453 = vadd.f32 %v295, %v421
  %v454 = vadd.f32 %v300, %v422
  %v455 = vadd.f32 %v303, %v423
  %v456 = vadd.f32 %v308, %v424
  %v457 = vadd.f32 %v311, %v425
  %v458 = vadd.f32 %v316, %v426
  %v459 = vadd.f32 %v319, %v427
  %v460 = vadd.f32 %v324, %v428
  %v461 = vadd.f32 %v327, %v429
  %v462 = vadd.f32 %v332, %v430
  %v463 = vadd.f32 %v335, %v431
  %v464 = vadd.f32 %v340, %v432
  %v465 = vadd.f32 %v343, %v433
  %v466 = vadd.f32 %v348, %v434
  %v467 = vadd.f32 %v351, %v435
  %v468 = vadd.f32 %v356, %v436
  %v469 = vadd.f32 %v359, %v437
  %v470 = vadd.f32 %v364, %v438
  %v471 = vadd.f32 %v367, %v439
  %v472 = vadd.f32 %v372, %v440
  %v473 = vadd.f32 %v375, %v441
  %v474 = vpack.c.bf16 %v443, %v442
  %v475 = vpack.c.bf16 %v445, %v444
  %v476 = vpack.c.bf16 %v447, %v446
  %v477 = vpack.c.bf16 %v449, %v448
  %v478 = vpack.c.bf16 %v451, %v450
  %v479 = vpack.c.bf16 %v453, %v452
  %v480 = vpack.c.bf16 %v455, %v454
  %v481 = vpack.c.bf16 %v457, %v456
  %v482 = vpack.c.bf16 %v459, %v458
  %v483 = vpack.c.bf16 %v461, %v460
  %v484 = vpack.c.bf16 %v463, %v462
  %v485 = vpack.c.bf16 %v465, %v464
  %v486 = vpack.c.bf16 %v467, %v466
  %v487 = vpack.c.bf16 %v469, %v468
  %v488 = vpack.c.bf16 %v471, %v470
  %v489 = vpack.c.bf16 %v473, %v472
  %v506 = vunpack.c.l.b16 %v474
  %v507 = vunpack.c.h.b16 %v474
  %v508 = vunpack.c.l.b16 %v475
  %v509 = vunpack.c.h.b16 %v475
  %v510 = vunpack.c.l.b16 %v476
  %v511 = vunpack.c.h.b16 %v476
  %v512 = vunpack.c.l.b16 %v477
  %v513 = vunpack.c.h.b16 %v477
  %v514 = vunpack.c.l.b16 %v478
  %v515 = vunpack.c.h.b16 %v478
  %v516 = vunpack.c.l.b16 %v479
  %v517 = vunpack.c.h.b16 %v479
  %v518 = vunpack.c.l.b16 %v480
  %v519 = vunpack.c.h.b16 %v480
  %v520 = vunpack.c.l.b16 %v481
  %v521 = vunpack.c.h.b16 %v481
  %v522 = vunpack.c.l.b16 %v482
  %v523 = vunpack.c.h.b16 %v482
  %v524 = vunpack.c.l.b16 %v483
  %v525 = vunpack.c.h.b16 %v483
  %v526 = vunpack.c.l.b16 %v484
  %v527 = vunpack.c.h.b16 %v484
  %v528 = vunpack.c.l.b16 %v485
  %v529 = vunpack.c.h.b16 %v485
  %v530 = vunpack.c.l.b16 %v486
  %v531 = vunpack.c.h.b16 %v486
  %v532 = vunpack.c.l.b16 %v487
  %v533 = vunpack.c.h.b16 %v487
  %v534 = vunpack.c.l.b16 %v488
  %v535 = vunpack.c.h.b16 %v488
  %v536 = vunpack.c.l.b16 %v489
  %v537 = vunpack.c.h.b16 %v489
  %v538 = vpack.c.b16 %v506, %v506
  %v539 = vpack.c.b16 %v507, %v507
  %v540 = vpack.c.b16 %v508, %v508
  %v541 = vpack.c.b16 %v509, %v509
  %v542 = vpack.c.b16 %v510, %v510
  %v543 = vpack.c.b16 %v511, %v511
  %v544 = vpack.c.b16 %v512, %v512
  %v545 = vpack.c.b16 %v513, %v513
  %v546 = vpack.c.b16 %v514, %v514
  %v547 = vpack.c.b16 %v515, %v515
  %v548 = vpack.c.b16 %v516, %v516
  %v549 = vpack.c.b16 %v517, %v517
  %v550 = vpack.c.b16 %v518, %v518
  %v551 = vpack.c.b16 %v519, %v519
  %v552 = vpack.c.b16 %v520, %v520
  %v553 = vpack.c.b16 %v521, %v521
  %v554 = vpack.c.b16 %v522, %v522
  %v555 = vpack.c.b16 %v523, %v523
  %v556 = vpack.c.b16 %v524, %v524
  %v557 = vpack.c.b16 %v525, %v525
  %v558 = vpack.c.b16 %v526, %v526
  %v559 = vpack.c.b16 %v527, %v527
  %v560 = vpack.c.b16 %v528, %v528
  %v561 = vpack.c.b16 %v529, %v529
  %v562 = vpack.c.b16 %v530, %v530
  %v563 = vpack.c.b16 %v531, %v531
  %v564 = vpack.c.b16 %v532, %v532
  %v565 = vpack.c.b16 %v533, %v533
  %v566 = vpack.c.b16 %v534, %v534
  %v567 = vpack.c.b16 %v535, %v535
  %v568 = vpack.c.b16 %v536, %v536
  %v569 = vpack.c.b16 %v537, %v537
  %602 = vst [vmem:[%s4] sm:$0xf] %v538
  %603 = vst [vmem:[%s4 + $0x4] sm:$0xf] %v539
  %604 = vst [vmem:[%s4 + $0x8] sm:$0xf] %v540
  %605 = vst [vmem:[%s4 + $0xc] sm:$0xf] %v541
  %606 = vst [vmem:[%s4 + $0x10] sm:$0xf] %v542
  %607 = vst [vmem:[%s4 + $0x14] sm:$0xf] %v543
  %608 = vst [vmem:[%s4 + $0x18] sm:$0xf] %v544
  %609 = vst [vmem:[%s4 + $0x1c] sm:$0xf] %v545
  %610 = vst [vmem:[%s4 + $0x20] sm:$0xf] %v546
  %611 = vst [vmem:[%s4 + $0x24] sm:$0xf] %v547
  %612 = vst [vmem:[%s4 + $0x28] sm:$0xf] %v548
  %613 = vst [vmem:[%s4 + $0x2c] sm:$0xf] %v549
  %614 = vst [vmem:[%s4 + $0x30] sm:$0xf] %v550
  %615 = vst [vmem:[%s4 + $0x34] sm:$0xf] %v551
  %616 = vst [vmem:[%s4 + $0x38] sm:$0xf] %v552
  %617 = vst [vmem:[%s4 + $0x3c] sm:$0xf] %v553
  %618 = vst [vmem:[%s4 + $0x40] sm:$0xf] %v554
  %619 = vst [vmem:[%s4 + $0x44] sm:$0xf] %v555
  %620 = vst [vmem:[%s4 + $0x48] sm:$0xf] %v556
  %621 = vst [vmem:[%s4 + $0x4c] sm:$0xf] %v557
  %622 = vst [vmem:[%s4 + $0x50] sm:$0xf] %v558
  %623 = vst [vmem:[%s4 + $0x54] sm:$0xf] %v559
  %624 = vst [vmem:[%s4 + $0x58] sm:$0xf] %v560
  %625 = vst [vmem:[%s4 + $0x5c] sm:$0xf] %v561
  %626 = vst [vmem:[%s4 + $0x60] sm:$0xf] %v562
  %627 = vst [vmem:[%s4 + $0x64] sm:$0xf] %v563
  %628 = vst [vmem:[%s4 + $0x68] sm:$0xf] %v564
  %629 = vst [vmem:[%s4 + $0x6c] sm:$0xf] %v565
  %630 = vst [vmem:[%s4 + $0x70] sm:$0xf] %v566
  %631 = vst [vmem:[%s4 + $0x74] sm:$0xf] %v567
  %632 = vst [vmem:[%s4 + $0x78] sm:$0xf] %v568
  %633 = vst [vmem:[%s4 + $0x7c] sm:$0xf] %v569
  // Predicated region
  $region18: #{gpt2_logits.19} parent=0 // pred_check
    _
  $region19: #{gpt2_logits.19} parent=0 // pred_check_branch
    %635 = sbr.rel (0) target = $region21
  $region20: #{gpt2_logits.19} parent=0 // pred_region
    _
  $region21: #{gpt2_logits.19} parent=0 // pred_fallthru
    _
  // Predicated region
  $region22: #{gpt2_logits.19} parent=0 // pred_check
    _
  $region23: #{gpt2_logits.19} parent=0 // pred_check_branch
    %637 = sbr.rel (0) target = $region25
  $region24: #{gpt2_logits.19} parent=0 // pred_region
    _
  $region25: #{gpt2_logits.19} parent=0 // pred_fallthru
    _

// kernel: gpt2_logits.22
$region0: #{gpt2_logits.22}
  #allocation0 [shape = 'u32[]', space=smem, size = 0x4, offset = 0x4, fixed_abs, tag = 'smem constant byte address 0x4 - core index']
  #allocation1 [shape = 'u32[144,128]{1,0:T(1,128)}', space=vmem, size = 0x12000, scoped, tag = 'internal scratch']
  %s0 = inlined_call_operand.vmem [shape: bf16[256,512], index: 0, kind: input, shape index: {}]
  %s1 = inlined_call_operand.vmem [shape: bf16[512,128], index: 1, kind: input, shape index: {}]
  %s2 = inlined_call_operand.vmem [shape: f32[1,128], index: 2, kind: input, shape index: {}]
  %s3 = inlined_call_operand.vmem [shape: bf16[256,128], index: 3, kind: input, shape index: {}]
  %s4 = inlined_call_operand.vmem [shape: bf16[256,128], index: 4, kind: output, shape index: {}]
  %s5 = sld [smem:[#allocation0]]
  $region26: #{gpt2_logits.22} parent=0
    _
  %s7 = ssub.s32 1, %s5
  %s8 = scalar_select 0, %s7, %s5
  // Predicated region
  $region2: #{gpt2_logits.22} parent=0 // pred_check
    _
  $region3: #{gpt2_logits.22} parent=0 // pred_check_branch
    %10 = sbr.rel (0) target = $region5
  $region4: #{gpt2_logits.22} parent=0 // pred_region
    _
  $region5: #{gpt2_logits.22} parent=0 // pred_fallthru
    _
  // Predicated region
  $region6: #{gpt2_logits.22} parent=0 // pred_check
    _
  $region7: #{gpt2_logits.22} parent=0 // pred_check_branch
    %12 = sbr.rel (0) target = $region9
  $region8: #{gpt2_logits.22} parent=0 // pred_region
    _
  $region9: #{gpt2_logits.22} parent=0 // pred_fallthru
    _
  // Predicated region
  $region10: #{gpt2_logits.22} parent=0 // pred_check
    _
  $region11: #{gpt2_logits.22} parent=0 // pred_check_branch
    %14 = sbr.rel (0) target = $region13
  $region12: #{gpt2_logits.22} parent=0 // pred_region
    _
  $region13: #{gpt2_logits.22} parent=0 // pred_fallthru
    _
  // Predicated region
  $region14: #{gpt2_logits.22} parent=0 // pred_check
    _
  $region15: #{gpt2_logits.22} parent=0 // pred_check_branch
    %16 = sbr.rel (0) target = $region17
  $region16: #{gpt2_logits.22} parent=0 // pred_region
    _
  $region17: #{gpt2_logits.22} parent=0 // pred_fallthru
    _
  %v18 = vld [vmem:[%s0] sm:$0xff]
  %v19 = vld [vmem:[%s0 + $0x8] sm:$0xff]
  %v20 = vld [vmem:[%s0 + $0x10] sm:$0xff]
  %v21 = vld [vmem:[%s0 + $0x18] sm:$0xff]
  %v22 = vld [vmem:[%s0 + $0x20] sm:$0xff]
  %v23 = vld [vmem:[%s0 + $0x28] sm:$0xff]
  %v24 = vld [vmem:[%s0 + $0x30] sm:$0xff]
  %v25 = vld [vmem:[%s0 + $0x38] sm:$0xff]
  %v26 = vld [vmem:[%s0 + $0x40] sm:$0xff]
  %v27 = vld [vmem:[%s0 + $0x48] sm:$0xff]
  %v28 = vld [vmem:[%s0 + $0x50] sm:$0xff]
  %v29 = vld [vmem:[%s0 + $0x58] sm:$0xff]
  %v30 = vld [vmem:[%s0 + $0x60] sm:$0xff]
  %v31 = vld [vmem:[%s0 + $0x68] sm:$0xff]
  %v32 = vld [vmem:[%s0 + $0x70] sm:$0xff]
  %v33 = vld [vmem:[%s0 + $0x78] sm:$0xff]
  %v34 = vld [vmem:[%s0 + $0x80] sm:$0xff]
  %v35 = vld [vmem:[%s0 + $0x88] sm:$0xff]
  %v36 = vld [vmem:[%s0 + $0x90] sm:$0xff]
  %v37 = vld [vmem:[%s0 + $0x98] sm:$0xff]
  %v38 = vld [vmem:[%s0 + $0xa0] sm:$0xff]
  %v39 = vld [vmem:[%s0 + $0xa8] sm:$0xff]
  %v40 = vld [vmem:[%s0 + $0xb0] sm:$0xff]
  %v41 = vld [vmem:[%s0 + $0xb8] sm:$0xff]
  %v42 = vld [vmem:[%s0 + $0xc0] sm:$0xff]
  %v43 = vld [vmem:[%s0 + $0xc8] sm:$0xff]
  %v44 = vld [vmem:[%s0 + $0xd0] sm:$0xff]
  %v45 = vld [vmem:[%s0 + $0xd8] sm:$0xff]
  %v46 = vld [vmem:[%s0 + $0xe0] sm:$0xff]
  %v47 = vld [vmem:[%s0 + $0xe8] sm:$0xff]
  %v48 = vld [vmem:[%s0 + $0xf0] sm:$0xff]
  %v49 = vld [vmem:[%s0 + $0xf8] sm:$0xff]
  %v50 = vld [vmem:[%s0 + $0x100] sm:$0xff]
  %v51 = vld [vmem:[%s0 + $0x108] sm:$0xff]
  %v52 = vld [vmem:[%s0 + $0x110] sm:$0xff]
  %v53 = vld [vmem:[%s0 + $0x118] sm:$0xff]
  %v54 = vld [vmem:[%s0 + $0x120] sm:$0xff]
  %v55 = vld [vmem:[%s0 + $0x128] sm:$0xff]
  %v56 = vld [vmem:[%s0 + $0x130] sm:$0xff]
  %v57 = vld [vmem:[%s0 + $0x138] sm:$0xff]
  %v58 = vld [vmem:[%s0 + $0x140] sm:$0xff]
  %v59 = vld [vmem:[%s0 + $0x148] sm:$0xff]
  %v60 = vld [vmem:[%s0 + $0x150] sm:$0xff]
  %v61 = vld [vmem:[%s0 + $0x158] sm:$0xff]
  %v62 = vld [vmem:[%s0 + $0x160] sm:$0xff]
  %v63 = vld [vmem:[%s0 + $0x168] sm:$0xff]
  %v64 = vld [vmem:[%s0 + $0x170] sm:$0xff]
  %v65 = vld [vmem:[%s0 + $0x178] sm:$0xff]
  %v66 = vld [vmem:[%s0 + $0x180] sm:$0xff]
  %v67 = vld [vmem:[%s0 + $0x188] sm:$0xff]
  %v68 = vld [vmem:[%s0 + $0x190] sm:$0xff]
  %v69 = vld [vmem:[%s0 + $0x198] sm:$0xff]
  %v70 = vld [vmem:[%s0 + $0x1a0] sm:$0xff]
  %v71 = vld [vmem:[%s0 + $0x1a8] sm:$0xff]
  %v72 = vld [vmem:[%s0 + $0x1b0] sm:$0xff]
  %v73 = vld [vmem:[%s0 + $0x1b8] sm:$0xff]
  %v74 = vld [vmem:[%s0 + $0x1c0] sm:$0xff]
  %v75 = vld [vmem:[%s0 + $0x1c8] sm:$0xff]
  %v76 = vld [vmem:[%s0 + $0x1d0] sm:$0xff]
  %v77 = vld [vmem:[%s0 + $0x1d8] sm:$0xff]
  %v78 = vld [vmem:[%s0 + $0x1e0] sm:$0xff]
  %v79 = vld [vmem:[%s0 + $0x1e8] sm:$0xff]
  %v80 = vld [vmem:[%s0 + $0x1f0] sm:$0xff]
  %v81 = vld [vmem:[%s0 + $0x1f8] sm:$0xff]
  %v82 = vld [vmem:[%s1] sm:$0xf]
  %v83 = vld [vmem:[%s1 + $0x4] sm:$0xf]
  %v84 = vld [vmem:[%s1 + $0x8] sm:$0xf]
  %v85 = vld [vmem:[%s1 + $0xc] sm:$0xf]
  %v86 = vld [vmem:[%s1 + $0x10] sm:$0xf]
  %v87 = vld [vmem:[%s1 + $0x14] sm:$0xf]
  %v88 = vld [vmem:[%s1 + $0x18] sm:$0xf]
  %v89 = vld [vmem:[%s1 + $0x1c] sm:$0xf]
  %v90 = vld [vmem:[%s1 + $0x20] sm:$0xf]
  %v91 = vld [vmem:[%s1 + $0x24] sm:$0xf]
  %v92 = vld [vmem:[%s1 + $0x28] sm:$0xf]
  %v93 = vld [vmem:[%s1 + $0x2c] sm:$0xf]
  %v94 = vld [vmem:[%s1 + $0x30] sm:$0xf]
  %v95 = vld [vmem:[%s1 + $0x34] sm:$0xf]
  %v96 = vld [vmem:[%s1 + $0x38] sm:$0xf]
  %v97 = vld [vmem:[%s1 + $0x3c] sm:$0xf]
  %v98 = vld [vmem:[%s1 + $0x40] sm:$0xf]
  %v99 = vld [vmem:[%s1 + $0x44] sm:$0xf]
  %v100 = vld [vmem:[%s1 + $0x48] sm:$0xf]
  %v101 = vld [vmem:[%s1 + $0x4c] sm:$0xf]
  %v102 = vld [vmem:[%s1 + $0x50] sm:$0xf]
  %v103 = vld [vmem:[%s1 + $0x54] sm:$0xf]
  %v104 = vld [vmem:[%s1 + $0x58] sm:$0xf]
  %v105 = vld [vmem:[%s1 + $0x5c] sm:$0xf]
  %v106 = vld [vmem:[%s1 + $0x60] sm:$0xf]
  %v107 = vld [vmem:[%s1 + $0x64] sm:$0xf]
  %v108 = vld [vmem:[%s1 + $0x68] sm:$0xf]
  %v109 = vld [vmem:[%s1 + $0x6c] sm:$0xf]
  %v110 = vld [vmem:[%s1 + $0x70] sm:$0xf]
  %v111 = vld [vmem:[%s1 + $0x74] sm:$0xf]
  %v112 = vld [vmem:[%s1 + $0x78] sm:$0xf]
  %v113 = vld [vmem:[%s1 + $0x7c] sm:$0xf]
  %v114 = vld [vmem:[%s1 + $0x80] sm:$0xf]
  %v115 = vld [vmem:[%s1 + $0x84] sm:$0xf]
  %v116 = vld [vmem:[%s1 + $0x88] sm:$0xf]
  %v117 = vld [vmem:[%s1 + $0x8c] sm:$0xf]
  %v118 = vld [vmem:[%s1 + $0x90] sm:$0xf]
  %v119 = vld [vmem:[%s1 + $0x94] sm:$0xf]
  %v120 = vld [vmem:[%s1 + $0x98] sm:$0xf]
  %v121 = vld [vmem:[%s1 + $0x9c] sm:$0xf]
  %v122 = vld [vmem:[%s1 + $0xa0] sm:$0xf]
  %v123 = vld [vmem:[%s1 + $0xa4] sm:$0xf]
  %v124 = vld [vmem:[%s1 + $0xa8] sm:$0xf]
  %v125 = vld [vmem:[%s1 + $0xac] sm:$0xf]
  %v126 = vld [vmem:[%s1 + $0xb0] sm:$0xf]
  %v127 = vld [vmem:[%s1 + $0xb4] sm:$0xf]
  %v128 = vld [vmem:[%s1 + $0xb8] sm:$0xf]
  %v129 = vld [vmem:[%s1 + $0xbc] sm:$0xf]
  %v130 = vld [vmem:[%s1 + $0xc0] sm:$0xf]
  %v131 = vld [vmem:[%s1 + $0xc4] sm:$0xf]
  %v132 = vld [vmem:[%s1 + $0xc8] sm:$0xf]
  %v133 = vld [vmem:[%s1 + $0xcc] sm:$0xf]
  %v134 = vld [vmem:[%s1 + $0xd0] sm:$0xf]
  %v135 = vld [vmem:[%s1 + $0xd4] sm:$0xf]
  %v136 = vld [vmem:[%s1 + $0xd8] sm:$0xf]
  %v137 = vld [vmem:[%s1 + $0xdc] sm:$0xf]
  %v138 = vld [vmem:[%s1 + $0xe0] sm:$0xf]
  %v139 = vld [vmem:[%s1 + $0xe4] sm:$0xf]
  %v140 = vld [vmem:[%s1 + $0xe8] sm:$0xf]
  %v141 = vld [vmem:[%s1 + $0xec] sm:$0xf]
  %v142 = vld [vmem:[%s1 + $0xf0] sm:$0xf]
  %v143 = vld [vmem:[%s1 + $0xf4] sm:$0xf]
  %v144 = vld [vmem:[%s1 + $0xf8] sm:$0xf]
  %v145 = vld [vmem:[%s1 + $0xfc] sm:$0xf]
  %v146 = vld [vmem:[%s2] sm:$0x1]
  %v148 = vlaneseq
  %v149 = vshrl.u32 %v148, 7
  %v150 = vsub.s32 0, %v149
  %v151 = vrot.slane %v146, %v150
  %v217 = vunpack.c.l.b16 %v18
  %v218 = vunpack.c.h.b16 %v18
  %v219 = vunpack.c.l.b16 %v19
  %v220 = vunpack.c.h.b16 %v19
  %v221 = vunpack.c.l.b16 %v20
  %v222 = vunpack.c.h.b16 %v20
  %v223 = vunpack.c.l.b16 %v21
  %v224 = vunpack.c.h.b16 %v21
  %v225 = vunpack.c.l.b16 %v22
  %v226 = vunpack.c.h.b16 %v22
  %v227 = vunpack.c.l.b16 %v23
  %v228 = vunpack.c.h.b16 %v23
  %v229 = vunpack.c.l.b16 %v24
  %v230 = vunpack.c.h.b16 %v24
  %v231 = vunpack.c.l.b16 %v25
  %v232 = vunpack.c.h.b16 %v25
  %v233 = vunpack.c.l.b16 %v26
  %v234 = vunpack.c.h.b16 %v26
  %v235 = vunpack.c.l.b16 %v27
  %v236 = vunpack.c.h.b16 %v27
  %v237 = vunpack.c.l.b16 %v28
  %v238 = vunpack.c.h.b16 %v28
  %v239 = vunpack.c.l.b16 %v29
  %v240 = vunpack.c.h.b16 %v29
  %v241 = vunpack.c.l.b16 %v30
  %v242 = vunpack.c.h.b16 %v30
  %v243 = vunpack.c.l.b16 %v31
  %v244 = vunpack.c.h.b16 %v31
  %v245 = vunpack.c.l.b16 %v32
  %v246 = vunpack.c.h.b16 %v32
  %v247 = vunpack.c.l.b16 %v33
  %v248 = vunpack.c.h.b16 %v33
  %v249 = vunpack.c.l.b16 %v34
  %v250 = vunpack.c.h.b16 %v34
  %v251 = vunpack.c.l.b16 %v35
  %v252 = vunpack.c.h.b16 %v35
  %v253 = vunpack.c.l.b16 %v36
  %v254 = vunpack.c.h.b16 %v36
  %v255 = vunpack.c.l.b16 %v37
  %v256 = vunpack.c.h.b16 %v37
  %v257 = vunpack.c.l.b16 %v38
  %v258 = vunpack.c.h.b16 %v38
  %v259 = vunpack.c.l.b16 %v39
  %v260 = vunpack.c.h.b16 %v39
  %v261 = vunpack.c.l.b16 %v40
  %v262 = vunpack.c.h.b16 %v40
  %v263 = vunpack.c.l.b16 %v41
  %v264 = vunpack.c.h.b16 %v41
  %v265 = vunpack.c.l.b16 %v42
  %v266 = vunpack.c.h.b16 %v42
  %v267 = vunpack.c.l.b16 %v43
  %v268 = vunpack.c.h.b16 %v43
  %v269 = vunpack.c.l.b16 %v44
  %v270 = vunpack.c.h.b16 %v44
  %v271 = vunpack.c.l.b16 %v45
  %v272 = vunpack.c.h.b16 %v45
  %v273 = vunpack.c.l.b16 %v46
  %v274 = vunpack.c.h.b16 %v46
  %v275 = vunpack.c.l.b16 %v47
  %v276 = vunpack.c.h.b16 %v47
  %v277 = vunpack.c.l.b16 %v48
  %v278 = vunpack.c.h.b16 %v48
  %v279 = vunpack.c.l.b16 %v49
  %v280 = vunpack.c.h.b16 %v49
  %v281 = vunpack.c.l.b16 %v50
  %v282 = vunpack.c.h.b16 %v50
  %v283 = vunpack.c.l.b16 %v51
  %v284 = vunpack.c.h.b16 %v51
  %v285 = vunpack.c.l.b16 %v52
  %v286 = vunpack.c.h.b16 %v52
  %v287 = vunpack.c.l.b16 %v53
  %v288 = vunpack.c.h.b16 %v53
  %v289 = vunpack.c.l.b16 %v54
  %v290 = vunpack.c.h.b16 %v54
  %v291 = vunpack.c.l.b16 %v55
  %v292 = vunpack.c.h.b16 %v55
  %v293 = vunpack.c.l.b16 %v56
  %v294 = vunpack.c.h.b16 %v56
  %v295 = vunpack.c.l.b16 %v57
  %v296 = vunpack.c.h.b16 %v57
  %v297 = vunpack.c.l.b16 %v58
  %v298 = vunpack.c.h.b16 %v58
  %v299 = vunpack.c.l.b16 %v59
  %v300 = vunpack.c.h.b16 %v59
  %v301 = vunpack.c.l.b16 %v60
  %v302 = vunpack.c.h.b16 %v60
  %v303 = vunpack.c.l.b16 %v61
  %v304 = vunpack.c.h.b16 %v61
  %v305 = vunpack.c.l.b16 %v62
  %v306 = vunpack.c.h.b16 %v62
  %v307 = vunpack.c.l.b16 %v63
  %v308 = vunpack.c.h.b16 %v63
  %v309 = vunpack.c.l.b16 %v64
  %v310 = vunpack.c.h.b16 %v64
  %v311 = vunpack.c.l.b16 %v65
  %v312 = vunpack.c.h.b16 %v65
  %v313 = vunpack.c.l.b16 %v66
  %v314 = vunpack.c.h.b16 %v66
  %v315 = vunpack.c.l.b16 %v67
  %v316 = vunpack.c.h.b16 %v67
  %v317 = vunpack.c.l.b16 %v68
  %v318 = vunpack.c.h.b16 %v68
  %v319 = vunpack.c.l.b16 %v69
  %v320 = vunpack.c.h.b16 %v69
  %v321 = vunpack.c.l.b16 %v70
  %v322 = vunpack.c.h.b16 %v70
  %v323 = vunpack.c.l.b16 %v71
  %v324 = vunpack.c.h.b16 %v71
  %v325 = vunpack.c.l.b16 %v72
  %v326 = vunpack.c.h.b16 %v72
  %v327 = vunpack.c.l.b16 %v73
  %v328 = vunpack.c.h.b16 %v73
  %v329 = vunpack.c.l.b16 %v74
  %v330 = vunpack.c.h.b16 %v74
  %v331 = vunpack.c.l.b16 %v75
  %v332 = vunpack.c.h.b16 %v75
  %v333 = vunpack.c.l.b16 %v76
  %v334 = vunpack.c.h.b16 %v76
  %v335 = vunpack.c.l.b16 %v77
  %v336 = vunpack.c.h.b16 %v77
  %v337 = vunpack.c.l.b16 %v78
  %v338 = vunpack.c.h.b16 %v78
  %v339 = vunpack.c.l.b16 %v79
  %v340 = vunpack.c.h.b16 %v79
  %v341 = vunpack.c.l.b16 %v80
  %v342 = vunpack.c.h.b16 %v80
  %v343 = vunpack.c.l.b16 %v81
  %v344 = vunpack.c.h.b16 %v81
  %v345 = vpack.c.b16 %v221, %v217
  %v346 = vpack.c.b16 %v222, %v218
  %v347 = vpack.c.b16 %v223, %v219
  %v348 = vpack.c.b16 %v224, %v220
  %v349 = vpack.c.b16 %v229, %v225
  %v350 = vpack.c.b16 %v230, %v226
  %v351 = vpack.c.b16 %v231, %v227
  %v352 = vpack.c.b16 %v232, %v228
  %v353 = vpack.c.b16 %v237, %v233
  %v354 = vpack.c.b16 %v238, %v234
  %v355 = vpack.c.b16 %v239, %v235
  %v356 = vpack.c.b16 %v240, %v236
  %v357 = vpack.c.b16 %v245, %v241
  %v358 = vpack.c.b16 %v246, %v242
  %v359 = vpack.c.b16 %v247, %v243
  %v360 = vpack.c.b16 %v248, %v244
  %v361 = vpack.c.b16 %v253, %v249
  %v362 = vpack.c.b16 %v254, %v250
  %v363 = vpack.c.b16 %v255, %v251
  %v364 = vpack.c.b16 %v256, %v252
  %v365 = vpack.c.b16 %v261, %v257
  %v366 = vpack.c.b16 %v262, %v258
  %v367 = vpack.c.b16 %v263, %v259
  %v368 = vpack.c.b16 %v264, %v260
  %v369 = vpack.c.b16 %v269, %v265
  %v370 = vpack.c.b16 %v270, %v266
  %v371 = vpack.c.b16 %v271, %v267
  %v372 = vpack.c.b16 %v272, %v268
  %v373 = vpack.c.b16 %v277, %v273
  %v374 = vpack.c.b16 %v278, %v274
  %v375 = vpack.c.b16 %v279, %v275
  %v376 = vpack.c.b16 %v280, %v276
  %v377 = vpack.c.b16 %v285, %v281
  %v378 = vpack.c.b16 %v286, %v282
  %v379 = vpack.c.b16 %v287, %v283
  %v380 = vpack.c.b16 %v288, %v284
  %v381 = vpack.c.b16 %v293, %v289
  %v382 = vpack.c.b16 %v294, %v290
  %v383 = vpack.c.b16 %v295, %v291
  %v384 = vpack.c.b16 %v296, %v292
  %v385 = vpack.c.b16 %v301, %v297
  %v386 = vpack.c.b16 %v302, %v298
  %v387 = vpack.c.b16 %v303, %v299
  %v388 = vpack.c.b16 %v304, %v300
  %v389 = vpack.c.b16 %v309, %v305
  %v390 = vpack.c.b16 %v310, %v306
  %v391 = vpack.c.b16 %v311, %v307
  %v392 = vpack.c.b16 %v312, %v308
  %v393 = vpack.c.b16 %v317, %v313
  %v394 = vpack.c.b16 %v318, %v314
  %v395 = vpack.c.b16 %v319, %v315
  %v396 = vpack.c.b16 %v320, %v316
  %v397 = vpack.c.b16 %v325, %v321
  %v398 = vpack.c.b16 %v326, %v322
  %v399 = vpack.c.b16 %v327, %v323
  %v400 = vpack.c.b16 %v328, %v324
  %v401 = vpack.c.b16 %v333, %v329
  %v402 = vpack.c.b16 %v334, %v330
  %v403 = vpack.c.b16 %v335, %v331
  %v404 = vpack.c.b16 %v336, %v332
  %v405 = vpack.c.b16 %v341, %v337
  %v406 = vpack.c.b16 %v342, %v338
  %v407 = vpack.c.b16 %v343, %v339
  %v408 = vpack.c.b16 %v344, %v340
  %v537 = vunpack.c.l.b16 %v82
  %v538 = vunpack.c.l.b16 %v83
  %v539 = vunpack.c.l.b16 %v84
  %v540 = vunpack.c.l.b16 %v85
  %v541 = vunpack.c.l.b16 %v86
  %v542 = vunpack.c.l.b16 %v87
  %v543 = vunpack.c.l.b16 %v88
  %v544 = vunpack.c.l.b16 %v89
  %v545 = vunpack.c.l.b16 %v90
  %v546 = vunpack.c.l.b16 %v91
  %v547 = vunpack.c.l.b16 %v92
  %v548 = vunpack.c.l.b16 %v93
  %v549 = vunpack.c.l.b16 %v94
  %v550 = vunpack.c.l.b16 %v95
  %v551 = vunpack.c.l.b16 %v96
  %v552 = vunpack.c.l.b16 %v97
  %v553 = vunpack.c.l.b16 %v98
  %v554 = vunpack.c.l.b16 %v99
  %v555 = vunpack.c.l.b16 %v100
  %v556 = vunpack.c.l.b16 %v101
  %v557 = vunpack.c.l.b16 %v102
  %v558 = vunpack.c.l.b16 %v103
  %v559 = vunpack.c.l.b16 %v104
  %v560 = vunpack.c.l.b16 %v105
  %v561 = vunpack.c.l.b16 %v106
  %v562 = vunpack.c.l.b16 %v107
  %v563 = vunpack.c.l.b16 %v108
  %v564 = vunpack.c.l.b16 %v109
  %v565 = vunpack.c.l.b16 %v110
  %v566 = vunpack.c.l.b16 %v111
  %v567 = vunpack.c.l.b16 %v112
  %v568 = vunpack.c.l.b16 %v113
  %v569 = vunpack.c.l.b16 %v114
  %v570 = vunpack.c.l.b16 %v115
  %v571 = vunpack.c.l.b16 %v116
  %v572 = vunpack.c.l.b16 %v117
  %v573 = vunpack.c.l.b16 %v118
  %v574 = vunpack.c.l.b16 %v119
  %v575 = vunpack.c.l.b16 %v120
  %v576 = vunpack.c.l.b16 %v121
  %v577 = vunpack.c.l.b16 %v122
  %v578 = vunpack.c.l.b16 %v123
  %v579 = vunpack.c.l.b16 %v124
  %v580 = vunpack.c.l.b16 %v125
  %v581 = vunpack.c.l.b16 %v126
  %v582 = vunpack.c.l.b16 %v127
  %v583 = vunpack.c.l.b16 %v128
  %v584 = vunpack.c.l.b16 %v129
  %v585 = vunpack.c.l.b16 %v130
  %v586 = vunpack.c.l.b16 %v131
  %v587 = vunpack.c.l.b16 %v132
  %v588 = vunpack.c.l.b16 %v133
  %v589 = vunpack.c.l.b16 %v134
  %v590 = vunpack.c.l.b16 %v135
  %v591 = vunpack.c.l.b16 %v136
  %v592 = vunpack.c.l.b16 %v137
  %v593 = vunpack.c.l.b16 %v138
  %v594 = vunpack.c.l.b16 %v139
  %v595 = vunpack.c.l.b16 %v140
  %v596 = vunpack.c.l.b16 %v141
  %v597 = vunpack.c.l.b16 %v142
  %v598 = vunpack.c.l.b16 %v143
  %v599 = vunpack.c.l.b16 %v144
  %v600 = vunpack.c.l.b16 %v145
  %v601 = vpack.c.b16 %v538, %v537
  %v602 = vpack.c.b16 %v540, %v539
  %v603 = vpack.c.b16 %v542, %v541
  %v604 = vpack.c.b16 %v544, %v543
  %v605 = vpack.c.b16 %v546, %v545
  %v606 = vpack.c.b16 %v548, %v547
  %v607 = vpack.c.b16 %v550, %v549
  %v608 = vpack.c.b16 %v552, %v551
  %v609 = vpack.c.b16 %v554, %v553
  %v610 = vpack.c.b16 %v556, %v555
  %v611 = vpack.c.b16 %v558, %v557
  %v612 = vpack.c.b16 %v560, %v559
  %v613 = vpack.c.b16 %v562, %v561
  %v614 = vpack.c.b16 %v564, %v563
  %v615 = vpack.c.b16 %v566, %v565
  %v616 = vpack.c.b16 %v568, %v567
  %v617 = vpack.c.b16 %v570, %v569
  %v618 = vpack.c.b16 %v572, %v571
  %v619 = vpack.c.b16 %v574, %v573
  %v620 = vpack.c.b16 %v576, %v575
  %v621 = vpack.c.b16 %v578, %v577
  %v622 = vpack.c.b16 %v580, %v579
  %v623 = vpack.c.b16 %v582, %v581
  %v624 = vpack.c.b16 %v584, %v583
  %v625 = vpack.c.b16 %v586, %v585
  %v626 = vpack.c.b16 %v588, %v587
  %v627 = vpack.c.b16 %v590, %v589
  %v628 = vpack.c.b16 %v592, %v591
  %v629 = vpack.c.b16 %v594, %v593
  %v630 = vpack.c.b16 %v596, %v595
  %v631 = vpack.c.b16 %v598, %v597
  %v632 = vpack.c.b16 %v600, %v599
  %665 = vmatprep.subr.bf16.mxu0 0
  %666 = vmatpush1.bf16.msra.mxu0 %v608
  %667 = vmatprep.subr.bf16.mxu0 0
  %668 = vmatpush1.bf16.msra.mxu0 %v607
  %669 = vmatprep.subr.bf16.mxu0 0
  %670 = vmatpush1.bf16.msra.mxu0 %v606
  %671 = vmatprep.subr.bf16.mxu0 0
  %672 = vmatpush1.bf16.msra.mxu0 %v605
  %673 = vmatprep.subr.bf16.mxu0 0
  %674 = vmatpush1.bf16.msra.mxu0 %v604
  %675 = vmatprep.subr.bf16.mxu0 0
  %676 = vmatpush1.bf16.msra.mxu0 %v603
  %677 = vmatprep.subr.bf16.mxu0 0
  %678 = vmatpush1.bf16.msra.mxu0 %v602
  %679 = vmatprep.subr.bf16.mxu0 0
  %680 = vmatpush1.bf16.msra.mxu0 %v601
  %681 = vmatprep.subr.bf16.mxu0 0
  %682 = vmatpush2.bf16.msra.mxu0 %v616
  %683 = vmatprep.subr.bf16.mxu0 0
  %684 = vmatpush2.bf16.msra.mxu0 %v615
  %685 = vmatprep.subr.bf16.mxu0 0
  %686 = vmatpush2.bf16.msra.mxu0 %v614
  %687 = vmatprep.subr.bf16.mxu0 0
  %688 = vmatpush2.bf16.msra.mxu0 %v613
  %689 = vmatprep.subr.bf16.mxu0 0
  %690 = vmatpush2.bf16.msra.mxu0 %v612
  %691 = vmatprep.subr.bf16.mxu0 0
  %692 = vmatpush2.bf16.msra.mxu0 %v611
  %693 = vmatprep.subr.bf16.mxu0 0
  %694 = vmatpush2.bf16.msra.mxu0 %v610
  %695 = vmatprep.subr.bf16.mxu0 0
  %696 = vmatpush2.bf16.msra.mxu0 %v609
  %697 = vmatprep.mubr.bf16.mxu0 %v346
  %698 = vmatmul.mubr.bf16.gmra.mxu0 %v345
  %v699 = vpop.f32.mrf.mxu0
  %v700 = vadd.f32 %v151, %v699
  %v701 = vpop.f32.mrf.mxu0
  %v702 = vpop.f32.mrf.mxu0
  %v703 = vadd.f32 %v151, %v702
  %v704 = vpop.f32.mrf.mxu0
  %705 = vmatprep.mubr.bf16.mxu0 %v350
  %706 = vmatmul.mubr.bf16.gmra.mxu0 %v349
  %v707 = vpop.f32.mrf.mxu0
  %v708 = vadd.f32 %v151, %v707
  %v709 = vpop.f32.mrf.mxu0
  %v710 = vpop.f32.mrf.mxu0
  %v711 = vadd.f32 %v151, %v710
  %v712 = vpop.f32.mrf.mxu0
  %713 = vmatprep.mubr.bf16.mxu0 %v354
  %714 = vmatmul.mubr.bf16.gmra.mxu0 %v353
  %v715 = vpop.f32.mrf.mxu0
  %v716 = vadd.f32 %v151, %v715
  %v717 = vpop.f32.mrf.mxu0
  %v718 = vpop.f32.mrf.mxu0
  %v719 = vadd.f32 %v151, %v718
  %v720 = vpop.f32.mrf.mxu0
  %721 = vmatprep.mubr.bf16.mxu0 %v358
  %722 = vmatmul.mubr.bf16.gmra.mxu0 %v357
  %v723 = vpop.f32.mrf.mxu0
  %v724 = vadd.f32 %v151, %v723
  %v725 = vpop.f32.mrf.mxu0
  %v726 = vpop.f32.mrf.mxu0
  %v727 = vadd.f32 %v151, %v726
  %v728 = vpop.f32.mrf.mxu0
  %729 = vmatprep.mubr.bf16.mxu0 %v362
  %730 = vmatmul.mubr.bf16.gmra.mxu0 %v361
  %v731 = vpop.f32.mrf.mxu0
  %v732 = vadd.f32 %v151, %v731
  %v733 = vpop.f32.mrf.mxu0
  %v734 = vpop.f32.mrf.mxu0
  %v735 = vadd.f32 %v151, %v734
  %v736 = vpop.f32.mrf.mxu0
  %737 = vmatprep.mubr.bf16.mxu0 %v366
  %738 = vmatmul.mubr.bf16.gmra.mxu0 %v365
  %v739 = vpop.f32.mrf.mxu0
  %v740 = vadd.f32 %v151, %v739
  %v741 = vpop.f32.mrf.mxu0
  %v742 = vpop.f32.mrf.mxu0
  %v743 = vadd.f32 %v151, %v742
  %v744 = vpop.f32.mrf.mxu0
  %745 = vmatprep.mubr.bf16.mxu0 %v370
  %746 = vmatmul.mubr.bf16.gmra.mxu0 %v369
  %v747 = vpop.f32.mrf.mxu0
  %v748 = vadd.f32 %v151, %v747
  %v749 = vpop.f32.mrf.mxu0
  %v750 = vpop.f32.mrf.mxu0
  %v751 = vadd.f32 %v151, %v750
  %v752 = vpop.f32.mrf.mxu0
  %753 = vmatprep.mubr.bf16.mxu0 %v374
  %754 = vmatmul.mubr.bf16.gmra.mxu0 %v373
  %v755 = vpop.f32.mrf.mxu0
  %v756 = vadd.f32 %v151, %v755
  %v757 = vpop.f32.mrf.mxu0
  %v758 = vpop.f32.mrf.mxu0
  %v759 = vadd.f32 %v151, %v758
  %v760 = vpop.f32.mrf.mxu0
  %761 = vmatprep.mubr.bf16.mxu0 %v378
  %762 = vmatmul.mubr.bf16.gmra.mxu0 %v377
  %v763 = vpop.f32.mrf.mxu0
  %v764 = vadd.f32 %v151, %v763
  %v765 = vpop.f32.mrf.mxu0
  %v766 = vpop.f32.mrf.mxu0
  %v767 = vadd.f32 %v151, %v766
  %v768 = vpop.f32.mrf.mxu0
  %769 = vmatprep.mubr.bf16.mxu0 %v382
  %770 = vmatmul.mubr.bf16.gmra.mxu0 %v381
  %v771 = vpop.f32.mrf.mxu0
  %v772 = vadd.f32 %v151, %v771
  %v773 = vpop.f32.mrf.mxu0
  %v774 = vpop.f32.mrf.mxu0
  %v775 = vadd.f32 %v151, %v774
  %v776 = vpop.f32.mrf.mxu0
  %777 = vmatprep.mubr.bf16.mxu0 %v386
  %778 = vmatmul.mubr.bf16.gmra.mxu0 %v385
  %v779 = vpop.f32.mrf.mxu0
  %v780 = vadd.f32 %v151, %v779
  %v781 = vpop.f32.mrf.mxu0
  %v782 = vpop.f32.mrf.mxu0
  %v783 = vadd.f32 %v151, %v782
  %v784 = vpop.f32.mrf.mxu0
  %785 = vmatprep.mubr.bf16.mxu0 %v390
  %786 = vmatmul.mubr.bf16.gmra.mxu0 %v389
  %v787 = vpop.f32.mrf.mxu0
  %v788 = vadd.f32 %v151, %v787
  %v789 = vpop.f32.mrf.mxu0
  %v790 = vpop.f32.mrf.mxu0
  %v791 = vadd.f32 %v151, %v790
  %v792 = vpop.f32.mrf.mxu0
  %793 = vmatprep.mubr.bf16.mxu0 %v394
  %794 = vmatmul.mubr.bf16.gmra.mxu0 %v393
  %v795 = vpop.f32.mrf.mxu0
  %v796 = vadd.f32 %v151, %v795
  %v797 = vpop.f32.mrf.mxu0
  %v798 = vpop.f32.mrf.mxu0
  %v799 = vadd.f32 %v151, %v798
  %v800 = vpop.f32.mrf.mxu0
  %801 = vmatprep.mubr.bf16.mxu0 %v398
  %802 = vmatmul.mubr.bf16.gmra.mxu0 %v397
  %v803 = vpop.f32.mrf.mxu0
  %v804 = vadd.f32 %v151, %v803
  %v805 = vpop.f32.mrf.mxu0
  %v806 = vpop.f32.mrf.mxu0
  %v807 = vadd.f32 %v151, %v806
  %v808 = vpop.f32.mrf.mxu0
  %809 = vmatprep.mubr.bf16.mxu0 %v402
  %810 = vmatmul.mubr.bf16.gmra.mxu0 %v401
  %v811 = vpop.f32.mrf.mxu0
  %v812 = vadd.f32 %v151, %v811
  %v813 = vpop.f32.mrf.mxu0
  %v814 = vpop.f32.mrf.mxu0
  %v815 = vadd.f32 %v151, %v814
  %v816 = vpop.f32.mrf.mxu0
  %817 = vmatprep.mubr.bf16.mxu0 %v406
  %818 = vmatmul.mubr.bf16.gmra.mxu0 %v405
  %v819 = vpop.f32.mrf.mxu0
  %v820 = vadd.f32 %v151, %v819
  %v821 = vpop.f32.mrf.mxu0
  %v822 = vpop.f32.mrf.mxu0
  %v823 = vadd.f32 %v151, %v822
  %v824 = vpop.f32.mrf.mxu0
  %825 = vdwg.mxu0
  %826 = vmatprep.subr.bf16.mxu0 0
  %827 = vmatpush1.bf16.msra.mxu0 %v624
  %828 = vmatprep.subr.bf16.mxu0 0
  %829 = vmatpush1.bf16.msra.mxu0 %v623
  %830 = vmatprep.subr.bf16.mxu0 0
  %831 = vmatpush1.bf16.msra.mxu0 %v622
  %832 = vmatprep.subr.bf16.mxu0 0
  %833 = vmatpush1.bf16.msra.mxu0 %v621
  %834 = vmatprep.subr.bf16.mxu0 0
  %835 = vmatpush1.bf16.msra.mxu0 %v620
  %836 = vmatprep.subr.bf16.mxu0 0
  %837 = vmatpush1.bf16.msra.mxu0 %v619
  %838 = vmatprep.subr.bf16.mxu0 0
  %839 = vmatpush1.bf16.msra.mxu0 %v618
  %840 = vmatprep.subr.bf16.mxu0 0
  %841 = vmatpush1.bf16.msra.mxu0 %v617
  %842 = vmatprep.subr.bf16.mxu0 0
  %843 = vmatpush2.bf16.msra.mxu0 %v632
  %844 = vmatprep.subr.bf16.mxu0 0
  %845 = vmatpush2.bf16.msra.mxu0 %v631
  %846 = vmatprep.subr.bf16.mxu0 0
  %847 = vmatpush2.bf16.msra.mxu0 %v630
  %848 = vmatprep.subr.bf16.mxu0 0
  %849 = vmatpush2.bf16.msra.mxu0 %v629
  %850 = vmatprep.subr.bf16.mxu0 0
  %851 = vmatpush2.bf16.msra.mxu0 %v628
  %852 = vmatprep.subr.bf16.mxu0 0
  %853 = vmatpush2.bf16.msra.mxu0 %v627
  %854 = vmatprep.subr.bf16.mxu0 0
  %855 = vmatpush2.bf16.msra.mxu0 %v626
  %856 = vmatprep.subr.bf16.mxu0 0
  %857 = vmatpush2.bf16.msra.mxu0 %v625
  %858 = vmatprep.mubr.bf16.mxu0 %v348
  %859 = vmatmul.mubr.bf16.gmra.mxu0 %v347
  %v860 = vpop.f32.mrf.mxu0
  %v861 = vadd.f32 %v700, %v860
  %v862 = vpop.f32.mrf.mxu0
  %v863 = vpop.f32.mrf.mxu0
  %v864 = vadd.f32 %v703, %v863
  %v865 = vpop.f32.mrf.mxu0
  %866 = vmatprep.mubr.bf16.mxu0 %v352
  %867 = vmatmul.mubr.bf16.gmra.mxu0 %v351
  %v868 = vpop.f32.mrf.mxu0
  %v869 = vadd.f32 %v708, %v868
  %v870 = vpop.f32.mrf.mxu0
  %v871 = vpop.f32.mrf.mxu0
  %v872 = vadd.f32 %v711, %v871
  %v873 = vpop.f32.mrf.mxu0
  %874 = vmatprep.mubr.bf16.mxu0 %v356
  %875 = vmatmul.mubr.bf16.gmra.mxu0 %v355
  %v876 = vpop.f32.mrf.mxu0
  %v877 = vadd.f32 %v716, %v876
  %v878 = vpop.f32.mrf.mxu0
  %v879 = vpop.f32.mrf.mxu0
  %v880 = vadd.f32 %v719, %v879
  %v881 = vpop.f32.mrf.mxu0
  %882 = vmatprep.mubr.bf16.mxu0 %v360
  %883 = vmatmul.mubr.bf16.gmra.mxu0 %v359
  %v884 = vpop.f32.mrf.mxu0
  %v885 = vadd.f32 %v724, %v884
  %v886 = vpop.f32.mrf.mxu0
  %v887 = vpop.f32.mrf.mxu0
  %v888 = vadd.f32 %v727, %v887
  %v889 = vpop.f32.mrf.mxu0
  %890 = vmatprep.mubr.bf16.mxu0 %v364
  %891 = vmatmul.mubr.bf16.gmra.mxu0 %v363
  %v892 = vpop.f32.mrf.mxu0
  %v893 = vadd.f32 %v732, %v892
  %v894 = vpop.f32.mrf.mxu0
  %v895 = vpop.f32.mrf.mxu0
  %v896 = vadd.f32 %v735, %v895
  %v897 = vpop.f32.mrf.mxu0
  %898 = vmatprep.mubr.bf16.mxu0 %v368
  %899 = vmatmul.mubr.bf16.gmra.mxu0 %v367
  %v900 = vpop.f32.mrf.mxu0
  %v901 = vadd.f32 %v740, %v900
  %v902 = vpop.f32.mrf.mxu0
  %v903 = vpop.f32.mrf.mxu0
  %v904 = vadd.f32 %v743, %v903
  %v905 = vpop.f32.mrf.mxu0
  %906 = vmatprep.mubr.bf16.mxu0 %v372
  %907 = vmatmul.mubr.bf16.gmra.mxu0 %v371
  %v908 = vpop.f32.mrf.mxu0
  %v909 = vadd.f32 %v748, %v908
  %v910 = vpop.f32.mrf.mxu0
  %v911 = vpop.f32.mrf.mxu0
  %v912 = vadd.f32 %v751, %v911
  %v913 = vpop.f32.mrf.mxu0
  %914 = vmatprep.mubr.bf16.mxu0 %v376
  %915 = vmatmul.mubr.bf16.gmra.mxu0 %v375
  %v916 = vpop.f32.mrf.mxu0
  %v917 = vadd.f32 %v756, %v916
  %v918 = vpop.f32.mrf.mxu0
  %v919 = vpop.f32.mrf.mxu0
  %v920 = vadd.f32 %v759, %v919
  %v921 = vpop.f32.mrf.mxu0
  %922 = vmatprep.mubr.bf16.mxu0 %v380
  %923 = vmatmul.mubr.bf16.gmra.mxu0 %v379
  %v924 = vpop.f32.mrf.mxu0
  %v925 = vadd.f32 %v764, %v924
  %v926 = vpop.f32.mrf.mxu0
  %v927 = vpop.f32.mrf.mxu0
  %v928 = vadd.f32 %v767, %v927
  %v929 = vpop.f32.mrf.mxu0
  %930 = vmatprep.mubr.bf16.mxu0 %v384
  %931 = vmatmul.mubr.bf16.gmra.mxu0 %v383
  %v932 = vpop.f32.mrf.mxu0
  %v933 = vadd.f32 %v772, %v932
  %v934 = vpop.f32.mrf.mxu0
  %v935 = vpop.f32.mrf.mxu0
  %v936 = vadd.f32 %v775, %v935
  %v937 = vpop.f32.mrf.mxu0
  %938 = vmatprep.mubr.bf16.mxu0 %v388
  %939 = vmatmul.mubr.bf16.gmra.mxu0 %v387
  %v940 = vpop.f32.mrf.mxu0
  %v941 = vadd.f32 %v780, %v940
  %v942 = vpop.f32.mrf.mxu0
  %v943 = vpop.f32.mrf.mxu0
  %v944 = vadd.f32 %v783, %v943
  %v945 = vpop.f32.mrf.mxu0
  %946 = vmatprep.mubr.bf16.mxu0 %v392
  %947 = vmatmul.mubr.bf16.gmra.mxu0 %v391
  %v948 = vpop.f32.mrf.mxu0
  %v949 = vadd.f32 %v788, %v948
  %v950 = vpop.f32.mrf.mxu0
  %v951 = vpop.f32.mrf.mxu0
  %v952 = vadd.f32 %v791, %v951
  %v953 = vpop.f32.mrf.mxu0
  %954 = vmatprep.mubr.bf16.mxu0 %v396
  %955 = vmatmul.mubr.bf16.gmra.mxu0 %v395
  %v956 = vpop.f32.mrf.mxu0
  %v957 = vadd.f32 %v796, %v956
  %v958 = vpop.f32.mrf.mxu0
  %v959 = vpop.f32.mrf.mxu0
  %v960 = vadd.f32 %v799, %v959
  %v961 = vpop.f32.mrf.mxu0
  %962 = vmatprep.mubr.bf16.mxu0 %v400
  %963 = vmatmul.mubr.bf16.gmra.mxu0 %v399
  %v964 = vpop.f32.mrf.mxu0
  %v965 = vadd.f32 %v804, %v964
  %v966 = vpop.f32.mrf.mxu0
  %v967 = vpop.f32.mrf.mxu0
  %v968 = vadd.f32 %v807, %v967
  %v969 = vpop.f32.mrf.mxu0
  %970 = vmatprep.mubr.bf16.mxu0 %v404
  %971 = vmatmul.mubr.bf16.gmra.mxu0 %v403
  %v972 = vpop.f32.mrf.mxu0
  %v973 = vadd.f32 %v812, %v972
  %v974 = vpop.f32.mrf.mxu0
  %v975 = vpop.f32.mrf.mxu0
  %v976 = vadd.f32 %v815, %v975
  %v977 = vpop.f32.mrf.mxu0
  %978 = vmatprep.mubr.bf16.mxu0 %v408
  %979 = vmatmul.mubr.bf16.gmra.mxu0 %v407
  %v980 = vpop.f32.mrf.mxu0
  %v981 = vadd.f32 %v820, %v980
  %v982 = vpop.f32.mrf.mxu0
  %v983 = vpop.f32.mrf.mxu0
  %v984 = vadd.f32 %v823, %v983
  %v985 = vpop.f32.mrf.mxu0
  %986 = vdwg.mxu0
  %v987 = vld [vmem:[%s3] sm:$0xf]
  %v988 = vld [vmem:[%s3 + $0x4] sm:$0xf]
  %v989 = vld [vmem:[%s3 + $0x8] sm:$0xf]
  %v990 = vld [vmem:[%s3 + $0xc] sm:$0xf]
  %v991 = vld [vmem:[%s3 + $0x10] sm:$0xf]
  %v992 = vld [vmem:[%s3 + $0x14] sm:$0xf]
  %v993 = vld [vmem:[%s3 + $0x18] sm:$0xf]
  %v994 = vld [vmem:[%s3 + $0x1c] sm:$0xf]
  %v995 = vld [vmem:[%s3 + $0x20] sm:$0xf]
  %v996 = vld [vmem:[%s3 + $0x24] sm:$0xf]
  %v997 = vld [vmem:[%s3 + $0x28] sm:$0xf]
  %v998 = vld [vmem:[%s3 + $0x2c] sm:$0xf]
  %v999 = vld [vmem:[%s3 + $0x30] sm:$0xf]
  %v1000 = vld [vmem:[%s3 + $0x34] sm:$0xf]
  %v1001 = vld [vmem:[%s3 + $0x38] sm:$0xf]
  %v1002 = vld [vmem:[%s3 + $0x3c] sm:$0xf]
  %v1003 = vld [vmem:[%s3 + $0x40] sm:$0xf]
  %v1004 = vld [vmem:[%s3 + $0x44] sm:$0xf]
  %v1005 = vld [vmem:[%s3 + $0x48] sm:$0xf]
  %v1006 = vld [vmem:[%s3 + $0x4c] sm:$0xf]
  %v1007 = vld [vmem:[%s3 + $0x50] sm:$0xf]
  %v1008 = vld [vmem:[%s3 + $0x54] sm:$0xf]
  %v1009 = vld [vmem:[%s3 + $0x58] sm:$0xf]
  %v1010 = vld [vmem:[%s3 + $0x5c] sm:$0xf]
  %v1011 = vld [vmem:[%s3 + $0x60] sm:$0xf]
  %v1012 = vld [vmem:[%s3 + $0x64] sm:$0xf]
  %v1013 = vld [vmem:[%s3 + $0x68] sm:$0xf]
  %v1014 = vld [vmem:[%s3 + $0x6c] sm:$0xf]
  %v1015 = vld [vmem:[%s3 + $0x70] sm:$0xf]
  %v1016 = vld [vmem:[%s3 + $0x74] sm:$0xf]
  %v1017 = vld [vmem:[%s3 + $0x78] sm:$0xf]
  %v1018 = vld [vmem:[%s3 + $0x7c] sm:$0xf]
  %v1019 = vunpack.c.l.bf16 %v987
  %v1020 = vunpack.c.l.bf16 %v988
  %v1021 = vunpack.c.l.bf16 %v989
  %v1022 = vunpack.c.l.bf16 %v990
  %v1023 = vunpack.c.l.bf16 %v991
  %v1024 = vunpack.c.l.bf16 %v992
  %v1025 = vunpack.c.l.bf16 %v993
  %v1026 = vunpack.c.l.bf16 %v994
  %v1027 = vunpack.c.l.bf16 %v995
  %v1028 = vunpack.c.l.bf16 %v996
  %v1029 = vunpack.c.l.bf16 %v997
  %v1030 = vunpack.c.l.bf16 %v998
  %v1031 = vunpack.c.l.bf16 %v999
  %v1032 = vunpack.c.l.bf16 %v1000
  %v1033 = vunpack.c.l.bf16 %v1001
  %v1034 = vunpack.c.l.bf16 %v1002
  %v1035 = vunpack.c.l.bf16 %v1003
  %v1036 = vunpack.c.l.bf16 %v1004
  %v1037 = vunpack.c.l.bf16 %v1005
  %v1038 = vunpack.c.l.bf16 %v1006
  %v1039 = vunpack.c.l.bf16 %v1007
  %v1040 = vunpack.c.l.bf16 %v1008
  %v1041 = vunpack.c.l.bf16 %v1009
  %v1042 = vunpack.c.l.bf16 %v1010
  %v1043 = vunpack.c.l.bf16 %v1011
  %v1044 = vunpack.c.l.bf16 %v1012
  %v1045 = vunpack.c.l.bf16 %v1013
  %v1046 = vunpack.c.l.bf16 %v1014
  %v1047 = vunpack.c.l.bf16 %v1015
  %v1048 = vunpack.c.l.bf16 %v1016
  %v1049 = vunpack.c.l.bf16 %v1017
  %v1050 = vunpack.c.l.bf16 %v1018
  %v1051 = vadd.f32 %v861, %v1019
  %v1052 = vadd.f32 %v864, %v1020
  %v1053 = vadd.f32 %v869, %v1021
  %v1054 = vadd.f32 %v872, %v1022
  %v1055 = vadd.f32 %v877, %v1023
  %v1056 = vadd.f32 %v880, %v1024
  %v1057 = vadd.f32 %v885, %v1025
  %v1058 = vadd.f32 %v888, %v1026
  %v1059 = vadd.f32 %v893, %v1027
  %v1060 = vadd.f32 %v896, %v1028
  %v1061 = vadd.f32 %v901, %v1029
  %v1062 = vadd.f32 %v904, %v1030
  %v1063 = vadd.f32 %v909, %v1031
  %v1064 = vadd.f32 %v912, %v1032
  %v1065 = vadd.f32 %v917, %v1033
  %v1066 = vadd.f32 %v920, %v1034
  %v1067 = vadd.f32 %v925, %v1035
  %v1068 = vadd.f32 %v928, %v1036
  %v1069 = vadd.f32 %v933, %v1037
  %v1070 = vadd.f32 %v936, %v1038
  %v1071 = vadd.f32 %v941, %v1039
  %v1072 = vadd.f32 %v944, %v1040
  %v1073 = vadd.f32 %v949, %v1041
  %v1074 = vadd.f32 %v952, %v1042
  %v1075 = vadd.f32 %v957, %v1043
  %v1076 = vadd.f32 %v960, %v1044
  %v1077 = vadd.f32 %v965, %v1045
  %v1078 = vadd.f32 %v968, %v1046
  %v1079 = vadd.f32 %v973, %v1047
  %v1080 = vadd.f32 %v976, %v1048
  %v1081 = vadd.f32 %v981, %v1049
  %v1082 = vadd.f32 %v984, %v1050
  %v1083 = vpack.c.bf16 %v1052, %v1051
  %v1084 = vpack.c.bf16 %v1054, %v1053
  %v1085 = vpack.c.bf16 %v1056, %v1055
  %v1086 = vpack.c.bf16 %v1058, %v1057
  %v1087 = vpack.c.bf16 %v1060, %v1059
  %v1088 = vpack.c.bf16 %v1062, %v1061
  %v1089 = vpack.c.bf16 %v1064, %v1063
  %v1090 = vpack.c.bf16 %v1066, %v1065
  %v1091 = vpack.c.bf16 %v1068, %v1067
  %v1092 = vpack.c.bf16 %v1070, %v1069
  %v1093 = vpack.c.bf16 %v1072, %v1071
  %v1094 = vpack.c.bf16 %v1074, %v1073
  %v1095 = vpack.c.bf16 %v1076, %v1075
  %v1096 = vpack.c.bf16 %v1078, %v1077
  %v1097 = vpack.c.bf16 %v1080, %v1079
  %v1098 = vpack.c.bf16 %v1082, %v1081
  %v1115 = vunpack.c.l.b16 %v1083
  %v1116 = vunpack.c.h.b16 %v1083
  %v1117 = vunpack.c.l.b16 %v1084
  %v1118 = vunpack.c.h.b16 %v1084
  %v1119 = vunpack.c.l.b16 %v1085
  %v1120 = vunpack.c.h.b16 %v1085
  %v1121 = vunpack.c.l.b16 %v1086
  %v1122 = vunpack.c.h.b16 %v1086
  %v1123 = vunpack.c.l.b16 %v1087
  %v1124 = vunpack.c.h.b16 %v1087
  %v1125 = vunpack.c.l.b16 %v1088
  %v1126 = vunpack.c.h.b16 %v1088
  %v1127 = vunpack.c.l.b16 %v1089
  %v1128 = vunpack.c.h.b16 %v1089
  %v1129 = vunpack.c.l.b16 %v1090
  %v1130 = vunpack.c.h.b16 %v1090
  %v1131 = vunpack.c.l.b16 %v1091
  %v1132 = vunpack.c.h.b16 %v1091
  %v1133 = vunpack.c.l.b16 %v1092
  %v1134 = vunpack.c.h.b16 %v1092
  %v1135 = vunpack.c.l.b16 %v1093
  %v1136 = vunpack.c.h.b16 %v1093
  %v1137 = vunpack.c.l.b16 %v1094
  %v1138 = vunpack.c.h.b16 %v1094
  %v1139 = vunpack.c.l.b16 %v1095
  %v1140 = vunpack.c.h.b16 %v1095
  %v1141 = vunpack.c.l.b16 %v1096
  %v1142 = vunpack.c.h.b16 %v1096
  %v1143 = vunpack.c.l.b16 %v1097
  %v1144 = vunpack.c.h.b16 %v1097
  %v1145 = vunpack.c.l.b16 %v1098
  %v1146 = vunpack.c.h.b16 %v1098
  %v1147 = vpack.c.b16 %v1115, %v1115
  %v1148 = vpack.c.b16 %v1116, %v1116
  %v1149 = vpack.c.b16 %v1117, %v1117
  %v1150 = vpack.c.b16 %v1118, %v1118
  %v1151 = vpack.c.b16 %v1119, %v1119
  %v1152 = vpack.c.b16 %v1120, %v1120
  %v1153 = vpack.c.b16 %v1121, %v1121
  %v1154 = vpack.c.b16 %v1122, %v1122
  %v1155 = vpack.c.b16 %v1123, %v1123
  %v1156 = vpack.c.b16 %v1124, %v1124
  %v1157 = vpack.c.b16 %v1125, %v1125
  %v1158 = vpack.c.b16 %v1126, %v1126
  %v1159 = vpack.c.b16 %v1127, %v1127
  %v1160 = vpack.c.b16 %v1128, %v1128
  %v1161 = vpack.c.b16 %v1129, %v1129
  %v1162 = vpack.c.b16 %v1130, %v1130
  %v1163 = vpack.c.b16 %v1131, %v1131
  %v1164 = vpack.c.b16 %v1132, %v1132
  %v1165 = vpack.c.b16 %v1133, %v1133
  %v1166 = vpack.c.b16 %v1134, %v1134
  %v1167 = vpack.c.b16 %v1135, %v1135
  %v1168 = vpack.c.b16 %v1136, %v1136
  %v1169 = vpack.c.b16 %v1137, %v1137
  %v1170 = vpack.c.b16 %v1138, %v1138
  %v1171 = vpack.c.b16 %v1139, %v1139
  %v1172 = vpack.c.b16 %v1140, %v1140
  %v1173 = vpack.c.b16 %v1141, %v1141
  %v1174 = vpack.c.b16 %v1142, %v1142
  %v1175 = vpack.c.b16 %v1143, %v1143
  %v1176 = vpack.c.b16 %v1144, %v1144
  %v1177 = vpack.c.b16 %v1145, %v1145
  %v1178 = vpack.c.b16 %v1146, %v1146
  %1211 = vst [vmem:[%s4] sm:$0xf] %v1147
  %1212 = vst [vmem:[%s4 + $0x4] sm:$0xf] %v1148
  %1213 = vst [vmem:[%s4 + $0x8] sm:$0xf] %v1149
  %1214 = vst [vmem:[%s4 + $0xc] sm:$0xf] %v1150
  %1215 = vst [vmem:[%s4 + $0x10] sm:$0xf] %v1151
  %1216 = vst [vmem:[%s4 + $0x14] sm:$0xf] %v1152
  %1217 = vst [vmem:[%s4 + $0x18] sm:$0xf] %v1153
  %1218 = vst [vmem:[%s4 + $0x1c] sm:$0xf] %v1154
  %1219 = vst [vmem:[%s4 + $0x20] sm:$0xf] %v1155
  %1220 = vst [vmem:[%s4 + $0x24] sm:$0xf] %v1156
  %1221 = vst [vmem:[%s4 + $0x28] sm:$0xf] %v1157
  %1222 = vst [vmem:[%s4 + $0x2c] sm:$0xf] %v1158
  %1223 = vst [vmem:[%s4 + $0x30] sm:$0xf] %v1159
  %1224 = vst [vmem:[%s4 + $0x34] sm:$0xf] %v1160
  %1225 = vst [vmem:[%s4 + $0x38] sm:$0xf] %v1161
  %1226 = vst [vmem:[%s4 + $0x3c] sm:$0xf] %v1162
  %1227 = vst [vmem:[%s4 + $0x40] sm:$0xf] %v1163
  %1228 = vst [vmem:[%s4 + $0x44] sm:$0xf] %v1164
  %1229 = vst [vmem:[%s4 + $0x48] sm:$0xf] %v1165
  %1230 = vst [vmem:[%s4 + $0x4c] sm:$0xf] %v1166
  %1231 = vst [vmem:[%s4 + $0x50] sm:$0xf] %v1167
  %1232 = vst [vmem:[%s4 + $0x54] sm:$0xf] %v1168
  %1233 = vst [vmem:[%s4 + $0x58] sm:$0xf] %v1169
  %1234 = vst [vmem:[%s4 + $0x5c] sm:$0xf] %v1170
  %1235 = vst [vmem:[%s4 + $0x60] sm:$0xf] %v1171
  %1236 = vst [vmem:[%s4 + $0x64] sm:$0xf] %v1172
  %1237 = vst [vmem:[%s4 + $0x68] sm:$0xf] %v1173
  %1238 = vst [vmem:[%s4 + $0x6c] sm:$0xf] %v1174
  %1239 = vst [vmem:[%s4 + $0x70] sm:$0xf] %v1175
  %1240 = vst [vmem:[%s4 + $0x74] sm:$0xf] %v1176
  %1241 = vst [vmem:[%s4 + $0x78] sm:$0xf] %v1177
  %1242 = vst [vmem:[%s4 + $0x7c] sm:$0xf] %v1178
  // Predicated region
  $region18: #{gpt2_logits.22} parent=0 // pred_check
    _
  $region19: #{gpt2_logits.22} parent=0 // pred_check_branch
    %1244 = sbr.rel (0) target = $region21
  $region20: #{gpt2_logits.22} parent=0 // pred_region
    _
  $region21: #{gpt2_logits.22} parent=0 // pred_fallthru
    _
  // Predicated region
  $region22: #{gpt2_logits.22} parent=0 // pred_check
    _
  $region23: #{gpt2_logits.22} parent=0 // pred_check_branch
    %1246 = sbr.rel (0) target = $region25
  $region24: #{gpt2_logits.22} parent=0 // pred_region
    _
  $region25: #{gpt2_logits.22} parent=0 // pred_fallthru
    _

// kernel: gpt2_logits.18
$region0: #{gpt2_logits.18}
  #allocation0 [shape = 'u32[]', space=smem, size = 0x4, offset = 0x4, fixed_abs, tag = 'smem constant byte address 0x4 - core index']
  #allocation1 [shape = 'u32[144,128]{1,0:T(1,128)}', space=vmem, size = 0x12000, scoped, tag = 'internal scratch']
  #allocation2 [shape = 'f32[256,1]{1,0:T(8,128)}', space=vmem, size = 0x20000, scoped, tag = 'scratch operand']
  #allocation3 [shape = 'f32[256,1]{1,0:T(8,128)}', space=vmem, size = 0x20000, scoped, tag = 'scratch operand']
  #allocation4 [shape = 'f32[256,32]{1,0:T(8,128)}', space=vmem, size = 0x20000, scoped, tag = 'scratch operand']
  #allocation5 [shape = 's32[1]{0}', space=sflag, size = 0x4, scoped, tag = 'scoped memory for gpt2_logits.18']
  #allocation6 [shape = 's32[1]{0:T(128)S(6)}', space=smem, size = 0x200, scoped, tag = 'prefetched SMEM operand 0']
  #allocation7 [shape = 's32[1]{0:T(128)S(6)}', space=smem, size = 0x200, scoped, tag = 'prefetched SMEM operand 1']
  %s0 = inlined_call_operand.<no memory space> [shape: s32[1], index: 0, kind: input, shape index: {}, may-alias: {0,1}]
  %s1 = inlined_call_operand.<no memory space> [shape: s32[1], index: 1, kind: input, shape index: {}, may-alias: {0,1}]
  %s2 = inlined_call_operand.vmem [shape: bf16[3,4,256,32], index: 2, kind: input, shape index: {}, may-alias: {2,3,4}]
  %s3 = inlined_call_operand.vmem [shape: bf16[3,4,256,32], index: 3, kind: input, shape index: {}, may-alias: {2,3,4}]
  %s4 = inlined_call_operand.vmem [shape: bf16[3,4,256,32], index: 4, kind: input, shape index: {}, may-alias: {2,3,4}]
  %s5 = inlined_call_operand.vmem [shape: bf16[4,256,32], index: 5, kind: output, shape index: {}]
  %s6 = sld [smem:[#allocation0]]
  $region53: #{gpt2_logits.18} parent=0
    _
  %s8 = ssub.s32 1, %s6
  %s9 = scalar_select 0, %s8, %s6
  %10 = sst [smem:[#allocation6]] %s0
  %11 = sst [smem:[#allocation7]] %s1
  loop: start=0, step=1, limit=6
  $region2: #{gpt2_logits.18} parent=0 // loop_pre_header
    _
  $region3: #{gpt2_logits.18} parent=0 // loop_header
    %s13 = sphi 0, %s17
    %p14 = scmp.ge.s32.totalorder %s13, 6
    %s20 = sphi 0, %s32
    %s21 = sphi 0, %s28
    %s22 = sphi 0, %s20
    %s23 = sphi 0, %s21
    %s24 = sphi 0, %s22
    %s25 = sphi 0, %s23
    %s39 = sphi 0, %s41
    %s42 = sphi 0, %s39
    %s43 = sphi 0, %s42
    %s59 = sphi 0, %s43
    %s69 = sphi 0, %s71
    %s72 = sphi 0, %s69
    %s73 = sphi 0, %s72
    %s89 = sphi 0, %s73
    %s99 = sphi 0, %s101
    %s102 = sphi 0, %s99
    %s103 = sphi 0, %s102
    %s119 = sphi 0, %s103
    %s129 = sphi 0, %s131
    %s132 = sphi 0, %s129
    %s133 = sphi 0, %s132
    %s149 = sphi 0, %s133
  $region4: #{gpt2_logits.18} parent=0 // loop_header_branch
    %16 = sbr.rel (%p14) target = $region8
  $region5: #{gpt2_logits.18} parent=0 // loop_body
    %s18 = ssub.s32 %s13, 1
    %s19 = ssub.s32 %s13, 2
    %s26 = sadd.s32 1, %s21
    %p27 = scmp.ge.s32.totalorder %s26, 1
    %s28 = scalar_select %p27, 0, %s26
    %s29 = sadd.s32 1, %s20
    %s30 = scalar_select %p27, %s29, %s20
    %p31 = scmp.ge.s32.totalorder %s30, 4
    %s32 = scalar_select %p31, 0, %s30
    %s33 = sld [smem:[#allocation6 + %s21]]
    %s34 = sld [smem:[#allocation6 + %s28]]
    %s35 = ssub.s32 %s20, %s32
    %s36 = ssub.s32 %s33, %s34
    %s37 = sor.u32 %s35, %s36
    %p38 = scmp.eq.s32.totalorder %s37, 0
    %s40 = sadd.s32 %s39, 1
    %s41 = scalar_select %p38, %s39, %s40
    %p44 = pneg %p38
    %p45 = scmp.eq.s32.totalorder %s13, 3
    %p46 = por %p44, %p45
    %p47 = scmp.ne.s32.totalorder %s39, %s42
    %p48 = scmp.eq.s32.totalorder %s13, 0
    %p49 = por %p47, %p48
    %p50 = scmp.ne.s32.totalorder %s39, %s42
    %p51 = scmp.eq.s32.totalorder %s18, 3
    %p52 = por %p50, %p51
    %p53 = scmp.ne.s32.totalorder %s42, %s43
    %p54 = scmp.eq.s32.totalorder %s18, 0
    %p55 = por %p53, %p54
    %p56 = scmp.ne.s32.totalorder %s42, %s43
    %p57 = scmp.eq.s32.totalorder %s19, 3
    %p58 = por %p56, %p57
    %p60 = scmp.ne.s32.totalorder %s43, %s59
    %p61 = scmp.eq.s32.totalorder %s19, 0
    %p62 = por %p60, %p61
    %s63 = sld [smem:[#allocation7 + %s21]]
    %s64 = sld [smem:[#allocation7 + %s28]]
    %s65 = ssub.s32 %s20, %s32
    %s66 = ssub.s32 %s63, %s64
    %s67 = sor.u32 %s65, %s66
    %p68 = scmp.eq.s32.totalorder %s67, 0
    %s70 = sadd.s32 %s69, 1
    %s71 = scalar_select %p68, %s69, %s70
    %p74 = pneg %p68
    %p75 = scmp.eq.s32.totalorder %s13, 3
    %p76 = por %p74, %p75
    %p77 = scmp.ne.s32.totalorder %s69, %s72
    %p78 = scmp.eq.s32.totalorder %s13, 0
    %p79 = por %p77, %p78
    %p80 = scmp.ne.s32.totalorder %s69, %s72
    %p81 = scmp.eq.s32.totalorder %s18, 3
    %p82 = por %p80, %p81
    %p83 = scmp.ne.s32.totalorder %s72, %s73
    %p84 = scmp.eq.s32.totalorder %s18, 0
    %p85 = por %p83, %p84
    %p86 = scmp.ne.s32.totalorder %s72, %s73
    %p87 = scmp.eq.s32.totalorder %s19, 3
    %p88 = por %p86, %p87
    %p90 = scmp.ne.s32.totalorder %s73, %s89
    %p91 = scmp.eq.s32.totalorder %s19, 0
    %p92 = por %p90, %p91
    %s93 = sld [smem:[#allocation7 + %s21]]
    %s94 = sld [smem:[#allocation7 + %s28]]
    %s95 = ssub.s32 %s20, %s32
    %s96 = ssub.s32 %s93, %s94
    %s97 = sor.u32 %s95, %s96
    %p98 = scmp.eq.s32.totalorder %s97, 0
    %s100 = sadd.s32 %s99, 1
    %s101 = scalar_select %p98, %s99, %s100
    %p104 = pneg %p98
    %p105 = scmp.eq.s32.totalorder %s13, 3
    %p106 = por %p104, %p105
    %p107 = scmp.ne.s32.totalorder %s99, %s102
    %p108 = scmp.eq.s32.totalorder %s13, 0
    %p109 = por %p107, %p108
    %p110 = scmp.ne.s32.totalorder %s99, %s102
    %p111 = scmp.eq.s32.totalorder %s18, 3
    %p112 = por %p110, %p111
    %p113 = scmp.ne.s32.totalorder %s102, %s103
    %p114 = scmp.eq.s32.totalorder %s18, 0
    %p115 = por %p113, %p114
    %p116 = scmp.ne.s32.totalorder %s102, %s103
    %p117 = scmp.eq.s32.totalorder %s19, 3
    %p118 = por %p116, %p117
    %p120 = scmp.ne.s32.totalorder %s103, %s119
    %p121 = scmp.eq.s32.totalorder %s19, 0
    %p122 = por %p120, %p121
    %s123 = sld [smem:[#allocation6 + %s21]]
    %s124 = sld [smem:[#allocation6 + %s28]]
    %s125 = ssub.s32 %s20, %s32
    %s126 = ssub.s32 %s123, %s124
    %s127 = sor.u32 %s125, %s126
    %p128 = scmp.eq.s32.totalorder %s127, 0
    %s130 = sadd.s32 %s129, 1
    %s131 = scalar_select %p128, %s129, %s130
    %p134 = pneg %p128
    %p135 = scmp.eq.s32.totalorder %s13, 3
    %p136 = por %p134, %p135
    %p137 = scmp.ne.s32.totalorder %s129, %s132
    %p138 = scmp.eq.s32.totalorder %s13, 0
    %p139 = por %p137, %p138
    %p140 = scmp.ne.s32.totalorder %s129, %s132
    %p141 = scmp.eq.s32.totalorder %s18, 3
    %p142 = por %p140, %p141
    %p143 = scmp.ne.s32.totalorder %s132, %s133
    %p144 = scmp.eq.s32.totalorder %s18, 0
    %p145 = por %p143, %p144
    %p146 = scmp.ne.s32.totalorder %s132, %s133
    %p147 = scmp.eq.s32.totalorder %s19, 3
    %p148 = por %p146, %p147
    %p150 = scmp.ne.s32.totalorder %s133, %s149
    %p151 = scmp.eq.s32.totalorder %s19, 0
    %p152 = por %p150, %p151
    %p153 = scmp.le.s32.totalorder 1, %s13
    %p154 = scmp.lt.s32.totalorder %s13, 5
    %p155 = pnand %p153, %p154
    %p156 = pneg %p155
    // Predicated region
    $region9: #{gpt2_logits.18} parent=5 // pred_check
      _
    $region10: #{gpt2_logits.18} parent=5 // pred_check_branch
      %158 = sbr.rel (%p155) target = $region12
    $region11: #{gpt2_logits.18} parent=5 // pred_region
      %s159 = ssub.s32 %s13, 1
    $region12: #{gpt2_logits.18} parent=5 // pred_fallthru
      _
    %p160 = scmp.lt.s32.totalorder %s13, 4
    // Predicated region
    $region13: #{gpt2_logits.18} parent=5 // pred_check
      %p161 = pneg %p160
    $region14: #{gpt2_logits.18} parent=5 // pred_check_branch
      %163 = sbr.rel (%p161) target = $region16
    $region15: #{gpt2_logits.18} parent=5 // pred_region
      // Predicated region
      $region17: #{gpt2_logits.18} parent=15 // pred_check
        %p164 = pneg %p49
      $region18: #{gpt2_logits.18} parent=15 // pred_check_branch
        %166 = sbr.rel (%p164) target = $region20
      $region19: #{gpt2_logits.18} parent=15 // pred_region
        %s167 = sld [smem:[#allocation6 + %s21]]
        %s168 = smul.u32 32, %s167
        %p169 = scmp.lt.s32.totalorder %s20, 3
        %s170 = scalar_select %p169, %s20, 3
        %p171 = scmp.lt.s32.totalorder %s168, 31
        %s172 = scalar_select %p171, %s168, 31
        %s173 = smul.addr %s170, 32
        %s174 = sadd.s32 %s172, %s173
        %s175 = smul.addr %s174, 4
        %s176 = scalar_lea.vmem %s2, %s175
        %s177 = sld [smem:[#allocation6 + %s21]]
        %s178 = smul.u32 32, %s177
      $region20: #{gpt2_logits.18} parent=15 // pred_fallthru
        _
      // Predicated region
      $region21: #{gpt2_logits.18} parent=15 // pred_check
        %p179 = pneg %p79
      $region22: #{gpt2_logits.18} parent=15 // pred_check_branch
        %181 = sbr.rel (%p179) target = $region24
      $region23: #{gpt2_logits.18} parent=15 // pred_region
        %s182 = sld [smem:[#allocation7 + %s21]]
        %s183 = smul.u32 32, %s182
        %p184 = scmp.lt.s32.totalorder %s20, 3
        %s185 = scalar_select %p184, %s20, 3
        %p186 = scmp.lt.s32.totalorder %s183, 31
        %s187 = scalar_select %p186, %s183, 31
        %s188 = smul.addr %s185, 32
        %s189 = sadd.s32 %s187, %s188
        %s190 = sadd.s32 %s189, 128
        %s191 = smul.addr %s190, 4
        %s192 = scalar_lea.vmem %s3, %s191
        %s193 = sld [smem:[#allocation7 + %s21]]
        %s194 = smul.u32 32, %s193
      $region24: #{gpt2_logits.18} parent=15 // pred_fallthru
        _
      // Predicated region
      $region25: #{gpt2_logits.18} parent=15 // pred_check
        %p195 = pneg %p109
      $region26: #{gpt2_logits.18} parent=15 // pred_check_branch
        %197 = sbr.rel (%p195) target = $region28
      $region27: #{gpt2_logits.18} parent=15 // pred_region
        %s198 = sld [smem:[#allocation7 + %s21]]
        %s199 = smul.u32 32, %s198
        %p200 = scmp.lt.s32.totalorder %s20, 3
        %s201 = scalar_select %p200, %s20, 3
        %p202 = scmp.lt.s32.totalorder %s199, 31
        %s203 = scalar_select %p202, %s199, 31
        %s204 = smul.addr %s201, 32
        %s205 = sadd.s32 %s203, %s204
        %s206 = sadd.s32 %s205, 256
        %s207 = smul.addr %s206, 4
        %s208 = scalar_lea.vmem %s4, %s207
        %s209 = sld [smem:[#allocation7 + %s21]]
        %s210 = smul.u32 32, %s209
      $region28: #{gpt2_logits.18} parent=15 // pred_fallthru
        _
    $region16: #{gpt2_logits.18} parent=5 // pred_fallthru
      _
    %p211 = scmp.le.s32.totalorder 1, %s13
    %p212 = scmp.lt.s32.totalorder %s13, 5
    %p213 = pnand %p211, %p212
    %p214 = pneg %p213
    // Predicated region
    $region29: #{gpt2_logits.18} parent=5 // pred_check
      _
    $region30: #{gpt2_logits.18} parent=5 // pred_check_branch
      %216 = sbr.rel (%p213) target = $region32
    $region31: #{gpt2_logits.18} parent=5 // pred_region
      %s217 = ssub.s32 %s13, 1
      %s218 = sld [smem:[#allocation6 + %s23]]
      %s219 = smul.u32 32, %s218
      %p220 = scmp.lt.s32.totalorder %s22, 3
      %s221 = scalar_select %p220, %s22, 3
      %p222 = scmp.lt.s32.totalorder %s219, 31
      %s223 = scalar_select %p222, %s219, 31
      %s224 = smul.addr %s221, 32
      %s225 = sadd.s32 %s223, %s224
      %s226 = smul.addr %s225, 4
      %s227 = scalar_lea.vmem %s2, %s226
      %p228 = pneg %p55
      %p229 = pneg %p52
      %s230 = sld [smem:[#allocation7 + %s23]]
      %s231 = smul.u32 32, %s230
      %p232 = scmp.lt.s32.totalorder %s22, 3
      %s233 = scalar_select %p232, %s22, 3
      %p234 = scmp.lt.s32.totalorder %s231, 31
      %s235 = scalar_select %p234, %s231, 31
      %s236 = smul.addr %s233, 32
      %s237 = sadd.s32 %s235, %s236
      %s238 = sadd.s32 %s237, 128
      %s239 = smul.addr %s238, 4
      %s240 = scalar_lea.vmem %s3, %s239
      %p241 = pneg %p85
      %p242 = pneg %p82
      %s243 = sld [smem:[#allocation7 + %s23]]
      %s244 = smul.u32 32, %s243
      %p245 = scmp.lt.s32.totalorder %s22, 3
      %s246 = scalar_select %p245, %s22, 3
      %p247 = scmp.lt.s32.totalorder %s244, 31
      %s248 = scalar_select %p247, %s244, 31
      %s249 = smul.addr %s246, 32
      %s250 = sadd.s32 %s248, %s249
      %s251 = sadd.s32 %s250, 256
      %s252 = smul.addr %s251, 4
      %s253 = scalar_lea.vmem %s4, %s252
      %p254 = pneg %p115
      %p255 = pneg %p112
      %p256 = pneg %p145
      %p257 = pneg %p142
      %s258 = sld [smem:[#allocation6 + %s23]]
      %s259 = smul.u32 32, %s258
      %p260 = scmp.lt.s32.totalorder %s22, 3
      %s261 = scalar_select %p260, %s22, 3
      %p262 = scmp.lt.s32.totalorder %s259, 31
      %s263 = scalar_select %p262, %s259, 31
      %s264 = smul.addr %s261, 32
      %s265 = sadd.s32 %s263, %s264
      %s266 = smul.addr %s265, 4
      %s267 = scalar_lea.vmem %s5, %s266
      %s268 = sld [smem:[#allocation6 + %s23]]
      %s269 = smul.u32 32, %s268
      %p270 = scmp.lt.s32.totalorder %s22, 3
      %s271 = scalar_select %p270, %s22, 3
      %p272 = scmp.lt.s32.totalorder %s269, 31
      %s273 = scalar_select %p272, %s269, 31
      %s274 = smul.addr %s271, 32
      %s275 = sadd.s32 %s273, %s274
      %s276 = smul.addr %s275, 4
      %s277 = scalar_lea.vmem %s2, %s276
      %s278 = sld [smem:[#allocation6 + %s23]]
      %s279 = smul.u32 32, %s278
      %s280 = sld [smem:[#allocation7 + %s23]]
      %s281 = smul.u32 32, %s280
      %p282 = scmp.lt.s32.totalorder %s22, 3
      %s283 = scalar_select %p282, %s22, 3
      %p284 = scmp.lt.s32.totalorder %s281, 31
      %s285 = scalar_select %p284, %s281, 31
      %s286 = smul.addr %s283, 32
      %s287 = sadd.s32 %s285, %s286
      %s288 = sadd.s32 %s287, 128
      %s289 = smul.addr %s288, 4
      %s290 = scalar_lea.vmem %s3, %s289
      %s291 = sld [smem:[#allocation7 + %s23]]
      %s292 = smul.u32 32, %s291
      %s293 = sld [smem:[#allocation7 + %s23]]
      %s294 = smul.u32 32, %s293
      %p295 = scmp.lt.s32.totalorder %s22, 3
      %s296 = scalar_select %p295, %s22, 3
      %p297 = scmp.lt.s32.totalorder %s294, 31
      %s298 = scalar_select %p297, %s294, 31
      %s299 = smul.addr %s296, 32
      %s300 = sadd.s32 %s298, %s299
      %s301 = sadd.s32 %s300, 256
      %s302 = smul.addr %s301, 4
      %s303 = scalar_lea.vmem %s4, %s302
      %s304 = sld [smem:[#allocation7 + %s23]]
      %s305 = smul.u32 32, %s304
      %s306 = sld [smem:[#allocation6 + %s23]]
      %s307 = smul.u32 32, %s306
      %p308 = scmp.lt.s32.totalorder %s22, 3
      %s309 = scalar_select %p308, %s22, 3
      %p310 = scmp.lt.s32.totalorder %s307, 31
      %s311 = scalar_select %p310, %s307, 31
      %s312 = smul.addr %s309, 32
      %s313 = sadd.s32 %s311, %s312
      %s314 = smul.addr %s313, 4
      %s315 = scalar_lea.vmem %s5, %s314
      %s316 = sld [smem:[#allocation6 + %s23]]
      %s317 = smul.u32 32, %s316
      %s319 = sld [smem:[#allocation6 + %s23]]
      %s320 = sld [smem:[#allocation7 + %s23]]
      %p321 = scmp.eq.s32.totalorder %s320, 0
      // Predicated region
      $region33: #{gpt2_logits.18} parent=31 // pred_check
        %p322 = pneg %p321
      $region34: #{gpt2_logits.18} parent=31 // pred_check_branch
        %324 = sbr.rel (%p322) target = $region36
      $region35: #{gpt2_logits.18} parent=31 // pred_region
        %vm325 = vcmask 7168
        %326 = vst.msk [vmem:[#allocation2] sm:$0xff] %vm325, -1e+30
        %327 = vst.msk [vmem:[#allocation2 + $0x8] sm:$0xff] %vm325, -1e+30
        %328 = vst.msk [vmem:[#allocation2 + $0x10] sm:$0xff] %vm325, -1e+30
        %329 = vst.msk [vmem:[#allocation2 + $0x18] sm:$0xff] %vm325, -1e+30
        %330 = vst.msk [vmem:[#allocation2 + $0x20] sm:$0xff] %vm325, -1e+30
        %331 = vst.msk [vmem:[#allocation2 + $0x28] sm:$0xff] %vm325, -1e+30
        %332 = vst.msk [vmem:[#allocation2 + $0x30] sm:$0xff] %vm325, -1e+30
        %333 = vst.msk [vmem:[#allocation2 + $0x38] sm:$0xff] %vm325, -1e+30
        %334 = vst.msk [vmem:[#allocation2 + $0x40] sm:$0xff] %vm325, -1e+30
        %335 = vst.msk [vmem:[#allocation2 + $0x48] sm:$0xff] %vm325, -1e+30
        %336 = vst.msk [vmem:[#allocation2 + $0x50] sm:$0xff] %vm325, -1e+30
        %337 = vst.msk [vmem:[#allocation2 + $0x58] sm:$0xff] %vm325, -1e+30
        %338 = vst.msk [vmem:[#allocation2 + $0x60] sm:$0xff] %vm325, -1e+30
        %339 = vst.msk [vmem:[#allocation2 + $0x68] sm:$0xff] %vm325, -1e+30
        %340 = vst.msk [vmem:[#allocation2 + $0x70] sm:$0xff] %vm325, -1e+30
        %341 = vst.msk [vmem:[#allocation2 + $0x78] sm:$0xff] %vm325, -1e+30
        %342 = vst.msk [vmem:[#allocation2 + $0x80] sm:$0xff] %vm325, -1e+30
        %343 = vst.msk [vmem:[#allocation2 + $0x88] sm:$0xff] %vm325, -1e+30
        %344 = vst.msk [vmem:[#allocation2 + $0x90] sm:$0xff] %vm325, -1e+30
        %345 = vst.msk [vmem:[#allocation2 + $0x98] sm:$0xff] %vm325, -1e+30
        %346 = vst.msk [vmem:[#allocation2 + $0xa0] sm:$0xff] %vm325, -1e+30
        %347 = vst.msk [vmem:[#allocation2 + $0xa8] sm:$0xff] %vm325, -1e+30
        %348 = vst.msk [vmem:[#allocation2 + $0xb0] sm:$0xff] %vm325, -1e+30
        %349 = vst.msk [vmem:[#allocation2 + $0xb8] sm:$0xff] %vm325, -1e+30
        %350 = vst.msk [vmem:[#allocation2 + $0xc0] sm:$0xff] %vm325, -1e+30
        %351 = vst.msk [vmem:[#allocation2 + $0xc8] sm:$0xff] %vm325, -1e+30
        %352 = vst.msk [vmem:[#allocation2 + $0xd0] sm:$0xff] %vm325, -1e+30
        %353 = vst.msk [vmem:[#allocation2 + $0xd8] sm:$0xff] %vm325, -1e+30
        %354 = vst.msk [vmem:[#allocation2 + $0xe0] sm:$0xff] %vm325, -1e+30
        %355 = vst.msk [vmem:[#allocation2 + $0xe8] sm:$0xff] %vm325, -1e+30
        %356 = vst.msk [vmem:[#allocation2 + $0xf0] sm:$0xff] %vm325, -1e+30
        %357 = vst.msk [vmem:[#allocation2 + $0xf8] sm:$0xff] %vm325, -1e+30
        %358 = vst.msk [vmem:[#allocation3] sm:$0xff] %vm325, 0.0
        %359 = vst.msk [vmem:[#allocation3 + $0x8] sm:$0xff] %vm325, 0.0
        %360 = vst.msk [vmem:[#allocation3 + $0x10] sm:$0xff] %vm325, 0.0
        %361 = vst.msk [vmem:[#allocation3 + $0x18] sm:$0xff] %vm325, 0.0
        %362 = vst.msk [vmem:[#allocation3 + $0x20] sm:$0xff] %vm325, 0.0
        %363 = vst.msk [vmem:[#allocation3 + $0x28] sm:$0xff] %vm325, 0.0
        %364 = vst.msk [vmem:[#allocation3 + $0x30] sm:$0xff] %vm325, 0.0
        %365 = vst.msk [vmem:[#allocation3 + $0x38] sm:$0xff] %vm325, 0.0
        %366 = vst.msk [vmem:[#allocation3 + $0x40] sm:$0xff] %vm325, 0.0
        %367 = vst.msk [vmem:[#allocation3 + $0x48] sm:$0xff] %vm325, 0.0
        %368 = vst.msk [vmem:[#allocation3 + $0x50] sm:$0xff] %vm325, 0.0
        %369 = vst.msk [vmem:[#allocation3 + $0x58] sm:$0xff] %vm325, 0.0
        %370 = vst.msk [vmem:[#allocation3 + $0x60] sm:$0xff] %vm325, 0.0
        %371 = vst.msk [vmem:[#allocation3 + $0x68] sm:$0xff] %vm325, 0.0
        %372 = vst.msk [vmem:[#allocation3 + $0x70] sm:$0xff] %vm325, 0.0
        %373 = vst.msk [vmem:[#allocation3 + $0x78] sm:$0xff] %vm325, 0.0
        %374 = vst.msk [vmem:[#allocation3 + $0x80] sm:$0xff] %vm325, 0.0
        %375 = vst.msk [vmem:[#allocation3 + $0x88] sm:$0xff] %vm325, 0.0
        %376 = vst.msk [vmem:[#allocation3 + $0x90] sm:$0xff] %vm325, 0.0
        %377 = vst.msk [vmem:[#allocation3 + $0x98] sm:$0xff] %vm325, 0.0
        %378 = vst.msk [vmem:[#allocation3 + $0xa0] sm:$0xff] %vm325, 0.0
        %379 = vst.msk [vmem:[#allocation3 + $0xa8] sm:$0xff] %vm325, 0.0
        %380 = vst.msk [vmem:[#allocation3 + $0xb0] sm:$0xff] %vm325, 0.0
        %381 = vst.msk [vmem:[#allocation3 + $0xb8] sm:$0xff] %vm325, 0.0
        %382 = vst.msk [vmem:[#allocation3 + $0xc0] sm:$0xff] %vm325, 0.0
        %383 = vst.msk [vmem:[#allocation3 + $0xc8] sm:$0xff] %vm325, 0.0
        %384 = vst.msk [vmem:[#allocation3 + $0xd0] sm:$0xff] %vm325, 0.0
        %385 = vst.msk [vmem:[#allocation3 + $0xd8] sm:$0xff] %vm325, 0.0
        %386 = vst.msk [vmem:[#allocation3 + $0xe0] sm:$0xff] %vm325, 0.0
        %387 = vst.msk [vmem:[#allocation3 + $0xe8] sm:$0xff] %vm325, 0.0
        %388 = vst.msk [vmem:[#allocation3 + $0xf0] sm:$0xff] %vm325, 0.0
        %389 = vst.msk [vmem:[#allocation3 + $0xf8] sm:$0xff] %vm325, 0.0
        %vm390 = vcmask 261120
        %391 = vst.msk [vmem:[#allocation4] sm:$0xff] %vm390, 0.0
        %392 = vst.msk [vmem:[#allocation4 + $0x8] sm:$0xff] %vm390, 0.0
        %393 = vst.msk [vmem:[#allocation4 + $0x10] sm:$0xff] %vm390, 0.0
        %394 = vst.msk [vmem:[#allocation4 + $0x18] sm:$0xff] %vm390, 0.0
        %395 = vst.msk [vmem:[#allocation4 + $0x20] sm:$0xff] %vm390, 0.0
        %396 = vst.msk [vmem:[#allocation4 + $0x28] sm:$0xff] %vm390, 0.0
        %397 = vst.msk [vmem:[#allocation4 + $0x30] sm:$0xff] %vm390, 0.0
        %398 = vst.msk [vmem:[#allocation4 + $0x38] sm:$0xff] %vm390, 0.0
        %399 = vst.msk [vmem:[#allocation4 + $0x40] sm:$0xff] %vm390, 0.0
        %400 = vst.msk [vmem:[#allocation4 + $0x48] sm:$0xff] %vm390, 0.0
        %401 = vst.msk [vmem:[#allocation4 + $0x50] sm:$0xff] %vm390, 0.0
        %402 = vst.msk [vmem:[#allocation4 + $0x58] sm:$0xff] %vm390, 0.0
        %403 = vst.msk [vmem:[#allocation4 + $0x60] sm:$0xff] %vm390, 0.0
        %404 = vst.msk [vmem:[#allocation4 + $0x68] sm:$0xff] %vm390, 0.0
        %405 = vst.msk [vmem:[#allocation4 + $0x70] sm:$0xff] %vm390, 0.0
        %406 = vst.msk [vmem:[#allocation4 + $0x78] sm:$0xff] %vm390, 0.0
        %407 = vst.msk [vmem:[#allocation4 + $0x80] sm:$0xff] %vm390, 0.0
        %408 = vst.msk [vmem:[#allocation4 + $0x88] sm:$0xff] %vm390, 0.0
        %409 = vst.msk [vmem:[#allocation4 + $0x90] sm:$0xff] %vm390, 0.0
        %410 = vst.msk [vmem:[#allocation4 + $0x98] sm:$0xff] %vm390, 0.0
        %411 = vst.msk [vmem:[#allocation4 + $0xa0] sm:$0xff] %vm390, 0.0
        %412 = vst.msk [vmem:[#allocation4 + $0xa8] sm:$0xff] %vm390, 0.0
        %413 = vst.msk [vmem:[#allocation4 + $0xb0] sm:$0xff] %vm390, 0.0
        %414 = vst.msk [vmem:[#allocation4 + $0xb8] sm:$0xff] %vm390, 0.0
        %415 = vst.msk [vmem:[#allocation4 + $0xc0] sm:$0xff] %vm390, 0.0
        %416 = vst.msk [vmem:[#allocation4 + $0xc8] sm:$0xff] %vm390, 0.0
        %417 = vst.msk [vmem:[#allocation4 + $0xd0] sm:$0xff] %vm390, 0.0
        %418 = vst.msk [vmem:[#allocation4 + $0xd8] sm:$0xff] %vm390, 0.0
        %419 = vst.msk [vmem:[#allocation4 + $0xe0] sm:$0xff] %vm390, 0.0
        %420 = vst.msk [vmem:[#allocation4 + $0xe8] sm:$0xff] %vm390, 0.0
        %421 = vst.msk [vmem:[#allocation4 + $0xf0] sm:$0xff] %vm390, 0.0
        %422 = vst.msk [vmem:[#allocation4 + $0xf8] sm:$0xff] %vm390, 0.0
      $region36: #{gpt2_logits.18} parent=31 // pred_fallthru
        _
      %v423 = vld [vmem:[%s277] sm:$0xf]
      %v424 = vld [vmem:[%s277 + $0x4] sm:$0xf]
      %v425 = vld [vmem:[%s277 + $0x8] sm:$0xf]
      %v426 = vld [vmem:[%s277 + $0xc] sm:$0xf]
      %v427 = vld [vmem:[%s277 + $0x10] sm:$0xf]
      %v428 = vld [vmem:[%s277 + $0x14] sm:$0xf]
      %v429 = vld [vmem:[%s277 + $0x18] sm:$0xf]
      %v430 = vld [vmem:[%s277 + $0x1c] sm:$0xf]
      %v431 = vld [vmem:[%s277 + $0x20] sm:$0xf]
      %v432 = vld [vmem:[%s277 + $0x24] sm:$0xf]
      %v433 = vld [vmem:[%s277 + $0x28] sm:$0xf]
      %v434 = vld [vmem:[%s277 + $0x2c] sm:$0xf]
      %v435 = vld [vmem:[%s277 + $0x30] sm:$0xf]
      %v436 = vld [vmem:[%s277 + $0x34] sm:$0xf]
      %v437 = vld [vmem:[%s277 + $0x38] sm:$0xf]
      %v438 = vld [vmem:[%s277 + $0x3c] sm:$0xf]
      %v439 = vld [vmem:[%s277 + $0x40] sm:$0xf]
      %v440 = vld [vmem:[%s277 + $0x44] sm:$0xf]
      %v441 = vld [vmem:[%s277 + $0x48] sm:$0xf]
      %v442 = vld [vmem:[%s277 + $0x4c] sm:$0xf]
      %v443 = vld [vmem:[%s277 + $0x50] sm:$0xf]
      %v444 = vld [vmem:[%s277 + $0x54] sm:$0xf]
      %v445 = vld [vmem:[%s277 + $0x58] sm:$0xf]
      %v446 = vld [vmem:[%s277 + $0x5c] sm:$0xf]
      %v447 = vld [vmem:[%s277 + $0x60] sm:$0xf]
      %v448 = vld [vmem:[%s277 + $0x64] sm:$0xf]
      %v449 = vld [vmem:[%s277 + $0x68] sm:$0xf]
      %v450 = vld [vmem:[%s277 + $0x6c] sm:$0xf]
      %v451 = vld [vmem:[%s277 + $0x70] sm:$0xf]
      %v452 = vld [vmem:[%s277 + $0x74] sm:$0xf]
      %v453 = vld [vmem:[%s277 + $0x78] sm:$0xf]
      %v454 = vld [vmem:[%s277 + $0x7c] sm:$0xf]
      %v455 = vunpack.c.l.bf16 %v423
      %v456 = vunpack.c.l.bf16 %v424
      %v457 = vunpack.c.l.bf16 %v425
      %v458 = vunpack.c.l.bf16 %v426
      %v459 = vunpack.c.l.bf16 %v427
      %v460 = vunpack.c.l.bf16 %v428
      %v461 = vunpack.c.l.bf16 %v429
      %v462 = vunpack.c.l.bf16 %v430
      %v463 = vunpack.c.l.bf16 %v431
      %v464 = vunpack.c.l.bf16 %v432
      %v465 = vunpack.c.l.bf16 %v433
      %v466 = vunpack.c.l.bf16 %v434
      %v467 = vunpack.c.l.bf16 %v435
      %v468 = vunpack.c.l.bf16 %v436
      %v469 = vunpack.c.l.bf16 %v437
      %v470 = vunpack.c.l.bf16 %v438
      %v471 = vunpack.c.l.bf16 %v439
      %v472 = vunpack.c.l.bf16 %v440
      %v473 = vunpack.c.l.bf16 %v441
      %v474 = vunpack.c.l.bf16 %v442
      %v475 = vunpack.c.l.bf16 %v443
      %v476 = vunpack.c.l.bf16 %v444
      %v477 = vunpack.c.l.bf16 %v445
      %v478 = vunpack.c.l.bf16 %v446
      %v479 = vunpack.c.l.bf16 %v447
      %v480 = vunpack.c.l.bf16 %v448
      %v481 = vunpack.c.l.bf16 %v449
      %v482 = vunpack.c.l.bf16 %v450
      %v483 = vunpack.c.l.bf16 %v451
      %v484 = vunpack.c.l.bf16 %v452
      %v485 = vunpack.c.l.bf16 %v453
      %v486 = vunpack.c.l.bf16 %v454
      %v487 = vmul.f32 %v455, 0.17677669
      %v488 = vmul.f32 %v456, 0.17677669
      %v489 = vmul.f32 %v457, 0.17677669
      %v490 = vmul.f32 %v458, 0.17677669
      %v491 = vmul.f32 %v459, 0.17677669
      %v492 = vmul.f32 %v460, 0.17677669
      %v493 = vmul.f32 %v461, 0.17677669
      %v494 = vmul.f32 %v462, 0.17677669
      %v495 = vmul.f32 %v463, 0.17677669
      %v496 = vmul.f32 %v464, 0.17677669
      %v497 = vmul.f32 %v465, 0.17677669
      %v498 = vmul.f32 %v466, 0.17677669
      %v499 = vmul.f32 %v467, 0.17677669
      %v500 = vmul.f32 %v468, 0.17677669
      %v501 = vmul.f32 %v469, 0.17677669
      %v502 = vmul.f32 %v470, 0.17677669
      %v503 = vmul.f32 %v471, 0.17677669
      %v504 = vmul.f32 %v472, 0.17677669
      %v505 = vmul.f32 %v473, 0.17677669
      %v506 = vmul.f32 %v474, 0.17677669
      %v507 = vmul.f32 %v475, 0.17677669
      %v508 = vmul.f32 %v476, 0.17677669
      %v509 = vmul.f32 %v477, 0.17677669
      %v510 = vmul.f32 %v478, 0.17677669
      %v511 = vmul.f32 %v479, 0.17677669
      %v512 = vmul.f32 %v480, 0.17677669
      %v513 = vmul.f32 %v481, 0.17677669
      %v514 = vmul.f32 %v482, 0.17677669
      %v515 = vmul.f32 %v483, 0.17677669
      %v516 = vmul.f32 %v484, 0.17677669
      %v517 = vmul.f32 %v485, 0.17677669
      %v518 = vmul.f32 %v486, 0.17677669
      %v519 = vpack.c.bf16 %v488, %v487
      %v520 = vpack.c.bf16 %v490, %v489
      %v521 = vpack.c.bf16 %v492, %v491
      %v522 = vpack.c.bf16 %v494, %v493
      %v523 = vpack.c.bf16 %v496, %v495
      %v524 = vpack.c.bf16 %v498, %v497
      %v525 = vpack.c.bf16 %v500, %v499
      %v526 = vpack.c.bf16 %v502, %v501
      %v527 = vpack.c.bf16 %v504, %v503
      %v528 = vpack.c.bf16 %v506, %v505
      %v529 = vpack.c.bf16 %v508, %v507
      %v530 = vpack.c.bf16 %v510, %v509
      %v531 = vpack.c.bf16 %v512, %v511
      %v532 = vpack.c.bf16 %v514, %v513
      %v533 = vpack.c.bf16 %v516, %v515
      %v534 = vpack.c.bf16 %v518, %v517
      %v535 = vld [vmem:[%s290] sm:$0xf]
      %v536 = vld [vmem:[%s290 + $0x4] sm:$0xf]
      %v537 = vld [vmem:[%s290 + $0x8] sm:$0xf]
      %v538 = vld [vmem:[%s290 + $0xc] sm:$0xf]
      %v539 = vld [vmem:[%s290 + $0x10] sm:$0xf]
      %v540 = vld [vmem:[%s290 + $0x14] sm:$0xf]
      %v541 = vld [vmem:[%s290 + $0x18] sm:$0xf]
      %v542 = vld [vmem:[%s290 + $0x1c] sm:$0xf]
      %v543 = vld [vmem:[%s290 + $0x20] sm:$0xf]
      %v544 = vld [vmem:[%s290 + $0x24] sm:$0xf]
      %v545 = vld [vmem:[%s290 + $0x28] sm:$0xf]
      %v546 = vld [vmem:[%s290 + $0x2c] sm:$0xf]
      %v547 = vld [vmem:[%s290 + $0x30] sm:$0xf]
      %v548 = vld [vmem:[%s290 + $0x34] sm:$0xf]
      %v549 = vld [vmem:[%s290 + $0x38] sm:$0xf]
      %v550 = vld [vmem:[%s290 + $0x3c] sm:$0xf]
      %v551 = vld [vmem:[%s290 + $0x40] sm:$0xf]
      %v552 = vld [vmem:[%s290 + $0x44] sm:$0xf]
      %v553 = vld [vmem:[%s290 + $0x48] sm:$0xf]
      %v554 = vld [vmem:[%s290 + $0x4c] sm:$0xf]
      %v555 = vld [vmem:[%s290 + $0x50] sm:$0xf]
      %v556 = vld [vmem:[%s290 + $0x54] sm:$0xf]
      %v557 = vld [vmem:[%s290 + $0x58] sm:$0xf]
      %v558 = vld [vmem:[%s290 + $0x5c] sm:$0xf]
      %v559 = vld [vmem:[%s290 + $0x60] sm:$0xf]
      %v560 = vld [vmem:[%s290 + $0x64] sm:$0xf]
      %v561 = vld [vmem:[%s290 + $0x68] sm:$0xf]
      %v562 = vld [vmem:[%s290 + $0x6c] sm:$0xf]
      %v563 = vld [vmem:[%s290 + $0x70] sm:$0xf]
      %v564 = vld [vmem:[%s290 + $0x74] sm:$0xf]
      %v565 = vld [vmem:[%s290 + $0x78] sm:$0xf]
      %v566 = vld [vmem:[%s290 + $0x7c] sm:$0xf]
      %v599 = vunpack.c.l.b16 %v535
      %v600 = vunpack.c.l.b16 %v536
      %v601 = vunpack.c.l.b16 %v537
      %v602 = vunpack.c.l.b16 %v538
      %v603 = vunpack.c.l.b16 %v539
      %v604 = vunpack.c.l.b16 %v540
      %v605 = vunpack.c.l.b16 %v541
      %v606 = vunpack.c.l.b16 %v542
      %v607 = vunpack.c.l.b16 %v543
      %v608 = vunpack.c.l.b16 %v544
      %v609 = vunpack.c.l.b16 %v545
      %v610 = vunpack.c.l.b16 %v546
      %v611 = vunpack.c.l.b16 %v547
      %v612 = vunpack.c.l.b16 %v548
      %v613 = vunpack.c.l.b16 %v549
      %v614 = vunpack.c.l.b16 %v550
      %v615 = vunpack.c.l.b16 %v551
      %v616 = vunpack.c.l.b16 %v552
      %v617 = vunpack.c.l.b16 %v553
      %v618 = vunpack.c.l.b16 %v554
      %v619 = vunpack.c.l.b16 %v555
      %v620 = vunpack.c.l.b16 %v556
      %v621 = vunpack.c.l.b16 %v557
      %v622 = vunpack.c.l.b16 %v558
      %v623 = vunpack.c.l.b16 %v559
      %v624 = vunpack.c.l.b16 %v560
      %v625 = vunpack.c.l.b16 %v561
      %v626 = vunpack.c.l.b16 %v562
      %v627 = vunpack.c.l.b16 %v563
      %v628 = vunpack.c.l.b16 %v564
      %v629 = vunpack.c.l.b16 %v565
      %v630 = vunpack.c.l.b16 %v566
      %v631 = vpack.c.b16 %v600, %v599
      %v632 = vpack.c.b16 %v602, %v601
      %v633 = vpack.c.b16 %v604, %v603
      %v634 = vpack.c.b16 %v606, %v605
      %v635 = vpack.c.b16 %v608, %v607
      %v636 = vpack.c.b16 %v610, %v609
      %v637 = vpack.c.b16 %v612, %v611
      %v638 = vpack.c.b16 %v614, %v613
      %v639 = vpack.c.b16 %v616, %v615
      %v640 = vpack.c.b16 %v618, %v617
      %v641 = vpack.c.b16 %v620, %v619
      %v642 = vpack.c.b16 %v622, %v621
      %v643 = vpack.c.b16 %v624, %v623
      %v644 = vpack.c.b16 %v626, %v625
      %v645 = vpack.c.b16 %v628, %v627
      %v646 = vpack.c.b16 %v630, %v629
      %vm647 = vcmask 261120
      %v649 = vsel %vm647, %v519, 0
      %v652 = vsel %vm647, %v520, 0
      %v655 = vsel %vm647, %v521, 0
      %v658 = vsel %vm647, %v522, 0
      %v661 = vsel %vm647, %v523, 0
      %v664 = vsel %vm647, %v524, 0
      %v667 = vsel %vm647, %v525, 0
      %v670 = vsel %vm647, %v526, 0
      %v673 = vsel %vm647, %v527, 0
      %v676 = vsel %vm647, %v528, 0
      %v679 = vsel %vm647, %v529, 0
      %v682 = vsel %vm647, %v530, 0
      %v685 = vsel %vm647, %v531, 0
      %v688 = vsel %vm647, %v532, 0
      %v691 = vsel %vm647, %v533, 0
      %v694 = vsel %vm647, %v534, 0
      %v697 = vsel %vm647, %v631, 0
      %v700 = vsel %vm647, %v632, 0
      %v703 = vsel %vm647, %v633, 0
      %v706 = vsel %vm647, %v634, 0
      %v709 = vsel %vm647, %v635, 0
      %v712 = vsel %vm647, %v636, 0
      %v715 = vsel %vm647, %v637, 0
      %v718 = vsel %vm647, %v638, 0
      %v721 = vsel %vm647, %v639, 0
      %v724 = vsel %vm647, %v640, 0
      %v727 = vsel %vm647, %v641, 0
      %v730 = vsel %vm647, %v642, 0
      %v733 = vsel %vm647, %v643, 0
      %v736 = vsel %vm647, %v644, 0
      %v739 = vsel %vm647, %v645, 0
      %v742 = vsel %vm647, %v646, 0
      %744 = vmatprep.subr.bf16.mxu0 0
      %745 = vmatpush1.bf16.xpose.msra.mxu0 %v718
      %746 = vmatprep.subr.bf16.mxu0 0
      %747 = vmatpush1.bf16.xpose.msra.mxu0 %v715
      %748 = vmatprep.subr.bf16.mxu0 0
      %749 = vmatpush1.bf16.xpose.msra.mxu0 %v712
      %750 = vmatprep.subr.bf16.mxu0 0
      %751 = vmatpush1.bf16.xpose.msra.mxu0 %v709
      %752 = vmatprep.subr.bf16.mxu0 0
      %753 = vmatpush1.bf16.xpose.msra.mxu0 %v706
      %754 = vmatprep.subr.bf16.mxu0 0
      %755 = vmatpush1.bf16.xpose.msra.mxu0 %v703
      %756 = vmatprep.subr.bf16.mxu0 0
      %757 = vmatpush1.bf16.xpose.msra.mxu0 %v700
      %758 = vmatprep.subr.bf16.mxu0 0
      %759 = vmatpush1.bf16.xpose.msra.mxu0 %v697
      %760 = vmatprep.subr.bf16.mxu0 0
      %761 = vmatpush2.bf16.xpose.msra.mxu0 %v742
      %762 = vmatprep.subr.bf16.mxu0 0
      %763 = vmatpush2.bf16.xpose.msra.mxu0 %v739
      %764 = vmatprep.subr.bf16.mxu0 0
      %765 = vmatpush2.bf16.xpose.msra.mxu0 %v736
      %766 = vmatprep.subr.bf16.mxu0 0
      %767 = vmatpush2.bf16.xpose.msra.mxu0 %v733
      %768 = vmatprep.subr.bf16.mxu0 0
      %769 = vmatpush2.bf16.xpose.msra.mxu0 %v730
      %770 = vmatprep.subr.bf16.mxu0 0
      %771 = vmatpush2.bf16.xpose.msra.mxu0 %v727
      %772 = vmatprep.subr.bf16.mxu0 0
      %773 = vmatpush2.bf16.xpose.msra.mxu0 %v724
      %774 = vmatprep.subr.bf16.mxu0 0
      %775 = vmatpush2.bf16.xpose.msra.mxu0 %v721
      %776 = vmatprep.mubr.bf16.mxu0 0
      %777 = vmatmul.mubr.bf16.gmra.mxu0 %v649
      %v778 = vpop.f32.mrf.mxu0
      %v779 = vadd.f32 0.0, %v778
      %v780 = vpop.f32.mrf.mxu0
      %v781 = vadd.f32 0.0, %v780
      %v782 = vpop.f32.mrf.mxu0
      %v783 = vadd.f32 0.0, %v782
      %v784 = vpop.f32.mrf.mxu0
      %v785 = vadd.f32 0.0, %v784
      %786 = vmatprep.mubr.bf16.mxu0 0
      %787 = vmatmul.mubr.bf16.gmra.mxu0 %v652
      %v788 = vpop.f32.mrf.mxu0
      %v789 = vadd.f32 0.0, %v788
      %v790 = vpop.f32.mrf.mxu0
      %v791 = vadd.f32 0.0, %v790
      %v792 = vpop.f32.mrf.mxu0
      %v793 = vadd.f32 0.0, %v792
      %v794 = vpop.f32.mrf.mxu0
      %v795 = vadd.f32 0.0, %v794
      %796 = vmatprep.mubr.bf16.mxu0 0
      %797 = vmatmul.mubr.bf16.gmra.mxu0 %v655
      %v798 = vpop.f32.mrf.mxu0
      %v799 = vadd.f32 0.0, %v798
      %v800 = vpop.f32.mrf.mxu0
      %v801 = vadd.f32 0.0, %v800
      %v802 = vpop.f32.mrf.mxu0
      %v803 = vadd.f32 0.0, %v802
      %v804 = vpop.f32.mrf.mxu0
      %v805 = vadd.f32 0.0, %v804
      %806 = vmatprep.mubr.bf16.mxu0 0
      %807 = vmatmul.mubr.bf16.gmra.mxu0 %v658
      %v808 = vpop.f32.mrf.mxu0
      %v809 = vadd.f32 0.0, %v808
      %v810 = vpop.f32.mrf.mxu0
      %v811 = vadd.f32 0.0, %v810
      %v812 = vpop.f32.mrf.mxu0
      %v813 = vadd.f32 0.0, %v812
      %v814 = vpop.f32.mrf.mxu0
      %v815 = vadd.f32 0.0, %v814
      %816 = vmatprep.mubr.bf16.mxu0 0
      %817 = vmatmul.mubr.bf16.gmra.mxu0 %v661
      %v818 = vpop.f32.mrf.mxu0
      %v819 = vadd.f32 0.0, %v818
      %v820 = vpop.f32.mrf.mxu0
      %v821 = vadd.f32 0.0, %v820
      %v822 = vpop.f32.mrf.mxu0
      %v823 = vadd.f32 0.0, %v822
      %v824 = vpop.f32.mrf.mxu0
      %v825 = vadd.f32 0.0, %v824
      %826 = vmatprep.mubr.bf16.mxu0 0
      %827 = vmatmul.mubr.bf16.gmra.mxu0 %v664
      %v828 = vpop.f32.mrf.mxu0
      %v829 = vadd.f32 0.0, %v828
      %v830 = vpop.f32.mrf.mxu0
      %v831 = vadd.f32 0.0, %v830
      %v832 = vpop.f32.mrf.mxu0
      %v833 = vadd.f32 0.0, %v832
      %v834 = vpop.f32.mrf.mxu0
      %v835 = vadd.f32 0.0, %v834
      %836 = vmatprep.mubr.bf16.mxu0 0
      %837 = vmatmul.mubr.bf16.gmra.mxu0 %v667
      %v838 = vpop.f32.mrf.mxu0
      %v839 = vadd.f32 0.0, %v838
      %v840 = vpop.f32.mrf.mxu0
      %v841 = vadd.f32 0.0, %v840
      %v842 = vpop.f32.mrf.mxu0
      %v843 = vadd.f32 0.0, %v842
      %v844 = vpop.f32.mrf.mxu0
      %v845 = vadd.f32 0.0, %v844
      %846 = vmatprep.mubr.bf16.mxu0 0
      %847 = vmatmul.mubr.bf16.gmra.mxu0 %v670
      %v848 = vpop.f32.mrf.mxu0
      %v849 = vadd.f32 0.0, %v848
      %v850 = vpop.f32.mrf.mxu0
      %v851 = vadd.f32 0.0, %v850
      %v852 = vpop.f32.mrf.mxu0
      %v853 = vadd.f32 0.0, %v852
      %v854 = vpop.f32.mrf.mxu0
      %v855 = vadd.f32 0.0, %v854
      %856 = vmatprep.mubr.bf16.mxu0 0
      %857 = vmatmul.mubr.bf16.gmra.mxu0 %v673
      %v858 = vpop.f32.mrf.mxu0
      %v859 = vadd.f32 0.0, %v858
      %v860 = vpop.f32.mrf.mxu0
      %v861 = vadd.f32 0.0, %v860
      %v862 = vpop.f32.mrf.mxu0
      %v863 = vadd.f32 0.0, %v862
      %v864 = vpop.f32.mrf.mxu0
      %v865 = vadd.f32 0.0, %v864
      %866 = vmatprep.mubr.bf16.mxu0 0
      %867 = vmatmul.mubr.bf16.gmra.mxu0 %v676
      %v868 = vpop.f32.mrf.mxu0
      %v869 = vadd.f32 0.0, %v868
      %v870 = vpop.f32.mrf.mxu0
      %v871 = vadd.f32 0.0, %v870
      %v872 = vpop.f32.mrf.mxu0
      %v873 = vadd.f32 0.0, %v872
      %v874 = vpop.f32.mrf.mxu0
      %v875 = vadd.f32 0.0, %v874
      %876 = vmatprep.mubr.bf16.mxu0 0
      %877 = vmatmul.mubr.bf16.gmra.mxu0 %v679
      %v878 = vpop.f32.mrf.mxu0
      %v879 = vadd.f32 0.0, %v878
      %v880 = vpop.f32.mrf.mxu0
      %v881 = vadd.f32 0.0, %v880
      %v882 = vpop.f32.mrf.mxu0
      %v883 = vadd.f32 0.0, %v882
      %v884 = vpop.f32.mrf.mxu0
      %v885 = vadd.f32 0.0, %v884
      %886 = vmatprep.mubr.bf16.mxu0 0
      %887 = vmatmul.mubr.bf16.gmra.mxu0 %v682
      %v888 = vpop.f32.mrf.mxu0
      %v889 = vadd.f32 0.0, %v888
      %v890 = vpop.f32.mrf.mxu0
      %v891 = vadd.f32 0.0, %v890
      %v892 = vpop.f32.mrf.mxu0
      %v893 = vadd.f32 0.0, %v892
      %v894 = vpop.f32.mrf.mxu0
      %v895 = vadd.f32 0.0, %v894
      %896 = vmatprep.mubr.bf16.mxu0 0
      %897 = vmatmul.mubr.bf16.gmra.mxu0 %v685
      %v898 = vpop.f32.mrf.mxu0
      %v899 = vadd.f32 0.0, %v898
      %v900 = vpop.f32.mrf.mxu0
      %v901 = vadd.f32 0.0, %v900
      %v902 = vpop.f32.mrf.mxu0
      %v903 = vadd.f32 0.0, %v902
      %v904 = vpop.f32.mrf.mxu0
      %v905 = vadd.f32 0.0, %v904
      %906 = vmatprep.mubr.bf16.mxu0 0
      %907 = vmatmul.mubr.bf16.gmra.mxu0 %v688
      %v908 = vpop.f32.mrf.mxu0
      %v909 = vadd.f32 0.0, %v908
      %v910 = vpop.f32.mrf.mxu0
      %v911 = vadd.f32 0.0, %v910
      %v912 = vpop.f32.mrf.mxu0
      %v913 = vadd.f32 0.0, %v912
      %v914 = vpop.f32.mrf.mxu0
      %v915 = vadd.f32 0.0, %v914
      %916 = vmatprep.mubr.bf16.mxu0 0
      %917 = vmatmul.mubr.bf16.gmra.mxu0 %v691
      %v918 = vpop.f32.mrf.mxu0
      %v919 = vadd.f32 0.0, %v918
      %v920 = vpop.f32.mrf.mxu0
      %v921 = vadd.f32 0.0, %v920
      %v922 = vpop.f32.mrf.mxu0
      %v923 = vadd.f32 0.0, %v922
      %v924 = vpop.f32.mrf.mxu0
      %v925 = vadd.f32 0.0, %v924
      %926 = vmatprep.mubr.bf16.mxu0 0
      %927 = vmatmul.mubr.bf16.gmra.mxu0 %v694
      %v928 = vpop.f32.mrf.mxu0
      %v929 = vadd.f32 0.0, %v928
      %v930 = vpop.f32.mrf.mxu0
      %v931 = vadd.f32 0.0, %v930
      %v932 = vpop.f32.mrf.mxu0
      %v933 = vadd.f32 0.0, %v932
      %v934 = vpop.f32.mrf.mxu0
      %v935 = vadd.f32 0.0, %v934
      %936 = vdwg.mxu0
      %s937 = smul.u32 %s319, 256
      %v938 = vlaneseq
      %v939 = vshrl.u32 %v938, 7
      %v940 = vadd.s32 %v939, 8
      %v941 = vadd.s32 %v939, 16
      %v942 = vadd.s32 %v939, 24
      %v943 = vadd.s32 %v939, 32
      %v944 = vadd.s32 %v939, 40
      %v945 = vadd.s32 %v939, 48
      %v946 = vadd.s32 %v939, 56
      %v947 = vadd.s32 %v939, 64
      %v948 = vadd.s32 %v939, 72
      %v949 = vadd.s32 %v939, 80
      %v950 = vadd.s32 %v939, 88
      %v951 = vadd.s32 %v939, 96
      %v952 = vadd.s32 %v939, 104
      %v953 = vadd.s32 %v939, 112
      %v954 = vadd.s32 %v939, 120
      %v955 = vadd.s32 %v939, 128
      %v956 = vadd.s32 %v939, 136
      %v957 = vadd.s32 %v939, 144
      %v958 = vadd.s32 %v939, 152
      %v959 = vadd.s32 %v939, 160
      %v960 = vadd.s32 %v939, 168
      %v961 = vadd.s32 %v939, 176
      %v962 = vadd.s32 %v939, 184
      %v963 = vadd.s32 %v939, 192
      %v964 = vadd.s32 %v939, 200
      %v965 = vadd.s32 %v939, 208
      %v966 = vadd.s32 %v939, 216
      %v967 = vadd.s32 %v939, 224
      %v968 = vadd.s32 %v939, 232
      %v969 = vadd.s32 %v939, 240
      %v970 = vadd.s32 %v939, 248
      %v971 = vstv %s937
      %v972 = vadd.s32 %v971, %v939
      %v973 = vadd.s32 %v971, %v940
      %v974 = vadd.s32 %v971, %v941
      %v975 = vadd.s32 %v971, %v942
      %v976 = vadd.s32 %v971, %v943
      %v977 = vadd.s32 %v971, %v944
      %v978 = vadd.s32 %v971, %v945
      %v979 = vadd.s32 %v971, %v946
      %v980 = vadd.s32 %v971, %v947
      %v981 = vadd.s32 %v971, %v948
      %v982 = vadd.s32 %v971, %v949
      %v983 = vadd.s32 %v971, %v950
      %v984 = vadd.s32 %v971, %v951
      %v985 = vadd.s32 %v971, %v952
      %v986 = vadd.s32 %v971, %v953
      %v987 = vadd.s32 %v971, %v954
      %v988 = vadd.s32 %v971, %v955
      %v989 = vadd.s32 %v971, %v956
      %v990 = vadd.s32 %v971, %v957
      %v991 = vadd.s32 %v971, %v958
      %v992 = vadd.s32 %v971, %v959
      %v993 = vadd.s32 %v971, %v960
      %v994 = vadd.s32 %v971, %v961
      %v995 = vadd.s32 %v971, %v962
      %v996 = vadd.s32 %v971, %v963
      %v997 = vadd.s32 %v971, %v964
      %v998 = vadd.s32 %v971, %v965
      %v999 = vadd.s32 %v971, %v966
      %v1000 = vadd.s32 %v971, %v967
      %v1001 = vadd.s32 %v971, %v968
      %v1002 = vadd.s32 %v971, %v969
      %v1003 = vadd.s32 %v971, %v970
      %s1004 = smul.u32 %s320, 256
      %v1005 = vlaneseq
      %v1006 = vand.u32 %v1005, 127
      %v1007 = vadd.s32 %v1006, 128
      %v1008 = vstv %s1004
      %v1009 = vadd.s32 %v1008, %v1006
      %v1010 = vadd.s32 %v1008, %v1007
      %vm1011 = vcmp.le.s32.totalorder %v1009, %v972
      %vm1012 = vcmp.le.s32.totalorder %v1010, %v972
      %vm1013 = vcmp.le.s32.totalorder %v1009, %v973
      %vm1014 = vcmp.le.s32.totalorder %v1010, %v973
      %vm1015 = vcmp.le.s32.totalorder %v1009, %v974
      %vm1016 = vcmp.le.s32.totalorder %v1010, %v974
      %vm1017 = vcmp.le.s32.totalorder %v1009, %v975
      %vm1018 = vcmp.le.s32.totalorder %v1010, %v975
      %vm1019 = vcmp.le.s32.totalorder %v1009, %v976
      %vm1020 = vcmp.le.s32.totalorder %v1010, %v976
      %vm1021 = vcmp.le.s32.totalorder %v1009, %v977
      %vm1022 = vcmp.le.s32.totalorder %v1010, %v977
      %vm1023 = vcmp.le.s32.totalorder %v1009, %v978
      %vm1024 = vcmp.le.s32.totalorder %v1010, %v978
      %vm1025 = vcmp.le.s32.totalorder %v1009, %v979
      %vm1026 = vcmp.le.s32.totalorder %v1010, %v979
      %vm1027 = vcmp.le.s32.totalorder %v1009, %v980
      %vm1028 = vcmp.le.s32.totalorder %v1010, %v980
      %vm1029 = vcmp.le.s32.totalorder %v1009, %v981
      %vm1030 = vcmp.le.s32.totalorder %v1010, %v981
      %vm1031 = vcmp.le.s32.totalorder %v1009, %v982
      %vm1032 = vcmp.le.s32.totalorder %v1010, %v982
      %vm1033 = vcmp.le.s32.totalorder %v1009, %v983
      %vm1034 = vcmp.le.s32.totalorder %v1010, %v983
      %vm1035 = vcmp.le.s32.totalorder %v1009, %v984
      %vm1036 = vcmp.le.s32.totalorder %v1010, %v984
      %vm1037 = vcmp.le.s32.totalorder %v1009, %v985
      %vm1038 = vcmp.le.s32.totalorder %v1010, %v985
      %vm1039 = vcmp.le.s32.totalorder %v1009, %v986
      %vm1040 = vcmp.le.s32.totalorder %v1010, %v986
      %vm1041 = vcmp.le.s32.totalorder %v1009, %v987
      %vm1042 = vcmp.le.s32.totalorder %v1010, %v987
      %vm1043 = vcmp.le.s32.totalorder %v1009, %v988
      %vm1044 = vcmp.le.s32.totalorder %v1010, %v988
      %vm1045 = vcmp.le.s32.totalorder %v1009, %v989
      %vm1046 = vcmp.le.s32.totalorder %v1010, %v989
      %vm1047 = vcmp.le.s32.totalorder %v1009, %v990
      %vm1048 = vcmp.le.s32.totalorder %v1010, %v990
      %vm1049 = vcmp.le.s32.totalorder %v1009, %v991
      %vm1050 = vcmp.le.s32.totalorder %v1010, %v991
      %vm1051 = vcmp.le.s32.totalorder %v1009, %v992
      %vm1052 = vcmp.le.s32.totalorder %v1010, %v992
      %vm1053 = vcmp.le.s32.totalorder %v1009, %v993
      %vm1054 = vcmp.le.s32.totalorder %v1010, %v993
      %vm1055 = vcmp.le.s32.totalorder %v1009, %v994
      %vm1056 = vcmp.le.s32.totalorder %v1010, %v994
      %vm1057 = vcmp.le.s32.totalorder %v1009, %v995
      %vm1058 = vcmp.le.s32.totalorder %v1010, %v995
      %vm1059 = vcmp.le.s32.totalorder %v1009, %v996
      %vm1060 = vcmp.le.s32.totalorder %v1010, %v996
      %vm1061 = vcmp.le.s32.totalorder %v1009, %v997
      %vm1062 = vcmp.le.s32.totalorder %v1010, %v997
      %vm1063 = vcmp.le.s32.totalorder %v1009, %v998
      %vm1064 = vcmp.le.s32.totalorder %v1010, %v998
      %vm1065 = vcmp.le.s32.totalorder %v1009, %v999
      %vm1066 = vcmp.le.s32.totalorder %v1010, %v999
      %vm1067 = vcmp.le.s32.totalorder %v1009, %v1000
      %vm1068 = vcmp.le.s32.totalorder %v1010, %v1000
      %vm1069 = vcmp.le.s32.totalorder %v1009, %v1001
      %vm1070 = vcmp.le.s32.totalorder %v1010, %v1001
      %vm1071 = vcmp.le.s32.totalorder %v1009, %v1002
      %vm1072 = vcmp.le.s32.totalorder %v1010, %v1002
      %vm1073 = vcmp.le.s32.totalorder %v1009, %v1003
      %vm1074 = vcmp.le.s32.totalorder %v1010, %v1003
      %v1075 = vsel %vm1011, %v779, -1e+30
      %v1076 = vsel %vm1012, %v781, -1e+30
      %v1077 = vsel %vm1013, %v783, -1e+30
      %v1078 = vsel %vm1014, %v785, -1e+30
      %v1079 = vsel %vm1015, %v789, -1e+30
      %v1080 = vsel %vm1016, %v791, -1e+30
      %v1081 = vsel %vm1017, %v793, -1e+30
      %v1082 = vsel %vm1018, %v795, -1e+30
      %v1083 = vsel %vm1019, %v799, -1e+30
      %v1084 = vsel %vm1020, %v801, -1e+30
      %v1085 = vsel %vm1021, %v803, -1e+30
      %v1086 = vsel %vm1022, %v805, -1e+30
      %v1087 = vsel %vm1023, %v809, -1e+30
      %v1088 = vsel %vm1024, %v811, -1e+30
      %v1089 = vsel %vm1025, %v813, -1e+30
      %v1090 = vsel %vm1026, %v815, -1e+30
      %v1091 = vsel %vm1027, %v819, -1e+30
      %v1092 = vsel %vm1028, %v821, -1e+30
      %v1093 = vsel %vm1029, %v823, -1e+30
      %v1094 = vsel %vm1030, %v825, -1e+30
      %v1095 = vsel %vm1031, %v829, -1e+30
      %v1096 = vsel %vm1032, %v831, -1e+30
      %v1097 = vsel %vm1033, %v833, -1e+30
      %v1098 = vsel %vm1034, %v835, -1e+30
      %v1099 = vsel %vm1035, %v839, -1e+30
      %v1100 = vsel %vm1036, %v841, -1e+30
      %v1101 = vsel %vm1037, %v843, -1e+30
      %v1102 = vsel %vm1038, %v845, -1e+30
      %v1103 = vsel %vm1039, %v849, -1e+30
      %v1104 = vsel %vm1040, %v851, -1e+30
      %v1105 = vsel %vm1041, %v853, -1e+30
      %v1106 = vsel %vm1042, %v855, -1e+30
      %v1107 = vsel %vm1043, %v859, -1e+30
      %v1108 = vsel %vm1044, %v861, -1e+30
      %v1109 = vsel %vm1045, %v863, -1e+30
      %v1110 = vsel %vm1046, %v865, -1e+30
      %v1111 = vsel %vm1047, %v869, -1e+30
      %v1112 = vsel %vm1048, %v871, -1e+30
      %v1113 = vsel %vm1049, %v873, -1e+30
      %v1114 = vsel %vm1050, %v875, -1e+30
      %v1115 = vsel %vm1051, %v879, -1e+30
      %v1116 = vsel %vm1052, %v881, -1e+30
      %v1117 = vsel %vm1053, %v883, -1e+30
      %v1118 = vsel %vm1054, %v885, -1e+30
      %v1119 = vsel %vm1055, %v889, -1e+30
      %v1120 = vsel %vm1056, %v891, -1e+30
      %v1121 = vsel %vm1057, %v893, -1e+30
      %v1122 = vsel %vm1058, %v895, -1e+30
      %v1123 = vsel %vm1059, %v899, -1e+30
      %v1124 = vsel %vm1060, %v901, -1e+30
      %v1125 = vsel %vm1061, %v903, -1e+30
      %v1126 = vsel %vm1062, %v905, -1e+30
      %v1127 = vsel %vm1063, %v909, -1e+30
      %v1128 = vsel %vm1064, %v911, -1e+30
      %v1129 = vsel %vm1065, %v913, -1e+30
      %v1130 = vsel %vm1066, %v915, -1e+30
      %v1131 = vsel %vm1067, %v919, -1e+30
      %v1132 = vsel %vm1068, %v921, -1e+30
      %v1133 = vsel %vm1069, %v923, -1e+30
      %v1134 = vsel %vm1070, %v925, -1e+30
      %v1135 = vsel %vm1071, %v929, -1e+30
      %v1136 = vsel %vm1072, %v931, -1e+30
      %v1137 = vsel %vm1073, %v933, -1e+30
      %v1138 = vsel %vm1074, %v935, -1e+30
      %v1139 = vld [vmem:[#allocation2] sm:$0xff]
      %v1140 = vld [vmem:[#allocation2 + $0x8] sm:$0xff]
      %v1141 = vld [vmem:[#allocation2 + $0x10] sm:$0xff]
      %v1142 = vld [vmem:[#allocation2 + $0x18] sm:$0xff]
      %v1143 = vld [vmem:[#allocation2 + $0x20] sm:$0xff]
      %v1144 = vld [vmem:[#allocation2 + $0x28] sm:$0xff]
      %v1145 = vld [vmem:[#allocation2 + $0x30] sm:$0xff]
      %v1146 = vld [vmem:[#allocation2 + $0x38] sm:$0xff]
      %v1147 = vld [vmem:[#allocation2 + $0x40] sm:$0xff]
      %v1148 = vld [vmem:[#allocation2 + $0x48] sm:$0xff]
      %v1149 = vld [vmem:[#allocation2 + $0x50] sm:$0xff]
      %v1150 = vld [vmem:[#allocation2 + $0x58] sm:$0xff]
      %v1151 = vld [vmem:[#allocation2 + $0x60] sm:$0xff]
      %v1152 = vld [vmem:[#allocation2 + $0x68] sm:$0xff]
      %v1153 = vld [vmem:[#allocation2 + $0x70] sm:$0xff]
      %v1154 = vld [vmem:[#allocation2 + $0x78] sm:$0xff]
      %v1155 = vld [vmem:[#allocation2 + $0x80] sm:$0xff]
      %v1156 = vld [vmem:[#allocation2 + $0x88] sm:$0xff]
      %v1157 = vld [vmem:[#allocation2 + $0x90] sm:$0xff]
      %v1158 = vld [vmem:[#allocation2 + $0x98] sm:$0xff]
      %v1159 = vld [vmem:[#allocation2 + $0xa0] sm:$0xff]
      %v1160 = vld [vmem:[#allocation2 + $0xa8] sm:$0xff]
      %v1161 = vld [vmem:[#allocation2 + $0xb0] sm:$0xff]
      %v1162 = vld [vmem:[#allocation2 + $0xb8] sm:$0xff]
      %v1163 = vld [vmem:[#allocation2 + $0xc0] sm:$0xff]
      %v1164 = vld [vmem:[#allocation2 + $0xc8] sm:$0xff]
      %v1165 = vld [vmem:[#allocation2 + $0xd0] sm:$0xff]
      %v1166 = vld [vmem:[#allocation2 + $0xd8] sm:$0xff]
      %v1167 = vld [vmem:[#allocation2 + $0xe0] sm:$0xff]
      %v1168 = vld [vmem:[#allocation2 + $0xe8] sm:$0xff]
      %v1169 = vld [vmem:[#allocation2 + $0xf0] sm:$0xff]
      %v1170 = vld [vmem:[#allocation2 + $0xf8] sm:$0xff]
      %v1171 = vmax.f32 %v1075, %v1076
      %1172 = vmax.xlane.f32.xlu0 %v1171
      %v1173 = vpop.xlane.xlu0 %1172
      %v1174 = vmax.f32 %v1077, %v1078
      %1175 = vmax.xlane.f32.xlu0 %v1174
      %v1176 = vpop.xlane.xlu0 %1175
      %v1177 = vmax.f32 %v1079, %v1080
      %1178 = vmax.xlane.f32.xlu0 %v1177
      %v1179 = vpop.xlane.xlu0 %1178
      %v1180 = vmax.f32 %v1081, %v1082
      %1181 = vmax.xlane.f32.xlu0 %v1180
      %v1182 = vpop.xlane.xlu0 %1181
      %v1183 = vmax.f32 %v1083, %v1084
      %1184 = vmax.xlane.f32.xlu0 %v1183
      %v1185 = vpop.xlane.xlu0 %1184
      %v1186 = vmax.f32 %v1085, %v1086
      %1187 = vmax.xlane.f32.xlu0 %v1186
      %v1188 = vpop.xlane.xlu0 %1187
      %v1189 = vmax.f32 %v1087, %v1088
      %1190 = vmax.xlane.f32.xlu0 %v1189
      %v1191 = vpop.xlane.xlu0 %1190
      %v1192 = vmax.f32 %v1089, %v1090
      %1193 = vmax.xlane.f32.xlu0 %v1192
      %v1194 = vpop.xlane.xlu0 %1193
      %v1195 = vmax.f32 %v1091, %v1092
      %1196 = vmax.xlane.f32.xlu0 %v1195
      %v1197 = vpop.xlane.xlu0 %1196
      %v1198 = vmax.f32 %v1093, %v1094
      %1199 = vmax.xlane.f32.xlu0 %v1198
      %v1200 = vpop.xlane.xlu0 %1199
      %v1201 = vmax.f32 %v1095, %v1096
      %1202 = vmax.xlane.f32.xlu0 %v1201
      %v1203 = vpop.xlane.xlu0 %1202
      %v1204 = vmax.f32 %v1097, %v1098
      %1205 = vmax.xlane.f32.xlu0 %v1204
      %v1206 = vpop.xlane.xlu0 %1205
      %v1207 = vmax.f32 %v1099, %v1100
      %1208 = vmax.xlane.f32.xlu0 %v1207
      %v1209 = vpop.xlane.xlu0 %1208
      %v1210 = vmax.f32 %v1101, %v1102
      %1211 = vmax.xlane.f32.xlu0 %v1210
      %v1212 = vpop.xlane.xlu0 %1211
      %v1213 = vmax.f32 %v1103, %v1104
      %1214 = vmax.xlane.f32.xlu0 %v1213
      %v1215 = vpop.xlane.xlu0 %1214
      %v1216 = vmax.f32 %v1105, %v1106
      %1217 = vmax.xlane.f32.xlu0 %v1216
      %v1218 = vpop.xlane.xlu0 %1217
      %v1219 = vmax.f32 %v1107, %v1108
      %1220 = vmax.xlane.f32.xlu0 %v1219
      %v1221 = vpop.xlane.xlu0 %1220
      %v1222 = vmax.f32 %v1109, %v1110
      %1223 = vmax.xlane.f32.xlu0 %v1222
      %v1224 = vpop.xlane.xlu0 %1223
      %v1225 = vmax.f32 %v1111, %v1112
      %1226 = vmax.xlane.f32.xlu0 %v1225
      %v1227 = vpop.xlane.xlu0 %1226
      %v1228 = vmax.f32 %v1113, %v1114
      %1229 = vmax.xlane.f32.xlu0 %v1228
      %v1230 = vpop.xlane.xlu0 %1229
      %v1231 = vmax.f32 %v1115, %v1116
      %1232 = vmax.xlane.f32.xlu0 %v1231
      %v1233 = vpop.xlane.xlu0 %1232
      %v1234 = vmax.f32 %v1117, %v1118
      %1235 = vmax.xlane.f32.xlu0 %v1234
      %v1236 = vpop.xlane.xlu0 %1235
      %v1237 = vmax.f32 %v1119, %v1120
      %1238 = vmax.xlane.f32.xlu0 %v1237
      %v1239 = vpop.xlane.xlu0 %1238
      %v1240 = vmax.f32 %v1121, %v1122
      %1241 = vmax.xlane.f32.xlu0 %v1240
      %v1242 = vpop.xlane.xlu0 %1241
      %v1243 = vmax.f32 %v1123, %v1124
      %1244 = vmax.xlane.f32.xlu0 %v1243
      %v1245 = vpop.xlane.xlu0 %1244
      %v1246 = vmax.f32 %v1125, %v1126
      %1247 = vmax.xlane.f32.xlu0 %v1246
      %v1248 = vpop.xlane.xlu0 %1247
      %v1249 = vmax.f32 %v1127, %v1128
      %1250 = vmax.xlane.f32.xlu0 %v1249
      %v1251 = vpop.xlane.xlu0 %1250
      %v1252 = vmax.f32 %v1129, %v1130
      %1253 = vmax.xlane.f32.xlu0 %v1252
      %v1254 = vpop.xlane.xlu0 %1253
      %v1255 = vmax.f32 %v1131, %v1132
      %1256 = vmax.xlane.f32.xlu0 %v1255
      %v1257 = vpop.xlane.xlu0 %1256
      %v1258 = vmax.f32 %v1133, %v1134
      %1259 = vmax.xlane.f32.xlu0 %v1258
      %v1260 = vpop.xlane.xlu0 %1259
      %v1261 = vmax.f32 %v1135, %v1136
      %1262 = vmax.xlane.f32.xlu0 %v1261
      %v1263 = vpop.xlane.xlu0 %1262
      %v1264 = vmax.f32 %v1137, %v1138
      %1265 = vmax.xlane.f32.xlu0 %v1264
      %v1266 = vpop.xlane.xlu0 %1265
      %v1267 = vmax.f32 %v1139, %v1173
      %v1268 = vmax.f32 %v1140, %v1176
      %v1269 = vmax.f32 %v1141, %v1179
      %v1270 = vmax.f32 %v1142, %v1182
      %v1271 = vmax.f32 %v1143, %v1185
      %v1272 = vmax.f32 %v1144, %v1188
      %v1273 = vmax.f32 %v1145, %v1191
      %v1274 = vmax.f32 %v1146, %v1194
      %v1275 = vmax.f32 %v1147, %v1197
      %v1276 = vmax.f32 %v1148, %v1200
      %v1277 = vmax.f32 %v1149, %v1203
      %v1278 = vmax.f32 %v1150, %v1206
      %v1279 = vmax.f32 %v1151, %v1209
      %v1280 = vmax.f32 %v1152, %v1212
      %v1281 = vmax.f32 %v1153, %v1215
      %v1282 = vmax.f32 %v1154, %v1218
      %v1283 = vmax.f32 %v1155, %v1221
      %v1284 = vmax.f32 %v1156, %v1224
      %v1285 = vmax.f32 %v1157, %v1227
      %v1286 = vmax.f32 %v1158, %v1230
      %v1287 = vmax.f32 %v1159, %v1233
      %v1288 = vmax.f32 %v1160, %v1236
      %v1289 = vmax.f32 %v1161, %v1239
      %v1290 = vmax.f32 %v1162, %v1242
      %v1291 = vmax.f32 %v1163, %v1245
      %v1292 = vmax.f32 %v1164, %v1248
      %v1293 = vmax.f32 %v1165, %v1251
      %v1294 = vmax.f32 %v1166, %v1254
      %v1295 = vmax.f32 %v1167, %v1257
      %v1296 = vmax.f32 %v1168, %v1260
      %v1297 = vmax.f32 %v1169, %v1263
      %v1298 = vmax.f32 %v1170, %v1266
      %v1299 = vsub.f32 %v1139, %v1267
      %v1300 = vsub.f32 %v1140, %v1268
      %v1301 = vsub.f32 %v1141, %v1269
      %v1302 = vsub.f32 %v1142, %v1270
      %v1303 = vsub.f32 %v1143, %v1271
      %v1304 = vsub.f32 %v1144, %v1272
      %v1305 = vsub.f32 %v1145, %v1273
      %v1306 = vsub.f32 %v1146, %v1274
      %v1307 = vsub.f32 %v1147, %v1275
      %v1308 = vsub.f32 %v1148, %v1276
      %v1309 = vsub.f32 %v1149, %v1277
      %v1310 = vsub.f32 %v1150, %v1278
      %v1311 = vsub.f32 %v1151, %v1279
      %v1312 = vsub.f32 %v1152, %v1280
      %v1313 = vsub.f32 %v1153, %v1281
      %v1314 = vsub.f32 %v1154, %v1282
      %v1315 = vsub.f32 %v1155, %v1283
      %v1316 = vsub.f32 %v1156, %v1284
      %v1317 = vsub.f32 %v1157, %v1285
      %v1318 = vsub.f32 %v1158, %v1286
      %v1319 = vsub.f32 %v1159, %v1287
      %v1320 = vsub.f32 %v1160, %v1288
      %v1321 = vsub.f32 %v1161, %v1289
      %v1322 = vsub.f32 %v1162, %v1290
      %v1323 = vsub.f32 %v1163, %v1291
      %v1324 = vsub.f32 %v1164, %v1292
      %v1325 = vsub.f32 %v1165, %v1293
      %v1326 = vsub.f32 %v1166, %v1294
      %v1327 = vsub.f32 %v1167, %v1295
      %v1328 = vsub.f32 %v1168, %v1296
      %v1329 = vsub.f32 %v1169, %v1297
      %v1330 = vsub.f32 %v1170, %v1298
      %v1331 = vmul.f32 %v1299, 1.442695
      %v1332 = vpow.pop %v1331
      %v1333 = vmul.f32 %v1300, 1.442695
      %v1334 = vpow.pop %v1333
      %v1335 = vmul.f32 %v1301, 1.442695
      %v1336 = vpow.pop %v1335
      %v1337 = vmul.f32 %v1302, 1.442695
      %v1338 = vpow.pop %v1337
      %v1339 = vmul.f32 %v1303, 1.442695
      %v1340 = vpow.pop %v1339
      %v1341 = vmul.f32 %v1304, 1.442695
      %v1342 = vpow.pop %v1341
      %v1343 = vmul.f32 %v1305, 1.442695
      %v1344 = vpow.pop %v1343
      %v1345 = vmul.f32 %v1306, 1.442695
      %v1346 = vpow.pop %v1345
      %v1347 = vmul.f32 %v1307, 1.442695
      %v1348 = vpow.pop %v1347
      %v1349 = vmul.f32 %v1308, 1.442695
      %v1350 = vpow.pop %v1349
      %v1351 = vmul.f32 %v1309, 1.442695
      %v1352 = vpow.pop %v1351
      %v1353 = vmul.f32 %v1310, 1.442695
      %v1354 = vpow.pop %v1353
      %v1355 = vmul.f32 %v1311, 1.442695
      %v1356 = vpow.pop %v1355
      %v1357 = vmul.f32 %v1312, 1.442695
      %v1358 = vpow.pop %v1357
      %v1359 = vmul.f32 %v1313, 1.442695
      %v1360 = vpow.pop %v1359
      %v1361 = vmul.f32 %v1314, 1.442695
      %v1362 = vpow.pop %v1361
      %v1363 = vmul.f32 %v1315, 1.442695
      %v1364 = vpow.pop %v1363
      %v1365 = vmul.f32 %v1316, 1.442695
      %v1366 = vpow.pop %v1365
      %v1367 = vmul.f32 %v1317, 1.442695
      %v1368 = vpow.pop %v1367
      %v1369 = vmul.f32 %v1318, 1.442695
      %v1370 = vpow.pop %v1369
      %v1371 = vmul.f32 %v1319, 1.442695
      %v1372 = vpow.pop %v1371
      %v1373 = vmul.f32 %v1320, 1.442695
      %v1374 = vpow.pop %v1373
      %v1375 = vmul.f32 %v1321, 1.442695
      %v1376 = vpow.pop %v1375
      %v1377 = vmul.f32 %v1322, 1.442695
      %v1378 = vpow.pop %v1377
      %v1379 = vmul.f32 %v1323, 1.442695
      %v1380 = vpow.pop %v1379
      %v1381 = vmul.f32 %v1324, 1.442695
      %v1382 = vpow.pop %v1381
      %v1383 = vmul.f32 %v1325, 1.442695
      %v1384 = vpow.pop %v1383
      %v1385 = vmul.f32 %v1326, 1.442695
      %v1386 = vpow.pop %v1385
      %v1387 = vmul.f32 %v1327, 1.442695
      %v1388 = vpow.pop %v1387
      %v1389 = vmul.f32 %v1328, 1.442695
      %v1390 = vpow.pop %v1389
      %v1391 = vmul.f32 %v1329, 1.442695
      %v1392 = vpow.pop %v1391
      %v1393 = vmul.f32 %v1330, 1.442695
      %v1394 = vpow.pop %v1393
      %1396 = vset.pattern.permute.xlu0 0
      %1397 = vperm.xlu0 %1396, %v1267
      %v1398 = vpop.permute.xlu0 %1397
      %1401 = vset.pattern.permute.xlu0 0
      %1402 = vperm.xlu0 %1401, %v1268
      %v1403 = vpop.permute.xlu0 %1402
      %1406 = vset.pattern.permute.xlu0 0
      %1407 = vperm.xlu0 %1406, %v1269
      %v1408 = vpop.permute.xlu0 %1407
      %1411 = vset.pattern.permute.xlu0 0
      %1412 = vperm.xlu0 %1411, %v1270
      %v1413 = vpop.permute.xlu0 %1412
      %1416 = vset.pattern.permute.xlu0 0
      %1417 = vperm.xlu0 %1416, %v1271
      %v1418 = vpop.permute.xlu0 %1417
      %1421 = vset.pattern.permute.xlu0 0
      %1422 = vperm.xlu0 %1421, %v1272
      %v1423 = vpop.permute.xlu0 %1422
      %1426 = vset.pattern.permute.xlu0 0
      %1427 = vperm.xlu0 %1426, %v1273
      %v1428 = vpop.permute.xlu0 %1427
      %1431 = vset.pattern.permute.xlu0 0
      %1432 = vperm.xlu0 %1431, %v1274
      %v1433 = vpop.permute.xlu0 %1432
      %1436 = vset.pattern.permute.xlu0 0
      %1437 = vperm.xlu0 %1436, %v1275
      %v1438 = vpop.permute.xlu0 %1437
      %1441 = vset.pattern.permute.xlu0 0
      %1442 = vperm.xlu0 %1441, %v1276
      %v1443 = vpop.permute.xlu0 %1442
      %1446 = vset.pattern.permute.xlu0 0
      %1447 = vperm.xlu0 %1446, %v1277
      %v1448 = vpop.permute.xlu0 %1447
      %1451 = vset.pattern.permute.xlu0 0
      %1452 = vperm.xlu0 %1451, %v1278
      %v1453 = vpop.permute.xlu0 %1452
      %1456 = vset.pattern.permute.xlu0 0
      %1457 = vperm.xlu0 %1456, %v1279
      %v1458 = vpop.permute.xlu0 %1457
      %1461 = vset.pattern.permute.xlu0 0
      %1462 = vperm.xlu0 %1461, %v1280
      %v1463 = vpop.permute.xlu0 %1462
      %1466 = vset.pattern.permute.xlu0 0
      %1467 = vperm.xlu0 %1466, %v1281
      %v1468 = vpop.permute.xlu0 %1467
      %1471 = vset.pattern.permute.xlu0 0
      %1472 = vperm.xlu0 %1471, %v1282
      %v1473 = vpop.permute.xlu0 %1472
      %1476 = vset.pattern.permute.xlu0 0
      %1477 = vperm.xlu0 %1476, %v1283
      %v1478 = vpop.permute.xlu0 %1477
      %1481 = vset.pattern.permute.xlu0 0
      %1482 = vperm.xlu0 %1481, %v1284
      %v1483 = vpop.permute.xlu0 %1482
      %1486 = vset.pattern.permute.xlu0 0
      %1487 = vperm.xlu0 %1486, %v1285
      %v1488 = vpop.permute.xlu0 %1487
      %1491 = vset.pattern.permute.xlu0 0
      %1492 = vperm.xlu0 %1491, %v1286
      %v1493 = vpop.permute.xlu0 %1492
      %1496 = vset.pattern.permute.xlu0 0
      %1497 = vperm.xlu0 %1496, %v1287
      %v1498 = vpop.permute.xlu0 %1497
      %1501 = vset.pattern.permute.xlu0 0
      %1502 = vperm.xlu0 %1501, %v1288
      %v1503 = vpop.permute.xlu0 %1502
      %1506 = vset.pattern.permute.xlu0 0
      %1507 = vperm.xlu0 %1506, %v1289
      %v1508 = vpop.permute.xlu0 %1507
      %1511 = vset.pattern.permute.xlu0 0
      %1512 = vperm.xlu0 %1511, %v1290
      %v1513 = vpop.permute.xlu0 %1512
      %1516 = vset.pattern.permute.xlu0 0
      %1517 = vperm.xlu0 %1516, %v1291
      %v1518 = vpop.permute.xlu0 %1517
      %1521 = vset.pattern.permute.xlu0 0
      %1522 = vperm.xlu0 %1521, %v1292
      %v1523 = vpop.permute.xlu0 %1522
      %1526 = vset.pattern.permute.xlu0 0
      %1527 = vperm.xlu0 %1526, %v1293
      %v1528 = vpop.permute.xlu0 %1527
      %1531 = vset.pattern.permute.xlu0 0
      %1532 = vperm.xlu0 %1531, %v1294
      %v1533 = vpop.permute.xlu0 %1532
      %1536 = vset.pattern.permute.xlu0 0
      %1537 = vperm.xlu0 %1536, %v1295
      %v1538 = vpop.permute.xlu0 %1537
      %1541 = vset.pattern.permute.xlu0 0
      %1542 = vperm.xlu0 %1541, %v1296
      %v1543 = vpop.permute.xlu0 %1542
      %1546 = vset.pattern.permute.xlu0 0
      %1547 = vperm.xlu0 %1546, %v1297
      %v1548 = vpop.permute.xlu0 %1547
      %1551 = vset.pattern.permute.xlu0 0
      %1552 = vperm.xlu0 %1551, %v1298
      %v1553 = vpop.permute.xlu0 %1552
      %v1555 = vsub.f32 %v1075, %v1398
      %v1556 = vsub.f32 %v1076, %v1398
      %v1557 = vsub.f32 %v1077, %v1403
      %v1558 = vsub.f32 %v1078, %v1403
      %v1559 = vsub.f32 %v1079, %v1408
      %v1560 = vsub.f32 %v1080, %v1408
      %v1561 = vsub.f32 %v1081, %v1413
      %v1562 = vsub.f32 %v1082, %v1413
      %v1563 = vsub.f32 %v1083, %v1418
      %v1564 = vsub.f32 %v1084, %v1418
      %v1565 = vsub.f32 %v1085, %v1423
      %v1566 = vsub.f32 %v1086, %v1423
      %v1567 = vsub.f32 %v1087, %v1428
      %v1568 = vsub.f32 %v1088, %v1428
      %v1569 = vsub.f32 %v1089, %v1433
      %v1570 = vsub.f32 %v1090, %v1433
      %v1571 = vsub.f32 %v1091, %v1438
      %v1572 = vsub.f32 %v1092, %v1438
      %v1573 = vsub.f32 %v1093, %v1443
      %v1574 = vsub.f32 %v1094, %v1443
      %v1575 = vsub.f32 %v1095, %v1448
      %v1576 = vsub.f32 %v1096, %v1448
      %v1577 = vsub.f32 %v1097, %v1453
      %v1578 = vsub.f32 %v1098, %v1453
      %v1579 = vsub.f32 %v1099, %v1458
      %v1580 = vsub.f32 %v1100, %v1458
      %v1581 = vsub.f32 %v1101, %v1463
      %v1582 = vsub.f32 %v1102, %v1463
      %v1583 = vsub.f32 %v1103, %v1468
      %v1584 = vsub.f32 %v1104, %v1468
      %v1585 = vsub.f32 %v1105, %v1473
      %v1586 = vsub.f32 %v1106, %v1473
      %v1587 = vsub.f32 %v1107, %v1478
      %v1588 = vsub.f32 %v1108, %v1478
      %v1589 = vsub.f32 %v1109, %v1483
      %v1590 = vsub.f32 %v1110, %v1483
      %v1591 = vsub.f32 %v1111, %v1488
      %v1592 = vsub.f32 %v1112, %v1488
      %v1593 = vsub.f32 %v1113, %v1493
      %v1594 = vsub.f32 %v1114, %v1493
      %v1595 = vsub.f32 %v1115, %v1498
      %v1596 = vsub.f32 %v1116, %v1498
      %v1597 = vsub.f32 %v1117, %v1503
      %v1598 = vsub.f32 %v1118, %v1503
      %v1599 = vsub.f32 %v1119, %v1508
      %v1600 = vsub.f32 %v1120, %v1508
      %v1601 = vsub.f32 %v1121, %v1513
      %v1602 = vsub.f32 %v1122, %v1513
      %v1603 = vsub.f32 %v1123, %v1518
      %v1604 = vsub.f32 %v1124, %v1518
      %v1605 = vsub.f32 %v1125, %v1523
      %v1606 = vsub.f32 %v1126, %v1523
      %v1607 = vsub.f32 %v1127, %v1528
      %v1608 = vsub.f32 %v1128, %v1528
      %v1609 = vsub.f32 %v1129, %v1533
      %v1610 = vsub.f32 %v1130, %v1533
      %v1611 = vsub.f32 %v1131, %v1538
      %v1612 = vsub.f32 %v1132, %v1538
      %v1613 = vsub.f32 %v1133, %v1543
      %v1614 = vsub.f32 %v1134, %v1543
      %v1615 = vsub.f32 %v1135, %v1548
      %v1616 = vsub.f32 %v1136, %v1548
      %v1617 = vsub.f32 %v1137, %v1553
      %v1618 = vsub.f32 %v1138, %v1553
      %v1619 = vmul.f32 %v1555, 1.442695
      %v1620 = vpow.pop %v1619
      %v1621 = vmul.f32 %v1556, 1.442695
      %v1622 = vpow.pop %v1621
      %v1623 = vmul.f32 %v1557, 1.442695
      %v1624 = vpow.pop %v1623
      %v1625 = vmul.f32 %v1558, 1.442695
      %v1626 = vpow.pop %v1625
      %v1627 = vmul.f32 %v1559, 1.442695
      %v1628 = vpow.pop %v1627
      %v1629 = vmul.f32 %v1560, 1.442695
      %v1630 = vpow.pop %v1629
      %v1631 = vmul.f32 %v1561, 1.442695
      %v1632 = vpow.pop %v1631
      %v1633 = vmul.f32 %v1562, 1.442695
      %v1634 = vpow.pop %v1633
      %v1635 = vmul.f32 %v1563, 1.442695
      %v1636 = vpow.pop %v1635
      %v1637 = vmul.f32 %v1564, 1.442695
      %v1638 = vpow.pop %v1637
      %v1639 = vmul.f32 %v1565, 1.442695
      %v1640 = vpow.pop %v1639
      %v1641 = vmul.f32 %v1566, 1.442695
      %v1642 = vpow.pop %v1641
      %v1643 = vmul.f32 %v1567, 1.442695
      %v1644 = vpow.pop %v1643
      %v1645 = vmul.f32 %v1568, 1.442695
      %v1646 = vpow.pop %v1645
      %v1647 = vmul.f32 %v1569, 1.442695
      %v1648 = vpow.pop %v1647
      %v1649 = vmul.f32 %v1570, 1.442695
      %v1650 = vpow.pop %v1649
      %v1651 = vmul.f32 %v1571, 1.442695
      %v1652 = vpow.pop %v1651
      %v1653 = vmul.f32 %v1572, 1.442695
      %v1654 = vpow.pop %v1653
      %v1655 = vmul.f32 %v1573, 1.442695
      %v1656 = vpow.pop %v1655
      %v1657 = vmul.f32 %v1574, 1.442695
      %v1658 = vpow.pop %v1657
      %v1659 = vmul.f32 %v1575, 1.442695
      %v1660 = vpow.pop %v1659
      %v1661 = vmul.f32 %v1576, 1.442695
      %v1662 = vpow.pop %v1661
      %v1663 = vmul.f32 %v1577, 1.442695
      %v1664 = vpow.pop %v1663
      %v1665 = vmul.f32 %v1578, 1.442695
      %v1666 = vpow.pop %v1665
      %v1667 = vmul.f32 %v1579, 1.442695
      %v1668 = vpow.pop %v1667
      %v1669 = vmul.f32 %v1580, 1.442695
      %v1670 = vpow.pop %v1669
      %v1671 = vmul.f32 %v1581, 1.442695
      %v1672 = vpow.pop %v1671
      %v1673 = vmul.f32 %v1582, 1.442695
      %v1674 = vpow.pop %v1673
      %v1675 = vmul.f32 %v1583, 1.442695
      %v1676 = vpow.pop %v1675
      %v1677 = vmul.f32 %v1584, 1.442695
      %v1678 = vpow.pop %v1677
      %v1679 = vmul.f32 %v1585, 1.442695
      %v1680 = vpow.pop %v1679
      %v1681 = vmul.f32 %v1586, 1.442695
      %v1682 = vpow.pop %v1681
      %v1683 = vmul.f32 %v1587, 1.442695
      %v1684 = vpow.pop %v1683
      %v1685 = vmul.f32 %v1588, 1.442695
      %v1686 = vpow.pop %v1685
      %v1687 = vmul.f32 %v1589, 1.442695
      %v1688 = vpow.pop %v1687
      %v1689 = vmul.f32 %v1590, 1.442695
      %v1690 = vpow.pop %v1689
      %v1691 = vmul.f32 %v1591, 1.442695
      %v1692 = vpow.pop %v1691
      %v1693 = vmul.f32 %v1592, 1.442695
      %v1694 = vpow.pop %v1693
      %v1695 = vmul.f32 %v1593, 1.442695
      %v1696 = vpow.pop %v1695
      %v1697 = vmul.f32 %v1594, 1.442695
      %v1698 = vpow.pop %v1697
      %v1699 = vmul.f32 %v1595, 1.442695
      %v1700 = vpow.pop %v1699
      %v1701 = vmul.f32 %v1596, 1.442695
      %v1702 = vpow.pop %v1701
      %v1703 = vmul.f32 %v1597, 1.442695
      %v1704 = vpow.pop %v1703
      %v1705 = vmul.f32 %v1598, 1.442695
      %v1706 = vpow.pop %v1705
      %v1707 = vmul.f32 %v1599, 1.442695
      %v1708 = vpow.pop %v1707
      %v1709 = vmul.f32 %v1600, 1.442695
      %v1710 = vpow.pop %v1709
      %v1711 = vmul.f32 %v1601, 1.442695
      %v1712 = vpow.pop %v1711
      %v1713 = vmul.f32 %v1602, 1.442695
      %v1714 = vpow.pop %v1713
      %v1715 = vmul.f32 %v1603, 1.442695
      %v1716 = vpow.pop %v1715
      %v1717 = vmul.f32 %v1604, 1.442695
      %v1718 = vpow.pop %v1717
      %v1719 = vmul.f32 %v1605, 1.442695
      %v1720 = vpow.pop %v1719
      %v1721 = vmul.f32 %v1606, 1.442695
      %v1722 = vpow.pop %v1721
      %v1723 = vmul.f32 %v1607, 1.442695
      %v1724 = vpow.pop %v1723
      %v1725 = vmul.f32 %v1608, 1.442695
      %v1726 = vpow.pop %v1725
      %v1727 = vmul.f32 %v1609, 1.442695
      %v1728 = vpow.pop %v1727
      %v1729 = vmul.f32 %v1610, 1.442695
      %v1730 = vpow.pop %v1729
      %v1731 = vmul.f32 %v1611, 1.442695
      %v1732 = vpow.pop %v1731
      %v1733 = vmul.f32 %v1612, 1.442695
      %v1734 = vpow.pop %v1733
      %v1735 = vmul.f32 %v1613, 1.442695
      %v1736 = vpow.pop %v1735
      %v1737 = vmul.f32 %v1614, 1.442695
      %v1738 = vpow.pop %v1737
      %v1739 = vmul.f32 %v1615, 1.442695
      %v1740 = vpow.pop %v1739
      %v1741 = vmul.f32 %v1616, 1.442695
      %v1742 = vpow.pop %v1741
      %v1743 = vmul.f32 %v1617, 1.442695
      %v1744 = vpow.pop %v1743
      %v1745 = vmul.f32 %v1618, 1.442695
      %v1746 = vpow.pop %v1745
      %v1747 = vld [vmem:[#allocation3] sm:$0xff]
      %v1748 = vld [vmem:[#allocation3 + $0x8] sm:$0xff]
      %v1749 = vld [vmem:[#allocation3 + $0x10] sm:$0xff]
      %v1750 = vld [vmem:[#allocation3 + $0x18] sm:$0xff]
      %v1751 = vld [vmem:[#allocation3 + $0x20] sm:$0xff]
      %v1752 = vld [vmem:[#allocation3 + $0x28] sm:$0xff]
      %v1753 = vld [vmem:[#allocation3 + $0x30] sm:$0xff]
      %v1754 = vld [vmem:[#allocation3 + $0x38] sm:$0xff]
      %v1755 = vld [vmem:[#allocation3 + $0x40] sm:$0xff]
      %v1756 = vld [vmem:[#allocation3 + $0x48] sm:$0xff]
      %v1757 = vld [vmem:[#allocation3 + $0x50] sm:$0xff]
      %v1758 = vld [vmem:[#allocation3 + $0x58] sm:$0xff]
      %v1759 = vld [vmem:[#allocation3 + $0x60] sm:$0xff]
      %v1760 = vld [vmem:[#allocation3 + $0x68] sm:$0xff]
      %v1761 = vld [vmem:[#allocation3 + $0x70] sm:$0xff]
      %v1762 = vld [vmem:[#allocation3 + $0x78] sm:$0xff]
      %v1763 = vld [vmem:[#allocation3 + $0x80] sm:$0xff]
      %v1764 = vld [vmem:[#allocation3 + $0x88] sm:$0xff]
      %v1765 = vld [vmem:[#allocation3 + $0x90] sm:$0xff]
      %v1766 = vld [vmem:[#allocation3 + $0x98] sm:$0xff]
      %v1767 = vld [vmem:[#allocation3 + $0xa0] sm:$0xff]
      %v1768 = vld [vmem:[#allocation3 + $0xa8] sm:$0xff]
      %v1769 = vld [vmem:[#allocation3 + $0xb0] sm:$0xff]
      %v1770 = vld [vmem:[#allocation3 + $0xb8] sm:$0xff]
      %v1771 = vld [vmem:[#allocation3 + $0xc0] sm:$0xff]
      %v1772 = vld [vmem:[#allocation3 + $0xc8] sm:$0xff]
      %v1773 = vld [vmem:[#allocation3 + $0xd0] sm:$0xff]
      %v1774 = vld [vmem:[#allocation3 + $0xd8] sm:$0xff]
      %v1775 = vld [vmem:[#allocation3 + $0xe0] sm:$0xff]
      %v1776 = vld [vmem:[#allocation3 + $0xe8] sm:$0xff]
      %v1777 = vld [vmem:[#allocation3 + $0xf0] sm:$0xff]
      %v1778 = vld [vmem:[#allocation3 + $0xf8] sm:$0xff]
      %v1779 = vmul.f32 %v1332, %v1747
      %v1780 = vmul.f32 %v1334, %v1748
      %v1781 = vmul.f32 %v1336, %v1749
      %v1782 = vmul.f32 %v1338, %v1750
      %v1783 = vmul.f32 %v1340, %v1751
      %v1784 = vmul.f32 %v1342, %v1752
      %v1785 = vmul.f32 %v1344, %v1753
      %v1786 = vmul.f32 %v1346, %v1754
      %v1787 = vmul.f32 %v1348, %v1755
      %v1788 = vmul.f32 %v1350, %v1756
      %v1789 = vmul.f32 %v1352, %v1757
      %v1790 = vmul.f32 %v1354, %v1758
      %v1791 = vmul.f32 %v1356, %v1759
      %v1792 = vmul.f32 %v1358, %v1760
      %v1793 = vmul.f32 %v1360, %v1761
      %v1794 = vmul.f32 %v1362, %v1762
      %v1795 = vmul.f32 %v1364, %v1763
      %v1796 = vmul.f32 %v1366, %v1764
      %v1797 = vmul.f32 %v1368, %v1765
      %v1798 = vmul.f32 %v1370, %v1766
      %v1799 = vmul.f32 %v1372, %v1767
      %v1800 = vmul.f32 %v1374, %v1768
      %v1801 = vmul.f32 %v1376, %v1769
      %v1802 = vmul.f32 %v1378, %v1770
      %v1803 = vmul.f32 %v1380, %v1771
      %v1804 = vmul.f32 %v1382, %v1772
      %v1805 = vmul.f32 %v1384, %v1773
      %v1806 = vmul.f32 %v1386, %v1774
      %v1807 = vmul.f32 %v1388, %v1775
      %v1808 = vmul.f32 %v1390, %v1776
      %v1809 = vmul.f32 %v1392, %v1777
      %v1810 = vmul.f32 %v1394, %v1778
      %v1811 = vadd.f32 %v1620, %v1622
      %1812 = vadd.xlane.f32.xlu0 %v1811
      %v1813 = vpop.xlane.xlu0 %1812
      %v1814 = vadd.f32 %v1624, %v1626
      %1815 = vadd.xlane.f32.xlu0 %v1814
      %v1816 = vpop.xlane.xlu0 %1815
      %v1817 = vadd.f32 %v1628, %v1630
      %1818 = vadd.xlane.f32.xlu0 %v1817
      %v1819 = vpop.xlane.xlu0 %1818
      %v1820 = vadd.f32 %v1632, %v1634
      %1821 = vadd.xlane.f32.xlu0 %v1820
      %v1822 = vpop.xlane.xlu0 %1821
      %v1823 = vadd.f32 %v1636, %v1638
      %1824 = vadd.xlane.f32.xlu0 %v1823
      %v1825 = vpop.xlane.xlu0 %1824
      %v1826 = vadd.f32 %v1640, %v1642
      %1827 = vadd.xlane.f32.xlu0 %v1826
      %v1828 = vpop.xlane.xlu0 %1827
      %v1829 = vadd.f32 %v1644, %v1646
      %1830 = vadd.xlane.f32.xlu0 %v1829
      %v1831 = vpop.xlane.xlu0 %1830
      %v1832 = vadd.f32 %v1648, %v1650
      %1833 = vadd.xlane.f32.xlu0 %v1832
      %v1834 = vpop.xlane.xlu0 %1833
      %v1835 = vadd.f32 %v1652, %v1654
      %1836 = vadd.xlane.f32.xlu0 %v1835
      %v1837 = vpop.xlane.xlu0 %1836
      %v1838 = vadd.f32 %v1656, %v1658
      %1839 = vadd.xlane.f32.xlu0 %v1838
      %v1840 = vpop.xlane.xlu0 %1839
      %v1841 = vadd.f32 %v1660, %v1662
      %1842 = vadd.xlane.f32.xlu0 %v1841
      %v1843 = vpop.xlane.xlu0 %1842
      %v1844 = vadd.f32 %v1664, %v1666
      %1845 = vadd.xlane.f32.xlu0 %v1844
      %v1846 = vpop.xlane.xlu0 %1845
      %v1847 = vadd.f32 %v1668, %v1670
      %1848 = vadd.xlane.f32.xlu0 %v1847
      %v1849 = vpop.xlane.xlu0 %1848
      %v1850 = vadd.f32 %v1672, %v1674
      %1851 = vadd.xlane.f32.xlu0 %v1850
      %v1852 = vpop.xlane.xlu0 %1851
      %v1853 = vadd.f32 %v1676, %v1678
      %1854 = vadd.xlane.f32.xlu0 %v1853
      %v1855 = vpop.xlane.xlu0 %1854
      %v1856 = vadd.f32 %v1680, %v1682
      %1857 = vadd.xlane.f32.xlu0 %v1856
      %v1858 = vpop.xlane.xlu0 %1857
      %v1859 = vadd.f32 %v1684, %v1686
      %1860 = vadd.xlane.f32.xlu0 %v1859
      %v1861 = vpop.xlane.xlu0 %1860
      %v1862 = vadd.f32 %v1688, %v1690
      %1863 = vadd.xlane.f32.xlu0 %v1862
      %v1864 = vpop.xlane.xlu0 %1863
      %v1865 = vadd.f32 %v1692, %v1694
      %1866 = vadd.xlane.f32.xlu0 %v1865
      %v1867 = vpop.xlane.xlu0 %1866
      %v1868 = vadd.f32 %v1696, %v1698
      %1869 = vadd.xlane.f32.xlu0 %v1868
      %v1870 = vpop.xlane.xlu0 %1869
      %v1871 = vadd.f32 %v1700, %v1702
      %1872 = vadd.xlane.f32.xlu0 %v1871
      %v1873 = vpop.xlane.xlu0 %1872
      %v1874 = vadd.f32 %v1704, %v1706
      %1875 = vadd.xlane.f32.xlu0 %v1874
      %v1876 = vpop.xlane.xlu0 %1875
      %v1877 = vadd.f32 %v1708, %v1710
      %1878 = vadd.xlane.f32.xlu0 %v1877
      %v1879 = vpop.xlane.xlu0 %1878
      %v1880 = vadd.f32 %v1712, %v1714
      %1881 = vadd.xlane.f32.xlu0 %v1880
      %v1882 = vpop.xlane.xlu0 %1881
      %v1883 = vadd.f32 %v1716, %v1718
      %1884 = vadd.xlane.f32.xlu0 %v1883
      %v1885 = vpop.xlane.xlu0 %1884
      %v1886 = vadd.f32 %v1720, %v1722
      %1887 = vadd.xlane.f32.xlu0 %v1886
      %v1888 = vpop.xlane.xlu0 %1887
      %v1889 = vadd.f32 %v1724, %v1726
      %1890 = vadd.xlane.f32.xlu0 %v1889
      %v1891 = vpop.xlane.xlu0 %1890
      %v1892 = vadd.f32 %v1728, %v1730
      %1893 = vadd.xlane.f32.xlu0 %v1892
      %v1894 = vpop.xlane.xlu0 %1893
      %v1895 = vadd.f32 %v1732, %v1734
      %1896 = vadd.xlane.f32.xlu0 %v1895
      %v1897 = vpop.xlane.xlu0 %1896
      %v1898 = vadd.f32 %v1736, %v1738
      %1899 = vadd.xlane.f32.xlu0 %v1898
      %v1900 = vpop.xlane.xlu0 %1899
      %v1901 = vadd.f32 %v1740, %v1742
      %1902 = vadd.xlane.f32.xlu0 %v1901
      %v1903 = vpop.xlane.xlu0 %1902
      %v1904 = vadd.f32 %v1744, %v1746
      %1905 = vadd.xlane.f32.xlu0 %v1904
      %v1906 = vpop.xlane.xlu0 %1905
      %v1907 = vadd.f32 %v1779, %v1813
      %v1908 = vadd.f32 %v1780, %v1816
      %v1909 = vadd.f32 %v1781, %v1819
      %v1910 = vadd.f32 %v1782, %v1822
      %v1911 = vadd.f32 %v1783, %v1825
      %v1912 = vadd.f32 %v1784, %v1828
      %v1913 = vadd.f32 %v1785, %v1831
      %v1914 = vadd.f32 %v1786, %v1834
      %v1915 = vadd.f32 %v1787, %v1837
      %v1916 = vadd.f32 %v1788, %v1840
      %v1917 = vadd.f32 %v1789, %v1843
      %v1918 = vadd.f32 %v1790, %v1846
      %v1919 = vadd.f32 %v1791, %v1849
      %v1920 = vadd.f32 %v1792, %v1852
      %v1921 = vadd.f32 %v1793, %v1855
      %v1922 = vadd.f32 %v1794, %v1858
      %v1923 = vadd.f32 %v1795, %v1861
      %v1924 = vadd.f32 %v1796, %v1864
      %v1925 = vadd.f32 %v1797, %v1867
      %v1926 = vadd.f32 %v1798, %v1870
      %v1927 = vadd.f32 %v1799, %v1873
      %v1928 = vadd.f32 %v1800, %v1876
      %v1929 = vadd.f32 %v1801, %v1879
      %v1930 = vadd.f32 %v1802, %v1882
      %v1931 = vadd.f32 %v1803, %v1885
      %v1932 = vadd.f32 %v1804, %v1888
      %v1933 = vadd.f32 %v1805, %v1891
      %v1934 = vadd.f32 %v1806, %v1894
      %v1935 = vadd.f32 %v1807, %v1897
      %v1936 = vadd.f32 %v1808, %v1900
      %v1937 = vadd.f32 %v1809, %v1903
      %v1938 = vadd.f32 %v1810, %v1906
      %vm1939 = vcmask 7168
      %1940 = vst.msk [vmem:[#allocation3] sm:$0xff] %vm1939, %v1907
      %1941 = vst.msk [vmem:[#allocation3 + $0x8] sm:$0xff] %vm1939, %v1908
      %1942 = vst.msk [vmem:[#allocation3 + $0x10] sm:$0xff] %vm1939, %v1909
      %1943 = vst.msk [vmem:[#allocation3 + $0x18] sm:$0xff] %vm1939, %v1910
      %1944 = vst.msk [vmem:[#allocation3 + $0x20] sm:$0xff] %vm1939, %v1911
      %1945 = vst.msk [vmem:[#allocation3 + $0x28] sm:$0xff] %vm1939, %v1912
      %1946 = vst.msk [vmem:[#allocation3 + $0x30] sm:$0xff] %vm1939, %v1913
      %1947 = vst.msk [vmem:[#allocation3 + $0x38] sm:$0xff] %vm1939, %v1914
      %1948 = vst.msk [vmem:[#allocation3 + $0x40] sm:$0xff] %vm1939, %v1915
      %1949 = vst.msk [vmem:[#allocation3 + $0x48] sm:$0xff] %vm1939, %v1916
      %1950 = vst.msk [vmem:[#allocation3 + $0x50] sm:$0xff] %vm1939, %v1917
      %1951 = vst.msk [vmem:[#allocation3 + $0x58] sm:$0xff] %vm1939, %v1918
      %1952 = vst.msk [vmem:[#allocation3 + $0x60] sm:$0xff] %vm1939, %v1919
      %1953 = vst.msk [vmem:[#allocation3 + $0x68] sm:$0xff] %vm1939, %v1920
      %1954 = vst.msk [vmem:[#allocation3 + $0x70] sm:$0xff] %vm1939, %v1921
      %1955 = vst.msk [vmem:[#allocation3 + $0x78] sm:$0xff] %vm1939, %v1922
      %1956 = vst.msk [vmem:[#allocation3 + $0x80] sm:$0xff] %vm1939, %v1923
      %1957 = vst.msk [vmem:[#allocation3 + $0x88] sm:$0xff] %vm1939, %v1924
      %1958 = vst.msk [vmem:[#allocation3 + $0x90] sm:$0xff] %vm1939, %v1925
      %1959 = vst.msk [vmem:[#allocation3 + $0x98] sm:$0xff] %vm1939, %v1926
      %1960 = vst.msk [vmem:[#allocation3 + $0xa0] sm:$0xff] %vm1939, %v1927
      %1961 = vst.msk [vmem:[#allocation3 + $0xa8] sm:$0xff] %vm1939, %v1928
      %1962 = vst.msk [vmem:[#allocation3 + $0xb0] sm:$0xff] %vm1939, %v1929
      %1963 = vst.msk [vmem:[#allocation3 + $0xb8] sm:$0xff] %vm1939, %v1930
      %1964 = vst.msk [vmem:[#allocation3 + $0xc0] sm:$0xff] %vm1939, %v1931
      %1965 = vst.msk [vmem:[#allocation3 + $0xc8] sm:$0xff] %vm1939, %v1932
      %1966 = vst.msk [vmem:[#allocation3 + $0xd0] sm:$0xff] %vm1939, %v1933
      %1967 = vst.msk [vmem:[#allocation3 + $0xd8] sm:$0xff] %vm1939, %v1934
      %1968 = vst.msk [vmem:[#allocation3 + $0xe0] sm:$0xff] %vm1939, %v1935
      %1969 = vst.msk [vmem:[#allocation3 + $0xe8] sm:$0xff] %vm1939, %v1936
      %1970 = vst.msk [vmem:[#allocation3 + $0xf0] sm:$0xff] %vm1939, %v1937
      %1971 = vst.msk [vmem:[#allocation3 + $0xf8] sm:$0xff] %vm1939, %v1938
      %v1972 = vld [vmem:[#allocation4] sm:$0xff]
      %v1973 = vld [vmem:[#allocation4 + $0x8] sm:$0xff]
      %v1974 = vld [vmem:[#allocation4 + $0x10] sm:$0xff]
      %v1975 = vld [vmem:[#allocation4 + $0x18] sm:$0xff]
      %v1976 = vld [vmem:[#allocation4 + $0x20] sm:$0xff]
      %v1977 = vld [vmem:[#allocation4 + $0x28] sm:$0xff]
      %v1978 = vld [vmem:[#allocation4 + $0x30] sm:$0xff]
      %v1979 = vld [vmem:[#allocation4 + $0x38] sm:$0xff]
      %v1980 = vld [vmem:[#allocation4 + $0x40] sm:$0xff]
      %v1981 = vld [vmem:[#allocation4 + $0x48] sm:$0xff]
      %v1982 = vld [vmem:[#allocation4 + $0x50] sm:$0xff]
      %v1983 = vld [vmem:[#allocation4 + $0x58] sm:$0xff]
      %v1984 = vld [vmem:[#allocation4 + $0x60] sm:$0xff]
      %v1985 = vld [vmem:[#allocation4 + $0x68] sm:$0xff]
      %v1986 = vld [vmem:[#allocation4 + $0x70] sm:$0xff]
      %v1987 = vld [vmem:[#allocation4 + $0x78] sm:$0xff]
      %v1988 = vld [vmem:[#allocation4 + $0x80] sm:$0xff]
      %v1989 = vld [vmem:[#allocation4 + $0x88] sm:$0xff]
      %v1990 = vld [vmem:[#allocation4 + $0x90] sm:$0xff]
      %v1991 = vld [vmem:[#allocation4 + $0x98] sm:$0xff]
      %v1992 = vld [vmem:[#allocation4 + $0xa0] sm:$0xff]
      %v1993 = vld [vmem:[#allocation4 + $0xa8] sm:$0xff]
      %v1994 = vld [vmem:[#allocation4 + $0xb0] sm:$0xff]
      %v1995 = vld [vmem:[#allocation4 + $0xb8] sm:$0xff]
      %v1996 = vld [vmem:[#allocation4 + $0xc0] sm:$0xff]
      %v1997 = vld [vmem:[#allocation4 + $0xc8] sm:$0xff]
      %v1998 = vld [vmem:[#allocation4 + $0xd0] sm:$0xff]
      %v1999 = vld [vmem:[#allocation4 + $0xd8] sm:$0xff]
      %v2000 = vld [vmem:[#allocation4 + $0xe0] sm:$0xff]
      %v2001 = vld [vmem:[#allocation4 + $0xe8] sm:$0xff]
      %v2002 = vld [vmem:[#allocation4 + $0xf0] sm:$0xff]
      %v2003 = vld [vmem:[#allocation4 + $0xf8] sm:$0xff]
      %2005 = vset.pattern.permute.xlu0 0
      %2006 = vperm.xlu0 %2005, %v1332
      %v2007 = vpop.permute.xlu0 %2006
      %2010 = vset.pattern.permute.xlu0 0
      %2011 = vperm.xlu0 %2010, %v1334
      %v2012 = vpop.permute.xlu0 %2011
      %2015 = vset.pattern.permute.xlu0 0
      %2016 = vperm.xlu0 %2015, %v1336
      %v2017 = vpop.permute.xlu0 %2016
      %2020 = vset.pattern.permute.xlu0 0
      %2021 = vperm.xlu0 %2020, %v1338
      %v2022 = vpop.permute.xlu0 %2021
      %2025 = vset.pattern.permute.xlu0 0
      %2026 = vperm.xlu0 %2025, %v1340
      %v2027 = vpop.permute.xlu0 %2026
      %2030 = vset.pattern.permute.xlu0 0
      %2031 = vperm.xlu0 %2030, %v1342
      %v2032 = vpop.permute.xlu0 %2031
      %2035 = vset.pattern.permute.xlu0 0
      %2036 = vperm.xlu0 %2035, %v1344
      %v2037 = vpop.permute.xlu0 %2036
      %2040 = vset.pattern.permute.xlu0 0
      %2041 = vperm.xlu0 %2040, %v1346
      %v2042 = vpop.permute.xlu0 %2041
      %2045 = vset.pattern.permute.xlu0 0
      %2046 = vperm.xlu0 %2045, %v1348
      %v2047 = vpop.permute.xlu0 %2046
      %2050 = vset.pattern.permute.xlu0 0
      %2051 = vperm.xlu0 %2050, %v1350
      %v2052 = vpop.permute.xlu0 %2051
      %2055 = vset.pattern.permute.xlu0 0
      %2056 = vperm.xlu0 %2055, %v1352
      %v2057 = vpop.permute.xlu0 %2056
      %2060 = vset.pattern.permute.xlu0 0
      %2061 = vperm.xlu0 %2060, %v1354
      %v2062 = vpop.permute.xlu0 %2061
      %2065 = vset.pattern.permute.xlu0 0
      %2066 = vperm.xlu0 %2065, %v1356
      %v2067 = vpop.permute.xlu0 %2066
      %2070 = vset.pattern.permute.xlu0 0
      %2071 = vperm.xlu0 %2070, %v1358
      %v2072 = vpop.permute.xlu0 %2071
      %2075 = vset.pattern.permute.xlu0 0
      %2076 = vperm.xlu0 %2075, %v1360
      %v2077 = vpop.permute.xlu0 %2076
      %2080 = vset.pattern.permute.xlu0 0
      %2081 = vperm.xlu0 %2080, %v1362
      %v2082 = vpop.permute.xlu0 %2081
      %2085 = vset.pattern.permute.xlu0 0
      %2086 = vperm.xlu0 %2085, %v1364
      %v2087 = vpop.permute.xlu0 %2086
      %2090 = vset.pattern.permute.xlu0 0
      %2091 = vperm.xlu0 %2090, %v1366
      %v2092 = vpop.permute.xlu0 %2091
      %2095 = vset.pattern.permute.xlu0 0
      %2096 = vperm.xlu0 %2095, %v1368
      %v2097 = vpop.permute.xlu0 %2096
      %2100 = vset.pattern.permute.xlu0 0
      %2101 = vperm.xlu0 %2100, %v1370
      %v2102 = vpop.permute.xlu0 %2101
      %2105 = vset.pattern.permute.xlu0 0
      %2106 = vperm.xlu0 %2105, %v1372
      %v2107 = vpop.permute.xlu0 %2106
      %2110 = vset.pattern.permute.xlu0 0
      %2111 = vperm.xlu0 %2110, %v1374
      %v2112 = vpop.permute.xlu0 %2111
      %2115 = vset.pattern.permute.xlu0 0
      %2116 = vperm.xlu0 %2115, %v1376
      %v2117 = vpop.permute.xlu0 %2116
      %2120 = vset.pattern.permute.xlu0 0
      %2121 = vperm.xlu0 %2120, %v1378
      %v2122 = vpop.permute.xlu0 %2121
      %2125 = vset.pattern.permute.xlu0 0
      %2126 = vperm.xlu0 %2125, %v1380
      %v2127 = vpop.permute.xlu0 %2126
      %2130 = vset.pattern.permute.xlu0 0
      %2131 = vperm.xlu0 %2130, %v1382
      %v2132 = vpop.permute.xlu0 %2131
      %2135 = vset.pattern.permute.xlu0 0
      %2136 = vperm.xlu0 %2135, %v1384
      %v2137 = vpop.permute.xlu0 %2136
      %2140 = vset.pattern.permute.xlu0 0
      %2141 = vperm.xlu0 %2140, %v1386
      %v2142 = vpop.permute.xlu0 %2141
      %2145 = vset.pattern.permute.xlu0 0
      %2146 = vperm.xlu0 %2145, %v1388
      %v2147 = vpop.permute.xlu0 %2146
      %2150 = vset.pattern.permute.xlu0 0
      %2151 = vperm.xlu0 %2150, %v1390
      %v2152 = vpop.permute.xlu0 %2151
      %2155 = vset.pattern.permute.xlu0 0
      %2156 = vperm.xlu0 %2155, %v1392
      %v2157 = vpop.permute.xlu0 %2156
      %2160 = vset.pattern.permute.xlu0 0
      %2161 = vperm.xlu0 %2160, %v1394
      %v2162 = vpop.permute.xlu0 %2161
      %v2164 = vmul.f32 %v2007, %v1972
      %v2165 = vmul.f32 %v2012, %v1973
      %v2166 = vmul.f32 %v2017, %v1974
      %v2167 = vmul.f32 %v2022, %v1975
      %v2168 = vmul.f32 %v2027, %v1976
      %v2169 = vmul.f32 %v2032, %v1977
      %v2170 = vmul.f32 %v2037, %v1978
      %v2171 = vmul.f32 %v2042, %v1979
      %v2172 = vmul.f32 %v2047, %v1980
      %v2173 = vmul.f32 %v2052, %v1981
      %v2174 = vmul.f32 %v2057, %v1982
      %v2175 = vmul.f32 %v2062, %v1983
      %v2176 = vmul.f32 %v2067, %v1984
      %v2177 = vmul.f32 %v2072, %v1985
      %v2178 = vmul.f32 %v2077, %v1986
      %v2179 = vmul.f32 %v2082, %v1987
      %v2180 = vmul.f32 %v2087, %v1988
      %v2181 = vmul.f32 %v2092, %v1989
      %v2182 = vmul.f32 %v2097, %v1990
      %v2183 = vmul.f32 %v2102, %v1991
      %v2184 = vmul.f32 %v2107, %v1992
      %v2185 = vmul.f32 %v2112, %v1993
      %v2186 = vmul.f32 %v2117, %v1994
      %v2187 = vmul.f32 %v2122, %v1995
      %v2188 = vmul.f32 %v2127, %v1996
      %v2189 = vmul.f32 %v2132, %v1997
      %v2190 = vmul.f32 %v2137, %v1998
      %v2191 = vmul.f32 %v2142, %v1999
      %v2192 = vmul.f32 %v2147, %v2000
      %v2193 = vmul.f32 %v2152, %v2001
      %v2194 = vmul.f32 %v2157, %v2002
      %v2195 = vmul.f32 %v2162, %v2003
      %v2196 = vpack.c.bf16 %v1624, %v1620
      %v2197 = vpack.c.bf16 %v1626, %v1622
      %v2198 = vpack.c.bf16 %v1632, %v1628
      %v2199 = vpack.c.bf16 %v1634, %v1630
      %v2200 = vpack.c.bf16 %v1640, %v1636
      %v2201 = vpack.c.bf16 %v1642, %v1638
      %v2202 = vpack.c.bf16 %v1648, %v1644
      %v2203 = vpack.c.bf16 %v1650, %v1646
      %v2204 = vpack.c.bf16 %v1656, %v1652
      %v2205 = vpack.c.bf16 %v1658, %v1654
      %v2206 = vpack.c.bf16 %v1664, %v1660
      %v2207 = vpack.c.bf16 %v1666, %v1662
      %v2208 = vpack.c.bf16 %v1672, %v1668
      %v2209 = vpack.c.bf16 %v1674, %v1670
      %v2210 = vpack.c.bf16 %v1680, %v1676
      %v2211 = vpack.c.bf16 %v1682, %v1678
      %v2212 = vpack.c.bf16 %v1688, %v1684
      %v2213 = vpack.c.bf16 %v1690, %v1686
      %v2214 = vpack.c.bf16 %v1696, %v1692
      %v2215 = vpack.c.bf16 %v1698, %v1694
      %v2216 = vpack.c.bf16 %v1704, %v1700
      %v2217 = vpack.c.bf16 %v1706, %v1702
      %v2218 = vpack.c.bf16 %v1712, %v1708
      %v2219 = vpack.c.bf16 %v1714, %v1710
      %v2220 = vpack.c.bf16 %v1720, %v1716
      %v2221 = vpack.c.bf16 %v1722, %v1718
      %v2222 = vpack.c.bf16 %v1728, %v1724
      %v2223 = vpack.c.bf16 %v1730, %v1726
      %v2224 = vpack.c.bf16 %v1736, %v1732
      %v2225 = vpack.c.bf16 %v1738, %v1734
      %v2226 = vpack.c.bf16 %v1744, %v1740
      %v2227 = vpack.c.bf16 %v1746, %v1742
      %v2228 = vld [vmem:[%s303] sm:$0xf]
      %v2229 = vld [vmem:[%s303 + $0x4] sm:$0xf]
      %v2230 = vld [vmem:[%s303 + $0x8] sm:$0xf]
      %v2231 = vld [vmem:[%s303 + $0xc] sm:$0xf]
      %v2232 = vld [vmem:[%s303 + $0x10] sm:$0xf]
      %v2233 = vld [vmem:[%s303 + $0x14] sm:$0xf]
      %v2234 = vld [vmem:[%s303 + $0x18] sm:$0xf]
      %v2235 = vld [vmem:[%s303 + $0x1c] sm:$0xf]
      %v2236 = vld [vmem:[%s303 + $0x20] sm:$0xf]
      %v2237 = vld [vmem:[%s303 + $0x24] sm:$0xf]
      %v2238 = vld [vmem:[%s303 + $0x28] sm:$0xf]
      %v2239 = vld [vmem:[%s303 + $0x2c] sm:$0xf]
      %v2240 = vld [vmem:[%s303 + $0x30] sm:$0xf]
      %v2241 = vld [vmem:[%s303 + $0x34] sm:$0xf]
      %v2242 = vld [vmem:[%s303 + $0x38] sm:$0xf]
      %v2243 = vld [vmem:[%s303 + $0x3c] sm:$0xf]
      %v2244 = vld [vmem:[%s303 + $0x40] sm:$0xf]
      %v2245 = vld [vmem:[%s303 + $0x44] sm:$0xf]
      %v2246 = vld [vmem:[%s303 + $0x48] sm:$0xf]
      %v2247 = vld [vmem:[%s303 + $0x4c] sm:$0xf]
      %v2248 = vld [vmem:[%s303 + $0x50] sm:$0xf]
      %v2249 = vld [vmem:[%s303 + $0x54] sm:$0xf]
      %v2250 = vld [vmem:[%s303 + $0x58] sm:$0xf]
      %v2251 = vld [vmem:[%s303 + $0x5c] sm:$0xf]
      %v2252 = vld [vmem:[%s303 + $0x60] sm:$0xf]
      %v2253 = vld [vmem:[%s303 + $0x64] sm:$0xf]
      %v2254 = vld [vmem:[%s303 + $0x68] sm:$0xf]
      %v2255 = vld [vmem:[%s303 + $0x6c] sm:$0xf]
      %v2256 = vld [vmem:[%s303 + $0x70] sm:$0xf]
      %v2257 = vld [vmem:[%s303 + $0x74] sm:$0xf]
      %v2258 = vld [vmem:[%s303 + $0x78] sm:$0xf]
      %v2259 = vld [vmem:[%s303 + $0x7c] sm:$0xf]
      %v2292 = vunpack.c.l.b16 %v2228
      %v2293 = vunpack.c.l.b16 %v2229
      %v2294 = vunpack.c.l.b16 %v2230
      %v2295 = vunpack.c.l.b16 %v2231
      %v2296 = vunpack.c.l.b16 %v2232
      %v2297 = vunpack.c.l.b16 %v2233
      %v2298 = vunpack.c.l.b16 %v2234
      %v2299 = vunpack.c.l.b16 %v2235
      %v2300 = vunpack.c.l.b16 %v2236
      %v2301 = vunpack.c.l.b16 %v2237
      %v2302 = vunpack.c.l.b16 %v2238
      %v2303 = vunpack.c.l.b16 %v2239
      %v2304 = vunpack.c.l.b16 %v2240
      %v2305 = vunpack.c.l.b16 %v2241
      %v2306 = vunpack.c.l.b16 %v2242
      %v2307 = vunpack.c.l.b16 %v2243
      %v2308 = vunpack.c.l.b16 %v2244
      %v2309 = vunpack.c.l.b16 %v2245
      %v2310 = vunpack.c.l.b16 %v2246
      %v2311 = vunpack.c.l.b16 %v2247
      %v2312 = vunpack.c.l.b16 %v2248
      %v2313 = vunpack.c.l.b16 %v2249
      %v2314 = vunpack.c.l.b16 %v2250
      %v2315 = vunpack.c.l.b16 %v2251
      %v2316 = vunpack.c.l.b16 %v2252
      %v2317 = vunpack.c.l.b16 %v2253
      %v2318 = vunpack.c.l.b16 %v2254
      %v2319 = vunpack.c.l.b16 %v2255
      %v2320 = vunpack.c.l.b16 %v2256
      %v2321 = vunpack.c.l.b16 %v2257
      %v2322 = vunpack.c.l.b16 %v2258
      %v2323 = vunpack.c.l.b16 %v2259
      %v2324 = vpack.c.b16 %v2293, %v2292
      %v2325 = vpack.c.b16 %v2295, %v2294
      %v2326 = vpack.c.b16 %v2297, %v2296
      %v2327 = vpack.c.b16 %v2299, %v2298
      %v2328 = vpack.c.b16 %v2301, %v2300
      %v2329 = vpack.c.b16 %v2303, %v2302
      %v2330 = vpack.c.b16 %v2305, %v2304
      %v2331 = vpack.c.b16 %v2307, %v2306
      %v2332 = vpack.c.b16 %v2309, %v2308
      %v2333 = vpack.c.b16 %v2311, %v2310
      %v2334 = vpack.c.b16 %v2313, %v2312
      %v2335 = vpack.c.b16 %v2315, %v2314
      %v2336 = vpack.c.b16 %v2317, %v2316
      %v2337 = vpack.c.b16 %v2319, %v2318
      %v2338 = vpack.c.b16 %v2321, %v2320
      %v2339 = vpack.c.b16 %v2323, %v2322
      %2356 = vmatprep.subr.bf16.mxu0 0
      %2357 = vmatpush1.bf16.msra.mxu0 %v2331
      %2358 = vmatprep.subr.bf16.mxu0 0
      %2359 = vmatpush1.bf16.msra.mxu0 %v2330
      %2360 = vmatprep.subr.bf16.mxu0 0
      %2361 = vmatpush1.bf16.msra.mxu0 %v2329
      %2362 = vmatprep.subr.bf16.mxu0 0
      %2363 = vmatpush1.bf16.msra.mxu0 %v2328
      %2364 = vmatprep.subr.bf16.mxu0 0
      %2365 = vmatpush1.bf16.msra.mxu0 %v2327
      %2366 = vmatprep.subr.bf16.mxu0 0
      %2367 = vmatpush1.bf16.msra.mxu0 %v2326
      %2368 = vmatprep.subr.bf16.mxu0 0
      %2369 = vmatpush1.bf16.msra.mxu0 %v2325
      %2370 = vmatprep.subr.bf16.mxu0 0
      %2371 = vmatpush1.bf16.msra.mxu0 %v2324
      %2372 = vmatprep.subr.bf16.mxu0 0
      %2373 = vmatpush2.bf16.msra.mxu0 %v2339
      %2374 = vmatprep.subr.bf16.mxu0 0
      %2375 = vmatpush2.bf16.msra.mxu0 %v2338
      %2376 = vmatprep.subr.bf16.mxu0 0
      %2377 = vmatpush2.bf16.msra.mxu0 %v2337
      %2378 = vmatprep.subr.bf16.mxu0 0
      %2379 = vmatpush2.bf16.msra.mxu0 %v2336
      %2380 = vmatprep.subr.bf16.mxu0 0
      %2381 = vmatpush2.bf16.msra.mxu0 %v2335
      %2382 = vmatprep.subr.bf16.mxu0 0
      %2383 = vmatpush2.bf16.msra.mxu0 %v2334
      %2384 = vmatprep.subr.bf16.mxu0 0
      %2385 = vmatpush2.bf16.msra.mxu0 %v2333
      %2386 = vmatprep.subr.bf16.mxu0 0
      %2387 = vmatpush2.bf16.msra.mxu0 %v2332
      %2388 = vmatprep.mubr.bf16.mxu0 %v2197
      %2389 = vmatmul.mubr.bf16.gmra.mxu0 %v2196
      %v2390 = vpop.f32.mrf.mxu0
      %v2391 = vadd.f32 0.0, %v2390
      %v2392 = vpop.f32.mrf.mxu0
      %v2393 = vpop.f32.mrf.mxu0
      %v2394 = vadd.f32 0.0, %v2393
      %v2395 = vpop.f32.mrf.mxu0
      %2396 = vmatprep.mubr.bf16.mxu0 %v2199
      %2397 = vmatmul.mubr.bf16.gmra.mxu0 %v2198
      %v2398 = vpop.f32.mrf.mxu0
      %v2399 = vadd.f32 0.0, %v2398
      %v2400 = vpop.f32.mrf.mxu0
      %v2401 = vpop.f32.mrf.mxu0
      %v2402 = vadd.f32 0.0, %v2401
      %v2403 = vpop.f32.mrf.mxu0
      %2404 = vmatprep.mubr.bf16.mxu0 %v2201
      %2405 = vmatmul.mubr.bf16.gmra.mxu0 %v2200
      %v2406 = vpop.f32.mrf.mxu0
      %v2407 = vadd.f32 0.0, %v2406
      %v2408 = vpop.f32.mrf.mxu0
      %v2409 = vpop.f32.mrf.mxu0
      %v2410 = vadd.f32 0.0, %v2409
      %v2411 = vpop.f32.mrf.mxu0
      %2412 = vmatprep.mubr.bf16.mxu0 %v2203
      %2413 = vmatmul.mubr.bf16.gmra.mxu0 %v2202
      %v2414 = vpop.f32.mrf.mxu0
      %v2415 = vadd.f32 0.0, %v2414
      %v2416 = vpop.f32.mrf.mxu0
      %v2417 = vpop.f32.mrf.mxu0
      %v2418 = vadd.f32 0.0, %v2417
      %v2419 = vpop.f32.mrf.mxu0
      %2420 = vmatprep.mubr.bf16.mxu0 %v2205
      %2421 = vmatmul.mubr.bf16.gmra.mxu0 %v2204
      %v2422 = vpop.f32.mrf.mxu0
      %v2423 = vadd.f32 0.0, %v2422
      %v2424 = vpop.f32.mrf.mxu0
      %v2425 = vpop.f32.mrf.mxu0
      %v2426 = vadd.f32 0.0, %v2425
      %v2427 = vpop.f32.mrf.mxu0
      %2428 = vmatprep.mubr.bf16.mxu0 %v2207
      %2429 = vmatmul.mubr.bf16.gmra.mxu0 %v2206
      %v2430 = vpop.f32.mrf.mxu0
      %v2431 = vadd.f32 0.0, %v2430
      %v2432 = vpop.f32.mrf.mxu0
      %v2433 = vpop.f32.mrf.mxu0
      %v2434 = vadd.f32 0.0, %v2433
      %v2435 = vpop.f32.mrf.mxu0
      %2436 = vmatprep.mubr.bf16.mxu0 %v2209
      %2437 = vmatmul.mubr.bf16.gmra.mxu0 %v2208
      %v2438 = vpop.f32.mrf.mxu0
      %v2439 = vadd.f32 0.0, %v2438
      %v2440 = vpop.f32.mrf.mxu0
      %v2441 = vpop.f32.mrf.mxu0
      %v2442 = vadd.f32 0.0, %v2441
      %v2443 = vpop.f32.mrf.mxu0
      %2444 = vmatprep.mubr.bf16.mxu0 %v2211
      %2445 = vmatmul.mubr.bf16.gmra.mxu0 %v2210
      %v2446 = vpop.f32.mrf.mxu0
      %v2447 = vadd.f32 0.0, %v2446
      %v2448 = vpop.f32.mrf.mxu0
      %v2449 = vpop.f32.mrf.mxu0
      %v2450 = vadd.f32 0.0, %v2449
      %v2451 = vpop.f32.mrf.mxu0
      %2452 = vmatprep.mubr.bf16.mxu0 %v2213
      %2453 = vmatmul.mubr.bf16.gmra.mxu0 %v2212
      %v2454 = vpop.f32.mrf.mxu0
      %v2455 = vadd.f32 0.0, %v2454
      %v2456 = vpop.f32.mrf.mxu0
      %v2457 = vpop.f32.mrf.mxu0
      %v2458 = vadd.f32 0.0, %v2457
      %v2459 = vpop.f32.mrf.mxu0
      %2460 = vmatprep.mubr.bf16.mxu0 %v2215
      %2461 = vmatmul.mubr.bf16.gmra.mxu0 %v2214
      %v2462 = vpop.f32.mrf.mxu0
      %v2463 = vadd.f32 0.0, %v2462
      %v2464 = vpop.f32.mrf.mxu0
      %v2465 = vpop.f32.mrf.mxu0
      %v2466 = vadd.f32 0.0, %v2465
      %v2467 = vpop.f32.mrf.mxu0
      %2468 = vmatprep.mubr.bf16.mxu0 %v2217
      %2469 = vmatmul.mubr.bf16.gmra.mxu0 %v2216
      %v2470 = vpop.f32.mrf.mxu0
      %v2471 = vadd.f32 0.0, %v2470
      %v2472 = vpop.f32.mrf.mxu0
      %v2473 = vpop.f32.mrf.mxu0
      %v2474 = vadd.f32 0.0, %v2473
      %v2475 = vpop.f32.mrf.mxu0
      %2476 = vmatprep.mubr.bf16.mxu0 %v2219
      %2477 = vmatmul.mubr.bf16.gmra.mxu0 %v2218
      %v2478 = vpop.f32.mrf.mxu0
      %v2479 = vadd.f32 0.0, %v2478
      %v2480 = vpop.f32.mrf.mxu0
      %v2481 = vpop.f32.mrf.mxu0
      %v2482 = vadd.f32 0.0, %v2481
      %v2483 = vpop.f32.mrf.mxu0
      %2484 = vmatprep.mubr.bf16.mxu0 %v2221
      %2485 = vmatmul.mubr.bf16.gmra.mxu0 %v2220
      %v2486 = vpop.f32.mrf.mxu0
      %v2487 = vadd.f32 0.0, %v2486
      %v2488 = vpop.f32.mrf.mxu0
      %v2489 = vpop.f32.mrf.mxu0
      %v2490 = vadd.f32 0.0, %v2489
      %v2491 = vpop.f32.mrf.mxu0
      %2492 = vmatprep.mubr.bf16.mxu0 %v2223
      %2493 = vmatmul.mubr.bf16.gmra.mxu0 %v2222
      %v2494 = vpop.f32.mrf.mxu0
      %v2495 = vadd.f32 0.0, %v2494
      %v2496 = vpop.f32.mrf.mxu0
      %v2497 = vpop.f32.mrf.mxu0
      %v2498 = vadd.f32 0.0, %v2497
      %v2499 = vpop.f32.mrf.mxu0
      %2500 = vmatprep.mubr.bf16.mxu0 %v2225
      %2501 = vmatmul.mubr.bf16.gmra.mxu0 %v2224
      %v2502 = vpop.f32.mrf.mxu0
      %v2503 = vadd.f32 0.0, %v2502
      %v2504 = vpop.f32.mrf.mxu0
      %v2505 = vpop.f32.mrf.mxu0
      %v2506 = vadd.f32 0.0, %v2505
      %v2507 = vpop.f32.mrf.mxu0
      %2508 = vmatprep.mubr.bf16.mxu0 %v2227
      %2509 = vmatmul.mubr.bf16.gmra.mxu0 %v2226
      %v2510 = vpop.f32.mrf.mxu0
      %v2511 = vadd.f32 0.0, %v2510
      %v2512 = vpop.f32.mrf.mxu0
      %v2513 = vpop.f32.mrf.mxu0
      %v2514 = vadd.f32 0.0, %v2513
      %v2515 = vpop.f32.mrf.mxu0
      %2516 = vdwg.mxu0
      %v2517 = vadd.f32 %v2164, %v2391
      %v2518 = vadd.f32 %v2165, %v2394
      %v2519 = vadd.f32 %v2166, %v2399
      %v2520 = vadd.f32 %v2167, %v2402
      %v2521 = vadd.f32 %v2168, %v2407
      %v2522 = vadd.f32 %v2169, %v2410
      %v2523 = vadd.f32 %v2170, %v2415
      %v2524 = vadd.f32 %v2171, %v2418
      %v2525 = vadd.f32 %v2172, %v2423
      %v2526 = vadd.f32 %v2173, %v2426
      %v2527 = vadd.f32 %v2174, %v2431
      %v2528 = vadd.f32 %v2175, %v2434
      %v2529 = vadd.f32 %v2176, %v2439
      %v2530 = vadd.f32 %v2177, %v2442
      %v2531 = vadd.f32 %v2178, %v2447
      %v2532 = vadd.f32 %v2179, %v2450
      %v2533 = vadd.f32 %v2180, %v2455
      %v2534 = vadd.f32 %v2181, %v2458
      %v2535 = vadd.f32 %v2182, %v2463
      %v2536 = vadd.f32 %v2183, %v2466
      %v2537 = vadd.f32 %v2184, %v2471
      %v2538 = vadd.f32 %v2185, %v2474
      %v2539 = vadd.f32 %v2186, %v2479
      %v2540 = vadd.f32 %v2187, %v2482
      %v2541 = vadd.f32 %v2188, %v2487
      %v2542 = vadd.f32 %v2189, %v2490
      %v2543 = vadd.f32 %v2190, %v2495
      %v2544 = vadd.f32 %v2191, %v2498
      %v2545 = vadd.f32 %v2192, %v2503
      %v2546 = vadd.f32 %v2193, %v2506
      %v2547 = vadd.f32 %v2194, %v2511
      %v2548 = vadd.f32 %v2195, %v2514
      %2549 = vst.msk [vmem:[#allocation4] sm:$0xff] %vm647, %v2517
      %2550 = vst.msk [vmem:[#allocation4 + $0x8] sm:$0xff] %vm647, %v2518
      %2551 = vst.msk [vmem:[#allocation4 + $0x10] sm:$0xff] %vm647, %v2519
      %2552 = vst.msk [vmem:[#allocation4 + $0x18] sm:$0xff] %vm647, %v2520
      %2553 = vst.msk [vmem:[#allocation4 + $0x20] sm:$0xff] %vm647, %v2521
      %2554 = vst.msk [vmem:[#allocation4 + $0x28] sm:$0xff] %vm647, %v2522
      %2555 = vst.msk [vmem:[#allocation4 + $0x30] sm:$0xff] %vm647, %v2523
      %2556 = vst.msk [vmem:[#allocation4 + $0x38] sm:$0xff] %vm647, %v2524
      %2557 = vst.msk [vmem:[#allocation4 + $0x40] sm:$0xff] %vm647, %v2525
      %2558 = vst.msk [vmem:[#allocation4 + $0x48] sm:$0xff] %vm647, %v2526
      %2559 = vst.msk [vmem:[#allocation4 + $0x50] sm:$0xff] %vm647, %v2527
      %2560 = vst.msk [vmem:[#allocation4 + $0x58] sm:$0xff] %vm647, %v2528
      %2561 = vst.msk [vmem:[#allocation4 + $0x60] sm:$0xff] %vm647, %v2529
      %2562 = vst.msk [vmem:[#allocation4 + $0x68] sm:$0xff] %vm647, %v2530
      %2563 = vst.msk [vmem:[#allocation4 + $0x70] sm:$0xff] %vm647, %v2531
      %2564 = vst.msk [vmem:[#allocation4 + $0x78] sm:$0xff] %vm647, %v2532
      %2565 = vst.msk [vmem:[#allocation4 + $0x80] sm:$0xff] %vm647, %v2533
      %2566 = vst.msk [vmem:[#allocation4 + $0x88] sm:$0xff] %vm647, %v2534
      %2567 = vst.msk [vmem:[#allocation4 + $0x90] sm:$0xff] %vm647, %v2535
      %2568 = vst.msk [vmem:[#allocation4 + $0x98] sm:$0xff] %vm647, %v2536
      %2569 = vst.msk [vmem:[#allocation4 + $0xa0] sm:$0xff] %vm647, %v2537
      %2570 = vst.msk [vmem:[#allocation4 + $0xa8] sm:$0xff] %vm647, %v2538
      %2571 = vst.msk [vmem:[#allocation4 + $0xb0] sm:$0xff] %vm647, %v2539
      %2572 = vst.msk [vmem:[#allocation4 + $0xb8] sm:$0xff] %vm647, %v2540
      %2573 = vst.msk [vmem:[#allocation4 + $0xc0] sm:$0xff] %vm647, %v2541
      %2574 = vst.msk [vmem:[#allocation4 + $0xc8] sm:$0xff] %vm647, %v2542
      %2575 = vst.msk [vmem:[#allocation4 + $0xd0] sm:$0xff] %vm647, %v2543
      %2576 = vst.msk [vmem:[#allocation4 + $0xd8] sm:$0xff] %vm647, %v2544
      %2577 = vst.msk [vmem:[#allocation4 + $0xe0] sm:$0xff] %vm647, %v2545
      %2578 = vst.msk [vmem:[#allocation4 + $0xe8] sm:$0xff] %vm647, %v2546
      %2579 = vst.msk [vmem:[#allocation4 + $0xf0] sm:$0xff] %vm647, %v2547
      %2580 = vst.msk [vmem:[#allocation4 + $0xf8] sm:$0xff] %vm647, %v2548
      %2581 = vst.msk [vmem:[#allocation2] sm:$0xff] %vm1939, %v1267
      %2582 = vst.msk [vmem:[#allocation2 + $0x8] sm:$0xff] %vm1939, %v1268
      %2583 = vst.msk [vmem:[#allocation2 + $0x10] sm:$0xff] %vm1939, %v1269
      %2584 = vst.msk [vmem:[#allocation2 + $0x18] sm:$0xff] %vm1939, %v1270
      %2585 = vst.msk [vmem:[#allocation2 + $0x20] sm:$0xff] %vm1939, %v1271
      %2586 = vst.msk [vmem:[#allocation2 + $0x28] sm:$0xff] %vm1939, %v1272
      %2587 = vst.msk [vmem:[#allocation2 + $0x30] sm:$0xff] %vm1939, %v1273
      %2588 = vst.msk [vmem:[#allocation2 + $0x38] sm:$0xff] %vm1939, %v1274
      %2589 = vst.msk [vmem:[#allocation2 + $0x40] sm:$0xff] %vm1939, %v1275
      %2590 = vst.msk [vmem:[#allocation2 + $0x48] sm:$0xff] %vm1939, %v1276
      %2591 = vst.msk [vmem:[#allocation2 + $0x50] sm:$0xff] %vm1939, %v1277
      %2592 = vst.msk [vmem:[#allocation2 + $0x58] sm:$0xff] %vm1939, %v1278
      %2593 = vst.msk [vmem:[#allocation2 + $0x60] sm:$0xff] %vm1939, %v1279
      %2594 = vst.msk [vmem:[#allocation2 + $0x68] sm:$0xff] %vm1939, %v1280
      %2595 = vst.msk [vmem:[#allocation2 + $0x70] sm:$0xff] %vm1939, %v1281
      %2596 = vst.msk [vmem:[#allocation2 + $0x78] sm:$0xff] %vm1939, %v1282
      %2597 = vst.msk [vmem:[#allocation2 + $0x80] sm:$0xff] %vm1939, %v1283
      %2598 = vst.msk [vmem:[#allocation2 + $0x88] sm:$0xff] %vm1939, %v1284
      %2599 = vst.msk [vmem:[#allocation2 + $0x90] sm:$0xff] %vm1939, %v1285
      %2600 = vst.msk [vmem:[#allocation2 + $0x98] sm:$0xff] %vm1939, %v1286
      %2601 = vst.msk [vmem:[#allocation2 + $0xa0] sm:$0xff] %vm1939, %v1287
      %2602 = vst.msk [vmem:[#allocation2 + $0xa8] sm:$0xff] %vm1939, %v1288
      %2603 = vst.msk [vmem:[#allocation2 + $0xb0] sm:$0xff] %vm1939, %v1289
      %2604 = vst.msk [vmem:[#allocation2 + $0xb8] sm:$0xff] %vm1939, %v1290
      %2605 = vst.msk [vmem:[#allocation2 + $0xc0] sm:$0xff] %vm1939, %v1291
      %2606 = vst.msk [vmem:[#allocation2 + $0xc8] sm:$0xff] %vm1939, %v1292
      %2607 = vst.msk [vmem:[#allocation2 + $0xd0] sm:$0xff] %vm1939, %v1293
      %2608 = vst.msk [vmem:[#allocation2 + $0xd8] sm:$0xff] %vm1939, %v1294
      %2609 = vst.msk [vmem:[#allocation2 + $0xe0] sm:$0xff] %vm1939, %v1295
      %2610 = vst.msk [vmem:[#allocation2 + $0xe8] sm:$0xff] %vm1939, %v1296
      %2611 = vst.msk [vmem:[#allocation2 + $0xf0] sm:$0xff] %vm1939, %v1297
      %2612 = vst.msk [vmem:[#allocation2 + $0xf8] sm:$0xff] %vm1939, %v1298
      %p2613 = scmp.eq.s32.totalorder %s320, %s319
      // Predicated region
      $region37: #{gpt2_logits.18} parent=31 // pred_check
        %p2614 = pneg %p2613
      $region38: #{gpt2_logits.18} parent=31 // pred_check_branch
        %2616 = sbr.rel (%p2614) target = $region40
      $region39: #{gpt2_logits.18} parent=31 // pred_region
        %v2617 = vld [vmem:[#allocation4] sm:$0xff]
        %v2618 = vld [vmem:[#allocation4 + $0x8] sm:$0xff]
        %v2619 = vld [vmem:[#allocation4 + $0x10] sm:$0xff]
        %v2620 = vld [vmem:[#allocation4 + $0x18] sm:$0xff]
        %v2621 = vld [vmem:[#allocation4 + $0x20] sm:$0xff]
        %v2622 = vld [vmem:[#allocation4 + $0x28] sm:$0xff]
        %v2623 = vld [vmem:[#allocation4 + $0x30] sm:$0xff]
        %v2624 = vld [vmem:[#allocation4 + $0x38] sm:$0xff]
        %v2625 = vld [vmem:[#allocation4 + $0x40] sm:$0xff]
        %v2626 = vld [vmem:[#allocation4 + $0x48] sm:$0xff]
        %v2627 = vld [vmem:[#allocation4 + $0x50] sm:$0xff]
        %v2628 = vld [vmem:[#allocation4 + $0x58] sm:$0xff]
        %v2629 = vld [vmem:[#allocation4 + $0x60] sm:$0xff]
        %v2630 = vld [vmem:[#allocation4 + $0x68] sm:$0xff]
        %v2631 = vld [vmem:[#allocation4 + $0x70] sm:$0xff]
        %v2632 = vld [vmem:[#allocation4 + $0x78] sm:$0xff]
        %v2633 = vld [vmem:[#allocation4 + $0x80] sm:$0xff]
        %v2634 = vld [vmem:[#allocation4 + $0x88] sm:$0xff]
        %v2635 = vld [vmem:[#allocation4 + $0x90] sm:$0xff]
        %v2636 = vld [vmem:[#allocation4 + $0x98] sm:$0xff]
        %v2637 = vld [vmem:[#allocation4 + $0xa0] sm:$0xff]
        %v2638 = vld [vmem:[#allocation4 + $0xa8] sm:$0xff]
        %v2639 = vld [vmem:[#allocation4 + $0xb0] sm:$0xff]
        %v2640 = vld [vmem:[#allocation4 + $0xb8] sm:$0xff]
        %v2641 = vld [vmem:[#allocation4 + $0xc0] sm:$0xff]
        %v2642 = vld [vmem:[#allocation4 + $0xc8] sm:$0xff]
        %v2643 = vld [vmem:[#allocation4 + $0xd0] sm:$0xff]
        %v2644 = vld [vmem:[#allocation4 + $0xd8] sm:$0xff]
        %v2645 = vld [vmem:[#allocation4 + $0xe0] sm:$0xff]
        %v2646 = vld [vmem:[#allocation4 + $0xe8] sm:$0xff]
        %v2647 = vld [vmem:[#allocation4 + $0xf0] sm:$0xff]
        %v2648 = vld [vmem:[#allocation4 + $0xf8] sm:$0xff]
        %v2649 = vld [vmem:[#allocation3] sm:$0xff]
        %v2650 = vld [vmem:[#allocation3 + $0x8] sm:$0xff]
        %v2651 = vld [vmem:[#allocation3 + $0x10] sm:$0xff]
        %v2652 = vld [vmem:[#allocation3 + $0x18] sm:$0xff]
        %v2653 = vld [vmem:[#allocation3 + $0x20] sm:$0xff]
        %v2654 = vld [vmem:[#allocation3 + $0x28] sm:$0xff]
        %v2655 = vld [vmem:[#allocation3 + $0x30] sm:$0xff]
        %v2656 = vld [vmem:[#allocation3 + $0x38] sm:$0xff]
        %v2657 = vld [vmem:[#allocation3 + $0x40] sm:$0xff]
        %v2658 = vld [vmem:[#allocation3 + $0x48] sm:$0xff]
        %v2659 = vld [vmem:[#allocation3 + $0x50] sm:$0xff]
        %v2660 = vld [vmem:[#allocation3 + $0x58] sm:$0xff]
        %v2661 = vld [vmem:[#allocation3 + $0x60] sm:$0xff]
        %v2662 = vld [vmem:[#allocation3 + $0x68] sm:$0xff]
        %v2663 = vld [vmem:[#allocation3 + $0x70] sm:$0xff]
        %v2664 = vld [vmem:[#allocation3 + $0x78] sm:$0xff]
        %v2665 = vld [vmem:[#allocation3 + $0x80] sm:$0xff]
        %v2666 = vld [vmem:[#allocation3 + $0x88] sm:$0xff]
        %v2667 = vld [vmem:[#allocation3 + $0x90] sm:$0xff]
        %v2668 = vld [vmem:[#allocation3 + $0x98] sm:$0xff]
        %v2669 = vld [vmem:[#allocation3 + $0xa0] sm:$0xff]
        %v2670 = vld [vmem:[#allocation3 + $0xa8] sm:$0xff]
        %v2671 = vld [vmem:[#allocation3 + $0xb0] sm:$0xff]
        %v2672 = vld [vmem:[#allocation3 + $0xb8] sm:$0xff]
        %v2673 = vld [vmem:[#allocation3 + $0xc0] sm:$0xff]
        %v2674 = vld [vmem:[#allocation3 + $0xc8] sm:$0xff]
        %v2675 = vld [vmem:[#allocation3 + $0xd0] sm:$0xff]
        %v2676 = vld [vmem:[#allocation3 + $0xd8] sm:$0xff]
        %v2677 = vld [vmem:[#allocation3 + $0xe0] sm:$0xff]
        %v2678 = vld [vmem:[#allocation3 + $0xe8] sm:$0xff]
        %v2679 = vld [vmem:[#allocation3 + $0xf0] sm:$0xff]
        %v2680 = vld [vmem:[#allocation3 + $0xf8] sm:$0xff]
        %v2681 = vrcp.pop %v2649
        %v2682 = vrcp.pop %v2650
        %v2683 = vrcp.pop %v2651
        %v2684 = vrcp.pop %v2652
        %v2685 = vrcp.pop %v2653
        %v2686 = vrcp.pop %v2654
        %v2687 = vrcp.pop %v2655
        %v2688 = vrcp.pop %v2656
        %v2689 = vrcp.pop %v2657
        %v2690 = vrcp.pop %v2658
        %v2691 = vrcp.pop %v2659
        %v2692 = vrcp.pop %v2660
        %v2693 = vrcp.pop %v2661
        %v2694 = vrcp.pop %v2662
        %v2695 = vrcp.pop %v2663
        %v2696 = vrcp.pop %v2664
        %v2697 = vrcp.pop %v2665
        %v2698 = vrcp.pop %v2666
        %v2699 = vrcp.pop %v2667
        %v2700 = vrcp.pop %v2668
        %v2701 = vrcp.pop %v2669
        %v2702 = vrcp.pop %v2670
        %v2703 = vrcp.pop %v2671
        %v2704 = vrcp.pop %v2672
        %v2705 = vrcp.pop %v2673
        %v2706 = vrcp.pop %v2674
        %v2707 = vrcp.pop %v2675
        %v2708 = vrcp.pop %v2676
        %v2709 = vrcp.pop %v2677
        %v2710 = vrcp.pop %v2678
        %v2711 = vrcp.pop %v2679
        %v2712 = vrcp.pop %v2680
        %2714 = vset.pattern.permute.xlu0 0
        %2715 = vperm.xlu0 %2714, %v2681
        %v2716 = vpop.permute.xlu0 %2715
        %2719 = vset.pattern.permute.xlu0 0
        %2720 = vperm.xlu0 %2719, %v2682
        %v2721 = vpop.permute.xlu0 %2720
        %2724 = vset.pattern.permute.xlu0 0
        %2725 = vperm.xlu0 %2724, %v2683
        %v2726 = vpop.permute.xlu0 %2725
        %2729 = vset.pattern.permute.xlu0 0
        %2730 = vperm.xlu0 %2729, %v2684
        %v2731 = vpop.permute.xlu0 %2730
        %2734 = vset.pattern.permute.xlu0 0
        %2735 = vperm.xlu0 %2734, %v2685
        %v2736 = vpop.permute.xlu0 %2735
        %2739 = vset.pattern.permute.xlu0 0
        %2740 = vperm.xlu0 %2739, %v2686
        %v2741 = vpop.permute.xlu0 %2740
        %2744 = vset.pattern.permute.xlu0 0
        %2745 = vperm.xlu0 %2744, %v2687
        %v2746 = vpop.permute.xlu0 %2745
        %2749 = vset.pattern.permute.xlu0 0
        %2750 = vperm.xlu0 %2749, %v2688
        %v2751 = vpop.permute.xlu0 %2750
        %2754 = vset.pattern.permute.xlu0 0
        %2755 = vperm.xlu0 %2754, %v2689
        %v2756 = vpop.permute.xlu0 %2755
        %2759 = vset.pattern.permute.xlu0 0
        %2760 = vperm.xlu0 %2759, %v2690
        %v2761 = vpop.permute.xlu0 %2760
        %2764 = vset.pattern.permute.xlu0 0
        %2765 = vperm.xlu0 %2764, %v2691
        %v2766 = vpop.permute.xlu0 %2765
        %2769 = vset.pattern.permute.xlu0 0
        %2770 = vperm.xlu0 %2769, %v2692
        %v2771 = vpop.permute.xlu0 %2770
        %2774 = vset.pattern.permute.xlu0 0
        %2775 = vperm.xlu0 %2774, %v2693
        %v2776 = vpop.permute.xlu0 %2775
        %2779 = vset.pattern.permute.xlu0 0
        %2780 = vperm.xlu0 %2779, %v2694
        %v2781 = vpop.permute.xlu0 %2780
        %2784 = vset.pattern.permute.xlu0 0
        %2785 = vperm.xlu0 %2784, %v2695
        %v2786 = vpop.permute.xlu0 %2785
        %2789 = vset.pattern.permute.xlu0 0
        %2790 = vperm.xlu0 %2789, %v2696
        %v2791 = vpop.permute.xlu0 %2790
        %2794 = vset.pattern.permute.xlu0 0
        %2795 = vperm.xlu0 %2794, %v2697
        %v2796 = vpop.permute.xlu0 %2795
        %2799 = vset.pattern.permute.xlu0 0
        %2800 = vperm.xlu0 %2799, %v2698
        %v2801 = vpop.permute.xlu0 %2800
        %2804 = vset.pattern.permute.xlu0 0
        %2805 = vperm.xlu0 %2804, %v2699
        %v2806 = vpop.permute.xlu0 %2805
        %2809 = vset.pattern.permute.xlu0 0
        %2810 = vperm.xlu0 %2809, %v2700
        %v2811 = vpop.permute.xlu0 %2810
        %2814 = vset.pattern.permute.xlu0 0
        %2815 = vperm.xlu0 %2814, %v2701
        %v2816 = vpop.permute.xlu0 %2815
        %2819 = vset.pattern.permute.xlu0 0
        %2820 = vperm.xlu0 %2819, %v2702
        %v2821 = vpop.permute.xlu0 %2820
        %2824 = vset.pattern.permute.xlu0 0
        %2825 = vperm.xlu0 %2824, %v2703
        %v2826 = vpop.permute.xlu0 %2825
        %2829 = vset.pattern.permute.xlu0 0
        %2830 = vperm.xlu0 %2829, %v2704
        %v2831 = vpop.permute.xlu0 %2830
        %2834 = vset.pattern.permute.xlu0 0
        %2835 = vperm.xlu0 %2834, %v2705
        %v2836 = vpop.permute.xlu0 %2835
        %2839 = vset.pattern.permute.xlu0 0
        %2840 = vperm.xlu0 %2839, %v2706
        %v2841 = vpop.permute.xlu0 %2840
        %2844 = vset.pattern.permute.xlu0 0
        %2845 = vperm.xlu0 %2844, %v2707
        %v2846 = vpop.permute.xlu0 %2845
        %2849 = vset.pattern.permute.xlu0 0
        %2850 = vperm.xlu0 %2849, %v2708
        %v2851 = vpop.permute.xlu0 %2850
        %2854 = vset.pattern.permute.xlu0 0
        %2855 = vperm.xlu0 %2854, %v2709
        %v2856 = vpop.permute.xlu0 %2855
        %2859 = vset.pattern.permute.xlu0 0
        %2860 = vperm.xlu0 %2859, %v2710
        %v2861 = vpop.permute.xlu0 %2860
        %2864 = vset.pattern.permute.xlu0 0
        %2865 = vperm.xlu0 %2864, %v2711
        %v2866 = vpop.permute.xlu0 %2865
        %2869 = vset.pattern.permute.xlu0 0
        %2870 = vperm.xlu0 %2869, %v2712
        %v2871 = vpop.permute.xlu0 %2870
        %v2873 = vmul.f32 %v2617, %v2716
        %v2874 = vmul.f32 %v2618, %v2721
        %v2875 = vmul.f32 %v2619, %v2726
        %v2876 = vmul.f32 %v2620, %v2731
        %v2877 = vmul.f32 %v2621, %v2736
        %v2878 = vmul.f32 %v2622, %v2741
        %v2879 = vmul.f32 %v2623, %v2746
        %v2880 = vmul.f32 %v2624, %v2751
        %v2881 = vmul.f32 %v2625, %v2756
        %v2882 = vmul.f32 %v2626, %v2761
        %v2883 = vmul.f32 %v2627, %v2766
        %v2884 = vmul.f32 %v2628, %v2771
        %v2885 = vmul.f32 %v2629, %v2776
        %v2886 = vmul.f32 %v2630, %v2781
        %v2887 = vmul.f32 %v2631, %v2786
        %v2888 = vmul.f32 %v2632, %v2791
        %v2889 = vmul.f32 %v2633, %v2796
        %v2890 = vmul.f32 %v2634, %v2801
        %v2891 = vmul.f32 %v2635, %v2806
        %v2892 = vmul.f32 %v2636, %v2811
        %v2893 = vmul.f32 %v2637, %v2816
        %v2894 = vmul.f32 %v2638, %v2821
        %v2895 = vmul.f32 %v2639, %v2826
        %v2896 = vmul.f32 %v2640, %v2831
        %v2897 = vmul.f32 %v2641, %v2836
        %v2898 = vmul.f32 %v2642, %v2841
        %v2899 = vmul.f32 %v2643, %v2846
        %v2900 = vmul.f32 %v2644, %v2851
        %v2901 = vmul.f32 %v2645, %v2856
        %v2902 = vmul.f32 %v2646, %v2861
        %v2903 = vmul.f32 %v2647, %v2866
        %v2904 = vmul.f32 %v2648, %v2871
        %v2905 = vpack.c.bf16 %v2874, %v2873
        %v2906 = vpack.c.bf16 %v2876, %v2875
        %v2907 = vpack.c.bf16 %v2878, %v2877
        %v2908 = vpack.c.bf16 %v2880, %v2879
        %v2909 = vpack.c.bf16 %v2882, %v2881
        %v2910 = vpack.c.bf16 %v2884, %v2883
        %v2911 = vpack.c.bf16 %v2886, %v2885
        %v2912 = vpack.c.bf16 %v2888, %v2887
        %v2913 = vpack.c.bf16 %v2890, %v2889
        %v2914 = vpack.c.bf16 %v2892, %v2891
        %v2915 = vpack.c.bf16 %v2894, %v2893
        %v2916 = vpack.c.bf16 %v2896, %v2895
        %v2917 = vpack.c.bf16 %v2898, %v2897
        %v2918 = vpack.c.bf16 %v2900, %v2899
        %v2919 = vpack.c.bf16 %v2902, %v2901
        %v2920 = vpack.c.bf16 %v2904, %v2903
        %v2937 = vunpack.c.l.b16 %v2905
        %v2938 = vunpack.c.h.b16 %v2905
        %v2939 = vunpack.c.l.b16 %v2906
        %v2940 = vunpack.c.h.b16 %v2906
        %v2941 = vunpack.c.l.b16 %v2907
        %v2942 = vunpack.c.h.b16 %v2907
        %v2943 = vunpack.c.l.b16 %v2908
        %v2944 = vunpack.c.h.b16 %v2908
        %v2945 = vunpack.c.l.b16 %v2909
        %v2946 = vunpack.c.h.b16 %v2909
        %v2947 = vunpack.c.l.b16 %v2910
        %v2948 = vunpack.c.h.b16 %v2910
        %v2949 = vunpack.c.l.b16 %v2911
        %v2950 = vunpack.c.h.b16 %v2911
        %v2951 = vunpack.c.l.b16 %v2912
        %v2952 = vunpack.c.h.b16 %v2912
        %v2953 = vunpack.c.l.b16 %v2913
        %v2954 = vunpack.c.h.b16 %v2913
        %v2955 = vunpack.c.l.b16 %v2914
        %v2956 = vunpack.c.h.b16 %v2914
        %v2957 = vunpack.c.l.b16 %v2915
        %v2958 = vunpack.c.h.b16 %v2915
        %v2959 = vunpack.c.l.b16 %v2916
        %v2960 = vunpack.c.h.b16 %v2916
        %v2961 = vunpack.c.l.b16 %v2917
        %v2962 = vunpack.c.h.b16 %v2917
        %v2963 = vunpack.c.l.b16 %v2918
        %v2964 = vunpack.c.h.b16 %v2918
        %v2965 = vunpack.c.l.b16 %v2919
        %v2966 = vunpack.c.h.b16 %v2919
        %v2967 = vunpack.c.l.b16 %v2920
        %v2968 = vunpack.c.h.b16 %v2920
        %v2969 = vpack.c.b16 %v2937, %v2937
        %v2970 = vpack.c.b16 %v2938, %v2938
        %v2971 = vpack.c.b16 %v2939, %v2939
        %v2972 = vpack.c.b16 %v2940, %v2940
        %v2973 = vpack.c.b16 %v2941, %v2941
        %v2974 = vpack.c.b16 %v2942, %v2942
        %v2975 = vpack.c.b16 %v2943, %v2943
        %v2976 = vpack.c.b16 %v2944, %v2944
        %v2977 = vpack.c.b16 %v2945, %v2945
        %v2978 = vpack.c.b16 %v2946, %v2946
        %v2979 = vpack.c.b16 %v2947, %v2947
        %v2980 = vpack.c.b16 %v2948, %v2948
        %v2981 = vpack.c.b16 %v2949, %v2949
        %v2982 = vpack.c.b16 %v2950, %v2950
        %v2983 = vpack.c.b16 %v2951, %v2951
        %v2984 = vpack.c.b16 %v2952, %v2952
        %v2985 = vpack.c.b16 %v2953, %v2953
        %v2986 = vpack.c.b16 %v2954, %v2954
        %v2987 = vpack.c.b16 %v2955, %v2955
        %v2988 = vpack.c.b16 %v2956, %v2956
        %v2989 = vpack.c.b16 %v2957, %v2957
        %v2990 = vpack.c.b16 %v2958, %v2958
        %v2991 = vpack.c.b16 %v2959, %v2959
        %v2992 = vpack.c.b16 %v2960, %v2960
        %v2993 = vpack.c.b16 %v2961, %v2961
        %v2994 = vpack.c.b16 %v2962, %v2962
        %v2995 = vpack.c.b16 %v2963, %v2963
        %v2996 = vpack.c.b16 %v2964, %v2964
        %v2997 = vpack.c.b16 %v2965, %v2965
        %v2998 = vpack.c.b16 %v2966, %v2966
        %v2999 = vpack.c.b16 %v2967, %v2967
        %v3000 = vpack.c.b16 %v2968, %v2968
        %vm3033 = vcmask 257024
        %3034 = vst.msk [vmem:[%s315] sm:$0xf] %vm3033, %v2969
        %3035 = vst.msk [vmem:[%s315 + $0x4] sm:$0xf] %vm3033, %v2970
        %3036 = vst.msk [vmem:[%s315 + $0x8] sm:$0xf] %vm3033, %v2971
        %3037 = vst.msk [vmem:[%s315 + $0xc] sm:$0xf] %vm3033, %v2972
        %3038 = vst.msk [vmem:[%s315 + $0x10] sm:$0xf] %vm3033, %v2973
        %3039 = vst.msk [vmem:[%s315 + $0x14] sm:$0xf] %vm3033, %v2974
        %3040 = vst.msk [vmem:[%s315 + $0x18] sm:$0xf] %vm3033, %v2975
        %3041 = vst.msk [vmem:[%s315 + $0x1c] sm:$0xf] %vm3033, %v2976
        %3042 = vst.msk [vmem:[%s315 + $0x20] sm:$0xf] %vm3033, %v2977
        %3043 = vst.msk [vmem:[%s315 + $0x24] sm:$0xf] %vm3033, %v2978
        %3044 = vst.msk [vmem:[%s315 + $0x28] sm:$0xf] %vm3033, %v2979
        %3045 = vst.msk [vmem:[%s315 + $0x2c] sm:$0xf] %vm3033, %v2980
        %3046 = vst.msk [vmem:[%s315 + $0x30] sm:$0xf] %vm3033, %v2981
        %3047 = vst.msk [vmem:[%s315 + $0x34] sm:$0xf] %vm3033, %v2982
        %3048 = vst.msk [vmem:[%s315 + $0x38] sm:$0xf] %vm3033, %v2983
        %3049 = vst.msk [vmem:[%s315 + $0x3c] sm:$0xf] %vm3033, %v2984
        %3050 = vst.msk [vmem:[%s315 + $0x40] sm:$0xf] %vm3033, %v2985
        %3051 = vst.msk [vmem:[%s315 + $0x44] sm:$0xf] %vm3033, %v2986
        %3052 = vst.msk [vmem:[%s315 + $0x48] sm:$0xf] %vm3033, %v2987
        %3053 = vst.msk [vmem:[%s315 + $0x4c] sm:$0xf] %vm3033, %v2988
        %3054 = vst.msk [vmem:[%s315 + $0x50] sm:$0xf] %vm3033, %v2989
        %3055 = vst.msk [vmem:[%s315 + $0x54] sm:$0xf] %vm3033, %v2990
        %3056 = vst.msk [vmem:[%s315 + $0x58] sm:$0xf] %vm3033, %v2991
        %3057 = vst.msk [vmem:[%s315 + $0x5c] sm:$0xf] %vm3033, %v2992
        %3058 = vst.msk [vmem:[%s315 + $0x60] sm:$0xf] %vm3033, %v2993
        %3059 = vst.msk [vmem:[%s315 + $0x64] sm:$0xf] %vm3033, %v2994
        %3060 = vst.msk [vmem:[%s315 + $0x68] sm:$0xf] %vm3033, %v2995
        %3061 = vst.msk [vmem:[%s315 + $0x6c] sm:$0xf] %vm3033, %v2996
        %3062 = vst.msk [vmem:[%s315 + $0x70] sm:$0xf] %vm3033, %v2997
        %3063 = vst.msk [vmem:[%s315 + $0x74] sm:$0xf] %vm3033, %v2998
        %3064 = vst.msk [vmem:[%s315 + $0x78] sm:$0xf] %vm3033, %v2999
        %3065 = vst.msk [vmem:[%s315 + $0x7c] sm:$0xf] %vm3033, %v3000
      $region40: #{gpt2_logits.18} parent=31 // pred_fallthru
        _
      %s3066 = sld [smem:[#allocation6 + %s23]]
      %s3067 = smul.u32 32, %s3066
      %p3068 = scmp.lt.s32.totalorder %s22, 3
      %s3069 = scalar_select %p3068, %s22, 3
      %p3070 = scmp.lt.s32.totalorder %s3067, 31
      %s3071 = scalar_select %p3070, %s3067, 31
      %s3072 = smul.addr %s3069, 32
      %s3073 = sadd.s32 %s3071, %s3072
      %s3074 = smul.addr %s3073, 4
      %s3075 = scalar_lea.vmem %s5, %s3074
      // Predicated region
      $region41: #{gpt2_logits.18} parent=31 // pred_check
        %p3076 = pneg %p142
      $region42: #{gpt2_logits.18} parent=31 // pred_check_branch
        %3078 = sbr.rel (%p3076) target = $region44
      $region43: #{gpt2_logits.18} parent=31 // pred_region
        %s3079 = sld [smem:[#allocation6 + %s23]]
        %s3080 = smul.u32 32, %s3079
      $region44: #{gpt2_logits.18} parent=31 // pred_fallthru
        _
    $region32: #{gpt2_logits.18} parent=5 // pred_fallthru
      _
    %p3081 = scmp.le.s32.totalorder 2, %s13
    // Predicated region
    $region45: #{gpt2_logits.18} parent=5 // pred_check
      %p3082 = pneg %p3081
    $region46: #{gpt2_logits.18} parent=5 // pred_check_branch
      %3084 = sbr.rel (%p3082) target = $region48
    $region47: #{gpt2_logits.18} parent=5 // pred_region
      %s3085 = ssub.s32 %s13, 2
      // Predicated region
      $region49: #{gpt2_logits.18} parent=47 // pred_check
        %p3086 = pneg %p148
      $region50: #{gpt2_logits.18} parent=47 // pred_check_branch
        %3088 = sbr.rel (%p3086) target = $region52
      $region51: #{gpt2_logits.18} parent=47 // pred_region
        %s3089 = sld [smem:[#allocation6 + %s25]]
        %s3090 = smul.u32 32, %s3089
        %p3091 = scmp.lt.s32.totalorder %s24, 3
        %s3092 = scalar_select %p3091, %s24, 3
        %p3093 = scmp.lt.s32.totalorder %s3090, 31
        %s3094 = scalar_select %p3093, %s3090, 31
        %s3095 = smul.addr %s3092, 32
        %s3096 = sadd.s32 %s3094, %s3095
        %s3097 = smul.addr %s3096, 4
        %s3098 = scalar_lea.vmem %s5, %s3097
      $region52: #{gpt2_logits.18} parent=47 // pred_fallthru
        _
    $region48: #{gpt2_logits.18} parent=5 // pred_fallthru
      _
  $region6: #{gpt2_logits.18} parent=0 // loop_footer
    %s17 = sadd.s32 1, %s13
  $region7: #{gpt2_logits.18} parent=0 // loop_footer_branch
    %12 = sbr.rel target = $region3
  $region8: #{gpt2_logits.18} parent=0 // loop_exit
    _

// kernel: gpt2_logits.21
$region0: #{gpt2_logits.21}
  #allocation0 [shape = 'u32[]', space=smem, size = 0x4, offset = 0x4, fixed_abs, tag = 'smem constant byte address 0x4 - core index']
  #allocation1 [shape = 'u32[144,128]{1,0:T(1,128)}', space=vmem, size = 0x12000, scoped, tag = 'internal scratch']
  %s0 = inlined_call_operand.vmem [shape: bf16[256,128], index: 0, kind: input, shape index: {}]
  %s1 = inlined_call_operand.vmem [shape: bf16[128,512], index: 1, kind: input, shape index: {}]
  %s2 = inlined_call_operand.vmem [shape: f32[1,512], index: 2, kind: input, shape index: {}]
  %s3 = inlined_call_operand.vmem [shape: bf16[256,512], index: 3, kind: output, shape index: {}]
  %s4 = sld [smem:[#allocation0]]
  $region22: #{gpt2_logits.21} parent=0
    _
  %s6 = ssub.s32 1, %s4
  %s7 = scalar_select 0, %s6, %s4
  // Predicated region
  $region2: #{gpt2_logits.21} parent=0 // pred_check
    _
  $region3: #{gpt2_logits.21} parent=0 // pred_check_branch
    %9 = sbr.rel (0) target = $region5
  $region4: #{gpt2_logits.21} parent=0 // pred_region
    _
  $region5: #{gpt2_logits.21} parent=0 // pred_fallthru
    _
  // Predicated region
  $region6: #{gpt2_logits.21} parent=0 // pred_check
    _
  $region7: #{gpt2_logits.21} parent=0 // pred_check_branch
    %11 = sbr.rel (0) target = $region9
  $region8: #{gpt2_logits.21} parent=0 // pred_region
    _
  $region9: #{gpt2_logits.21} parent=0 // pred_fallthru
    _
  // Predicated region
  $region10: #{gpt2_logits.21} parent=0 // pred_check
    _
  $region11: #{gpt2_logits.21} parent=0 // pred_check_branch
    %13 = sbr.rel (0) target = $region13
  $region12: #{gpt2_logits.21} parent=0 // pred_region
    _
  $region13: #{gpt2_logits.21} parent=0 // pred_fallthru
    _
  %v15 = vld [vmem:[%s0] sm:$0xf]
  %v16 = vld [vmem:[%s0 + $0x4] sm:$0xf]
  %v17 = vld [vmem:[%s0 + $0x8] sm:$0xf]
  %v18 = vld [vmem:[%s0 + $0xc] sm:$0xf]
  %v19 = vld [vmem:[%s0 + $0x10] sm:$0xf]
  %v20 = vld [vmem:[%s0 + $0x14] sm:$0xf]
  %v21 = vld [vmem:[%s0 + $0x18] sm:$0xf]
  %v22 = vld [vmem:[%s0 + $0x1c] sm:$0xf]
  %v23 = vld [vmem:[%s0 + $0x20] sm:$0xf]
  %v24 = vld [vmem:[%s0 + $0x24] sm:$0xf]
  %v25 = vld [vmem:[%s0 + $0x28] sm:$0xf]
  %v26 = vld [vmem:[%s0 + $0x2c] sm:$0xf]
  %v27 = vld [vmem:[%s0 + $0x30] sm:$0xf]
  %v28 = vld [vmem:[%s0 + $0x34] sm:$0xf]
  %v29 = vld [vmem:[%s0 + $0x38] sm:$0xf]
  %v30 = vld [vmem:[%s0 + $0x3c] sm:$0xf]
  %v31 = vld [vmem:[%s0 + $0x40] sm:$0xf]
  %v32 = vld [vmem:[%s0 + $0x44] sm:$0xf]
  %v33 = vld [vmem:[%s0 + $0x48] sm:$0xf]
  %v34 = vld [vmem:[%s0 + $0x4c] sm:$0xf]
  %v35 = vld [vmem:[%s0 + $0x50] sm:$0xf]
  %v36 = vld [vmem:[%s0 + $0x54] sm:$0xf]
  %v37 = vld [vmem:[%s0 + $0x58] sm:$0xf]
  %v38 = vld [vmem:[%s0 + $0x5c] sm:$0xf]
  %v39 = vld [vmem:[%s0 + $0x60] sm:$0xf]
  %v40 = vld [vmem:[%s0 + $0x64] sm:$0xf]
  %v41 = vld [vmem:[%s0 + $0x68] sm:$0xf]
  %v42 = vld [vmem:[%s0 + $0x6c] sm:$0xf]
  %v43 = vld [vmem:[%s0 + $0x70] sm:$0xf]
  %v44 = vld [vmem:[%s0 + $0x74] sm:$0xf]
  %v45 = vld [vmem:[%s0 + $0x78] sm:$0xf]
  %v46 = vld [vmem:[%s0 + $0x7c] sm:$0xf]
  %v47 = vld [vmem:[%s1] sm:$0xff]
  %v48 = vld [vmem:[%s1 + $0x8] sm:$0xff]
  %v49 = vld [vmem:[%s1 + $0x10] sm:$0xff]
  %v50 = vld [vmem:[%s1 + $0x18] sm:$0xff]
  %v51 = vld [vmem:[%s1 + $0x20] sm:$0xff]
  %v52 = vld [vmem:[%s1 + $0x28] sm:$0xff]
  %v53 = vld [vmem:[%s1 + $0x30] sm:$0xff]
  %v54 = vld [vmem:[%s1 + $0x38] sm:$0xff]
  %v55 = vld [vmem:[%s1 + $0x40] sm:$0xff]
  %v56 = vld [vmem:[%s1 + $0x48] sm:$0xff]
  %v57 = vld [vmem:[%s1 + $0x50] sm:$0xff]
  %v58 = vld [vmem:[%s1 + $0x58] sm:$0xff]
  %v59 = vld [vmem:[%s1 + $0x60] sm:$0xff]
  %v60 = vld [vmem:[%s1 + $0x68] sm:$0xff]
  %v61 = vld [vmem:[%s1 + $0x70] sm:$0xff]
  %v62 = vld [vmem:[%s1 + $0x78] sm:$0xff]
  %v63 = vld [vmem:[%s1 + $0x80] sm:$0xff]
  %v64 = vld [vmem:[%s1 + $0x88] sm:$0xff]
  %v65 = vld [vmem:[%s1 + $0x90] sm:$0xff]
  %v66 = vld [vmem:[%s1 + $0x98] sm:$0xff]
  %v67 = vld [vmem:[%s1 + $0xa0] sm:$0xff]
  %v68 = vld [vmem:[%s1 + $0xa8] sm:$0xff]
  %v69 = vld [vmem:[%s1 + $0xb0] sm:$0xff]
  %v70 = vld [vmem:[%s1 + $0xb8] sm:$0xff]
  %v71 = vld [vmem:[%s1 + $0xc0] sm:$0xff]
  %v72 = vld [vmem:[%s1 + $0xc8] sm:$0xff]
  %v73 = vld [vmem:[%s1 + $0xd0] sm:$0xff]
  %v74 = vld [vmem:[%s1 + $0xd8] sm:$0xff]
  %v75 = vld [vmem:[%s1 + $0xe0] sm:$0xff]
  %v76 = vld [vmem:[%s1 + $0xe8] sm:$0xff]
  %v77 = vld [vmem:[%s1 + $0xf0] sm:$0xff]
  %v78 = vld [vmem:[%s1 + $0xf8] sm:$0xff]
  %v79 = vld [vmem:[%s2] sm:$0xf]
  %v81 = vlaneseq
  %v82 = vshrl.u32 %v81, 7
  %v83 = vsub.s32 0, %v82
  %v84 = vrot.slane %v79, %v83
  %v85 = vlaneseq
  %v86 = vshrl.u32 %v85, 7
  %v87 = vsub.s32 1, %v86
  %v88 = vrot.slane %v79, %v87
  %v89 = vlaneseq
  %v90 = vshrl.u32 %v89, 7
  %v91 = vsub.s32 2, %v90
  %v92 = vrot.slane %v79, %v91
  %v93 = vlaneseq
  %v94 = vshrl.u32 %v93, 7
  %v95 = vsub.s32 3, %v94
  %v96 = vrot.slane %v79, %v95
  %v133 = vunpack.c.l.b16 %v15
  %v134 = vunpack.c.l.b16 %v16
  %v135 = vunpack.c.l.b16 %v17
  %v136 = vunpack.c.l.b16 %v18
  %v137 = vunpack.c.l.b16 %v19
  %v138 = vunpack.c.l.b16 %v20
  %v139 = vunpack.c.l.b16 %v21
  %v140 = vunpack.c.l.b16 %v22
  %v141 = vunpack.c.l.b16 %v23
  %v142 = vunpack.c.l.b16 %v24
  %v143 = vunpack.c.l.b16 %v25
  %v144 = vunpack.c.l.b16 %v26
  %v145 = vunpack.c.l.b16 %v27
  %v146 = vunpack.c.l.b16 %v28
  %v147 = vunpack.c.l.b16 %v29
  %v148 = vunpack.c.l.b16 %v30
  %v149 = vunpack.c.l.b16 %v31
  %v150 = vunpack.c.l.b16 %v32
  %v151 = vunpack.c.l.b16 %v33
  %v152 = vunpack.c.l.b16 %v34
  %v153 = vunpack.c.l.b16 %v35
  %v154 = vunpack.c.l.b16 %v36
  %v155 = vunpack.c.l.b16 %v37
  %v156 = vunpack.c.l.b16 %v38
  %v157 = vunpack.c.l.b16 %v39
  %v158 = vunpack.c.l.b16 %v40
  %v159 = vunpack.c.l.b16 %v41
  %v160 = vunpack.c.l.b16 %v42
  %v161 = vunpack.c.l.b16 %v43
  %v162 = vunpack.c.l.b16 %v44
  %v163 = vunpack.c.l.b16 %v45
  %v164 = vunpack.c.l.b16 %v46
  %v165 = vpack.c.b16 %v134, %v133
  %v166 = vpack.c.b16 %v136, %v135
  %v167 = vpack.c.b16 %v138, %v137
  %v168 = vpack.c.b16 %v140, %v139
  %v169 = vpack.c.b16 %v142, %v141
  %v170 = vpack.c.b16 %v144, %v143
  %v171 = vpack.c.b16 %v146, %v145
  %v172 = vpack.c.b16 %v148, %v147
  %v173 = vpack.c.b16 %v150, %v149
  %v174 = vpack.c.b16 %v152, %v151
  %v175 = vpack.c.b16 %v154, %v153
  %v176 = vpack.c.b16 %v156, %v155
  %v177 = vpack.c.b16 %v158, %v157
  %v178 = vpack.c.b16 %v160, %v159
  %v179 = vpack.c.b16 %v162, %v161
  %v180 = vpack.c.b16 %v164, %v163
  %v229 = vunpack.c.l.b16 %v47
  %v230 = vunpack.c.h.b16 %v47
  %v231 = vunpack.c.l.b16 %v48
  %v232 = vunpack.c.h.b16 %v48
  %v233 = vunpack.c.l.b16 %v49
  %v234 = vunpack.c.h.b16 %v49
  %v235 = vunpack.c.l.b16 %v50
  %v236 = vunpack.c.h.b16 %v50
  %v237 = vunpack.c.l.b16 %v51
  %v238 = vunpack.c.h.b16 %v51
  %v239 = vunpack.c.l.b16 %v52
  %v240 = vunpack.c.h.b16 %v52
  %v241 = vunpack.c.l.b16 %v53
  %v242 = vunpack.c.h.b16 %v53
  %v243 = vunpack.c.l.b16 %v54
  %v244 = vunpack.c.h.b16 %v54
  %v245 = vunpack.c.l.b16 %v55
  %v246 = vunpack.c.h.b16 %v55
  %v247 = vunpack.c.l.b16 %v56
  %v248 = vunpack.c.h.b16 %v56
  %v249 = vunpack.c.l.b16 %v57
  %v250 = vunpack.c.h.b16 %v57
  %v251 = vunpack.c.l.b16 %v58
  %v252 = vunpack.c.h.b16 %v58
  %v253 = vunpack.c.l.b16 %v59
  %v254 = vunpack.c.h.b16 %v59
  %v255 = vunpack.c.l.b16 %v60
  %v256 = vunpack.c.h.b16 %v60
  %v257 = vunpack.c.l.b16 %v61
  %v258 = vunpack.c.h.b16 %v61
  %v259 = vunpack.c.l.b16 %v62
  %v260 = vunpack.c.h.b16 %v62
  %v261 = vunpack.c.l.b16 %v63
  %v262 = vunpack.c.h.b16 %v63
  %v263 = vunpack.c.l.b16 %v64
  %v264 = vunpack.c.h.b16 %v64
  %v265 = vunpack.c.l.b16 %v65
  %v266 = vunpack.c.h.b16 %v65
  %v267 = vunpack.c.l.b16 %v66
  %v268 = vunpack.c.h.b16 %v66
  %v269 = vunpack.c.l.b16 %v67
  %v270 = vunpack.c.h.b16 %v67
  %v271 = vunpack.c.l.b16 %v68
  %v272 = vunpack.c.h.b16 %v68
  %v273 = vunpack.c.l.b16 %v69
  %v274 = vunpack.c.h.b16 %v69
  %v275 = vunpack.c.l.b16 %v70
  %v276 = vunpack.c.h.b16 %v70
  %v277 = vunpack.c.l.b16 %v71
  %v278 = vunpack.c.h.b16 %v71
  %v279 = vunpack.c.l.b16 %v72
  %v280 = vunpack.c.h.b16 %v72
  %v281 = vunpack.c.l.b16 %v73
  %v282 = vunpack.c.h.b16 %v73
  %v283 = vunpack.c.l.b16 %v74
  %v284 = vunpack.c.h.b16 %v74
  %v285 = vunpack.c.l.b16 %v75
  %v286 = vunpack.c.h.b16 %v75
  %v287 = vunpack.c.l.b16 %v76
  %v288 = vunpack.c.h.b16 %v76
  %v289 = vunpack.c.l.b16 %v77
  %v290 = vunpack.c.h.b16 %v77
  %v291 = vunpack.c.l.b16 %v78
  %v292 = vunpack.c.h.b16 %v78
  %v293 = vpack.c.b16 %v233, %v229
  %v294 = vpack.c.b16 %v234, %v230
  %v295 = vpack.c.b16 %v235, %v231
  %v296 = vpack.c.b16 %v236, %v232
  %v297 = vpack.c.b16 %v241, %v237
  %v298 = vpack.c.b16 %v242, %v238
  %v299 = vpack.c.b16 %v243, %v239
  %v300 = vpack.c.b16 %v244, %v240
  %v301 = vpack.c.b16 %v249, %v245
  %v302 = vpack.c.b16 %v250, %v246
  %v303 = vpack.c.b16 %v251, %v247
  %v304 = vpack.c.b16 %v252, %v248
  %v305 = vpack.c.b16 %v257, %v253
  %v306 = vpack.c.b16 %v258, %v254
  %v307 = vpack.c.b16 %v259, %v255
  %v308 = vpack.c.b16 %v260, %v256
  %v309 = vpack.c.b16 %v265, %v261
  %v310 = vpack.c.b16 %v266, %v262
  %v311 = vpack.c.b16 %v267, %v263
  %v312 = vpack.c.b16 %v268, %v264
  %v313 = vpack.c.b16 %v273, %v269
  %v314 = vpack.c.b16 %v274, %v270
  %v315 = vpack.c.b16 %v275, %v271
  %v316 = vpack.c.b16 %v276, %v272
  %v317 = vpack.c.b16 %v281, %v277
  %v318 = vpack.c.b16 %v282, %v278
  %v319 = vpack.c.b16 %v283, %v279
  %v320 = vpack.c.b16 %v284, %v280
  %v321 = vpack.c.b16 %v289, %v285
  %v322 = vpack.c.b16 %v290, %v286
  %v323 = vpack.c.b16 %v291, %v287
  %v324 = vpack.c.b16 %v292, %v288
  %357 = vmatprep.subr.bf16.mxu0 %v322
  %358 = vmatpush1.bf16.msra.mxu0 %v321
  %359 = vmatprep.subr.bf16.mxu0 %v318
  %360 = vmatpush1.bf16.msra.mxu0 %v317
  %361 = vmatprep.subr.bf16.mxu0 %v314
  %362 = vmatpush1.bf16.msra.mxu0 %v313
  %363 = vmatprep.subr.bf16.mxu0 %v310
  %364 = vmatpush1.bf16.msra.mxu0 %v309
  %365 = vmatprep.subr.bf16.mxu0 %v306
  %366 = vmatpush1.bf16.msra.mxu0 %v305
  %367 = vmatprep.subr.bf16.mxu0 %v302
  %368 = vmatpush1.bf16.msra.mxu0 %v301
  %369 = vmatprep.subr.bf16.mxu0 %v298
  %370 = vmatpush1.bf16.msra.mxu0 %v297
  %371 = vmatprep.subr.bf16.mxu0 %v294
  %372 = vmatpush1.bf16.msra.mxu0 %v293
  %373 = vmatprep.subr.bf16.mxu0 0
  %374 = vmatpush2.bf16.msra.mxu0 0
  %375 = vmatprep.subr.bf16.mxu0 0
  %376 = vmatpush2.bf16.msra.mxu0 0
  %377 = vmatprep.subr.bf16.mxu0 0
  %378 = vmatpush2.bf16.msra.mxu0 0
  %379 = vmatprep.subr.bf16.mxu0 0
  %380 = vmatpush2.bf16.msra.mxu0 0
  %381 = vmatprep.subr.bf16.mxu0 0
  %382 = vmatpush2.bf16.msra.mxu0 0
  %383 = vmatprep.subr.bf16.mxu0 0
  %384 = vmatpush2.bf16.msra.mxu0 0
  %385 = vmatprep.subr.bf16.mxu0 0
  %386 = vmatpush2.bf16.msra.mxu0 0
  %387 = vmatprep.subr.bf16.mxu0 0
  %388 = vmatpush2.bf16.msra.mxu0 0
  %389 = vmatprep.mubr.bf16.mxu0 0
  %390 = vmatmul.mubr.bf16.gmra.mxu0 %v165
  %v391 = vpop.f32.mrf.mxu0
  %v392 = vadd.f32 %v84, %v391
  %v393 = vpop.f32.mrf.mxu0
  %v394 = vadd.f32 %v88, %v393
  %v395 = vpop.f32.mrf.mxu0
  %v396 = vadd.f32 %v84, %v395
  %v397 = vpop.f32.mrf.mxu0
  %v398 = vadd.f32 %v88, %v397
  %399 = vmatprep.mubr.bf16.mxu0 0
  %400 = vmatmul.mubr.bf16.gmra.mxu0 %v166
  %v401 = vpop.f32.mrf.mxu0
  %v402 = vadd.f32 %v84, %v401
  %v403 = vpop.f32.mrf.mxu0
  %v404 = vadd.f32 %v88, %v403
  %v405 = vpop.f32.mrf.mxu0
  %v406 = vadd.f32 %v84, %v405
  %v407 = vpop.f32.mrf.mxu0
  %v408 = vadd.f32 %v88, %v407
  %409 = vmatprep.mubr.bf16.mxu0 0
  %410 = vmatmul.mubr.bf16.gmra.mxu0 %v167
  %v411 = vpop.f32.mrf.mxu0
  %v412 = vadd.f32 %v84, %v411
  %v413 = vpop.f32.mrf.mxu0
  %v414 = vadd.f32 %v88, %v413
  %v415 = vpop.f32.mrf.mxu0
  %v416 = vadd.f32 %v84, %v415
  %v417 = vpop.f32.mrf.mxu0
  %v418 = vadd.f32 %v88, %v417
  %419 = vmatprep.mubr.bf16.mxu0 0
  %420 = vmatmul.mubr.bf16.gmra.mxu0 %v168
  %v421 = vpop.f32.mrf.mxu0
  %v422 = vadd.f32 %v84, %v421
  %v423 = vpop.f32.mrf.mxu0
  %v424 = vadd.f32 %v88, %v423
  %v425 = vpop.f32.mrf.mxu0
  %v426 = vadd.f32 %v84, %v425
  %v427 = vpop.f32.mrf.mxu0
  %v428 = vadd.f32 %v88, %v427
  %429 = vmatprep.mubr.bf16.mxu0 0
  %430 = vmatmul.mubr.bf16.gmra.mxu0 %v169
  %v431 = vpop.f32.mrf.mxu0
  %v432 = vadd.f32 %v84, %v431
  %v433 = vpop.f32.mrf.mxu0
  %v434 = vadd.f32 %v88, %v433
  %v435 = vpop.f32.mrf.mxu0
  %v436 = vadd.f32 %v84, %v435
  %v437 = vpop.f32.mrf.mxu0
  %v438 = vadd.f32 %v88, %v437
  %439 = vmatprep.mubr.bf16.mxu0 0
  %440 = vmatmul.mubr.bf16.gmra.mxu0 %v170
  %v441 = vpop.f32.mrf.mxu0
  %v442 = vadd.f32 %v84, %v441
  %v443 = vpop.f32.mrf.mxu0
  %v444 = vadd.f32 %v88, %v443
  %v445 = vpop.f32.mrf.mxu0
  %v446 = vadd.f32 %v84, %v445
  %v447 = vpop.f32.mrf.mxu0
  %v448 = vadd.f32 %v88, %v447
  %449 = vmatprep.mubr.bf16.mxu0 0
  %450 = vmatmul.mubr.bf16.gmra.mxu0 %v171
  %v451 = vpop.f32.mrf.mxu0
  %v452 = vadd.f32 %v84, %v451
  %v453 = vpop.f32.mrf.mxu0
  %v454 = vadd.f32 %v88, %v453
  %v455 = vpop.f32.mrf.mxu0
  %v456 = vadd.f32 %v84, %v455
  %v457 = vpop.f32.mrf.mxu0
  %v458 = vadd.f32 %v88, %v457
  %459 = vmatprep.mubr.bf16.mxu0 0
  %460 = vmatmul.mubr.bf16.gmra.mxu0 %v172
  %v461 = vpop.f32.mrf.mxu0
  %v462 = vadd.f32 %v84, %v461
  %v463 = vpop.f32.mrf.mxu0
  %v464 = vadd.f32 %v88, %v463
  %v465 = vpop.f32.mrf.mxu0
  %v466 = vadd.f32 %v84, %v465
  %v467 = vpop.f32.mrf.mxu0
  %v468 = vadd.f32 %v88, %v467
  %469 = vmatprep.mubr.bf16.mxu0 0
  %470 = vmatmul.mubr.bf16.gmra.mxu0 %v173
  %v471 = vpop.f32.mrf.mxu0
  %v472 = vadd.f32 %v84, %v471
  %v473 = vpop.f32.mrf.mxu0
  %v474 = vadd.f32 %v88, %v473
  %v475 = vpop.f32.mrf.mxu0
  %v476 = vadd.f32 %v84, %v475
  %v477 = vpop.f32.mrf.mxu0
  %v478 = vadd.f32 %v88, %v477
  %479 = vmatprep.mubr.bf16.mxu0 0
  %480 = vmatmul.mubr.bf16.gmra.mxu0 %v174
  %v481 = vpop.f32.mrf.mxu0
  %v482 = vadd.f32 %v84, %v481
  %v483 = vpop.f32.mrf.mxu0
  %v484 = vadd.f32 %v88, %v483
  %v485 = vpop.f32.mrf.mxu0
  %v486 = vadd.f32 %v84, %v485
  %v487 = vpop.f32.mrf.mxu0
  %v488 = vadd.f32 %v88, %v487
  %489 = vmatprep.mubr.bf16.mxu0 0
  %490 = vmatmul.mubr.bf16.gmra.mxu0 %v175
  %v491 = vpop.f32.mrf.mxu0
  %v492 = vadd.f32 %v84, %v491
  %v493 = vpop.f32.mrf.mxu0
  %v494 = vadd.f32 %v88, %v493
  %v495 = vpop.f32.mrf.mxu0
  %v496 = vadd.f32 %v84, %v495
  %v497 = vpop.f32.mrf.mxu0
  %v498 = vadd.f32 %v88, %v497
  %499 = vmatprep.mubr.bf16.mxu0 0
  %500 = vmatmul.mubr.bf16.gmra.mxu0 %v176
  %v501 = vpop.f32.mrf.mxu0
  %v502 = vadd.f32 %v84, %v501
  %v503 = vpop.f32.mrf.mxu0
  %v504 = vadd.f32 %v88, %v503
  %v505 = vpop.f32.mrf.mxu0
  %v506 = vadd.f32 %v84, %v505
  %v507 = vpop.f32.mrf.mxu0
  %v508 = vadd.f32 %v88, %v507
  %509 = vmatprep.mubr.bf16.mxu0 0
  %510 = vmatmul.mubr.bf16.gmra.mxu0 %v177
  %v511 = vpop.f32.mrf.mxu0
  %v512 = vadd.f32 %v84, %v511
  %v513 = vpop.f32.mrf.mxu0
  %v514 = vadd.f32 %v88, %v513
  %v515 = vpop.f32.mrf.mxu0
  %v516 = vadd.f32 %v84, %v515
  %v517 = vpop.f32.mrf.mxu0
  %v518 = vadd.f32 %v88, %v517
  %519 = vmatprep.mubr.bf16.mxu0 0
  %520 = vmatmul.mubr.bf16.gmra.mxu0 %v178
  %v521 = vpop.f32.mrf.mxu0
  %v522 = vadd.f32 %v84, %v521
  %v523 = vpop.f32.mrf.mxu0
  %v524 = vadd.f32 %v88, %v523
  %v525 = vpop.f32.mrf.mxu0
  %v526 = vadd.f32 %v84, %v525
  %v527 = vpop.f32.mrf.mxu0
  %v528 = vadd.f32 %v88, %v527
  %529 = vmatprep.mubr.bf16.mxu0 0
  %530 = vmatmul.mubr.bf16.gmra.mxu0 %v179
  %v531 = vpop.f32.mrf.mxu0
  %v532 = vadd.f32 %v84, %v531
  %v533 = vpop.f32.mrf.mxu0
  %v534 = vadd.f32 %v88, %v533
  %v535 = vpop.f32.mrf.mxu0
  %v536 = vadd.f32 %v84, %v535
  %v537 = vpop.f32.mrf.mxu0
  %v538 = vadd.f32 %v88, %v537
  %539 = vmatprep.mubr.bf16.mxu0 0
  %540 = vmatmul.mubr.bf16.gmra.mxu0 %v180
  %v541 = vpop.f32.mrf.mxu0
  %v542 = vadd.f32 %v84, %v541
  %v543 = vpop.f32.mrf.mxu0
  %v544 = vadd.f32 %v88, %v543
  %v545 = vpop.f32.mrf.mxu0
  %v546 = vadd.f32 %v84, %v545
  %v547 = vpop.f32.mrf.mxu0
  %v548 = vadd.f32 %v88, %v547
  %549 = vdwg.mxu0
  %550 = vmatprep.subr.bf16.mxu0 %v324
  %551 = vmatpush1.bf16.msra.mxu0 %v323
  %552 = vmatprep.subr.bf16.mxu0 %v320
  %553 = vmatpush1.bf16.msra.mxu0 %v319
  %554 = vmatprep.subr.bf16.mxu0 %v316
  %555 = vmatpush1.bf16.msra.mxu0 %v315
  %556 = vmatprep.subr.bf16.mxu0 %v312
  %557 = vmatpush1.bf16.msra.mxu0 %v311
  %558 = vmatprep.subr.bf16.mxu0 %v308
  %559 = vmatpush1.bf16.msra.mxu0 %v307
  %560 = vmatprep.subr.bf16.mxu0 %v304
  %561 = vmatpush1.bf16.msra.mxu0 %v303
  %562 = vmatprep.subr.bf16.mxu0 %v300
  %563 = vmatpush1.bf16.msra.mxu0 %v299
  %564 = vmatprep.subr.bf16.mxu0 %v296
  %565 = vmatpush1.bf16.msra.mxu0 %v295
  %566 = vmatprep.subr.bf16.mxu0 0
  %567 = vmatpush2.bf16.msra.mxu0 0
  %568 = vmatprep.subr.bf16.mxu0 0
  %569 = vmatpush2.bf16.msra.mxu0 0
  %570 = vmatprep.subr.bf16.mxu0 0
  %571 = vmatpush2.bf16.msra.mxu0 0
  %572 = vmatprep.subr.bf16.mxu0 0
  %573 = vmatpush2.bf16.msra.mxu0 0
  %574 = vmatprep.subr.bf16.mxu0 0
  %575 = vmatpush2.bf16.msra.mxu0 0
  %576 = vmatprep.subr.bf16.mxu0 0
  %577 = vmatpush2.bf16.msra.mxu0 0
  %578 = vmatprep.subr.bf16.mxu0 0
  %579 = vmatpush2.bf16.msra.mxu0 0
  %580 = vmatprep.subr.bf16.mxu0 0
  %581 = vmatpush2.bf16.msra.mxu0 0
  %582 = vmatprep.mubr.bf16.mxu0 0
  %583 = vmatmul.mubr.bf16.gmra.mxu0 %v165
  %v584 = vpop.f32.mrf.mxu0
  %v585 = vadd.f32 %v92, %v584
  %v586 = vpop.f32.mrf.mxu0
  %v587 = vadd.f32 %v96, %v586
  %v588 = vpop.f32.mrf.mxu0
  %v589 = vadd.f32 %v92, %v588
  %v590 = vpop.f32.mrf.mxu0
  %v591 = vadd.f32 %v96, %v590
  %592 = vmatprep.mubr.bf16.mxu0 0
  %593 = vmatmul.mubr.bf16.gmra.mxu0 %v166
  %v594 = vpop.f32.mrf.mxu0
  %v595 = vadd.f32 %v92, %v594
  %v596 = vpop.f32.mrf.mxu0
  %v597 = vadd.f32 %v96, %v596
  %v598 = vpop.f32.mrf.mxu0
  %v599 = vadd.f32 %v92, %v598
  %v600 = vpop.f32.mrf.mxu0
  %v601 = vadd.f32 %v96, %v600
  %602 = vmatprep.mubr.bf16.mxu0 0
  %603 = vmatmul.mubr.bf16.gmra.mxu0 %v167
  %v604 = vpop.f32.mrf.mxu0
  %v605 = vadd.f32 %v92, %v604
  %v606 = vpop.f32.mrf.mxu0
  %v607 = vadd.f32 %v96, %v606
  %v608 = vpop.f32.mrf.mxu0
  %v609 = vadd.f32 %v92, %v608
  %v610 = vpop.f32.mrf.mxu0
  %v611 = vadd.f32 %v96, %v610
  %612 = vmatprep.mubr.bf16.mxu0 0
  %613 = vmatmul.mubr.bf16.gmra.mxu0 %v168
  %v614 = vpop.f32.mrf.mxu0
  %v615 = vadd.f32 %v92, %v614
  %v616 = vpop.f32.mrf.mxu0
  %v617 = vadd.f32 %v96, %v616
  %v618 = vpop.f32.mrf.mxu0
  %v619 = vadd.f32 %v92, %v618
  %v620 = vpop.f32.mrf.mxu0
  %v621 = vadd.f32 %v96, %v620
  %622 = vmatprep.mubr.bf16.mxu0 0
  %623 = vmatmul.mubr.bf16.gmra.mxu0 %v169
  %v624 = vpop.f32.mrf.mxu0
  %v625 = vadd.f32 %v92, %v624
  %v626 = vpop.f32.mrf.mxu0
  %v627 = vadd.f32 %v96, %v626
  %v628 = vpop.f32.mrf.mxu0
  %v629 = vadd.f32 %v92, %v628
  %v630 = vpop.f32.mrf.mxu0
  %v631 = vadd.f32 %v96, %v630
  %632 = vmatprep.mubr.bf16.mxu0 0
  %633 = vmatmul.mubr.bf16.gmra.mxu0 %v170
  %v634 = vpop.f32.mrf.mxu0
  %v635 = vadd.f32 %v92, %v634
  %v636 = vpop.f32.mrf.mxu0
  %v637 = vadd.f32 %v96, %v636
  %v638 = vpop.f32.mrf.mxu0
  %v639 = vadd.f32 %v92, %v638
  %v640 = vpop.f32.mrf.mxu0
  %v641 = vadd.f32 %v96, %v640
  %642 = vmatprep.mubr.bf16.mxu0 0
  %643 = vmatmul.mubr.bf16.gmra.mxu0 %v171
  %v644 = vpop.f32.mrf.mxu0
  %v645 = vadd.f32 %v92, %v644
  %v646 = vpop.f32.mrf.mxu0
  %v647 = vadd.f32 %v96, %v646
  %v648 = vpop.f32.mrf.mxu0
  %v649 = vadd.f32 %v92, %v648
  %v650 = vpop.f32.mrf.mxu0
  %v651 = vadd.f32 %v96, %v650
  %652 = vmatprep.mubr.bf16.mxu0 0
  %653 = vmatmul.mubr.bf16.gmra.mxu0 %v172
  %v654 = vpop.f32.mrf.mxu0
  %v655 = vadd.f32 %v92, %v654
  %v656 = vpop.f32.mrf.mxu0
  %v657 = vadd.f32 %v96, %v656
  %v658 = vpop.f32.mrf.mxu0
  %v659 = vadd.f32 %v92, %v658
  %v660 = vpop.f32.mrf.mxu0
  %v661 = vadd.f32 %v96, %v660
  %662 = vmatprep.mubr.bf16.mxu0 0
  %663 = vmatmul.mubr.bf16.gmra.mxu0 %v173
  %v664 = vpop.f32.mrf.mxu0
  %v665 = vadd.f32 %v92, %v664
  %v666 = vpop.f32.mrf.mxu0
  %v667 = vadd.f32 %v96, %v666
  %v668 = vpop.f32.mrf.mxu0
  %v669 = vadd.f32 %v92, %v668
  %v670 = vpop.f32.mrf.mxu0
  %v671 = vadd.f32 %v96, %v670
  %672 = vmatprep.mubr.bf16.mxu0 0
  %673 = vmatmul.mubr.bf16.gmra.mxu0 %v174
  %v674 = vpop.f32.mrf.mxu0
  %v675 = vadd.f32 %v92, %v674
  %v676 = vpop.f32.mrf.mxu0
  %v677 = vadd.f32 %v96, %v676
  %v678 = vpop.f32.mrf.mxu0
  %v679 = vadd.f32 %v92, %v678
  %v680 = vpop.f32.mrf.mxu0
  %v681 = vadd.f32 %v96, %v680
  %682 = vmatprep.mubr.bf16.mxu0 0
  %683 = vmatmul.mubr.bf16.gmra.mxu0 %v175
  %v684 = vpop.f32.mrf.mxu0
  %v685 = vadd.f32 %v92, %v684
  %v686 = vpop.f32.mrf.mxu0
  %v687 = vadd.f32 %v96, %v686
  %v688 = vpop.f32.mrf.mxu0
  %v689 = vadd.f32 %v92, %v688
  %v690 = vpop.f32.mrf.mxu0
  %v691 = vadd.f32 %v96, %v690
  %692 = vmatprep.mubr.bf16.mxu0 0
  %693 = vmatmul.mubr.bf16.gmra.mxu0 %v176
  %v694 = vpop.f32.mrf.mxu0
  %v695 = vadd.f32 %v92, %v694
  %v696 = vpop.f32.mrf.mxu0
  %v697 = vadd.f32 %v96, %v696
  %v698 = vpop.f32.mrf.mxu0
  %v699 = vadd.f32 %v92, %v698
  %v700 = vpop.f32.mrf.mxu0
  %v701 = vadd.f32 %v96, %v700
  %702 = vmatprep.mubr.bf16.mxu0 0
  %703 = vmatmul.mubr.bf16.gmra.mxu0 %v177
  %v704 = vpop.f32.mrf.mxu0
  %v705 = vadd.f32 %v92, %v704
  %v706 = vpop.f32.mrf.mxu0
  %v707 = vadd.f32 %v96, %v706
  %v708 = vpop.f32.mrf.mxu0
  %v709 = vadd.f32 %v92, %v708
  %v710 = vpop.f32.mrf.mxu0
  %v711 = vadd.f32 %v96, %v710
  %712 = vmatprep.mubr.bf16.mxu0 0
  %713 = vmatmul.mubr.bf16.gmra.mxu0 %v178
  %v714 = vpop.f32.mrf.mxu0
  %v715 = vadd.f32 %v92, %v714
  %v716 = vpop.f32.mrf.mxu0
  %v717 = vadd.f32 %v96, %v716
  %v718 = vpop.f32.mrf.mxu0
  %v719 = vadd.f32 %v92, %v718
  %v720 = vpop.f32.mrf.mxu0
  %v721 = vadd.f32 %v96, %v720
  %722 = vmatprep.mubr.bf16.mxu0 0
  %723 = vmatmul.mubr.bf16.gmra.mxu0 %v179
  %v724 = vpop.f32.mrf.mxu0
  %v725 = vadd.f32 %v92, %v724
  %v726 = vpop.f32.mrf.mxu0
  %v727 = vadd.f32 %v96, %v726
  %v728 = vpop.f32.mrf.mxu0
  %v729 = vadd.f32 %v92, %v728
  %v730 = vpop.f32.mrf.mxu0
  %v731 = vadd.f32 %v96, %v730
  %732 = vmatprep.mubr.bf16.mxu0 0
  %733 = vmatmul.mubr.bf16.gmra.mxu0 %v180
  %v734 = vpop.f32.mrf.mxu0
  %v735 = vadd.f32 %v92, %v734
  %v736 = vpop.f32.mrf.mxu0
  %v737 = vadd.f32 %v96, %v736
  %v738 = vpop.f32.mrf.mxu0
  %v739 = vadd.f32 %v92, %v738
  %v740 = vpop.f32.mrf.mxu0
  %v741 = vadd.f32 %v96, %v740
  %742 = vdwg.mxu0
  %v743 = vmul.f32 %v392, 0.5
  %v744 = vmul.f32 %v394, 0.5
  %v745 = vmul.f32 %v585, 0.5
  %v746 = vmul.f32 %v587, 0.5
  %v747 = vmul.f32 %v396, 0.5
  %v748 = vmul.f32 %v398, 0.5
  %v749 = vmul.f32 %v589, 0.5
  %v750 = vmul.f32 %v591, 0.5
  %v751 = vmul.f32 %v402, 0.5
  %v752 = vmul.f32 %v404, 0.5
  %v753 = vmul.f32 %v595, 0.5
  %v754 = vmul.f32 %v597, 0.5
  %v755 = vmul.f32 %v406, 0.5
  %v756 = vmul.f32 %v408, 0.5
  %v757 = vmul.f32 %v599, 0.5
  %v758 = vmul.f32 %v601, 0.5
  %v759 = vmul.f32 %v412, 0.5
  %v760 = vmul.f32 %v414, 0.5
  %v761 = vmul.f32 %v605, 0.5
  %v762 = vmul.f32 %v607, 0.5
  %v763 = vmul.f32 %v416, 0.5
  %v764 = vmul.f32 %v418, 0.5
  %v765 = vmul.f32 %v609, 0.5
  %v766 = vmul.f32 %v611, 0.5
  %v767 = vmul.f32 %v422, 0.5
  %v768 = vmul.f32 %v424, 0.5
  %v769 = vmul.f32 %v615, 0.5
  %v770 = vmul.f32 %v617, 0.5
  %v771 = vmul.f32 %v426, 0.5
  %v772 = vmul.f32 %v428, 0.5
  %v773 = vmul.f32 %v619, 0.5
  %v774 = vmul.f32 %v621, 0.5
  %v775 = vmul.f32 %v432, 0.5
  %v776 = vmul.f32 %v434, 0.5
  %v777 = vmul.f32 %v625, 0.5
  %v778 = vmul.f32 %v627, 0.5
  %v779 = vmul.f32 %v436, 0.5
  %v780 = vmul.f32 %v438, 0.5
  %v781 = vmul.f32 %v629, 0.5
  %v782 = vmul.f32 %v631, 0.5
  %v783 = vmul.f32 %v442, 0.5
  %v784 = vmul.f32 %v444, 0.5
  %v785 = vmul.f32 %v635, 0.5
  %v786 = vmul.f32 %v637, 0.5
  %v787 = vmul.f32 %v446, 0.5
  %v788 = vmul.f32 %v448, 0.5
  %v789 = vmul.f32 %v639, 0.5
  %v790 = vmul.f32 %v641, 0.5
  %v791 = vmul.f32 %v452, 0.5
  %v792 = vmul.f32 %v454, 0.5
  %v793 = vmul.f32 %v645, 0.5
  %v794 = vmul.f32 %v647, 0.5
  %v795 = vmul.f32 %v456, 0.5
  %v796 = vmul.f32 %v458, 0.5
  %v797 = vmul.f32 %v649, 0.5
  %v798 = vmul.f32 %v651, 0.5
  %v799 = vmul.f32 %v462, 0.5
  %v800 = vmul.f32 %v464, 0.5
  %v801 = vmul.f32 %v655, 0.5
  %v802 = vmul.f32 %v657, 0.5
  %v803 = vmul.f32 %v466, 0.5
  %v804 = vmul.f32 %v468, 0.5
  %v805 = vmul.f32 %v659, 0.5
  %v806 = vmul.f32 %v661, 0.5
  %v807 = vmul.f32 %v472, 0.5
  %v808 = vmul.f32 %v474, 0.5
  %v809 = vmul.f32 %v665, 0.5
  %v810 = vmul.f32 %v667, 0.5
  %v811 = vmul.f32 %v476, 0.5
  %v812 = vmul.f32 %v478, 0.5
  %v813 = vmul.f32 %v669, 0.5
  %v814 = vmul.f32 %v671, 0.5
  %v815 = vmul.f32 %v482, 0.5
  %v816 = vmul.f32 %v484, 0.5
  %v817 = vmul.f32 %v675, 0.5
  %v818 = vmul.f32 %v677, 0.5
  %v819 = vmul.f32 %v486, 0.5
  %v820 = vmul.f32 %v488, 0.5
  %v821 = vmul.f32 %v679, 0.5
  %v822 = vmul.f32 %v681, 0.5
  %v823 = vmul.f32 %v492, 0.5
  %v824 = vmul.f32 %v494, 0.5
  %v825 = vmul.f32 %v685, 0.5
  %v826 = vmul.f32 %v687, 0.5
  %v827 = vmul.f32 %v496, 0.5
  %v828 = vmul.f32 %v498, 0.5
  %v829 = vmul.f32 %v689, 0.5
  %v830 = vmul.f32 %v691, 0.5
  %v831 = vmul.f32 %v502, 0.5
  %v832 = vmul.f32 %v504, 0.5
  %v833 = vmul.f32 %v695, 0.5
  %v834 = vmul.f32 %v697, 0.5
  %v835 = vmul.f32 %v506, 0.5
  %v836 = vmul.f32 %v508, 0.5
  %v837 = vmul.f32 %v699, 0.5
  %v838 = vmul.f32 %v701, 0.5
  %v839 = vmul.f32 %v512, 0.5
  %v840 = vmul.f32 %v514, 0.5
  %v841 = vmul.f32 %v705, 0.5
  %v842 = vmul.f32 %v707, 0.5
  %v843 = vmul.f32 %v516, 0.5
  %v844 = vmul.f32 %v518, 0.5
  %v845 = vmul.f32 %v709, 0.5
  %v846 = vmul.f32 %v711, 0.5
  %v847 = vmul.f32 %v522, 0.5
  %v848 = vmul.f32 %v524, 0.5
  %v849 = vmul.f32 %v715, 0.5
  %v850 = vmul.f32 %v717, 0.5
  %v851 = vmul.f32 %v526, 0.5
  %v852 = vmul.f32 %v528, 0.5
  %v853 = vmul.f32 %v719, 0.5
  %v854 = vmul.f32 %v721, 0.5
  %v855 = vmul.f32 %v532, 0.5
  %v856 = vmul.f32 %v534, 0.5
  %v857 = vmul.f32 %v725, 0.5
  %v858 = vmul.f32 %v727, 0.5
  %v859 = vmul.f32 %v536, 0.5
  %v860 = vmul.f32 %v538, 0.5
  %v861 = vmul.f32 %v729, 0.5
  %v862 = vmul.f32 %v731, 0.5
  %v863 = vmul.f32 %v542, 0.5
  %v864 = vmul.f32 %v544, 0.5
  %v865 = vmul.f32 %v735, 0.5
  %v866 = vmul.f32 %v737, 0.5
  %v867 = vmul.f32 %v546, 0.5
  %v868 = vmul.f32 %v548, 0.5
  %v869 = vmul.f32 %v739, 0.5
  %v870 = vmul.f32 %v741, 0.5
  %v871 = vmul.f32 %v392, 0.044715
  %v872 = vmul.f32 %v394, 0.044715
  %v873 = vmul.f32 %v585, 0.044715
  %v874 = vmul.f32 %v587, 0.044715
  %v875 = vmul.f32 %v396, 0.044715
  %v876 = vmul.f32 %v398, 0.044715
  %v877 = vmul.f32 %v589, 0.044715
  %v878 = vmul.f32 %v591, 0.044715
  %v879 = vmul.f32 %v402, 0.044715
  %v880 = vmul.f32 %v404, 0.044715
  %v881 = vmul.f32 %v595, 0.044715
  %v882 = vmul.f32 %v597, 0.044715
  %v883 = vmul.f32 %v406, 0.044715
  %v884 = vmul.f32 %v408, 0.044715
  %v885 = vmul.f32 %v599, 0.044715
  %v886 = vmul.f32 %v601, 0.044715
  %v887 = vmul.f32 %v412, 0.044715
  %v888 = vmul.f32 %v414, 0.044715
  %v889 = vmul.f32 %v605, 0.044715
  %v890 = vmul.f32 %v607, 0.044715
  %v891 = vmul.f32 %v416, 0.044715
  %v892 = vmul.f32 %v418, 0.044715
  %v893 = vmul.f32 %v609, 0.044715
  %v894 = vmul.f32 %v611, 0.044715
  %v895 = vmul.f32 %v422, 0.044715
  %v896 = vmul.f32 %v424, 0.044715
  %v897 = vmul.f32 %v615, 0.044715
  %v898 = vmul.f32 %v617, 0.044715
  %v899 = vmul.f32 %v426, 0.044715
  %v900 = vmul.f32 %v428, 0.044715
  %v901 = vmul.f32 %v619, 0.044715
  %v902 = vmul.f32 %v621, 0.044715
  %v903 = vmul.f32 %v432, 0.044715
  %v904 = vmul.f32 %v434, 0.044715
  %v905 = vmul.f32 %v625, 0.044715
  %v906 = vmul.f32 %v627, 0.044715
  %v907 = vmul.f32 %v436, 0.044715
  %v908 = vmul.f32 %v438, 0.044715
  %v909 = vmul.f32 %v629, 0.044715
  %v910 = vmul.f32 %v631, 0.044715
  %v911 = vmul.f32 %v442, 0.044715
  %v912 = vmul.f32 %v444, 0.044715
  %v913 = vmul.f32 %v635, 0.044715
  %v914 = vmul.f32 %v637, 0.044715
  %v915 = vmul.f32 %v446, 0.044715
  %v916 = vmul.f32 %v448, 0.044715
  %v917 = vmul.f32 %v639, 0.044715
  %v918 = vmul.f32 %v641, 0.044715
  %v919 = vmul.f32 %v452, 0.044715
  %v920 = vmul.f32 %v454, 0.044715
  %v921 = vmul.f32 %v645, 0.044715
  %v922 = vmul.f32 %v647, 0.044715
  %v923 = vmul.f32 %v456, 0.044715
  %v924 = vmul.f32 %v458, 0.044715
  %v925 = vmul.f32 %v649, 0.044715
  %v926 = vmul.f32 %v651, 0.044715
  %v927 = vmul.f32 %v462, 0.044715
  %v928 = vmul.f32 %v464, 0.044715
  %v929 = vmul.f32 %v655, 0.044715
  %v930 = vmul.f32 %v657, 0.044715
  %v931 = vmul.f32 %v466, 0.044715
  %v932 = vmul.f32 %v468, 0.044715
  %v933 = vmul.f32 %v659, 0.044715
  %v934 = vmul.f32 %v661, 0.044715
  %v935 = vmul.f32 %v472, 0.044715
  %v936 = vmul.f32 %v474, 0.044715
  %v937 = vmul.f32 %v665, 0.044715
  %v938 = vmul.f32 %v667, 0.044715
  %v939 = vmul.f32 %v476, 0.044715
  %v940 = vmul.f32 %v478, 0.044715
  %v941 = vmul.f32 %v669, 0.044715
  %v942 = vmul.f32 %v671, 0.044715
  %v943 = vmul.f32 %v482, 0.044715
  %v944 = vmul.f32 %v484, 0.044715
  %v945 = vmul.f32 %v675, 0.044715
  %v946 = vmul.f32 %v677, 0.044715
  %v947 = vmul.f32 %v486, 0.044715
  %v948 = vmul.f32 %v488, 0.044715
  %v949 = vmul.f32 %v679, 0.044715
  %v950 = vmul.f32 %v681, 0.044715
  %v951 = vmul.f32 %v492, 0.044715
  %v952 = vmul.f32 %v494, 0.044715
  %v953 = vmul.f32 %v685, 0.044715
  %v954 = vmul.f32 %v687, 0.044715
  %v955 = vmul.f32 %v496, 0.044715
  %v956 = vmul.f32 %v498, 0.044715
  %v957 = vmul.f32 %v689, 0.044715
  %v958 = vmul.f32 %v691, 0.044715
  %v959 = vmul.f32 %v502, 0.044715
  %v960 = vmul.f32 %v504, 0.044715
  %v961 = vmul.f32 %v695, 0.044715
  %v962 = vmul.f32 %v697, 0.044715
  %v963 = vmul.f32 %v506, 0.044715
  %v964 = vmul.f32 %v508, 0.044715
  %v965 = vmul.f32 %v699, 0.044715
  %v966 = vmul.f32 %v701, 0.044715
  %v967 = vmul.f32 %v512, 0.044715
  %v968 = vmul.f32 %v514, 0.044715
  %v969 = vmul.f32 %v705, 0.044715
  %v970 = vmul.f32 %v707, 0.044715
  %v971 = vmul.f32 %v516, 0.044715
  %v972 = vmul.f32 %v518, 0.044715
  %v973 = vmul.f32 %v709, 0.044715
  %v974 = vmul.f32 %v711, 0.044715
  %v975 = vmul.f32 %v522, 0.044715
  %v976 = vmul.f32 %v524, 0.044715
  %v977 = vmul.f32 %v715, 0.044715
  %v978 = vmul.f32 %v717, 0.044715
  %v979 = vmul.f32 %v526, 0.044715
  %v980 = vmul.f32 %v528, 0.044715
  %v981 = vmul.f32 %v719, 0.044715
  %v982 = vmul.f32 %v721, 0.044715
  %v983 = vmul.f32 %v532, 0.044715
  %v984 = vmul.f32 %v534, 0.044715
  %v985 = vmul.f32 %v725, 0.044715
  %v986 = vmul.f32 %v727, 0.044715
  %v987 = vmul.f32 %v536, 0.044715
  %v988 = vmul.f32 %v538, 0.044715
  %v989 = vmul.f32 %v729, 0.044715
  %v990 = vmul.f32 %v731, 0.044715
  %v991 = vmul.f32 %v542, 0.044715
  %v992 = vmul.f32 %v544, 0.044715
  %v993 = vmul.f32 %v735, 0.044715
  %v994 = vmul.f32 %v737, 0.044715
  %v995 = vmul.f32 %v546, 0.044715
  %v996 = vmul.f32 %v548, 0.044715
  %v997 = vmul.f32 %v739, 0.044715
  %v998 = vmul.f32 %v741, 0.044715
  %v999 = vmul.f32 %v871, %v392
  %v1000 = vmul.f32 %v872, %v394
  %v1001 = vmul.f32 %v873, %v585
  %v1002 = vmul.f32 %v874, %v587
  %v1003 = vmul.f32 %v875, %v396
  %v1004 = vmul.f32 %v876, %v398
  %v1005 = vmul.f32 %v877, %v589
  %v1006 = vmul.f32 %v878, %v591
  %v1007 = vmul.f32 %v879, %v402
  %v1008 = vmul.f32 %v880, %v404
  %v1009 = vmul.f32 %v881, %v595
  %v1010 = vmul.f32 %v882, %v597
  %v1011 = vmul.f32 %v883, %v406
  %v1012 = vmul.f32 %v884, %v408
  %v1013 = vmul.f32 %v885, %v599
  %v1014 = vmul.f32 %v886, %v601
  %v1015 = vmul.f32 %v887, %v412
  %v1016 = vmul.f32 %v888, %v414
  %v1017 = vmul.f32 %v889, %v605
  %v1018 = vmul.f32 %v890, %v607
  %v1019 = vmul.f32 %v891, %v416
  %v1020 = vmul.f32 %v892, %v418
  %v1021 = vmul.f32 %v893, %v609
  %v1022 = vmul.f32 %v894, %v611
  %v1023 = vmul.f32 %v895, %v422
  %v1024 = vmul.f32 %v896, %v424
  %v1025 = vmul.f32 %v897, %v615
  %v1026 = vmul.f32 %v898, %v617
  %v1027 = vmul.f32 %v899, %v426
  %v1028 = vmul.f32 %v900, %v428
  %v1029 = vmul.f32 %v901, %v619
  %v1030 = vmul.f32 %v902, %v621
  %v1031 = vmul.f32 %v903, %v432
  %v1032 = vmul.f32 %v904, %v434
  %v1033 = vmul.f32 %v905, %v625
  %v1034 = vmul.f32 %v906, %v627
  %v1035 = vmul.f32 %v907, %v436
  %v1036 = vmul.f32 %v908, %v438
  %v1037 = vmul.f32 %v909, %v629
  %v1038 = vmul.f32 %v910, %v631
  %v1039 = vmul.f32 %v911, %v442
  %v1040 = vmul.f32 %v912, %v444
  %v1041 = vmul.f32 %v913, %v635
  %v1042 = vmul.f32 %v914, %v637
  %v1043 = vmul.f32 %v915, %v446
  %v1044 = vmul.f32 %v916, %v448
  %v1045 = vmul.f32 %v917, %v639
  %v1046 = vmul.f32 %v918, %v641
  %v1047 = vmul.f32 %v919, %v452
  %v1048 = vmul.f32 %v920, %v454
  %v1049 = vmul.f32 %v921, %v645
  %v1050 = vmul.f32 %v922, %v647
  %v1051 = vmul.f32 %v923, %v456
  %v1052 = vmul.f32 %v924, %v458
  %v1053 = vmul.f32 %v925, %v649
  %v1054 = vmul.f32 %v926, %v651
  %v1055 = vmul.f32 %v927, %v462
  %v1056 = vmul.f32 %v928, %v464
  %v1057 = vmul.f32 %v929, %v655
  %v1058 = vmul.f32 %v930, %v657
  %v1059 = vmul.f32 %v931, %v466
  %v1060 = vmul.f32 %v932, %v468
  %v1061 = vmul.f32 %v933, %v659
  %v1062 = vmul.f32 %v934, %v661
  %v1063 = vmul.f32 %v935, %v472
  %v1064 = vmul.f32 %v936, %v474
  %v1065 = vmul.f32 %v937, %v665
  %v1066 = vmul.f32 %v938, %v667
  %v1067 = vmul.f32 %v939, %v476
  %v1068 = vmul.f32 %v940, %v478
  %v1069 = vmul.f32 %v941, %v669
  %v1070 = vmul.f32 %v942, %v671
  %v1071 = vmul.f32 %v943, %v482
  %v1072 = vmul.f32 %v944, %v484
  %v1073 = vmul.f32 %v945, %v675
  %v1074 = vmul.f32 %v946, %v677
  %v1075 = vmul.f32 %v947, %v486
  %v1076 = vmul.f32 %v948, %v488
  %v1077 = vmul.f32 %v949, %v679
  %v1078 = vmul.f32 %v950, %v681
  %v1079 = vmul.f32 %v951, %v492
  %v1080 = vmul.f32 %v952, %v494
  %v1081 = vmul.f32 %v953, %v685
  %v1082 = vmul.f32 %v954, %v687
  %v1083 = vmul.f32 %v955, %v496
  %v1084 = vmul.f32 %v956, %v498
  %v1085 = vmul.f32 %v957, %v689
  %v1086 = vmul.f32 %v958, %v691
  %v1087 = vmul.f32 %v959, %v502
  %v1088 = vmul.f32 %v960, %v504
  %v1089 = vmul.f32 %v961, %v695
  %v1090 = vmul.f32 %v962, %v697
  %v1091 = vmul.f32 %v963, %v506
  %v1092 = vmul.f32 %v964, %v508
  %v1093 = vmul.f32 %v965, %v699
  %v1094 = vmul.f32 %v966, %v701
  %v1095 = vmul.f32 %v967, %v512
  %v1096 = vmul.f32 %v968, %v514
  %v1097 = vmul.f32 %v969, %v705
  %v1098 = vmul.f32 %v970, %v707
  %v1099 = vmul.f32 %v971, %v516
  %v1100 = vmul.f32 %v972, %v518
  %v1101 = vmul.f32 %v973, %v709
  %v1102 = vmul.f32 %v974, %v711
  %v1103 = vmul.f32 %v975, %v522
  %v1104 = vmul.f32 %v976, %v524
  %v1105 = vmul.f32 %v977, %v715
  %v1106 = vmul.f32 %v978, %v717
  %v1107 = vmul.f32 %v979, %v526
  %v1108 = vmul.f32 %v980, %v528
  %v1109 = vmul.f32 %v981, %v719
  %v1110 = vmul.f32 %v982, %v721
  %v1111 = vmul.f32 %v983, %v532
  %v1112 = vmul.f32 %v984, %v534
  %v1113 = vmul.f32 %v985, %v725
  %v1114 = vmul.f32 %v986, %v727
  %v1115 = vmul.f32 %v987, %v536
  %v1116 = vmul.f32 %v988, %v538
  %v1117 = vmul.f32 %v989, %v729
  %v1118 = vmul.f32 %v990, %v731
  %v1119 = vmul.f32 %v991, %v542
  %v1120 = vmul.f32 %v992, %v544
  %v1121 = vmul.f32 %v993, %v735
  %v1122 = vmul.f32 %v994, %v737
  %v1123 = vmul.f32 %v995, %v546
  %v1124 = vmul.f32 %v996, %v548
  %v1125 = vmul.f32 %v997, %v739
  %v1126 = vmul.f32 %v998, %v741
  %v1127 = vmul.f32 %v999, %v392
  %v1128 = vmul.f32 %v1000, %v394
  %v1129 = vmul.f32 %v1001, %v585
  %v1130 = vmul.f32 %v1002, %v587
  %v1131 = vmul.f32 %v1003, %v396
  %v1132 = vmul.f32 %v1004, %v398
  %v1133 = vmul.f32 %v1005, %v589
  %v1134 = vmul.f32 %v1006, %v591
  %v1135 = vmul.f32 %v1007, %v402
  %v1136 = vmul.f32 %v1008, %v404
  %v1137 = vmul.f32 %v1009, %v595
  %v1138 = vmul.f32 %v1010, %v597
  %v1139 = vmul.f32 %v1011, %v406
  %v1140 = vmul.f32 %v1012, %v408
  %v1141 = vmul.f32 %v1013, %v599
  %v1142 = vmul.f32 %v1014, %v601
  %v1143 = vmul.f32 %v1015, %v412
  %v1144 = vmul.f32 %v1016, %v414
  %v1145 = vmul.f32 %v1017, %v605
  %v1146 = vmul.f32 %v1018, %v607
  %v1147 = vmul.f32 %v1019, %v416
  %v1148 = vmul.f32 %v1020, %v418
  %v1149 = vmul.f32 %v1021, %v609
  %v1150 = vmul.f32 %v1022, %v611
  %v1151 = vmul.f32 %v1023, %v422
  %v1152 = vmul.f32 %v1024, %v424
  %v1153 = vmul.f32 %v1025, %v615
  %v1154 = vmul.f32 %v1026, %v617
  %v1155 = vmul.f32 %v1027, %v426
  %v1156 = vmul.f32 %v1028, %v428
  %v1157 = vmul.f32 %v1029, %v619
  %v1158 = vmul.f32 %v1030, %v621
  %v1159 = vmul.f32 %v1031, %v432
  %v1160 = vmul.f32 %v1032, %v434
  %v1161 = vmul.f32 %v1033, %v625
  %v1162 = vmul.f32 %v1034, %v627
  %v1163 = vmul.f32 %v1035, %v436
  %v1164 = vmul.f32 %v1036, %v438
  %v1165 = vmul.f32 %v1037, %v629
  %v1166 = vmul.f32 %v1038, %v631
  %v1167 = vmul.f32 %v1039, %v442
  %v1168 = vmul.f32 %v1040, %v444
  %v1169 = vmul.f32 %v1041, %v635
  %v1170 = vmul.f32 %v1042, %v637
  %v1171 = vmul.f32 %v1043, %v446
  %v1172 = vmul.f32 %v1044, %v448
  %v1173 = vmul.f32 %v1045, %v639
  %v1174 = vmul.f32 %v1046, %v641
  %v1175 = vmul.f32 %v1047, %v452
  %v1176 = vmul.f32 %v1048, %v454
  %v1177 = vmul.f32 %v1049, %v645
  %v1178 = vmul.f32 %v1050, %v647
  %v1179 = vmul.f32 %v1051, %v456
  %v1180 = vmul.f32 %v1052, %v458
  %v1181 = vmul.f32 %v1053, %v649
  %v1182 = vmul.f32 %v1054, %v651
  %v1183 = vmul.f32 %v1055, %v462
  %v1184 = vmul.f32 %v1056, %v464
  %v1185 = vmul.f32 %v1057, %v655
  %v1186 = vmul.f32 %v1058, %v657
  %v1187 = vmul.f32 %v1059, %v466
  %v1188 = vmul.f32 %v1060, %v468
  %v1189 = vmul.f32 %v1061, %v659
  %v1190 = vmul.f32 %v1062, %v661
  %v1191 = vmul.f32 %v1063, %v472
  %v1192 = vmul.f32 %v1064, %v474
  %v1193 = vmul.f32 %v1065, %v665
  %v1194 = vmul.f32 %v1066, %v667
  %v1195 = vmul.f32 %v1067, %v476
  %v1196 = vmul.f32 %v1068, %v478
  %v1197 = vmul.f32 %v1069, %v669
  %v1198 = vmul.f32 %v1070, %v671
  %v1199 = vmul.f32 %v1071, %v482
  %v1200 = vmul.f32 %v1072, %v484
  %v1201 = vmul.f32 %v1073, %v675
  %v1202 = vmul.f32 %v1074, %v677
  %v1203 = vmul.f32 %v1075, %v486
  %v1204 = vmul.f32 %v1076, %v488
  %v1205 = vmul.f32 %v1077, %v679
  %v1206 = vmul.f32 %v1078, %v681
  %v1207 = vmul.f32 %v1079, %v492
  %v1208 = vmul.f32 %v1080, %v494
  %v1209 = vmul.f32 %v1081, %v685
  %v1210 = vmul.f32 %v1082, %v687
  %v1211 = vmul.f32 %v1083, %v496
  %v1212 = vmul.f32 %v1084, %v498
  %v1213 = vmul.f32 %v1085, %v689
  %v1214 = vmul.f32 %v1086, %v691
  %v1215 = vmul.f32 %v1087, %v502
  %v1216 = vmul.f32 %v1088, %v504
  %v1217 = vmul.f32 %v1089, %v695
  %v1218 = vmul.f32 %v1090, %v697
  %v1219 = vmul.f32 %v1091, %v506
  %v1220 = vmul.f32 %v1092, %v508
  %v1221 = vmul.f32 %v1093, %v699
  %v1222 = vmul.f32 %v1094, %v701
  %v1223 = vmul.f32 %v1095, %v512
  %v1224 = vmul.f32 %v1096, %v514
  %v1225 = vmul.f32 %v1097, %v705
  %v1226 = vmul.f32 %v1098, %v707
  %v1227 = vmul.f32 %v1099, %v516
  %v1228 = vmul.f32 %v1100, %v518
  %v1229 = vmul.f32 %v1101, %v709
  %v1230 = vmul.f32 %v1102, %v711
  %v1231 = vmul.f32 %v1103, %v522
  %v1232 = vmul.f32 %v1104, %v524
  %v1233 = vmul.f32 %v1105, %v715
  %v1234 = vmul.f32 %v1106, %v717
  %v1235 = vmul.f32 %v1107, %v526
  %v1236 = vmul.f32 %v1108, %v528
  %v1237 = vmul.f32 %v1109, %v719
  %v1238 = vmul.f32 %v1110, %v721
  %v1239 = vmul.f32 %v1111, %v532
  %v1240 = vmul.f32 %v1112, %v534
  %v1241 = vmul.f32 %v1113, %v725
  %v1242 = vmul.f32 %v1114, %v727
  %v1243 = vmul.f32 %v1115, %v536
  %v1244 = vmul.f32 %v1116, %v538
  %v1245 = vmul.f32 %v1117, %v729
  %v1246 = vmul.f32 %v1118, %v731
  %v1247 = vmul.f32 %v1119, %v542
  %v1248 = vmul.f32 %v1120, %v544
  %v1249 = vmul.f32 %v1121, %v735
  %v1250 = vmul.f32 %v1122, %v737
  %v1251 = vmul.f32 %v1123, %v546
  %v1252 = vmul.f32 %v1124, %v548
  %v1253 = vmul.f32 %v1125, %v739
  %v1254 = vmul.f32 %v1126, %v741
  %v1255 = vadd.f32 %v392, %v1127
  %v1256 = vadd.f32 %v394, %v1128
  %v1257 = vadd.f32 %v585, %v1129
  %v1258 = vadd.f32 %v587, %v1130
  %v1259 = vadd.f32 %v396, %v1131
  %v1260 = vadd.f32 %v398, %v1132
  %v1261 = vadd.f32 %v589, %v1133
  %v1262 = vadd.f32 %v591, %v1134
  %v1263 = vadd.f32 %v402, %v1135
  %v1264 = vadd.f32 %v404, %v1136
  %v1265 = vadd.f32 %v595, %v1137
  %v1266 = vadd.f32 %v597, %v1138
  %v1267 = vadd.f32 %v406, %v1139
  %v1268 = vadd.f32 %v408, %v1140
  %v1269 = vadd.f32 %v599, %v1141
  %v1270 = vadd.f32 %v601, %v1142
  %v1271 = vadd.f32 %v412, %v1143
  %v1272 = vadd.f32 %v414, %v1144
  %v1273 = vadd.f32 %v605, %v1145
  %v1274 = vadd.f32 %v607, %v1146
  %v1275 = vadd.f32 %v416, %v1147
  %v1276 = vadd.f32 %v418, %v1148
  %v1277 = vadd.f32 %v609, %v1149
  %v1278 = vadd.f32 %v611, %v1150
  %v1279 = vadd.f32 %v422, %v1151
  %v1280 = vadd.f32 %v424, %v1152
  %v1281 = vadd.f32 %v615, %v1153
  %v1282 = vadd.f32 %v617, %v1154
  %v1283 = vadd.f32 %v426, %v1155
  %v1284 = vadd.f32 %v428, %v1156
  %v1285 = vadd.f32 %v619, %v1157
  %v1286 = vadd.f32 %v621, %v1158
  %v1287 = vadd.f32 %v432, %v1159
  %v1288 = vadd.f32 %v434, %v1160
  %v1289 = vadd.f32 %v625, %v1161
  %v1290 = vadd.f32 %v627, %v1162
  %v1291 = vadd.f32 %v436, %v1163
  %v1292 = vadd.f32 %v438, %v1164
  %v1293 = vadd.f32 %v629, %v1165
  %v1294 = vadd.f32 %v631, %v1166
  %v1295 = vadd.f32 %v442, %v1167
  %v1296 = vadd.f32 %v444, %v1168
  %v1297 = vadd.f32 %v635, %v1169
  %v1298 = vadd.f32 %v637, %v1170
  %v1299 = vadd.f32 %v446, %v1171
  %v1300 = vadd.f32 %v448, %v1172
  %v1301 = vadd.f32 %v639, %v1173
  %v1302 = vadd.f32 %v641, %v1174
  %v1303 = vadd.f32 %v452, %v1175
  %v1304 = vadd.f32 %v454, %v1176
  %v1305 = vadd.f32 %v645, %v1177
  %v1306 = vadd.f32 %v647, %v1178
  %v1307 = vadd.f32 %v456, %v1179
  %v1308 = vadd.f32 %v458, %v1180
  %v1309 = vadd.f32 %v649, %v1181
  %v1310 = vadd.f32 %v651, %v1182
  %v1311 = vadd.f32 %v462, %v1183
  %v1312 = vadd.f32 %v464, %v1184
  %v1313 = vadd.f32 %v655, %v1185
  %v1314 = vadd.f32 %v657, %v1186
  %v1315 = vadd.f32 %v466, %v1187
  %v1316 = vadd.f32 %v468, %v1188
  %v1317 = vadd.f32 %v659, %v1189
  %v1318 = vadd.f32 %v661, %v1190
  %v1319 = vadd.f32 %v472, %v1191
  %v1320 = vadd.f32 %v474, %v1192
  %v1321 = vadd.f32 %v665, %v1193
  %v1322 = vadd.f32 %v667, %v1194
  %v1323 = vadd.f32 %v476, %v1195
  %v1324 = vadd.f32 %v478, %v1196
  %v1325 = vadd.f32 %v669, %v1197
  %v1326 = vadd.f32 %v671, %v1198
  %v1327 = vadd.f32 %v482, %v1199
  %v1328 = vadd.f32 %v484, %v1200
  %v1329 = vadd.f32 %v675, %v1201
  %v1330 = vadd.f32 %v677, %v1202
  %v1331 = vadd.f32 %v486, %v1203
  %v1332 = vadd.f32 %v488, %v1204
  %v1333 = vadd.f32 %v679, %v1205
  %v1334 = vadd.f32 %v681, %v1206
  %v1335 = vadd.f32 %v492, %v1207
  %v1336 = vadd.f32 %v494, %v1208
  %v1337 = vadd.f32 %v685, %v1209
  %v1338 = vadd.f32 %v687, %v1210
  %v1339 = vadd.f32 %v496, %v1211
  %v1340 = vadd.f32 %v498, %v1212
  %v1341 = vadd.f32 %v689, %v1213
  %v1342 = vadd.f32 %v691, %v1214
  %v1343 = vadd.f32 %v502, %v1215
  %v1344 = vadd.f32 %v504, %v1216
  %v1345 = vadd.f32 %v695, %v1217
  %v1346 = vadd.f32 %v697, %v1218
  %v1347 = vadd.f32 %v506, %v1219
  %v1348 = vadd.f32 %v508, %v1220
  %v1349 = vadd.f32 %v699, %v1221
  %v1350 = vadd.f32 %v701, %v1222
  %v1351 = vadd.f32 %v512, %v1223
  %v1352 = vadd.f32 %v514, %v1224
  %v1353 = vadd.f32 %v705, %v1225
  %v1354 = vadd.f32 %v707, %v1226
  %v1355 = vadd.f32 %v516, %v1227
  %v1356 = vadd.f32 %v518, %v1228
  %v1357 = vadd.f32 %v709, %v1229
  %v1358 = vadd.f32 %v711, %v1230
  %v1359 = vadd.f32 %v522, %v1231
  %v1360 = vadd.f32 %v524, %v1232
  %v1361 = vadd.f32 %v715, %v1233
  %v1362 = vadd.f32 %v717, %v1234
  %v1363 = vadd.f32 %v526, %v1235
  %v1364 = vadd.f32 %v528, %v1236
  %v1365 = vadd.f32 %v719, %v1237
  %v1366 = vadd.f32 %v721, %v1238
  %v1367 = vadd.f32 %v532, %v1239
  %v1368 = vadd.f32 %v534, %v1240
  %v1369 = vadd.f32 %v725, %v1241
  %v1370 = vadd.f32 %v727, %v1242
  %v1371 = vadd.f32 %v536, %v1243
  %v1372 = vadd.f32 %v538, %v1244
  %v1373 = vadd.f32 %v729, %v1245
  %v1374 = vadd.f32 %v731, %v1246
  %v1375 = vadd.f32 %v542, %v1247
  %v1376 = vadd.f32 %v544, %v1248
  %v1377 = vadd.f32 %v735, %v1249
  %v1378 = vadd.f32 %v737, %v1250
  %v1379 = vadd.f32 %v546, %v1251
  %v1380 = vadd.f32 %v548, %v1252
  %v1381 = vadd.f32 %v739, %v1253
  %v1382 = vadd.f32 %v741, %v1254
  %v1383 = vmul.f32 %v1255, 0.7978846
  %v1384 = vmul.f32 %v1256, 0.7978846
  %v1385 = vmul.f32 %v1257, 0.7978846
  %v1386 = vmul.f32 %v1258, 0.7978846
  %v1387 = vmul.f32 %v1259, 0.7978846
  %v1388 = vmul.f32 %v1260, 0.7978846
  %v1389 = vmul.f32 %v1261, 0.7978846
  %v1390 = vmul.f32 %v1262, 0.7978846
  %v1391 = vmul.f32 %v1263, 0.7978846
  %v1392 = vmul.f32 %v1264, 0.7978846
  %v1393 = vmul.f32 %v1265, 0.7978846
  %v1394 = vmul.f32 %v1266, 0.7978846
  %v1395 = vmul.f32 %v1267, 0.7978846
  %v1396 = vmul.f32 %v1268, 0.7978846
  %v1397 = vmul.f32 %v1269, 0.7978846
  %v1398 = vmul.f32 %v1270, 0.7978846
  %v1399 = vmul.f32 %v1271, 0.7978846
  %v1400 = vmul.f32 %v1272, 0.7978846
  %v1401 = vmul.f32 %v1273, 0.7978846
  %v1402 = vmul.f32 %v1274, 0.7978846
  %v1403 = vmul.f32 %v1275, 0.7978846
  %v1404 = vmul.f32 %v1276, 0.7978846
  %v1405 = vmul.f32 %v1277, 0.7978846
  %v1406 = vmul.f32 %v1278, 0.7978846
  %v1407 = vmul.f32 %v1279, 0.7978846
  %v1408 = vmul.f32 %v1280, 0.7978846
  %v1409 = vmul.f32 %v1281, 0.7978846
  %v1410 = vmul.f32 %v1282, 0.7978846
  %v1411 = vmul.f32 %v1283, 0.7978846
  %v1412 = vmul.f32 %v1284, 0.7978846
  %v1413 = vmul.f32 %v1285, 0.7978846
  %v1414 = vmul.f32 %v1286, 0.7978846
  %v1415 = vmul.f32 %v1287, 0.7978846
  %v1416 = vmul.f32 %v1288, 0.7978846
  %v1417 = vmul.f32 %v1289, 0.7978846
  %v1418 = vmul.f32 %v1290, 0.7978846
  %v1419 = vmul.f32 %v1291, 0.7978846
  %v1420 = vmul.f32 %v1292, 0.7978846
  %v1421 = vmul.f32 %v1293, 0.7978846
  %v1422 = vmul.f32 %v1294, 0.7978846
  %v1423 = vmul.f32 %v1295, 0.7978846
  %v1424 = vmul.f32 %v1296, 0.7978846
  %v1425 = vmul.f32 %v1297, 0.7978846
  %v1426 = vmul.f32 %v1298, 0.7978846
  %v1427 = vmul.f32 %v1299, 0.7978846
  %v1428 = vmul.f32 %v1300, 0.7978846
  %v1429 = vmul.f32 %v1301, 0.7978846
  %v1430 = vmul.f32 %v1302, 0.7978846
  %v1431 = vmul.f32 %v1303, 0.7978846
  %v1432 = vmul.f32 %v1304, 0.7978846
  %v1433 = vmul.f32 %v1305, 0.7978846
  %v1434 = vmul.f32 %v1306, 0.7978846
  %v1435 = vmul.f32 %v1307, 0.7978846
  %v1436 = vmul.f32 %v1308, 0.7978846
  %v1437 = vmul.f32 %v1309, 0.7978846
  %v1438 = vmul.f32 %v1310, 0.7978846
  %v1439 = vmul.f32 %v1311, 0.7978846
  %v1440 = vmul.f32 %v1312, 0.7978846
  %v1441 = vmul.f32 %v1313, 0.7978846
  %v1442 = vmul.f32 %v1314, 0.7978846
  %v1443 = vmul.f32 %v1315, 0.7978846
  %v1444 = vmul.f32 %v1316, 0.7978846
  %v1445 = vmul.f32 %v1317, 0.7978846
  %v1446 = vmul.f32 %v1318, 0.7978846
  %v1447 = vmul.f32 %v1319, 0.7978846
  %v1448 = vmul.f32 %v1320, 0.7978846
  %v1449 = vmul.f32 %v1321, 0.7978846
  %v1450 = vmul.f32 %v1322, 0.7978846
  %v1451 = vmul.f32 %v1323, 0.7978846
  %v1452 = vmul.f32 %v1324, 0.7978846
  %v1453 = vmul.f32 %v1325, 0.7978846
  %v1454 = vmul.f32 %v1326, 0.7978846
  %v1455 = vmul.f32 %v1327, 0.7978846
  %v1456 = vmul.f32 %v1328, 0.7978846
  %v1457 = vmul.f32 %v1329, 0.7978846
  %v1458 = vmul.f32 %v1330, 0.7978846
  %v1459 = vmul.f32 %v1331, 0.7978846
  %v1460 = vmul.f32 %v1332, 0.7978846
  %v1461 = vmul.f32 %v1333, 0.7978846
  %v1462 = vmul.f32 %v1334, 0.7978846
  %v1463 = vmul.f32 %v1335, 0.7978846
  %v1464 = vmul.f32 %v1336, 0.7978846
  %v1465 = vmul.f32 %v1337, 0.7978846
  %v1466 = vmul.f32 %v1338, 0.7978846
  %v1467 = vmul.f32 %v1339, 0.7978846
  %v1468 = vmul.f32 %v1340, 0.7978846
  %v1469 = vmul.f32 %v1341, 0.7978846
  %v1470 = vmul.f32 %v1342, 0.7978846
  %v1471 = vmul.f32 %v1343, 0.7978846
  %v1472 = vmul.f32 %v1344, 0.7978846
  %v1473 = vmul.f32 %v1345, 0.7978846
  %v1474 = vmul.f32 %v1346, 0.7978846
  %v1475 = vmul.f32 %v1347, 0.7978846
  %v1476 = vmul.f32 %v1348, 0.7978846
  %v1477 = vmul.f32 %v1349, 0.7978846
  %v1478 = vmul.f32 %v1350, 0.7978846
  %v1479 = vmul.f32 %v1351, 0.7978846
  %v1480 = vmul.f32 %v1352, 0.7978846
  %v1481 = vmul.f32 %v1353, 0.7978846
  %v1482 = vmul.f32 %v1354, 0.7978846
  %v1483 = vmul.f32 %v1355, 0.7978846
  %v1484 = vmul.f32 %v1356, 0.7978846
  %v1485 = vmul.f32 %v1357, 0.7978846
  %v1486 = vmul.f32 %v1358, 0.7978846
  %v1487 = vmul.f32 %v1359, 0.7978846
  %v1488 = vmul.f32 %v1360, 0.7978846
  %v1489 = vmul.f32 %v1361, 0.7978846
  %v1490 = vmul.f32 %v1362, 0.7978846
  %v1491 = vmul.f32 %v1363, 0.7978846
  %v1492 = vmul.f32 %v1364, 0.7978846
  %v1493 = vmul.f32 %v1365, 0.7978846
  %v1494 = vmul.f32 %v1366, 0.7978846
  %v1495 = vmul.f32 %v1367, 0.7978846
  %v1496 = vmul.f32 %v1368, 0.7978846
  %v1497 = vmul.f32 %v1369, 0.7978846
  %v1498 = vmul.f32 %v1370, 0.7978846
  %v1499 = vmul.f32 %v1371, 0.7978846
  %v1500 = vmul.f32 %v1372, 0.7978846
  %v1501 = vmul.f32 %v1373, 0.7978846
  %v1502 = vmul.f32 %v1374, 0.7978846
  %v1503 = vmul.f32 %v1375, 0.7978846
  %v1504 = vmul.f32 %v1376, 0.7978846
  %v1505 = vmul.f32 %v1377, 0.7978846
  %v1506 = vmul.f32 %v1378, 0.7978846
  %v1507 = vmul.f32 %v1379, 0.7978846
  %v1508 = vmul.f32 %v1380, 0.7978846
  %v1509 = vmul.f32 %v1381, 0.7978846
  %v1510 = vmul.f32 %v1382, 0.7978846
  %v1511 = vtanh.pop %v1383
  %v1512 = vtanh.pop %v1384
  %v1513 = vtanh.pop %v1385
  %v1514 = vtanh.pop %v1386
  %v1515 = vtanh.pop %v1387
  %v1516 = vtanh.pop %v1388
  %v1517 = vtanh.pop %v1389
  %v1518 = vtanh.pop %v1390
  %v1519 = vtanh.pop %v1391
  %v1520 = vtanh.pop %v1392
  %v1521 = vtanh.pop %v1393
  %v1522 = vtanh.pop %v1394
  %v1523 = vtanh.pop %v1395
  %v1524 = vtanh.pop %v1396
  %v1525 = vtanh.pop %v1397
  %v1526 = vtanh.pop %v1398
  %v1527 = vtanh.pop %v1399
  %v1528 = vtanh.pop %v1400
  %v1529 = vtanh.pop %v1401
  %v1530 = vtanh.pop %v1402
  %v1531 = vtanh.pop %v1403
  %v1532 = vtanh.pop %v1404
  %v1533 = vtanh.pop %v1405
  %v1534 = vtanh.pop %v1406
  %v1535 = vtanh.pop %v1407
  %v1536 = vtanh.pop %v1408
  %v1537 = vtanh.pop %v1409
  %v1538 = vtanh.pop %v1410
  %v1539 = vtanh.pop %v1411
  %v1540 = vtanh.pop %v1412
  %v1541 = vtanh.pop %v1413
  %v1542 = vtanh.pop %v1414
  %v1543 = vtanh.pop %v1415
  %v1544 = vtanh.pop %v1416
  %v1545 = vtanh.pop %v1417
  %v1546 = vtanh.pop %v1418
  %v1547 = vtanh.pop %v1419
  %v1548 = vtanh.pop %v1420
  %v1549 = vtanh.pop %v1421
  %v1550 = vtanh.pop %v1422
  %v1551 = vtanh.pop %v1423
  %v1552 = vtanh.pop %v1424
  %v1553 = vtanh.pop %v1425
  %v1554 = vtanh.pop %v1426
  %v1555 = vtanh.pop %v1427
  %v1556 = vtanh.pop %v1428
  %v1557 = vtanh.pop %v1429
  %v1558 = vtanh.pop %v1430
  %v1559 = vtanh.pop %v1431
  %v1560 = vtanh.pop %v1432
  %v1561 = vtanh.pop %v1433
  %v1562 = vtanh.pop %v1434
  %v1563 = vtanh.pop %v1435
  %v1564 = vtanh.pop %v1436
  %v1565 = vtanh.pop %v1437
  %v1566 = vtanh.pop %v1438
  %v1567 = vtanh.pop %v1439
  %v1568 = vtanh.pop %v1440
  %v1569 = vtanh.pop %v1441
  %v1570 = vtanh.pop %v1442
  %v1571 = vtanh.pop %v1443
  %v1572 = vtanh.pop %v1444
  %v1573 = vtanh.pop %v1445
  %v1574 = vtanh.pop %v1446
  %v1575 = vtanh.pop %v1447
  %v1576 = vtanh.pop %v1448
  %v1577 = vtanh.pop %v1449
  %v1578 = vtanh.pop %v1450
  %v1579 = vtanh.pop %v1451
  %v1580 = vtanh.pop %v1452
  %v1581 = vtanh.pop %v1453
  %v1582 = vtanh.pop %v1454
  %v1583 = vtanh.pop %v1455
  %v1584 = vtanh.pop %v1456
  %v1585 = vtanh.pop %v1457
  %v1586 = vtanh.pop %v1458
  %v1587 = vtanh.pop %v1459
  %v1588 = vtanh.pop %v1460
  %v1589 = vtanh.pop %v1461
  %v1590 = vtanh.pop %v1462
  %v1591 = vtanh.pop %v1463
  %v1592 = vtanh.pop %v1464
  %v1593 = vtanh.pop %v1465
  %v1594 = vtanh.pop %v1466
  %v1595 = vtanh.pop %v1467
  %v1596 = vtanh.pop %v1468
  %v1597 = vtanh.pop %v1469
  %v1598 = vtanh.pop %v1470
  %v1599 = vtanh.pop %v1471
  %v1600 = vtanh.pop %v1472
  %v1601 = vtanh.pop %v1473
  %v1602 = vtanh.pop %v1474
  %v1603 = vtanh.pop %v1475
  %v1604 = vtanh.pop %v1476
  %v1605 = vtanh.pop %v1477
  %v1606 = vtanh.pop %v1478
  %v1607 = vtanh.pop %v1479
  %v1608 = vtanh.pop %v1480
  %v1609 = vtanh.pop %v1481
  %v1610 = vtanh.pop %v1482
  %v1611 = vtanh.pop %v1483
  %v1612 = vtanh.pop %v1484
  %v1613 = vtanh.pop %v1485
  %v1614 = vtanh.pop %v1486
  %v1615 = vtanh.pop %v1487
  %v1616 = vtanh.pop %v1488
  %v1617 = vtanh.pop %v1489
  %v1618 = vtanh.pop %v1490
  %v1619 = vtanh.pop %v1491
  %v1620 = vtanh.pop %v1492
  %v1621 = vtanh.pop %v1493
  %v1622 = vtanh.pop %v1494
  %v1623 = vtanh.pop %v1495
  %v1624 = vtanh.pop %v1496
  %v1625 = vtanh.pop %v1497
  %v1626 = vtanh.pop %v1498
  %v1627 = vtanh.pop %v1499
  %v1628 = vtanh.pop %v1500
  %v1629 = vtanh.pop %v1501
  %v1630 = vtanh.pop %v1502
  %v1631 = vtanh.pop %v1503
  %v1632 = vtanh.pop %v1504
  %v1633 = vtanh.pop %v1505
  %v1634 = vtanh.pop %v1506
  %v1635 = vtanh.pop %v1507
  %v1636 = vtanh.pop %v1508
  %v1637 = vtanh.pop %v1509
  %v1638 = vtanh.pop %v1510
  %v1639 = vadd.f32 %v1511, 1.0
  %v1640 = vadd.f32 %v1512, 1.0
  %v1641 = vadd.f32 %v1513, 1.0
  %v1642 = vadd.f32 %v1514, 1.0
  %v1643 = vadd.f32 %v1515, 1.0
  %v1644 = vadd.f32 %v1516, 1.0
  %v1645 = vadd.f32 %v1517, 1.0
  %v1646 = vadd.f32 %v1518, 1.0
  %v1647 = vadd.f32 %v1519, 1.0
  %v1648 = vadd.f32 %v1520, 1.0
  %v1649 = vadd.f32 %v1521, 1.0
  %v1650 = vadd.f32 %v1522, 1.0
  %v1651 = vadd.f32 %v1523, 1.0
  %v1652 = vadd.f32 %v1524, 1.0
  %v1653 = vadd.f32 %v1525, 1.0
  %v1654 = vadd.f32 %v1526, 1.0
  %v1655 = vadd.f32 %v1527, 1.0
  %v1656 = vadd.f32 %v1528, 1.0
  %v1657 = vadd.f32 %v1529, 1.0
  %v1658 = vadd.f32 %v1530, 1.0
  %v1659 = vadd.f32 %v1531, 1.0
  %v1660 = vadd.f32 %v1532, 1.0
  %v1661 = vadd.f32 %v1533, 1.0
  %v1662 = vadd.f32 %v1534, 1.0
  %v1663 = vadd.f32 %v1535, 1.0
  %v1664 = vadd.f32 %v1536, 1.0
  %v1665 = vadd.f32 %v1537, 1.0
  %v1666 = vadd.f32 %v1538, 1.0
  %v1667 = vadd.f32 %v1539, 1.0
  %v1668 = vadd.f32 %v1540, 1.0
  %v1669 = vadd.f32 %v1541, 1.0
  %v1670 = vadd.f32 %v1542, 1.0
  %v1671 = vadd.f32 %v1543, 1.0
  %v1672 = vadd.f32 %v1544, 1.0
  %v1673 = vadd.f32 %v1545, 1.0
  %v1674 = vadd.f32 %v1546, 1.0
  %v1675 = vadd.f32 %v1547, 1.0
  %v1676 = vadd.f32 %v1548, 1.0
  %v1677 = vadd.f32 %v1549, 1.0
  %v1678 = vadd.f32 %v1550, 1.0
  %v1679 = vadd.f32 %v1551, 1.0
  %v1680 = vadd.f32 %v1552, 1.0
  %v1681 = vadd.f32 %v1553, 1.0
  %v1682 = vadd.f32 %v1554, 1.0
  %v1683 = vadd.f32 %v1555, 1.0
  %v1684 = vadd.f32 %v1556, 1.0
  %v1685 = vadd.f32 %v1557, 1.0
  %v1686 = vadd.f32 %v1558, 1.0
  %v1687 = vadd.f32 %v1559, 1.0
  %v1688 = vadd.f32 %v1560, 1.0
  %v1689 = vadd.f32 %v1561, 1.0
  %v1690 = vadd.f32 %v1562, 1.0
  %v1691 = vadd.f32 %v1563, 1.0
  %v1692 = vadd.f32 %v1564, 1.0
  %v1693 = vadd.f32 %v1565, 1.0
  %v1694 = vadd.f32 %v1566, 1.0
  %v1695 = vadd.f32 %v1567, 1.0
  %v1696 = vadd.f32 %v1568, 1.0
  %v1697 = vadd.f32 %v1569, 1.0
  %v1698 = vadd.f32 %v1570, 1.0
  %v1699 = vadd.f32 %v1571, 1.0
  %v1700 = vadd.f32 %v1572, 1.0
  %v1701 = vadd.f32 %v1573, 1.0
  %v1702 = vadd.f32 %v1574, 1.0
  %v1703 = vadd.f32 %v1575, 1.0
  %v1704 = vadd.f32 %v1576, 1.0
  %v1705 = vadd.f32 %v1577, 1.0
  %v1706 = vadd.f32 %v1578, 1.0
  %v1707 = vadd.f32 %v1579, 1.0
  %v1708 = vadd.f32 %v1580, 1.0
  %v1709 = vadd.f32 %v1581, 1.0
  %v1710 = vadd.f32 %v1582, 1.0
  %v1711 = vadd.f32 %v1583, 1.0
  %v1712 = vadd.f32 %v1584, 1.0
  %v1713 = vadd.f32 %v1585, 1.0
  %v1714 = vadd.f32 %v1586, 1.0
  %v1715 = vadd.f32 %v1587, 1.0
  %v1716 = vadd.f32 %v1588, 1.0
  %v1717 = vadd.f32 %v1589, 1.0
  %v1718 = vadd.f32 %v1590, 1.0
  %v1719 = vadd.f32 %v1591, 1.0
  %v1720 = vadd.f32 %v1592, 1.0
  %v1721 = vadd.f32 %v1593, 1.0
  %v1722 = vadd.f32 %v1594, 1.0
  %v1723 = vadd.f32 %v1595, 1.0
  %v1724 = vadd.f32 %v1596, 1.0
  %v1725 = vadd.f32 %v1597, 1.0
  %v1726 = vadd.f32 %v1598, 1.0
  %v1727 = vadd.f32 %v1599, 1.0
  %v1728 = vadd.f32 %v1600, 1.0
  %v1729 = vadd.f32 %v1601, 1.0
  %v1730 = vadd.f32 %v1602, 1.0
  %v1731 = vadd.f32 %v1603, 1.0
  %v1732 = vadd.f32 %v1604, 1.0
  %v1733 = vadd.f32 %v1605, 1.0
  %v1734 = vadd.f32 %v1606, 1.0
  %v1735 = vadd.f32 %v1607, 1.0
  %v1736 = vadd.f32 %v1608, 1.0
  %v1737 = vadd.f32 %v1609, 1.0
  %v1738 = vadd.f32 %v1610, 1.0
  %v1739 = vadd.f32 %v1611, 1.0
  %v1740 = vadd.f32 %v1612, 1.0
  %v1741 = vadd.f32 %v1613, 1.0
  %v1742 = vadd.f32 %v1614, 1.0
  %v1743 = vadd.f32 %v1615, 1.0
  %v1744 = vadd.f32 %v1616, 1.0
  %v1745 = vadd.f32 %v1617, 1.0
  %v1746 = vadd.f32 %v1618, 1.0
  %v1747 = vadd.f32 %v1619, 1.0
  %v1748 = vadd.f32 %v1620, 1.0
  %v1749 = vadd.f32 %v1621, 1.0
  %v1750 = vadd.f32 %v1622, 1.0
  %v1751 = vadd.f32 %v1623, 1.0
  %v1752 = vadd.f32 %v1624, 1.0
  %v1753 = vadd.f32 %v1625, 1.0
  %v1754 = vadd.f32 %v1626, 1.0
  %v1755 = vadd.f32 %v1627, 1.0
  %v1756 = vadd.f32 %v1628, 1.0
  %v1757 = vadd.f32 %v1629, 1.0
  %v1758 = vadd.f32 %v1630, 1.0
  %v1759 = vadd.f32 %v1631, 1.0
  %v1760 = vadd.f32 %v1632, 1.0
  %v1761 = vadd.f32 %v1633, 1.0
  %v1762 = vadd.f32 %v1634, 1.0
  %v1763 = vadd.f32 %v1635, 1.0
  %v1764 = vadd.f32 %v1636, 1.0
  %v1765 = vadd.f32 %v1637, 1.0
  %v1766 = vadd.f32 %v1638, 1.0
  %v1767 = vmul.f32 %v743, %v1639
  %v1768 = vmul.f32 %v744, %v1640
  %v1769 = vmul.f32 %v745, %v1641
  %v1770 = vmul.f32 %v746, %v1642
  %v1771 = vmul.f32 %v747, %v1643
  %v1772 = vmul.f32 %v748, %v1644
  %v1773 = vmul.f32 %v749, %v1645
  %v1774 = vmul.f32 %v750, %v1646
  %v1775 = vmul.f32 %v751, %v1647
  %v1776 = vmul.f32 %v752, %v1648
  %v1777 = vmul.f32 %v753, %v1649
  %v1778 = vmul.f32 %v754, %v1650
  %v1779 = vmul.f32 %v755, %v1651
  %v1780 = vmul.f32 %v756, %v1652
  %v1781 = vmul.f32 %v757, %v1653
  %v1782 = vmul.f32 %v758, %v1654
  %v1783 = vmul.f32 %v759, %v1655
  %v1784 = vmul.f32 %v760, %v1656
  %v1785 = vmul.f32 %v761, %v1657
  %v1786 = vmul.f32 %v762, %v1658
  %v1787 = vmul.f32 %v763, %v1659
  %v1788 = vmul.f32 %v764, %v1660
  %v1789 = vmul.f32 %v765, %v1661
  %v1790 = vmul.f32 %v766, %v1662
  %v1791 = vmul.f32 %v767, %v1663
  %v1792 = vmul.f32 %v768, %v1664
  %v1793 = vmul.f32 %v769, %v1665
  %v1794 = vmul.f32 %v770, %v1666
  %v1795 = vmul.f32 %v771, %v1667
  %v1796 = vmul.f32 %v772, %v1668
  %v1797 = vmul.f32 %v773, %v1669
  %v1798 = vmul.f32 %v774, %v1670
  %v1799 = vmul.f32 %v775, %v1671
  %v1800 = vmul.f32 %v776, %v1672
  %v1801 = vmul.f32 %v777, %v1673
  %v1802 = vmul.f32 %v778, %v1674
  %v1803 = vmul.f32 %v779, %v1675
  %v1804 = vmul.f32 %v780, %v1676
  %v1805 = vmul.f32 %v781, %v1677
  %v1806 = vmul.f32 %v782, %v1678
  %v1807 = vmul.f32 %v783, %v1679
  %v1808 = vmul.f32 %v784, %v1680
  %v1809 = vmul.f32 %v785, %v1681
  %v1810 = vmul.f32 %v786, %v1682
  %v1811 = vmul.f32 %v787, %v1683
  %v1812 = vmul.f32 %v788, %v1684
  %v1813 = vmul.f32 %v789, %v1685
  %v1814 = vmul.f32 %v790, %v1686
  %v1815 = vmul.f32 %v791, %v1687
  %v1816 = vmul.f32 %v792, %v1688
  %v1817 = vmul.f32 %v793, %v1689
  %v1818 = vmul.f32 %v794, %v1690
  %v1819 = vmul.f32 %v795, %v1691
  %v1820 = vmul.f32 %v796, %v1692
  %v1821 = vmul.f32 %v797, %v1693
  %v1822 = vmul.f32 %v798, %v1694
  %v1823 = vmul.f32 %v799, %v1695
  %v1824 = vmul.f32 %v800, %v1696
  %v1825 = vmul.f32 %v801, %v1697
  %v1826 = vmul.f32 %v802, %v1698
  %v1827 = vmul.f32 %v803, %v1699
  %v1828 = vmul.f32 %v804, %v1700
  %v1829 = vmul.f32 %v805, %v1701
  %v1830 = vmul.f32 %v806, %v1702
  %v1831 = vmul.f32 %v807, %v1703
  %v1832 = vmul.f32 %v808, %v1704
  %v1833 = vmul.f32 %v809, %v1705
  %v1834 = vmul.f32 %v810, %v1706
  %v1835 = vmul.f32 %v811, %v1707
  %v1836 = vmul.f32 %v812, %v1708
  %v1837 = vmul.f32 %v813, %v1709
  %v1838 = vmul.f32 %v814, %v1710
  %v1839 = vmul.f32 %v815, %v1711
  %v1840 = vmul.f32 %v816, %v1712
  %v1841 = vmul.f32 %v817, %v1713
  %v1842 = vmul.f32 %v818, %v1714
  %v1843 = vmul.f32 %v819, %v1715
  %v1844 = vmul.f32 %v820, %v1716
  %v1845 = vmul.f32 %v821, %v1717
  %v1846 = vmul.f32 %v822, %v1718
  %v1847 = vmul.f32 %v823, %v1719
  %v1848 = vmul.f32 %v824, %v1720
  %v1849 = vmul.f32 %v825, %v1721
  %v1850 = vmul.f32 %v826, %v1722
  %v1851 = vmul.f32 %v827, %v1723
  %v1852 = vmul.f32 %v828, %v1724
  %v1853 = vmul.f32 %v829, %v1725
  %v1854 = vmul.f32 %v830, %v1726
  %v1855 = vmul.f32 %v831, %v1727
  %v1856 = vmul.f32 %v832, %v1728
  %v1857 = vmul.f32 %v833, %v1729
  %v1858 = vmul.f32 %v834, %v1730
  %v1859 = vmul.f32 %v835, %v1731
  %v1860 = vmul.f32 %v836, %v1732
  %v1861 = vmul.f32 %v837, %v1733
  %v1862 = vmul.f32 %v838, %v1734
  %v1863 = vmul.f32 %v839, %v1735
  %v1864 = vmul.f32 %v840, %v1736
  %v1865 = vmul.f32 %v841, %v1737
  %v1866 = vmul.f32 %v842, %v1738
  %v1867 = vmul.f32 %v843, %v1739
  %v1868 = vmul.f32 %v844, %v1740
  %v1869 = vmul.f32 %v845, %v1741
  %v1870 = vmul.f32 %v846, %v1742
  %v1871 = vmul.f32 %v847, %v1743
  %v1872 = vmul.f32 %v848, %v1744
  %v1873 = vmul.f32 %v849, %v1745
  %v1874 = vmul.f32 %v850, %v1746
  %v1875 = vmul.f32 %v851, %v1747
  %v1876 = vmul.f32 %v852, %v1748
  %v1877 = vmul.f32 %v853, %v1749
  %v1878 = vmul.f32 %v854, %v1750
  %v1879 = vmul.f32 %v855, %v1751
  %v1880 = vmul.f32 %v856, %v1752
  %v1881 = vmul.f32 %v857, %v1753
  %v1882 = vmul.f32 %v858, %v1754
  %v1883 = vmul.f32 %v859, %v1755
  %v1884 = vmul.f32 %v860, %v1756
  %v1885 = vmul.f32 %v861, %v1757
  %v1886 = vmul.f32 %v862, %v1758
  %v1887 = vmul.f32 %v863, %v1759
  %v1888 = vmul.f32 %v864, %v1760
  %v1889 = vmul.f32 %v865, %v1761
  %v1890 = vmul.f32 %v866, %v1762
  %v1891 = vmul.f32 %v867, %v1763
  %v1892 = vmul.f32 %v868, %v1764
  %v1893 = vmul.f32 %v869, %v1765
  %v1894 = vmul.f32 %v870, %v1766
  %v1895 = vpack.c.bf16 %v1771, %v1767
  %v1896 = vpack.c.bf16 %v1772, %v1768
  %v1897 = vpack.c.bf16 %v1773, %v1769
  %v1898 = vpack.c.bf16 %v1774, %v1770
  %v1899 = vpack.c.bf16 %v1779, %v1775
  %v1900 = vpack.c.bf16 %v1780, %v1776
  %v1901 = vpack.c.bf16 %v1781, %v1777
  %v1902 = vpack.c.bf16 %v1782, %v1778
  %v1903 = vpack.c.bf16 %v1787, %v1783
  %v1904 = vpack.c.bf16 %v1788, %v1784
  %v1905 = vpack.c.bf16 %v1789, %v1785
  %v1906 = vpack.c.bf16 %v1790, %v1786
  %v1907 = vpack.c.bf16 %v1795, %v1791
  %v1908 = vpack.c.bf16 %v1796, %v1792
  %v1909 = vpack.c.bf16 %v1797, %v1793
  %v1910 = vpack.c.bf16 %v1798, %v1794
  %v1911 = vpack.c.bf16 %v1803, %v1799
  %v1912 = vpack.c.bf16 %v1804, %v1800
  %v1913 = vpack.c.bf16 %v1805, %v1801
  %v1914 = vpack.c.bf16 %v1806, %v1802
  %v1915 = vpack.c.bf16 %v1811, %v1807
  %v1916 = vpack.c.bf16 %v1812, %v1808
  %v1917 = vpack.c.bf16 %v1813, %v1809
  %v1918 = vpack.c.bf16 %v1814, %v1810
  %v1919 = vpack.c.bf16 %v1819, %v1815
  %v1920 = vpack.c.bf16 %v1820, %v1816
  %v1921 = vpack.c.bf16 %v1821, %v1817
  %v1922 = vpack.c.bf16 %v1822, %v1818
  %v1923 = vpack.c.bf16 %v1827, %v1823
  %v1924 = vpack.c.bf16 %v1828, %v1824
  %v1925 = vpack.c.bf16 %v1829, %v1825
  %v1926 = vpack.c.bf16 %v1830, %v1826
  %v1927 = vpack.c.bf16 %v1835, %v1831
  %v1928 = vpack.c.bf16 %v1836, %v1832
  %v1929 = vpack.c.bf16 %v1837, %v1833
  %v1930 = vpack.c.bf16 %v1838, %v1834
  %v1931 = vpack.c.bf16 %v1843, %v1839
  %v1932 = vpack.c.bf16 %v1844, %v1840
  %v1933 = vpack.c.bf16 %v1845, %v1841
  %v1934 = vpack.c.bf16 %v1846, %v1842
  %v1935 = vpack.c.bf16 %v1851, %v1847
  %v1936 = vpack.c.bf16 %v1852, %v1848
  %v1937 = vpack.c.bf16 %v1853, %v1849
  %v1938 = vpack.c.bf16 %v1854, %v1850
  %v1939 = vpack.c.bf16 %v1859, %v1855
  %v1940 = vpack.c.bf16 %v1860, %v1856
  %v1941 = vpack.c.bf16 %v1861, %v1857
  %v1942 = vpack.c.bf16 %v1862, %v1858
  %v1943 = vpack.c.bf16 %v1867, %v1863
  %v1944 = vpack.c.bf16 %v1868, %v1864
  %v1945 = vpack.c.bf16 %v1869, %v1865
  %v1946 = vpack.c.bf16 %v1870, %v1866
  %v1947 = vpack.c.bf16 %v1875, %v1871
  %v1948 = vpack.c.bf16 %v1876, %v1872
  %v1949 = vpack.c.bf16 %v1877, %v1873
  %v1950 = vpack.c.bf16 %v1878, %v1874
  %v1951 = vpack.c.bf16 %v1883, %v1879
  %v1952 = vpack.c.bf16 %v1884, %v1880
  %v1953 = vpack.c.bf16 %v1885, %v1881
  %v1954 = vpack.c.bf16 %v1886, %v1882
  %v1955 = vpack.c.bf16 %v1891, %v1887
  %v1956 = vpack.c.bf16 %v1892, %v1888
  %v1957 = vpack.c.bf16 %v1893, %v1889
  %v1958 = vpack.c.bf16 %v1894, %v1890
  %v2023 = vunpack.c.l.b16 %v1895
  %v2024 = vunpack.c.l.b16 %v1896
  %v2025 = vunpack.c.l.b16 %v1897
  %v2026 = vunpack.c.l.b16 %v1898
  %v2027 = vunpack.c.h.b16 %v1895
  %v2028 = vunpack.c.h.b16 %v1896
  %v2029 = vunpack.c.h.b16 %v1897
  %v2030 = vunpack.c.h.b16 %v1898
  %v2031 = vunpack.c.l.b16 %v1899
  %v2032 = vunpack.c.l.b16 %v1900
  %v2033 = vunpack.c.l.b16 %v1901
  %v2034 = vunpack.c.l.b16 %v1902
  %v2035 = vunpack.c.h.b16 %v1899
  %v2036 = vunpack.c.h.b16 %v1900
  %v2037 = vunpack.c.h.b16 %v1901
  %v2038 = vunpack.c.h.b16 %v1902
  %v2039 = vunpack.c.l.b16 %v1903
  %v2040 = vunpack.c.l.b16 %v1904
  %v2041 = vunpack.c.l.b16 %v1905
  %v2042 = vunpack.c.l.b16 %v1906
  %v2043 = vunpack.c.h.b16 %v1903
  %v2044 = vunpack.c.h.b16 %v1904
  %v2045 = vunpack.c.h.b16 %v1905
  %v2046 = vunpack.c.h.b16 %v1906
  %v2047 = vunpack.c.l.b16 %v1907
  %v2048 = vunpack.c.l.b16 %v1908
  %v2049 = vunpack.c.l.b16 %v1909
  %v2050 = vunpack.c.l.b16 %v1910
  %v2051 = vunpack.c.h.b16 %v1907
  %v2052 = vunpack.c.h.b16 %v1908
  %v2053 = vunpack.c.h.b16 %v1909
  %v2054 = vunpack.c.h.b16 %v1910
  %v2055 = vunpack.c.l.b16 %v1911
  %v2056 = vunpack.c.l.b16 %v1912
  %v2057 = vunpack.c.l.b16 %v1913
  %v2058 = vunpack.c.l.b16 %v1914
  %v2059 = vunpack.c.h.b16 %v1911
  %v2060 = vunpack.c.h.b16 %v1912
  %v2061 = vunpack.c.h.b16 %v1913
  %v2062 = vunpack.c.h.b16 %v1914
  %v2063 = vunpack.c.l.b16 %v1915
  %v2064 = vunpack.c.l.b16 %v1916
  %v2065 = vunpack.c.l.b16 %v1917
  %v2066 = vunpack.c.l.b16 %v1918
  %v2067 = vunpack.c.h.b16 %v1915
  %v2068 = vunpack.c.h.b16 %v1916
  %v2069 = vunpack.c.h.b16 %v1917
  %v2070 = vunpack.c.h.b16 %v1918
  %v2071 = vunpack.c.l.b16 %v1919
  %v2072 = vunpack.c.l.b16 %v1920
  %v2073 = vunpack.c.l.b16 %v1921
  %v2074 = vunpack.c.l.b16 %v1922
  %v2075 = vunpack.c.h.b16 %v1919
  %v2076 = vunpack.c.h.b16 %v1920
  %v2077 = vunpack.c.h.b16 %v1921
  %v2078 = vunpack.c.h.b16 %v1922
  %v2079 = vunpack.c.l.b16 %v1923
  %v2080 = vunpack.c.l.b16 %v1924
  %v2081 = vunpack.c.l.b16 %v1925
  %v2082 = vunpack.c.l.b16 %v1926
  %v2083 = vunpack.c.h.b16 %v1923
  %v2084 = vunpack.c.h.b16 %v1924
  %v2085 = vunpack.c.h.b16 %v1925
  %v2086 = vunpack.c.h.b16 %v1926
  %v2087 = vunpack.c.l.b16 %v1927
  %v2088 = vunpack.c.l.b16 %v1928
  %v2089 = vunpack.c.l.b16 %v1929
  %v2090 = vunpack.c.l.b16 %v1930
  %v2091 = vunpack.c.h.b16 %v1927
  %v2092 = vunpack.c.h.b16 %v1928
  %v2093 = vunpack.c.h.b16 %v1929
  %v2094 = vunpack.c.h.b16 %v1930
  %v2095 = vunpack.c.l.b16 %v1931
  %v2096 = vunpack.c.l.b16 %v1932
  %v2097 = vunpack.c.l.b16 %v1933
  %v2098 = vunpack.c.l.b16 %v1934
  %v2099 = vunpack.c.h.b16 %v1931
  %v2100 = vunpack.c.h.b16 %v1932
  %v2101 = vunpack.c.h.b16 %v1933
  %v2102 = vunpack.c.h.b16 %v1934
  %v2103 = vunpack.c.l.b16 %v1935
  %v2104 = vunpack.c.l.b16 %v1936
  %v2105 = vunpack.c.l.b16 %v1937
  %v2106 = vunpack.c.l.b16 %v1938
  %v2107 = vunpack.c.h.b16 %v1935
  %v2108 = vunpack.c.h.b16 %v1936
  %v2109 = vunpack.c.h.b16 %v1937
  %v2110 = vunpack.c.h.b16 %v1938
  %v2111 = vunpack.c.l.b16 %v1939
  %v2112 = vunpack.c.l.b16 %v1940
  %v2113 = vunpack.c.l.b16 %v1941
  %v2114 = vunpack.c.l.b16 %v1942
  %v2115 = vunpack.c.h.b16 %v1939
  %v2116 = vunpack.c.h.b16 %v1940
  %v2117 = vunpack.c.h.b16 %v1941
  %v2118 = vunpack.c.h.b16 %v1942
  %v2119 = vunpack.c.l.b16 %v1943
  %v2120 = vunpack.c.l.b16 %v1944
  %v2121 = vunpack.c.l.b16 %v1945
  %v2122 = vunpack.c.l.b16 %v1946
  %v2123 = vunpack.c.h.b16 %v1943
  %v2124 = vunpack.c.h.b16 %v1944
  %v2125 = vunpack.c.h.b16 %v1945
  %v2126 = vunpack.c.h.b16 %v1946
  %v2127 = vunpack.c.l.b16 %v1947
  %v2128 = vunpack.c.l.b16 %v1948
  %v2129 = vunpack.c.l.b16 %v1949
  %v2130 = vunpack.c.l.b16 %v1950
  %v2131 = vunpack.c.h.b16 %v1947
  %v2132 = vunpack.c.h.b16 %v1948
  %v2133 = vunpack.c.h.b16 %v1949
  %v2134 = vunpack.c.h.b16 %v1950
  %v2135 = vunpack.c.l.b16 %v1951
  %v2136 = vunpack.c.l.b16 %v1952
  %v2137 = vunpack.c.l.b16 %v1953
  %v2138 = vunpack.c.l.b16 %v1954
  %v2139 = vunpack.c.h.b16 %v1951
  %v2140 = vunpack.c.h.b16 %v1952
  %v2141 = vunpack.c.h.b16 %v1953
  %v2142 = vunpack.c.h.b16 %v1954
  %v2143 = vunpack.c.l.b16 %v1955
  %v2144 = vunpack.c.l.b16 %v1956
  %v2145 = vunpack.c.l.b16 %v1957
  %v2146 = vunpack.c.l.b16 %v1958
  %v2147 = vunpack.c.h.b16 %v1955
  %v2148 = vunpack.c.h.b16 %v1956
  %v2149 = vunpack.c.h.b16 %v1957
  %v2150 = vunpack.c.h.b16 %v1958
  %v2151 = vpack.c.b16 %v2024, %v2023
  %v2152 = vpack.c.b16 %v2026, %v2025
  %v2153 = vpack.c.b16 %v2028, %v2027
  %v2154 = vpack.c.b16 %v2030, %v2029
  %v2155 = vpack.c.b16 %v2032, %v2031
  %v2156 = vpack.c.b16 %v2034, %v2033
  %v2157 = vpack.c.b16 %v2036, %v2035
  %v2158 = vpack.c.b16 %v2038, %v2037
  %v2159 = vpack.c.b16 %v2040, %v2039
  %v2160 = vpack.c.b16 %v2042, %v2041
  %v2161 = vpack.c.b16 %v2044, %v2043
  %v2162 = vpack.c.b16 %v2046, %v2045
  %v2163 = vpack.c.b16 %v2048, %v2047
  %v2164 = vpack.c.b16 %v2050, %v2049
  %v2165 = vpack.c.b16 %v2052, %v2051
  %v2166 = vpack.c.b16 %v2054, %v2053
  %v2167 = vpack.c.b16 %v2056, %v2055
  %v2168 = vpack.c.b16 %v2058, %v2057
  %v2169 = vpack.c.b16 %v2060, %v2059
  %v2170 = vpack.c.b16 %v2062, %v2061
  %v2171 = vpack.c.b16 %v2064, %v2063
  %v2172 = vpack.c.b16 %v2066, %v2065
  %v2173 = vpack.c.b16 %v2068, %v2067
  %v2174 = vpack.c.b16 %v2070, %v2069
  %v2175 = vpack.c.b16 %v2072, %v2071
  %v2176 = vpack.c.b16 %v2074, %v2073
  %v2177 = vpack.c.b16 %v2076, %v2075
  %v2178 = vpack.c.b16 %v2078, %v2077
  %v2179 = vpack.c.b16 %v2080, %v2079
  %v2180 = vpack.c.b16 %v2082, %v2081
  %v2181 = vpack.c.b16 %v2084, %v2083
  %v2182 = vpack.c.b16 %v2086, %v2085
  %v2183 = vpack.c.b16 %v2088, %v2087
  %v2184 = vpack.c.b16 %v2090, %v2089
  %v2185 = vpack.c.b16 %v2092, %v2091
  %v2186 = vpack.c.b16 %v2094, %v2093
  %v2187 = vpack.c.b16 %v2096, %v2095
  %v2188 = vpack.c.b16 %v2098, %v2097
  %v2189 = vpack.c.b16 %v2100, %v2099
  %v2190 = vpack.c.b16 %v2102, %v2101
  %v2191 = vpack.c.b16 %v2104, %v2103
  %v2192 = vpack.c.b16 %v2106, %v2105
  %v2193 = vpack.c.b16 %v2108, %v2107
  %v2194 = vpack.c.b16 %v2110, %v2109
  %v2195 = vpack.c.b16 %v2112, %v2111
  %v2196 = vpack.c.b16 %v2114, %v2113
  %v2197 = vpack.c.b16 %v2116, %v2115
  %v2198 = vpack.c.b16 %v2118, %v2117
  %v2199 = vpack.c.b16 %v2120, %v2119
  %v2200 = vpack.c.b16 %v2122, %v2121
  %v2201 = vpack.c.b16 %v2124, %v2123
  %v2202 = vpack.c.b16 %v2126, %v2125
  %v2203 = vpack.c.b16 %v2128, %v2127
  %v2204 = vpack.c.b16 %v2130, %v2129
  %v2205 = vpack.c.b16 %v2132, %v2131
  %v2206 = vpack.c.b16 %v2134, %v2133
  %v2207 = vpack.c.b16 %v2136, %v2135
  %v2208 = vpack.c.b16 %v2138, %v2137
  %v2209 = vpack.c.b16 %v2140, %v2139
  %v2210 = vpack.c.b16 %v2142, %v2141
  %v2211 = vpack.c.b16 %v2144, %v2143
  %v2212 = vpack.c.b16 %v2146, %v2145
  %v2213 = vpack.c.b16 %v2148, %v2147
  %v2214 = vpack.c.b16 %v2150, %v2149
  %2279 = vst [vmem:[%s3] sm:$0xff] %v2151
  %2280 = vst [vmem:[%s3 + $0x8] sm:$0xff] %v2152
  %2281 = vst [vmem:[%s3 + $0x10] sm:$0xff] %v2153
  %2282 = vst [vmem:[%s3 + $0x18] sm:$0xff] %v2154
  %2283 = vst [vmem:[%s3 + $0x20] sm:$0xff] %v2155
  %2284 = vst [vmem:[%s3 + $0x28] sm:$0xff] %v2156
  %2285 = vst [vmem:[%s3 + $0x30] sm:$0xff] %v2157
  %2286 = vst [vmem:[%s3 + $0x38] sm:$0xff] %v2158
  %2287 = vst [vmem:[%s3 + $0x40] sm:$0xff] %v2159
  %2288 = vst [vmem:[%s3 + $0x48] sm:$0xff] %v2160
  %2289 = vst [vmem:[%s3 + $0x50] sm:$0xff] %v2161
  %2290 = vst [vmem:[%s3 + $0x58] sm:$0xff] %v2162
  %2291 = vst [vmem:[%s3 + $0x60] sm:$0xff] %v2163
  %2292 = vst [vmem:[%s3 + $0x68] sm:$0xff] %v2164
  %2293 = vst [vmem:[%s3 + $0x70] sm:$0xff] %v2165
  %2294 = vst [vmem:[%s3 + $0x78] sm:$0xff] %v2166
  %2295 = vst [vmem:[%s3 + $0x80] sm:$0xff] %v2167
  %2296 = vst [vmem:[%s3 + $0x88] sm:$0xff] %v2168
  %2297 = vst [vmem:[%s3 + $0x90] sm:$0xff] %v2169
  %2298 = vst [vmem:[%s3 + $0x98] sm:$0xff] %v2170
  %2299 = vst [vmem:[%s3 + $0xa0] sm:$0xff] %v2171
  %2300 = vst [vmem:[%s3 + $0xa8] sm:$0xff] %v2172
  %2301 = vst [vmem:[%s3 + $0xb0] sm:$0xff] %v2173
  %2302 = vst [vmem:[%s3 + $0xb8] sm:$0xff] %v2174
  %2303 = vst [vmem:[%s3 + $0xc0] sm:$0xff] %v2175
  %2304 = vst [vmem:[%s3 + $0xc8] sm:$0xff] %v2176
  %2305 = vst [vmem:[%s3 + $0xd0] sm:$0xff] %v2177
  %2306 = vst [vmem:[%s3 + $0xd8] sm:$0xff] %v2178
  %2307 = vst [vmem:[%s3 + $0xe0] sm:$0xff] %v2179
  %2308 = vst [vmem:[%s3 + $0xe8] sm:$0xff] %v2180
  %2309 = vst [vmem:[%s3 + $0xf0] sm:$0xff] %v2181
  %2310 = vst [vmem:[%s3 + $0xf8] sm:$0xff] %v2182
  %2311 = vst [vmem:[%s3 + $0x100] sm:$0xff] %v2183
  %2312 = vst [vmem:[%s3 + $0x108] sm:$0xff] %v2184
  %2313 = vst [vmem:[%s3 + $0x110] sm:$0xff] %v2185
  %2314 = vst [vmem:[%s3 + $0x118] sm:$0xff] %v2186
  %2315 = vst [vmem:[%s3 + $0x120] sm:$0xff] %v2187
  %2316 = vst [vmem:[%s3 + $0x128] sm:$0xff] %v2188
  %2317 = vst [vmem:[%s3 + $0x130] sm:$0xff] %v2189
  %2318 = vst [vmem:[%s3 + $0x138] sm:$0xff] %v2190
  %2319 = vst [vmem:[%s3 + $0x140] sm:$0xff] %v2191
  %2320 = vst [vmem:[%s3 + $0x148] sm:$0xff] %v2192
  %2321 = vst [vmem:[%s3 + $0x150] sm:$0xff] %v2193
  %2322 = vst [vmem:[%s3 + $0x158] sm:$0xff] %v2194
  %2323 = vst [vmem:[%s3 + $0x160] sm:$0xff] %v2195
  %2324 = vst [vmem:[%s3 + $0x168] sm:$0xff] %v2196
  %2325 = vst [vmem:[%s3 + $0x170] sm:$0xff] %v2197
  %2326 = vst [vmem:[%s3 + $0x178] sm:$0xff] %v2198
  %2327 = vst [vmem:[%s3 + $0x180] sm:$0xff] %v2199
  %2328 = vst [vmem:[%s3 + $0x188] sm:$0xff] %v2200
  %2329 = vst [vmem:[%s3 + $0x190] sm:$0xff] %v2201
  %2330 = vst [vmem:[%s3 + $0x198] sm:$0xff] %v2202
  %2331 = vst [vmem:[%s3 + $0x1a0] sm:$0xff] %v2203
  %2332 = vst [vmem:[%s3 + $0x1a8] sm:$0xff] %v2204
  %2333 = vst [vmem:[%s3 + $0x1b0] sm:$0xff] %v2205
  %2334 = vst [vmem:[%s3 + $0x1b8] sm:$0xff] %v2206
  %2335 = vst [vmem:[%s3 + $0x1c0] sm:$0xff] %v2207
  %2336 = vst [vmem:[%s3 + $0x1c8] sm:$0xff] %v2208
  %2337 = vst [vmem:[%s3 + $0x1d0] sm:$0xff] %v2209
  %2338 = vst [vmem:[%s3 + $0x1d8] sm:$0xff] %v2210
  %2339 = vst [vmem:[%s3 + $0x1e0] sm:$0xff] %v2211
  %2340 = vst [vmem:[%s3 + $0x1e8] sm:$0xff] %v2212
  %2341 = vst [vmem:[%s3 + $0x1f0] sm:$0xff] %v2213
  %2342 = vst [vmem:[%s3 + $0x1f8] sm:$0xff] %v2214
  // Predicated region
  $region14: #{gpt2_logits.21} parent=0 // pred_check
    _
  $region15: #{gpt2_logits.21} parent=0 // pred_check_branch
    %2344 = sbr.rel (0) target = $region17
  $region16: #{gpt2_logits.21} parent=0 // pred_region
    _
  $region17: #{gpt2_logits.21} parent=0 // pred_fallthru
    _
  // Predicated region
  $region18: #{gpt2_logits.21} parent=0 // pred_check
    _
  $region19: #{gpt2_logits.21} parent=0 // pred_check_branch
    %2346 = sbr.rel (0) target = $region21
  $region20: #{gpt2_logits.21} parent=0 // pred_region
    _
  $region21: #{gpt2_logits.21} parent=0 // pred_fallthru
    _

// kernel: gpt2_logits.31
$region0: #{gpt2_logits.31}
  #allocation0 [shape = 'u32[]', space=smem, size = 0x4, offset = 0x4, fixed_abs, tag = 'smem constant byte address 0x4 - core index']
  #allocation1 [shape = 'u32[144,128]{1,0:T(1,128)}', space=vmem, size = 0x12000, scoped, tag = 'internal scratch']
  %s0 = inlined_call_operand.vmem [shape: bf16[256,128], index: 0, kind: input, shape index: {}]
  %s1 = inlined_call_operand.vmem [shape: bf16[512,128], index: 1, kind: input, shape index: {}]
  %s2 = inlined_call_operand.hbm [shape: f32[200,500], index: 2, kind: output, shape index: {}]
  %s3 = sld [smem:[#allocation0]]
  $region18: #{gpt2_logits.31} parent=0
    _
  %s5 = ssub.s32 1, %s3
  %s6 = scalar_select 0, %s5, %s3
  $region1: #{gpt2_logits.31} parent=0
    #allocation2 [shape = 'u8[524288]{0}', space=vmem, size = 0x80000, scoped, tag = 'output window, operand 0, single buffered']
    #allocation3 [shape = 's32[1]{0}', space=sflag, size = 0x4, scoped, tag = 'scoped memory for gpt2_logits.31']
    %7 = vsyncpa [#allocation3], 0
    // Predicated region
    $region2: #{gpt2_logits.31} parent=1 // pred_check
      _
    $region3: #{gpt2_logits.31} parent=1 // pred_check_branch
      %9 = sbr.rel (0) target = $region5
    $region4: #{gpt2_logits.31} parent=1 // pred_region
      _
    $region5: #{gpt2_logits.31} parent=1 // pred_fallthru
      _
    // Predicated region
    $region6: #{gpt2_logits.31} parent=1 // pred_check
      _
    $region7: #{gpt2_logits.31} parent=1 // pred_check_branch
      %11 = sbr.rel (0) target = $region9
    $region8: #{gpt2_logits.31} parent=1 // pred_region
      _
    $region9: #{gpt2_logits.31} parent=1 // pred_fallthru
      _
    %v13 = vld [vmem:[%s0] sm:$0xf]
    %v14 = vld [vmem:[%s0 + $0x4] sm:$0xf]
    %v15 = vld [vmem:[%s0 + $0x8] sm:$0xf]
    %v16 = vld [vmem:[%s0 + $0xc] sm:$0xf]
    %v17 = vld [vmem:[%s0 + $0x10] sm:$0xf]
    %v18 = vld [vmem:[%s0 + $0x14] sm:$0xf]
    %v19 = vld [vmem:[%s0 + $0x18] sm:$0xf]
    %v20 = vld [vmem:[%s0 + $0x1c] sm:$0xf]
    %v21 = vld [vmem:[%s0 + $0x20] sm:$0xf]
    %v22 = vld [vmem:[%s0 + $0x24] sm:$0xf]
    %v23 = vld [vmem:[%s0 + $0x28] sm:$0xf]
    %v24 = vld [vmem:[%s0 + $0x2c] sm:$0xf]
    %v25 = vld [vmem:[%s0 + $0x30] sm:$0xf]
    %v26 = vld [vmem:[%s0 + $0x34] sm:$0xf]
    %v27 = vld [vmem:[%s0 + $0x38] sm:$0xf]
    %v28 = vld [vmem:[%s0 + $0x3c] sm:$0xf]
    %v29 = vld [vmem:[%s0 + $0x40] sm:$0xf]
    %v30 = vld [vmem:[%s0 + $0x44] sm:$0xf]
    %v31 = vld [vmem:[%s0 + $0x48] sm:$0xf]
    %v32 = vld [vmem:[%s0 + $0x4c] sm:$0xf]
    %v33 = vld [vmem:[%s0 + $0x50] sm:$0xf]
    %v34 = vld [vmem:[%s0 + $0x54] sm:$0xf]
    %v35 = vld [vmem:[%s0 + $0x58] sm:$0xf]
    %v36 = vld [vmem:[%s0 + $0x5c] sm:$0xf]
    %v37 = vld [vmem:[%s0 + $0x60] sm:$0xf]
    %v38 = vld [vmem:[%s0 + $0x64] sm:$0xf]
    %v39 = vld [vmem:[%s0 + $0x68] sm:$0xf]
    %v40 = vld [vmem:[%s0 + $0x6c] sm:$0xf]
    %v41 = vld [vmem:[%s0 + $0x70] sm:$0xf]
    %v42 = vld [vmem:[%s0 + $0x74] sm:$0xf]
    %v43 = vld [vmem:[%s0 + $0x78] sm:$0xf]
    %v44 = vld [vmem:[%s0 + $0x7c] sm:$0xf]
    %v45 = vld [vmem:[%s1] sm:$0xf]
    %v46 = vld [vmem:[%s1 + $0x4] sm:$0xf]
    %v47 = vld [vmem:[%s1 + $0x8] sm:$0xf]
    %v48 = vld [vmem:[%s1 + $0xc] sm:$0xf]
    %v49 = vld [vmem:[%s1 + $0x10] sm:$0xf]
    %v50 = vld [vmem:[%s1 + $0x14] sm:$0xf]
    %v51 = vld [vmem:[%s1 + $0x18] sm:$0xf]
    %v52 = vld [vmem:[%s1 + $0x1c] sm:$0xf]
    %v53 = vld [vmem:[%s1 + $0x20] sm:$0xf]
    %v54 = vld [vmem:[%s1 + $0x24] sm:$0xf]
    %v55 = vld [vmem:[%s1 + $0x28] sm:$0xf]
    %v56 = vld [vmem:[%s1 + $0x2c] sm:$0xf]
    %v57 = vld [vmem:[%s1 + $0x30] sm:$0xf]
    %v58 = vld [vmem:[%s1 + $0x34] sm:$0xf]
    %v59 = vld [vmem:[%s1 + $0x38] sm:$0xf]
    %v60 = vld [vmem:[%s1 + $0x3c] sm:$0xf]
    %v61 = vld [vmem:[%s1 + $0x40] sm:$0xf]
    %v62 = vld [vmem:[%s1 + $0x44] sm:$0xf]
    %v63 = vld [vmem:[%s1 + $0x48] sm:$0xf]
    %v64 = vld [vmem:[%s1 + $0x4c] sm:$0xf]
    %v65 = vld [vmem:[%s1 + $0x50] sm:$0xf]
    %v66 = vld [vmem:[%s1 + $0x54] sm:$0xf]
    %v67 = vld [vmem:[%s1 + $0x58] sm:$0xf]
    %v68 = vld [vmem:[%s1 + $0x5c] sm:$0xf]
    %v69 = vld [vmem:[%s1 + $0x60] sm:$0xf]
    %v70 = vld [vmem:[%s1 + $0x64] sm:$0xf]
    %v71 = vld [vmem:[%s1 + $0x68] sm:$0xf]
    %v72 = vld [vmem:[%s1 + $0x6c] sm:$0xf]
    %v73 = vld [vmem:[%s1 + $0x70] sm:$0xf]
    %v74 = vld [vmem:[%s1 + $0x74] sm:$0xf]
    %v75 = vld [vmem:[%s1 + $0x78] sm:$0xf]
    %v76 = vld [vmem:[%s1 + $0x7c] sm:$0xf]
    %v77 = vld [vmem:[%s1 + $0x80] sm:$0xf]
    %v78 = vld [vmem:[%s1 + $0x84] sm:$0xf]
    %v79 = vld [vmem:[%s1 + $0x88] sm:$0xf]
    %v80 = vld [vmem:[%s1 + $0x8c] sm:$0xf]
    %v81 = vld [vmem:[%s1 + $0x90] sm:$0xf]
    %v82 = vld [vmem:[%s1 + $0x94] sm:$0xf]
    %v83 = vld [vmem:[%s1 + $0x98] sm:$0xf]
    %v84 = vld [vmem:[%s1 + $0x9c] sm:$0xf]
    %v85 = vld [vmem:[%s1 + $0xa0] sm:$0xf]
    %v86 = vld [vmem:[%s1 + $0xa4] sm:$0xf]
    %v87 = vld [vmem:[%s1 + $0xa8] sm:$0xf]
    %v88 = vld [vmem:[%s1 + $0xac] sm:$0xf]
    %v89 = vld [vmem:[%s1 + $0xb0] sm:$0xf]
    %v90 = vld [vmem:[%s1 + $0xb4] sm:$0xf]
    %v91 = vld [vmem:[%s1 + $0xb8] sm:$0xf]
    %v92 = vld [vmem:[%s1 + $0xbc] sm:$0xf]
    %v93 = vld [vmem:[%s1 + $0xc0] sm:$0xf]
    %v94 = vld [vmem:[%s1 + $0xc4] sm:$0xf]
    %v95 = vld [vmem:[%s1 + $0xc8] sm:$0xf]
    %v96 = vld [vmem:[%s1 + $0xcc] sm:$0xf]
    %v97 = vld [vmem:[%s1 + $0xd0] sm:$0xf]
    %v98 = vld [vmem:[%s1 + $0xd4] sm:$0xf]
    %v99 = vld [vmem:[%s1 + $0xd8] sm:$0xf]
    %v100 = vld [vmem:[%s1 + $0xdc] sm:$0xf]
    %v101 = vld [vmem:[%s1 + $0xe0] sm:$0xf]
    %v102 = vld [vmem:[%s1 + $0xe4] sm:$0xf]
    %v103 = vld [vmem:[%s1 + $0xe8] sm:$0xf]
    %v104 = vld [vmem:[%s1 + $0xec] sm:$0xf]
    %v105 = vld [vmem:[%s1 + $0xf0] sm:$0xf]
    %v106 = vld [vmem:[%s1 + $0xf4] sm:$0xf]
    %v107 = vld [vmem:[%s1 + $0xf8] sm:$0xf]
    %v108 = vld [vmem:[%s1 + $0xfc] sm:$0xf]
    %v141 = vunpack.c.l.b16 %v13
    %v142 = vunpack.c.l.b16 %v14
    %v143 = vunpack.c.l.b16 %v15
    %v144 = vunpack.c.l.b16 %v16
    %v145 = vunpack.c.l.b16 %v17
    %v146 = vunpack.c.l.b16 %v18
    %v147 = vunpack.c.l.b16 %v19
    %v148 = vunpack.c.l.b16 %v20
    %v149 = vunpack.c.l.b16 %v21
    %v150 = vunpack.c.l.b16 %v22
    %v151 = vunpack.c.l.b16 %v23
    %v152 = vunpack.c.l.b16 %v24
    %v153 = vunpack.c.l.b16 %v25
    %v154 = vunpack.c.l.b16 %v26
    %v155 = vunpack.c.l.b16 %v27
    %v156 = vunpack.c.l.b16 %v28
    %v157 = vunpack.c.l.b16 %v29
    %v158 = vunpack.c.l.b16 %v30
    %v159 = vunpack.c.l.b16 %v31
    %v160 = vunpack.c.l.b16 %v32
    %v161 = vunpack.c.l.b16 %v33
    %v162 = vunpack.c.l.b16 %v34
    %v163 = vunpack.c.l.b16 %v35
    %v164 = vunpack.c.l.b16 %v36
    %v165 = vunpack.c.l.b16 %v37
    %v166 = vunpack.c.l.b16 %v38
    %v167 = vunpack.c.l.b16 %v39
    %v168 = vunpack.c.l.b16 %v40
    %v169 = vunpack.c.l.b16 %v41
    %v170 = vunpack.c.l.b16 %v42
    %v171 = vunpack.c.l.b16 %v43
    %v172 = vunpack.c.l.b16 %v44
    %v173 = vpack.c.b16 %v142, %v141
    %v174 = vpack.c.b16 %v144, %v143
    %v175 = vpack.c.b16 %v146, %v145
    %v176 = vpack.c.b16 %v148, %v147
    %v177 = vpack.c.b16 %v150, %v149
    %v178 = vpack.c.b16 %v152, %v151
    %v179 = vpack.c.b16 %v154, %v153
    %v180 = vpack.c.b16 %v156, %v155
    %v181 = vpack.c.b16 %v158, %v157
    %v182 = vpack.c.b16 %v160, %v159
    %v183 = vpack.c.b16 %v162, %v161
    %v184 = vpack.c.b16 %v164, %v163
    %v185 = vpack.c.b16 %v166, %v165
    %v186 = vpack.c.b16 %v168, %v167
    %v187 = vpack.c.b16 %v170, %v169
    %v188 = vpack.c.b16 %v172, %v171
    %v269 = vunpack.c.l.b16 %v45
    %v270 = vunpack.c.l.b16 %v46
    %v271 = vunpack.c.l.b16 %v47
    %v272 = vunpack.c.l.b16 %v48
    %v273 = vunpack.c.l.b16 %v49
    %v274 = vunpack.c.l.b16 %v50
    %v275 = vunpack.c.l.b16 %v51
    %v276 = vunpack.c.l.b16 %v52
    %v277 = vunpack.c.l.b16 %v53
    %v278 = vunpack.c.l.b16 %v54
    %v279 = vunpack.c.l.b16 %v55
    %v280 = vunpack.c.l.b16 %v56
    %v281 = vunpack.c.l.b16 %v57
    %v282 = vunpack.c.l.b16 %v58
    %v283 = vunpack.c.l.b16 %v59
    %v284 = vunpack.c.l.b16 %v60
    %v285 = vunpack.c.l.b16 %v61
    %v286 = vunpack.c.l.b16 %v62
    %v287 = vunpack.c.l.b16 %v63
    %v288 = vunpack.c.l.b16 %v64
    %v289 = vunpack.c.l.b16 %v65
    %v290 = vunpack.c.l.b16 %v66
    %v291 = vunpack.c.l.b16 %v67
    %v292 = vunpack.c.l.b16 %v68
    %v293 = vunpack.c.l.b16 %v69
    %v294 = vunpack.c.l.b16 %v70
    %v295 = vunpack.c.l.b16 %v71
    %v296 = vunpack.c.l.b16 %v72
    %v297 = vunpack.c.l.b16 %v73
    %v298 = vunpack.c.l.b16 %v74
    %v299 = vunpack.c.l.b16 %v75
    %v300 = vunpack.c.l.b16 %v76
    %v301 = vunpack.c.l.b16 %v77
    %v302 = vunpack.c.l.b16 %v78
    %v303 = vunpack.c.l.b16 %v79
    %v304 = vunpack.c.l.b16 %v80
    %v305 = vunpack.c.l.b16 %v81
    %v306 = vunpack.c.l.b16 %v82
    %v307 = vunpack.c.l.b16 %v83
    %v308 = vunpack.c.l.b16 %v84
    %v309 = vunpack.c.l.b16 %v85
    %v310 = vunpack.c.l.b16 %v86
    %v311 = vunpack.c.l.b16 %v87
    %v312 = vunpack.c.l.b16 %v88
    %v313 = vunpack.c.l.b16 %v89
    %v314 = vunpack.c.l.b16 %v90
    %v315 = vunpack.c.l.b16 %v91
    %v316 = vunpack.c.l.b16 %v92
    %v317 = vunpack.c.l.b16 %v93
    %v318 = vunpack.c.l.b16 %v94
    %v319 = vunpack.c.l.b16 %v95
    %v320 = vunpack.c.l.b16 %v96
    %v321 = vunpack.c.l.b16 %v97
    %v322 = vunpack.c.l.b16 %v98
    %v323 = vunpack.c.l.b16 %v99
    %v324 = vunpack.c.l.b16 %v100
    %v325 = vunpack.c.l.b16 %v101
    %v326 = vunpack.c.l.b16 %v102
    %v327 = vunpack.c.l.b16 %v103
    %v328 = vunpack.c.l.b16 %v104
    %v329 = vunpack.c.l.b16 %v105
    %v330 = vunpack.c.l.b16 %v106
    %v331 = vunpack.c.l.b16 %v107
    %v332 = vunpack.c.l.b16 %v108
    %v333 = vpack.c.b16 %v270, %v269
    %v334 = vpack.c.b16 %v272, %v271
    %v335 = vpack.c.b16 %v274, %v273
    %v336 = vpack.c.b16 %v276, %v275
    %v337 = vpack.c.b16 %v278, %v277
    %v338 = vpack.c.b16 %v280, %v279
    %v339 = vpack.c.b16 %v282, %v281
    %v340 = vpack.c.b16 %v284, %v283
    %v341 = vpack.c.b16 %v286, %v285
    %v342 = vpack.c.b16 %v288, %v287
    %v343 = vpack.c.b16 %v290, %v289
    %v344 = vpack.c.b16 %v292, %v291
    %v345 = vpack.c.b16 %v294, %v293
    %v346 = vpack.c.b16 %v296, %v295
    %v347 = vpack.c.b16 %v298, %v297
    %v348 = vpack.c.b16 %v300, %v299
    %v349 = vpack.c.b16 %v302, %v301
    %v350 = vpack.c.b16 %v304, %v303
    %v351 = vpack.c.b16 %v306, %v305
    %v352 = vpack.c.b16 %v308, %v307
    %v353 = vpack.c.b16 %v310, %v309
    %v354 = vpack.c.b16 %v312, %v311
    %v355 = vpack.c.b16 %v314, %v313
    %v356 = vpack.c.b16 %v316, %v315
    %v357 = vpack.c.b16 %v318, %v317
    %v358 = vpack.c.b16 %v320, %v319
    %v359 = vpack.c.b16 %v322, %v321
    %v360 = vpack.c.b16 %v324, %v323
    %v361 = vpack.c.b16 %v326, %v325
    %v362 = vpack.c.b16 %v328, %v327
    %v363 = vpack.c.b16 %v330, %v329
    %v364 = vpack.c.b16 %v332, %v331
    %397 = vmatprep.subr.bf16.mxu0 0
    %398 = vmatpush1.bf16.xpose.msra.mxu0 %v340
    %399 = vmatprep.subr.bf16.mxu0 0
    %400 = vmatpush1.bf16.xpose.msra.mxu0 %v339
    %401 = vmatprep.subr.bf16.mxu0 0
    %402 = vmatpush1.bf16.xpose.msra.mxu0 %v338
    %403 = vmatprep.subr.bf16.mxu0 0
    %404 = vmatpush1.bf16.xpose.msra.mxu0 %v337
    %405 = vmatprep.subr.bf16.mxu0 0
    %406 = vmatpush1.bf16.xpose.msra.mxu0 %v336
    %407 = vmatprep.subr.bf16.mxu0 0
    %408 = vmatpush1.bf16.xpose.msra.mxu0 %v335
    %409 = vmatprep.subr.bf16.mxu0 0
    %410 = vmatpush1.bf16.xpose.msra.mxu0 %v334
    %411 = vmatprep.subr.bf16.mxu0 0
    %412 = vmatpush1.bf16.xpose.msra.mxu0 %v333
    %413 = vmatprep.subr.bf16.mxu0 0
    %414 = vmatpush2.bf16.xpose.msra.mxu0 %v348
    %415 = vmatprep.subr.bf16.mxu0 0
    %416 = vmatpush2.bf16.xpose.msra.mxu0 %v347
    %417 = vmatprep.subr.bf16.mxu0 0
    %418 = vmatpush2.bf16.xpose.msra.mxu0 %v346
    %419 = vmatprep.subr.bf16.mxu0 0
    %420 = vmatpush2.bf16.xpose.msra.mxu0 %v345
    %421 = vmatprep.subr.bf16.mxu0 0
    %422 = vmatpush2.bf16.xpose.msra.mxu0 %v344
    %423 = vmatprep.subr.bf16.mxu0 0
    %424 = vmatpush2.bf16.xpose.msra.mxu0 %v343
    %425 = vmatprep.subr.bf16.mxu0 0
    %426 = vmatpush2.bf16.xpose.msra.mxu0 %v342
    %427 = vmatprep.subr.bf16.mxu0 0
    %428 = vmatpush2.bf16.xpose.msra.mxu0 %v341
    %429 = vmatprep.mubr.bf16.mxu0 0
    %430 = vmatmul.mubr.bf16.gmra.mxu0 %v173
    %v431 = vpop.f32.mrf.mxu0
    %v432 = vadd.f32 0.0, %v431
    %v433 = vpop.f32.mrf.mxu0
    %v434 = vadd.f32 0.0, %v433
    %v435 = vpop.f32.mrf.mxu0
    %v436 = vadd.f32 0.0, %v435
    %v437 = vpop.f32.mrf.mxu0
    %v438 = vadd.f32 0.0, %v437
    %439 = vmatprep.mubr.bf16.mxu0 0
    %440 = vmatmul.mubr.bf16.gmra.mxu0 %v174
    %v441 = vpop.f32.mrf.mxu0
    %v442 = vadd.f32 0.0, %v441
    %v443 = vpop.f32.mrf.mxu0
    %v444 = vadd.f32 0.0, %v443
    %v445 = vpop.f32.mrf.mxu0
    %v446 = vadd.f32 0.0, %v445
    %v447 = vpop.f32.mrf.mxu0
    %v448 = vadd.f32 0.0, %v447
    %449 = vmatprep.mubr.bf16.mxu0 0
    %450 = vmatmul.mubr.bf16.gmra.mxu0 %v175
    %v451 = vpop.f32.mrf.mxu0
    %v452 = vadd.f32 0.0, %v451
    %v453 = vpop.f32.mrf.mxu0
    %v454 = vadd.f32 0.0, %v453
    %v455 = vpop.f32.mrf.mxu0
    %v456 = vadd.f32 0.0, %v455
    %v457 = vpop.f32.mrf.mxu0
    %v458 = vadd.f32 0.0, %v457
    %459 = vmatprep.mubr.bf16.mxu0 0
    %460 = vmatmul.mubr.bf16.gmra.mxu0 %v176
    %v461 = vpop.f32.mrf.mxu0
    %v462 = vadd.f32 0.0, %v461
    %v463 = vpop.f32.mrf.mxu0
    %v464 = vadd.f32 0.0, %v463
    %v465 = vpop.f32.mrf.mxu0
    %v466 = vadd.f32 0.0, %v465
    %v467 = vpop.f32.mrf.mxu0
    %v468 = vadd.f32 0.0, %v467
    %469 = vmatprep.mubr.bf16.mxu0 0
    %470 = vmatmul.mubr.bf16.gmra.mxu0 %v177
    %v471 = vpop.f32.mrf.mxu0
    %v472 = vadd.f32 0.0, %v471
    %v473 = vpop.f32.mrf.mxu0
    %v474 = vadd.f32 0.0, %v473
    %v475 = vpop.f32.mrf.mxu0
    %v476 = vadd.f32 0.0, %v475
    %v477 = vpop.f32.mrf.mxu0
    %v478 = vadd.f32 0.0, %v477
    %479 = vmatprep.mubr.bf16.mxu0 0
    %480 = vmatmul.mubr.bf16.gmra.mxu0 %v178
    %v481 = vpop.f32.mrf.mxu0
    %v482 = vadd.f32 0.0, %v481
    %v483 = vpop.f32.mrf.mxu0
    %v484 = vadd.f32 0.0, %v483
    %v485 = vpop.f32.mrf.mxu0
    %v486 = vadd.f32 0.0, %v485
    %v487 = vpop.f32.mrf.mxu0
    %v488 = vadd.f32 0.0, %v487
    %489 = vmatprep.mubr.bf16.mxu0 0
    %490 = vmatmul.mubr.bf16.gmra.mxu0 %v179
    %v491 = vpop.f32.mrf.mxu0
    %v492 = vadd.f32 0.0, %v491
    %v493 = vpop.f32.mrf.mxu0
    %v494 = vadd.f32 0.0, %v493
    %v495 = vpop.f32.mrf.mxu0
    %v496 = vadd.f32 0.0, %v495
    %v497 = vpop.f32.mrf.mxu0
    %v498 = vadd.f32 0.0, %v497
    %499 = vmatprep.mubr.bf16.mxu0 0
    %500 = vmatmul.mubr.bf16.gmra.mxu0 %v180
    %v501 = vpop.f32.mrf.mxu0
    %v502 = vadd.f32 0.0, %v501
    %v503 = vpop.f32.mrf.mxu0
    %v504 = vadd.f32 0.0, %v503
    %v505 = vpop.f32.mrf.mxu0
    %v506 = vadd.f32 0.0, %v505
    %v507 = vpop.f32.mrf.mxu0
    %v508 = vadd.f32 0.0, %v507
    %509 = vmatprep.mubr.bf16.mxu0 0
    %510 = vmatmul.mubr.bf16.gmra.mxu0 %v181
    %v511 = vpop.f32.mrf.mxu0
    %v512 = vadd.f32 0.0, %v511
    %v513 = vpop.f32.mrf.mxu0
    %v514 = vadd.f32 0.0, %v513
    %v515 = vpop.f32.mrf.mxu0
    %v516 = vadd.f32 0.0, %v515
    %v517 = vpop.f32.mrf.mxu0
    %v518 = vadd.f32 0.0, %v517
    %519 = vmatprep.mubr.bf16.mxu0 0
    %520 = vmatmul.mubr.bf16.gmra.mxu0 %v182
    %v521 = vpop.f32.mrf.mxu0
    %v522 = vadd.f32 0.0, %v521
    %v523 = vpop.f32.mrf.mxu0
    %v524 = vadd.f32 0.0, %v523
    %v525 = vpop.f32.mrf.mxu0
    %v526 = vadd.f32 0.0, %v525
    %v527 = vpop.f32.mrf.mxu0
    %v528 = vadd.f32 0.0, %v527
    %529 = vmatprep.mubr.bf16.mxu0 0
    %530 = vmatmul.mubr.bf16.gmra.mxu0 %v183
    %v531 = vpop.f32.mrf.mxu0
    %v532 = vadd.f32 0.0, %v531
    %v533 = vpop.f32.mrf.mxu0
    %v534 = vadd.f32 0.0, %v533
    %v535 = vpop.f32.mrf.mxu0
    %v536 = vadd.f32 0.0, %v535
    %v537 = vpop.f32.mrf.mxu0
    %v538 = vadd.f32 0.0, %v537
    %539 = vmatprep.mubr.bf16.mxu0 0
    %540 = vmatmul.mubr.bf16.gmra.mxu0 %v184
    %v541 = vpop.f32.mrf.mxu0
    %v542 = vadd.f32 0.0, %v541
    %v543 = vpop.f32.mrf.mxu0
    %v544 = vadd.f32 0.0, %v543
    %v545 = vpop.f32.mrf.mxu0
    %v546 = vadd.f32 0.0, %v545
    %v547 = vpop.f32.mrf.mxu0
    %v548 = vadd.f32 0.0, %v547
    %549 = vmatprep.mubr.bf16.mxu0 0
    %550 = vmatmul.mubr.bf16.gmra.mxu0 %v185
    %v551 = vpop.f32.mrf.mxu0
    %v552 = vadd.f32 0.0, %v551
    %v553 = vpop.f32.mrf.mxu0
    %v554 = vadd.f32 0.0, %v553
    %v555 = vpop.f32.mrf.mxu0
    %v556 = vadd.f32 0.0, %v555
    %v557 = vpop.f32.mrf.mxu0
    %v558 = vadd.f32 0.0, %v557
    %559 = vmatprep.mubr.bf16.mxu0 0
    %560 = vmatmul.mubr.bf16.gmra.mxu0 %v186
    %v561 = vpop.f32.mrf.mxu0
    %v562 = vadd.f32 0.0, %v561
    %v563 = vpop.f32.mrf.mxu0
    %v564 = vadd.f32 0.0, %v563
    %v565 = vpop.f32.mrf.mxu0
    %v566 = vadd.f32 0.0, %v565
    %v567 = vpop.f32.mrf.mxu0
    %v568 = vadd.f32 0.0, %v567
    %569 = vmatprep.mubr.bf16.mxu0 0
    %570 = vmatmul.mubr.bf16.gmra.mxu0 %v187
    %v571 = vpop.f32.mrf.mxu0
    %v572 = vadd.f32 0.0, %v571
    %v573 = vpop.f32.mrf.mxu0
    %v574 = vadd.f32 0.0, %v573
    %v575 = vpop.f32.mrf.mxu0
    %v576 = vadd.f32 0.0, %v575
    %v577 = vpop.f32.mrf.mxu0
    %v578 = vadd.f32 0.0, %v577
    %579 = vmatprep.mubr.bf16.mxu0 0
    %580 = vmatmul.mubr.bf16.gmra.mxu0 %v188
    %v581 = vpop.f32.mrf.mxu0
    %v582 = vadd.f32 0.0, %v581
    %v583 = vpop.f32.mrf.mxu0
    %v584 = vadd.f32 0.0, %v583
    %v585 = vpop.f32.mrf.mxu0
    %v586 = vadd.f32 0.0, %v585
    %v587 = vpop.f32.mrf.mxu0
    %v588 = vadd.f32 0.0, %v587
    %589 = vdwg.mxu0
    %590 = vmatprep.subr.bf16.mxu0 0
    %591 = vmatpush1.bf16.xpose.msra.mxu0 %v356
    %592 = vmatprep.subr.bf16.mxu0 0
    %593 = vmatpush1.bf16.xpose.msra.mxu0 %v355
    %594 = vmatprep.subr.bf16.mxu0 0
    %595 = vmatpush1.bf16.xpose.msra.mxu0 %v354
    %596 = vmatprep.subr.bf16.mxu0 0
    %597 = vmatpush1.bf16.xpose.msra.mxu0 %v353
    %598 = vmatprep.subr.bf16.mxu0 0
    %599 = vmatpush1.bf16.xpose.msra.mxu0 %v352
    %600 = vmatprep.subr.bf16.mxu0 0
    %601 = vmatpush1.bf16.xpose.msra.mxu0 %v351
    %602 = vmatprep.subr.bf16.mxu0 0
    %603 = vmatpush1.bf16.xpose.msra.mxu0 %v350
    %604 = vmatprep.subr.bf16.mxu0 0
    %605 = vmatpush1.bf16.xpose.msra.mxu0 %v349
    %606 = vmatprep.subr.bf16.mxu0 0
    %607 = vmatpush2.bf16.xpose.msra.mxu0 %v364
    %608 = vmatprep.subr.bf16.mxu0 0
    %609 = vmatpush2.bf16.xpose.msra.mxu0 %v363
    %610 = vmatprep.subr.bf16.mxu0 0
    %611 = vmatpush2.bf16.xpose.msra.mxu0 %v362
    %612 = vmatprep.subr.bf16.mxu0 0
    %613 = vmatpush2.bf16.xpose.msra.mxu0 %v361
    %614 = vmatprep.subr.bf16.mxu0 0
    %615 = vmatpush2.bf16.xpose.msra.mxu0 %v360
    %616 = vmatprep.subr.bf16.mxu0 0
    %617 = vmatpush2.bf16.xpose.msra.mxu0 %v359
    %618 = vmatprep.subr.bf16.mxu0 0
    %619 = vmatpush2.bf16.xpose.msra.mxu0 %v358
    %620 = vmatprep.subr.bf16.mxu0 0
    %621 = vmatpush2.bf16.xpose.msra.mxu0 %v357
    %622 = vmatprep.mubr.bf16.mxu0 0
    %623 = vmatmul.mubr.bf16.gmra.mxu0 %v173
    %v624 = vpop.f32.mrf.mxu0
    %v625 = vadd.f32 0.0, %v624
    %v626 = vpop.f32.mrf.mxu0
    %v627 = vadd.f32 0.0, %v626
    %v628 = vpop.f32.mrf.mxu0
    %v629 = vadd.f32 0.0, %v628
    %v630 = vpop.f32.mrf.mxu0
    %v631 = vadd.f32 0.0, %v630
    %632 = vmatprep.mubr.bf16.mxu0 0
    %633 = vmatmul.mubr.bf16.gmra.mxu0 %v174
    %v634 = vpop.f32.mrf.mxu0
    %v635 = vadd.f32 0.0, %v634
    %v636 = vpop.f32.mrf.mxu0
    %v637 = vadd.f32 0.0, %v636
    %v638 = vpop.f32.mrf.mxu0
    %v639 = vadd.f32 0.0, %v638
    %v640 = vpop.f32.mrf.mxu0
    %v641 = vadd.f32 0.0, %v640
    %642 = vmatprep.mubr.bf16.mxu0 0
    %643 = vmatmul.mubr.bf16.gmra.mxu0 %v175
    %v644 = vpop.f32.mrf.mxu0
    %v645 = vadd.f32 0.0, %v644
    %v646 = vpop.f32.mrf.mxu0
    %v647 = vadd.f32 0.0, %v646
    %v648 = vpop.f32.mrf.mxu0
    %v649 = vadd.f32 0.0, %v648
    %v650 = vpop.f32.mrf.mxu0
    %v651 = vadd.f32 0.0, %v650
    %652 = vmatprep.mubr.bf16.mxu0 0
    %653 = vmatmul.mubr.bf16.gmra.mxu0 %v176
    %v654 = vpop.f32.mrf.mxu0
    %v655 = vadd.f32 0.0, %v654
    %v656 = vpop.f32.mrf.mxu0
    %v657 = vadd.f32 0.0, %v656
    %v658 = vpop.f32.mrf.mxu0
    %v659 = vadd.f32 0.0, %v658
    %v660 = vpop.f32.mrf.mxu0
    %v661 = vadd.f32 0.0, %v660
    %662 = vmatprep.mubr.bf16.mxu0 0
    %663 = vmatmul.mubr.bf16.gmra.mxu0 %v177
    %v664 = vpop.f32.mrf.mxu0
    %v665 = vadd.f32 0.0, %v664
    %v666 = vpop.f32.mrf.mxu0
    %v667 = vadd.f32 0.0, %v666
    %v668 = vpop.f32.mrf.mxu0
    %v669 = vadd.f32 0.0, %v668
    %v670 = vpop.f32.mrf.mxu0
    %v671 = vadd.f32 0.0, %v670
    %672 = vmatprep.mubr.bf16.mxu0 0
    %673 = vmatmul.mubr.bf16.gmra.mxu0 %v178
    %v674 = vpop.f32.mrf.mxu0
    %v675 = vadd.f32 0.0, %v674
    %v676 = vpop.f32.mrf.mxu0
    %v677 = vadd.f32 0.0, %v676
    %v678 = vpop.f32.mrf.mxu0
    %v679 = vadd.f32 0.0, %v678
    %v680 = vpop.f32.mrf.mxu0
    %v681 = vadd.f32 0.0, %v680
    %682 = vmatprep.mubr.bf16.mxu0 0
    %683 = vmatmul.mubr.bf16.gmra.mxu0 %v179
    %v684 = vpop.f32.mrf.mxu0
    %v685 = vadd.f32 0.0, %v684
    %v686 = vpop.f32.mrf.mxu0
    %v687 = vadd.f32 0.0, %v686
    %v688 = vpop.f32.mrf.mxu0
    %v689 = vadd.f32 0.0, %v688
    %v690 = vpop.f32.mrf.mxu0
    %v691 = vadd.f32 0.0, %v690
    %692 = vmatprep.mubr.bf16.mxu0 0
    %693 = vmatmul.mubr.bf16.gmra.mxu0 %v180
    %v694 = vpop.f32.mrf.mxu0
    %v695 = vadd.f32 0.0, %v694
    %v696 = vpop.f32.mrf.mxu0
    %v697 = vadd.f32 0.0, %v696
    %v698 = vpop.f32.mrf.mxu0
    %v699 = vadd.f32 0.0, %v698
    %v700 = vpop.f32.mrf.mxu0
    %v701 = vadd.f32 0.0, %v700
    %702 = vmatprep.mubr.bf16.mxu0 0
    %703 = vmatmul.mubr.bf16.gmra.mxu0 %v181
    %v704 = vpop.f32.mrf.mxu0
    %v705 = vadd.f32 0.0, %v704
    %v706 = vpop.f32.mrf.mxu0
    %v707 = vadd.f32 0.0, %v706
    %v708 = vpop.f32.mrf.mxu0
    %v709 = vadd.f32 0.0, %v708
    %v710 = vpop.f32.mrf.mxu0
    %v711 = vadd.f32 0.0, %v710
    %712 = vmatprep.mubr.bf16.mxu0 0
    %713 = vmatmul.mubr.bf16.gmra.mxu0 %v182
    %v714 = vpop.f32.mrf.mxu0
    %v715 = vadd.f32 0.0, %v714
    %v716 = vpop.f32.mrf.mxu0
    %v717 = vadd.f32 0.0, %v716
    %v718 = vpop.f32.mrf.mxu0
    %v719 = vadd.f32 0.0, %v718
    %v720 = vpop.f32.mrf.mxu0
    %v721 = vadd.f32 0.0, %v720
    %722 = vmatprep.mubr.bf16.mxu0 0
    %723 = vmatmul.mubr.bf16.gmra.mxu0 %v183
    %v724 = vpop.f32.mrf.mxu0
    %v725 = vadd.f32 0.0, %v724
    %v726 = vpop.f32.mrf.mxu0
    %v727 = vadd.f32 0.0, %v726
    %v728 = vpop.f32.mrf.mxu0
    %v729 = vadd.f32 0.0, %v728
    %v730 = vpop.f32.mrf.mxu0
    %v731 = vadd.f32 0.0, %v730
    %732 = vmatprep.mubr.bf16.mxu0 0
    %733 = vmatmul.mubr.bf16.gmra.mxu0 %v184
    %v734 = vpop.f32.mrf.mxu0
    %v735 = vadd.f32 0.0, %v734
    %v736 = vpop.f32.mrf.mxu0
    %v737 = vadd.f32 0.0, %v736
    %v738 = vpop.f32.mrf.mxu0
    %v739 = vadd.f32 0.0, %v738
    %v740 = vpop.f32.mrf.mxu0
    %v741 = vadd.f32 0.0, %v740
    %742 = vmatprep.mubr.bf16.mxu0 0
    %743 = vmatmul.mubr.bf16.gmra.mxu0 %v185
    %v744 = vpop.f32.mrf.mxu0
    %v745 = vadd.f32 0.0, %v744
    %v746 = vpop.f32.mrf.mxu0
    %v747 = vadd.f32 0.0, %v746
    %v748 = vpop.f32.mrf.mxu0
    %v749 = vadd.f32 0.0, %v748
    %v750 = vpop.f32.mrf.mxu0
    %v751 = vadd.f32 0.0, %v750
    %752 = vmatprep.mubr.bf16.mxu0 0
    %753 = vmatmul.mubr.bf16.gmra.mxu0 %v186
    %v754 = vpop.f32.mrf.mxu0
    %v755 = vadd.f32 0.0, %v754
    %v756 = vpop.f32.mrf.mxu0
    %v757 = vadd.f32 0.0, %v756
    %v758 = vpop.f32.mrf.mxu0
    %v759 = vadd.f32 0.0, %v758
    %v760 = vpop.f32.mrf.mxu0
    %v761 = vadd.f32 0.0, %v760
    %762 = vmatprep.mubr.bf16.mxu0 0
    %763 = vmatmul.mubr.bf16.gmra.mxu0 %v187
    %v764 = vpop.f32.mrf.mxu0
    %v765 = vadd.f32 0.0, %v764
    %v766 = vpop.f32.mrf.mxu0
    %v767 = vadd.f32 0.0, %v766
    %v768 = vpop.f32.mrf.mxu0
    %v769 = vadd.f32 0.0, %v768
    %v770 = vpop.f32.mrf.mxu0
    %v771 = vadd.f32 0.0, %v770
    %772 = vmatprep.mubr.bf16.mxu0 0
    %773 = vmatmul.mubr.bf16.gmra.mxu0 %v188
    %v774 = vpop.f32.mrf.mxu0
    %v775 = vadd.f32 0.0, %v774
    %v776 = vpop.f32.mrf.mxu0
    %v777 = vadd.f32 0.0, %v776
    %v778 = vpop.f32.mrf.mxu0
    %v779 = vadd.f32 0.0, %v778
    %v780 = vpop.f32.mrf.mxu0
    %v781 = vadd.f32 0.0, %v780
    %782 = vdwg.mxu0
    %783 = vst [vmem:[#allocation2] sm:$0xff] %v432
    %784 = vst [vmem:[#allocation2 + $0x8] sm:$0xff] %v434
    %785 = vst [vmem:[#allocation2 + $0x10] sm:$0xff] %v625
    %786 = vst [vmem:[#allocation2 + $0x18] sm:$0xff] %v627
    %787 = vst [vmem:[#allocation2 + $0x20] sm:$0xff] %v436
    %788 = vst [vmem:[#allocation2 + $0x28] sm:$0xff] %v438
    %789 = vst [vmem:[#allocation2 + $0x30] sm:$0xff] %v629
    %790 = vst [vmem:[#allocation2 + $0x38] sm:$0xff] %v631
    %791 = vst [vmem:[#allocation2 + $0x40] sm:$0xff] %v442
    %792 = vst [vmem:[#allocation2 + $0x48] sm:$0xff] %v444
    %793 = vst [vmem:[#allocation2 + $0x50] sm:$0xff] %v635
    %794 = vst [vmem:[#allocation2 + $0x58] sm:$0xff] %v637
    %795 = vst [vmem:[#allocation2 + $0x60] sm:$0xff] %v446
    %796 = vst [vmem:[#allocation2 + $0x68] sm:$0xff] %v448
    %797 = vst [vmem:[#allocation2 + $0x70] sm:$0xff] %v639
    %798 = vst [vmem:[#allocation2 + $0x78] sm:$0xff] %v641
    %799 = vst [vmem:[#allocation2 + $0x80] sm:$0xff] %v452
    %800 = vst [vmem:[#allocation2 + $0x88] sm:$0xff] %v454
    %801 = vst [vmem:[#allocation2 + $0x90] sm:$0xff] %v645
    %802 = vst [vmem:[#allocation2 + $0x98] sm:$0xff] %v647
    %803 = vst [vmem:[#allocation2 + $0xa0] sm:$0xff] %v456
    %804 = vst [vmem:[#allocation2 + $0xa8] sm:$0xff] %v458
    %805 = vst [vmem:[#allocation2 + $0xb0] sm:$0xff] %v649
    %806 = vst [vmem:[#allocation2 + $0xb8] sm:$0xff] %v651
    %807 = vst [vmem:[#allocation2 + $0xc0] sm:$0xff] %v462
    %808 = vst [vmem:[#allocation2 + $0xc8] sm:$0xff] %v464
    %809 = vst [vmem:[#allocation2 + $0xd0] sm:$0xff] %v655
    %810 = vst [vmem:[#allocation2 + $0xd8] sm:$0xff] %v657
    %811 = vst [vmem:[#allocation2 + $0xe0] sm:$0xff] %v466
    %812 = vst [vmem:[#allocation2 + $0xe8] sm:$0xff] %v468
    %813 = vst [vmem:[#allocation2 + $0xf0] sm:$0xff] %v659
    %814 = vst [vmem:[#allocation2 + $0xf8] sm:$0xff] %v661
    %815 = vst [vmem:[#allocation2 + $0x100] sm:$0xff] %v472
    %816 = vst [vmem:[#allocation2 + $0x108] sm:$0xff] %v474
    %817 = vst [vmem:[#allocation2 + $0x110] sm:$0xff] %v665
    %818 = vst [vmem:[#allocation2 + $0x118] sm:$0xff] %v667
    %819 = vst [vmem:[#allocation2 + $0x120] sm:$0xff] %v476
    %820 = vst [vmem:[#allocation2 + $0x128] sm:$0xff] %v478
    %821 = vst [vmem:[#allocation2 + $0x130] sm:$0xff] %v669
    %822 = vst [vmem:[#allocation2 + $0x138] sm:$0xff] %v671
    %823 = vst [vmem:[#allocation2 + $0x140] sm:$0xff] %v482
    %824 = vst [vmem:[#allocation2 + $0x148] sm:$0xff] %v484
    %825 = vst [vmem:[#allocation2 + $0x150] sm:$0xff] %v675
    %826 = vst [vmem:[#allocation2 + $0x158] sm:$0xff] %v677
    %827 = vst [vmem:[#allocation2 + $0x160] sm:$0xff] %v486
    %828 = vst [vmem:[#allocation2 + $0x168] sm:$0xff] %v488
    %829 = vst [vmem:[#allocation2 + $0x170] sm:$0xff] %v679
    %830 = vst [vmem:[#allocation2 + $0x178] sm:$0xff] %v681
    %831 = vst [vmem:[#allocation2 + $0x180] sm:$0xff] %v492
    %832 = vst [vmem:[#allocation2 + $0x188] sm:$0xff] %v494
    %833 = vst [vmem:[#allocation2 + $0x190] sm:$0xff] %v685
    %834 = vst [vmem:[#allocation2 + $0x198] sm:$0xff] %v687
    %835 = vst [vmem:[#allocation2 + $0x1a0] sm:$0xff] %v496
    %836 = vst [vmem:[#allocation2 + $0x1a8] sm:$0xff] %v498
    %837 = vst [vmem:[#allocation2 + $0x1b0] sm:$0xff] %v689
    %838 = vst [vmem:[#allocation2 + $0x1b8] sm:$0xff] %v691
    %839 = vst [vmem:[#allocation2 + $0x1c0] sm:$0xff] %v502
    %840 = vst [vmem:[#allocation2 + $0x1c8] sm:$0xff] %v504
    %841 = vst [vmem:[#allocation2 + $0x1d0] sm:$0xff] %v695
    %842 = vst [vmem:[#allocation2 + $0x1d8] sm:$0xff] %v697
    %843 = vst [vmem:[#allocation2 + $0x1e0] sm:$0xff] %v506
    %844 = vst [vmem:[#allocation2 + $0x1e8] sm:$0xff] %v508
    %845 = vst [vmem:[#allocation2 + $0x1f0] sm:$0xff] %v699
    %846 = vst [vmem:[#allocation2 + $0x1f8] sm:$0xff] %v701
    %847 = vst [vmem:[#allocation2 + $0x200] sm:$0xff] %v512
    %848 = vst [vmem:[#allocation2 + $0x208] sm:$0xff] %v514
    %849 = vst [vmem:[#allocation2 + $0x210] sm:$0xff] %v705
    %850 = vst [vmem:[#allocation2 + $0x218] sm:$0xff] %v707
    %851 = vst [vmem:[#allocation2 + $0x220] sm:$0xff] %v516
    %852 = vst [vmem:[#allocation2 + $0x228] sm:$0xff] %v518
    %853 = vst [vmem:[#allocation2 + $0x230] sm:$0xff] %v709
    %854 = vst [vmem:[#allocation2 + $0x238] sm:$0xff] %v711
    %855 = vst [vmem:[#allocation2 + $0x240] sm:$0xff] %v522
    %856 = vst [vmem:[#allocation2 + $0x248] sm:$0xff] %v524
    %857 = vst [vmem:[#allocation2 + $0x250] sm:$0xff] %v715
    %858 = vst [vmem:[#allocation2 + $0x258] sm:$0xff] %v717
    %859 = vst [vmem:[#allocation2 + $0x260] sm:$0xff] %v526
    %860 = vst [vmem:[#allocation2 + $0x268] sm:$0xff] %v528
    %861 = vst [vmem:[#allocation2 + $0x270] sm:$0xff] %v719
    %862 = vst [vmem:[#allocation2 + $0x278] sm:$0xff] %v721
    %863 = vst [vmem:[#allocation2 + $0x280] sm:$0xff] %v532
    %864 = vst [vmem:[#allocation2 + $0x288] sm:$0xff] %v534
    %865 = vst [vmem:[#allocation2 + $0x290] sm:$0xff] %v725
    %866 = vst [vmem:[#allocation2 + $0x298] sm:$0xff] %v727
    %867 = vst [vmem:[#allocation2 + $0x2a0] sm:$0xff] %v536
    %868 = vst [vmem:[#allocation2 + $0x2a8] sm:$0xff] %v538
    %869 = vst [vmem:[#allocation2 + $0x2b0] sm:$0xff] %v729
    %870 = vst [vmem:[#allocation2 + $0x2b8] sm:$0xff] %v731
    %871 = vst [vmem:[#allocation2 + $0x2c0] sm:$0xff] %v542
    %872 = vst [vmem:[#allocation2 + $0x2c8] sm:$0xff] %v544
    %873 = vst [vmem:[#allocation2 + $0x2d0] sm:$0xff] %v735
    %874 = vst [vmem:[#allocation2 + $0x2d8] sm:$0xff] %v737
    %875 = vst [vmem:[#allocation2 + $0x2e0] sm:$0xff] %v546
    %876 = vst [vmem:[#allocation2 + $0x2e8] sm:$0xff] %v548
    %877 = vst [vmem:[#allocation2 + $0x2f0] sm:$0xff] %v739
    %878 = vst [vmem:[#allocation2 + $0x2f8] sm:$0xff] %v741
    %879 = vst [vmem:[#allocation2 + $0x300] sm:$0xff] %v552
    %880 = vst [vmem:[#allocation2 + $0x308] sm:$0xff] %v554
    %881 = vst [vmem:[#allocation2 + $0x310] sm:$0xff] %v745
    %882 = vst [vmem:[#allocation2 + $0x318] sm:$0xff] %v747
    %883 = vst [vmem:[#allocation2 + $0x320] sm:$0xff] %v556
    %884 = vst [vmem:[#allocation2 + $0x328] sm:$0xff] %v558
    %885 = vst [vmem:[#allocation2 + $0x330] sm:$0xff] %v749
    %886 = vst [vmem:[#allocation2 + $0x338] sm:$0xff] %v751
    %887 = vst [vmem:[#allocation2 + $0x340] sm:$0xff] %v562
    %888 = vst [vmem:[#allocation2 + $0x348] sm:$0xff] %v564
    %889 = vst [vmem:[#allocation2 + $0x350] sm:$0xff] %v755
    %890 = vst [vmem:[#allocation2 + $0x358] sm:$0xff] %v757
    %891 = vst [vmem:[#allocation2 + $0x360] sm:$0xff] %v566
    %892 = vst [vmem:[#allocation2 + $0x368] sm:$0xff] %v568
    %893 = vst [vmem:[#allocation2 + $0x370] sm:$0xff] %v759
    %894 = vst [vmem:[#allocation2 + $0x378] sm:$0xff] %v761
    %895 = vst [vmem:[#allocation2 + $0x380] sm:$0xff] %v572
    %896 = vst [vmem:[#allocation2 + $0x388] sm:$0xff] %v574
    %897 = vst [vmem:[#allocation2 + $0x390] sm:$0xff] %v765
    %898 = vst [vmem:[#allocation2 + $0x398] sm:$0xff] %v767
    %899 = vst [vmem:[#allocation2 + $0x3a0] sm:$0xff] %v576
    %900 = vst [vmem:[#allocation2 + $0x3a8] sm:$0xff] %v578
    %901 = vst [vmem:[#allocation2 + $0x3b0] sm:$0xff] %v769
    %902 = vst [vmem:[#allocation2 + $0x3b8] sm:$0xff] %v771
    %903 = vst [vmem:[#allocation2 + $0x3c0] sm:$0xff] %v582
    %904 = vst [vmem:[#allocation2 + $0x3c8] sm:$0xff] %v584
    %905 = vst [vmem:[#allocation2 + $0x3d0] sm:$0xff] %v775
    %906 = vst [vmem:[#allocation2 + $0x3d8] sm:$0xff] %v777
    %907 = vst [vmem:[#allocation2 + $0x3e0] sm:$0xff] %v586
    %908 = vst [vmem:[#allocation2 + $0x3e8] sm:$0xff] %v588
    %909 = vst [vmem:[#allocation2 + $0x3f0] sm:$0xff] %v779
    %910 = vst [vmem:[#allocation2 + $0x3f8] sm:$0xff] %v781
    // Predicated region
    $region10: #{gpt2_logits.31} parent=1 // pred_check
      _
    $region11: #{gpt2_logits.31} parent=1 // pred_check_branch
      %912 = sbr.rel (0) target = $region13
    $region12: #{gpt2_logits.31} parent=1 // pred_region
      %s914 = ssub.s32 16384, 12800
      %915 = vsyncadd [#allocation3], %s914
      %s916 = sshll.u32 [#allocation2], 4
      %s917 = int_to_ptr.vmem [resolvable:$true] %s916
      %922 = dma.vmem_to_hbm [thread:$0]  %s917, 12800, %s2, [#allocation3], 512, 512, 32
    $region13: #{gpt2_logits.31} parent=1 // pred_fallthru
      _
    // Predicated region
    $region14: #{gpt2_logits.31} parent=1 // pred_check
      _
    $region15: #{gpt2_logits.31} parent=1 // pred_check_branch
      %924 = sbr.rel (0) target = $region17
    $region16: #{gpt2_logits.31} parent=1 // pred_region
      %925 = dma.done [#allocation3], 16384
    $region17: #{gpt2_logits.31} parent=1 // pred_fallthru
      _
    %926 = vsyncpa [#allocation3], 1

</llo_original>
